<compile_context>
chip_gen: v5e
topology: v5e:2x2
jax: 0.10.0
libtpu: 0.0.40
codegen_flags: <defaults>
</compile_context>

<pallas_src>
import functools

import jax
import jax.numpy as jnp
from jax.experimental import pallas as pl
from jax.experimental.pallas import tpu as pltpu


def _round_up(x, m):
    return (x + m - 1) // m * m


# --------------------------- Pallas kernels ---------------------------

def _stats_kernel(top_ref, bot_ref, w_ref, sum_ref, sq_ref, *, n_rows, wp):
    """Pass 1 (BN path). Per per-phase row: assemble the (4*Cin, Wp) patch matrix from the two
    row-shifted views (column shifts sliced in VMEM), z = W_fold @ patch (bf16 MXU, f32 acc),
    and accumulate per-(folded-channel, lane) sum / sum-of-squares with pure VPU adds.
    Each grid step writes its own partial block -> no cross-step dependency (megacore-safe)."""
    w = w_ref[...]
    c4 = w.shape[0]
    acc_s = jnp.zeros((c4, wp), jnp.float32)
    acc_q = jnp.zeros((c4, wp), jnp.float32)
    for t in range(n_rows):                      # static, unrolled (n_rows <= 64)
        top = top_ref[0, :, t, :]                # (Cin, W+2)
        bot = bot_ref[0, :, t, :]
        patch = jnp.concatenate(
            [top[:, 0:wp], top[:, 1:wp + 1], bot[:, 0:wp], bot[:, 1:wp + 1]], axis=0)
        z = jnp.dot(w, patch, preferred_element_type=jnp.float32)   # (4*Cout, Wp)
        acc_s = acc_s + z
        acc_q = acc_q + z * z
    sum_ref[0, 0] = acc_s
    sq_ref[0, 0] = acc_q


def _apply_kernel(top_ref, bot_ref, w_ref, scale_ref, shift_ref, o_ref, *, n_rows, wp, act):
    """Pass 2: same folded matmul, then out = act(z * scale + shift), stored as bf16 rows of
    shape (4*Cout, Wp) into the phase-major output block."""
    w = w_ref[...]
    scale = scale_ref[...]                       # (4*Cout, 1) f32
    shift = shift_ref[...]
    for t in range(n_rows):
        top = top_ref[0, :, t, :]
        bot = bot_ref[0, :, t, :]
        patch = jnp.concatenate(
            [top[:, 0:wp], top[:, 1:wp + 1], bot[:, 0:wp], bot[:, 1:wp + 1]], axis=0)
        z = jnp.dot(w, patch, preferred_element_type=jnp.float32)
        y = z * scale + shift
        if act == "tanh":
            y = jnp.tanh(y)
        else:
            y = jnp.maximum(y, 0.0)
        o_ref[0, t] = y.astype(o_ref.dtype)


# --------------------------- Wrapper ---------------------------

def upconv_block_forward(x_nchw, w_t, b, gamma, beta, *, stride=2,
                         final_layer=False, eps=1e-5):
    """Forward pass of UpConvBlock.

    x_nchw : (N, Cin, H, W)
    w_t    : (Cin, Cout, 3, 3)   -- nn.ConvTranspose2d weight layout
    b      : (Cout,)
    gamma, beta : (Cout,)        -- BatchNorm affine (unused when final_layer)
    returns (N, Cout, 2H+1, 2W+1) float32.
    """
    N, Cin, H, W = x_nchw.shape
    Cin2, Cout, KH, KW = w_t.shape
    assert Cin == Cin2
    assert stride == 2 and KH == 3 and KW == 3, \
        "phase-folded lowering is specialized to the module defaults kernel=3, stride=2"

    Hp, Wp = H + 1, W + 1                      # per-phase spatial grid
    Ho, Wo = 2 * H + 1, 2 * W + 1              # true deconv output size
    W2 = W + 2
    K4, C4 = 4 * Cin, 4 * Cout

    # ---- row-block tiling (grid = (N, row_blocks)); rows per step multiple of 8 ----
    bytes_per_row = Cin * W2 * 2
    row_cap = int(max(8, min(64, (4 * 2 ** 20) // max(1, bytes_per_row))))
    nb = -(-Hp // row_cap)
    TH = _round_up(-(-Hp // nb), 8)
    Hp_pad = TH * nb

    # ---- glue: two row-shifted, zero-padded NCHW views (bf16). Extra padded rows are zero,
    # so they (and the cropped phase positions, which only see zero padding) contribute
    # exactly 0 to the bias-free conv output and hence to the BN accumulators. ----
    xb = x_nchw.astype(jnp.bfloat16)
    x_top = jnp.pad(xb, ((0, 0), (0, 0), (1, Hp_pad - 1 - H), (1, 1)))   # row a   of padded x
    x_bot = jnp.pad(xb, ((0, 0), (0, 0), (0, Hp_pad - H), (1, 1)))       # row a+1 of padded x

    # Folded weight: row = (ph*2+pw)*Cout + co, col = (rr*2+cc)*Cin + ci,
    # value = W[ci, co, ph + 2 - 2*rr, pw + 2 - 2*cc], zero when the tap index falls outside k=3.
    wpad = jnp.pad(w_t.astype(jnp.float32), ((0, 0), (0, 0), (0, 1), (0, 1)))   # (Cin,Cout,4,4)
    sel = jnp.arange(2)[:, None] + 2 - 2 * jnp.arange(2)[None, :]               # sel[phase, tap]
    wf = wpad[:, :, sel[:, None, :, None], sel[None, :, None, :]]               # (Cin,Cout,ph,pw,rr,cc)
    w_fold = wf.transpose(2, 3, 1, 4, 5, 0).reshape(C4, K4).astype(jnp.bfloat16)

    in_specs = [
        pl.BlockSpec((1, Cin, TH, W2), lambda n, i: (n, 0, i, 0)),
        pl.BlockSpec((1, Cin, TH, W2), lambda n, i: (n, 0, i, 0)),
        pl.BlockSpec((C4, K4), lambda n, i: (0, 0)),
    ]
    vec_spec = pl.BlockSpec((C4, 1), lambda n, i: (0, 0))
    part_spec = pl.BlockSpec((1, 1, C4, Wp), lambda n, i: (n, i, 0, 0))
    out_spec = pl.BlockSpec((1, TH, C4, Wp), lambda n, i: (n, i, 0, 0))

    # v7x has 64 MiB physical VMEM: keep the scoped limit v7x-safe, growing only with the
    # actual working set (raise toward 96 MiB on v5e/v6e's 128 MiB parts for huge shapes).
    in_block = Cin * TH * W2 * 2
    out_block = TH * C4 * Wp * 2
    est = 4 * in_block + 2 * out_block + C4 * K4 * 2 + 8 * C4 * Wp * 4
    vmem_limit = int(min(48 * 2 ** 20, max(32 * 2 ** 20, 6 * est)))
    cparams = pltpu.CompilerParams(
        dimension_semantics=("parallel", "parallel"),   # all steps independent (megacore-shardable)
        vmem_limit_bytes=vmem_limit)

    if final_layer:
        scale = jnp.ones((C4, 1), jnp.float32)
        shift = jnp.tile(b.astype(jnp.float32), 4).reshape(C4, 1)
        act = "tanh"
    else:
        # ---- pass 1: per-step partial sum / sumsq blocks (exactly additive partials) ----
        sums, sqs = pl.pallas_call(
            functools.partial(_stats_kernel, n_rows=TH, wp=Wp),
            grid=(N, nb),
            in_specs=in_specs,
            out_specs=(part_spec, part_spec),
            out_shape=(jax.ShapeDtypeStruct((N, nb, C4, Wp), jnp.float32),
                       jax.ShapeDtypeStruct((N, nb, C4, Wp), jnp.float32)),
            compiler_params=cparams,
        )(x_top, x_bot, w_fold)

        # ---- tiny f32 glue: cross-step + cross-lane reduction, bias / crop corrections ----
        b32 = b.astype(jnp.float32)
        s = jnp.sum(sums, axis=(0, 1, 3)).reshape(4, Cout)   # per (phase, channel) sum of conv
        q = jnp.sum(sqs, axis=(0, 1, 3)).reshape(4, Cout)    # per (phase, channel) sum of conv^2
        # valid element counts per phase after cropping to (Ho, Wo)
        n_p = jnp.array([N * Hp * Wp, N * Hp * W, N * H * Wp, N * H * W],
                        jnp.float32).reshape(4, 1)
        count = float(N * Ho * Wo)
        total_sum = jnp.sum(s + n_p * b32[None, :], axis=0)
        total_sq = jnp.sum(q + 2.0 * b32[None, :] * s + n_p * b32[None, :] ** 2, axis=0)
        mean = total_sum / count
        var = jnp.maximum(total_sq / count - mean * mean, 0.0)   # biased var (PyTorch BN norm)
        inv = jax.lax.rsqrt(var + eps)
        sc = gamma.astype(jnp.float32) * inv
        sh = (b32 - mean) * sc + beta.astype(jnp.float32)
        scale = jnp.tile(sc, 4).reshape(C4, 1)
        shift = jnp.tile(sh, 4).reshape(C4, 1)
        act = "relu"

    # ---- pass 2: matmul + affine + activation, bf16 writeback, phase-major rows ----
    yt = pl.pallas_call(
        functools.partial(_apply_kernel, n_rows=TH, wp=Wp, act=act),
        grid=(N, nb),
        in_specs=in_specs + [vec_spec, vec_spec],
        out_specs=out_spec,
        out_shape=jax.ShapeDtypeStruct((N, Hp_pad, C4, Wp), jnp.bfloat16),
        compiler_params=cparams,
    )(x_top, x_bot, w_fold, scale, shift)

    # ---- epilogue: single fused bf16 transpose+crop pass to NCHW (f32 cast fuses in).
    # A chained decoder block would consume the phase-planar form directly and skip this.
    y = yt[:, :Hp].reshape(N, Hp, 2, 2, Cout, Wp)
    y = y.transpose(0, 4, 1, 2, 5, 3).reshape(N, Cout, 2 * Hp, 2 * Wp)
    return y[:, :, :Ho, :Wo].astype(jnp.float32)


# --------------------------- Pure-JAX reference (f32) ---------------------------

def reference_forward(x_nchw, w_t, b, gamma, beta, *, stride=2,
                      final_layer=False, eps=1e-5):
    """Direct ConvTranspose2d scatter formulation + training-mode BN / Tanh, all f32."""
    N, Cin, H, W = x_nchw.shape
    _, Cout, K, _ = w_t.shape
    x = jnp.transpose(x_nchw, (0, 2, 3, 1)).astype(jnp.float32)
    Ho = (H - 1) * stride + K
    Wo = (W - 1) * stride + K
    y = jnp.zeros((N, Ho, Wo, Cout), jnp.float32)
    for kh in range(K):
        for kw in range(K):
            contrib = jnp.einsum('nhwc,cf->nhwf', x, w_t[:, :, kh, kw].astype(jnp.float32))
            y = y.at[:, kh:kh + (H - 1) * stride + 1:stride,
                        kw:kw + (W - 1) * stride + 1:stride, :].add(contrib)
    y = y + b.reshape(1, 1, 1, Cout)
    if final_layer:
        y = jnp.tanh(y)
    else:
        mean = jnp.mean(y, axis=(0, 1, 2), keepdims=True)
        var = jnp.mean((y - mean) ** 2, axis=(0, 1, 2), keepdims=True)
        y = (gamma.reshape(1, 1, 1, Cout) * (y - mean) * jax.lax.rsqrt(var + eps)
             + beta.reshape(1, 1, 1, Cout))
        y = jnp.maximum(y, 0.0)
    return jnp.transpose(y, (0, 3, 1, 2))


if __name__ == "__main__":
    key = jax.random.PRNGKey(0)
    k_x, k_w, k_b, k_g, k_be, k_w2, k_b2 = jax.random.split(key, 7)

    # small shapes consistent with the module: batch=2, chn_dim=4, spatial=16x16
    N, Cin, H, W = 2, 4, 16, 16
    hid = 8
    kernel_size = 3

    x = jax.random.normal(k_x, (N, Cin, H, W), jnp.float32)

    # nn.ConvTranspose2d(chn_dim, hid_dim, 3, 2): weight (Cin, Cout, 3, 3), bias (Cout,)
    w1 = 0.2 * jax.random.normal(k_w, (Cin, hid, kernel_size, kernel_size), jnp.float32)
    b1 = 0.1 * jax.random.normal(k_b, (hid,), jnp.float32)
    gamma = 1.0 + 0.05 * jax.random.normal(k_g, (hid,), jnp.float32)
    beta = 0.05 * jax.random.normal(k_be, (hid,), jnp.float32)

    fwd_mid = jax.jit(functools.partial(upconv_block_forward, final_layer=False))
    fwd_final = jax.jit(functools.partial(upconv_block_forward, final_layer=True))

    # bf16 matmul operands (f32 accumulation) -> compare to the f32 reference with a
    # correspondingly looser tolerance.
    RTOL = ATOL = 5e-2

    # --- intermediate block: upconv -> bn -> relu ---
    out1 = jax.block_until_ready(fwd_mid(x, w1, b1, gamma, beta))
    ref1 = reference_forward(x, w1, b1, gamma, beta, final_layer=False)
    assert out1.shape == (N, hid, (H - 1) * 2 + 3, (W - 1) * 2 + 3)
    assert jnp.allclose(out1, ref1, rtol=RTOL, atol=ATOL), "intermediate block mismatch"

    # --- final block: upconv -> tanh (e.g. hid_dim = 3 image channels) ---
    out_ch = 3
    w2 = 0.2 * jax.random.normal(k_w2, (Cin, out_ch, kernel_size, kernel_size), jnp.float32)
    b2 = 0.1 * jax.random.normal(k_b2, (out_ch,), jnp.float32)
    dummy = jnp.zeros((out_ch,), jnp.float32)  # unused BN params in final-layer path
    out2 = jax.block_until_ready(fwd_final(x, w2, b2, dummy, dummy))
    ref2 = reference_forward(x, w2, b2, dummy, dummy, final_layer=True)
    assert out2.shape == (N, out_ch, (H - 1) * 2 + 3, (W - 1) * 2 + 3)
    assert jnp.allclose(out2, ref2, rtol=RTOL, atol=ATOL), "final block mismatch"

    print("KERNEL_OK")
</pallas_src>

<mosaic_0001>
module attributes {stable_mosaic.version = 11 : i64} {
  func.func @_stats_kernel(%arg0: i32, %arg1: i32, %arg2: memref<1x4x24x18xbf16, #tpu.memory_space<vmem>>, %arg3: memref<1x4x24x18xbf16, #tpu.memory_space<vmem>>, %arg4: memref<32x16xbf16, #tpu.memory_space<vmem>>, %arg5: memref<1x1x32x17xf32, #tpu.memory_space<vmem>>, %arg6: memref<1x1x32x17xf32, #tpu.memory_space<vmem>>) attributes {dimension_semantics = [#tpu.dimension_semantics<parallel>, #tpu.dimension_semantics<parallel>], iteration_bounds = array<i64: 2, 1>, scalar_prefetch = 0 : i64, scratch_operands = 0 : i64, tpu.core_type = #tpu.core_type<tc>, window_params = [{transform_indices = @transform_0, window_bounds = array<i64: 1, 4, 24, 18>}, {transform_indices = @transform_1, window_bounds = array<i64: 1, 4, 24, 18>}, {pipeline_mode = #tpu.pipeline_mode<synchronous>, transform_indices = @transform_2, window_bounds = array<i64: 32, 16>}, {transform_indices = @transform_3, window_bounds = array<i64: 1, 1, 32, 17>}, {transform_indices = @transform_4, window_bounds = array<i64: 1, 1, 32, 17>}]} {
    %c0 = arith.constant 0 : index
    %c0_0 = arith.constant 0 : index
    %0 = vector.load %arg4[%c0, %c0_0] : memref<32x16xbf16, #tpu.memory_space<vmem>>, vector<32x16xbf16>
    %cst = arith.constant 0.000000e+00 : f32
    %1 = vector.broadcast %cst : f32 to vector<32x17xf32>
    %cst_1 = arith.constant 0.000000e+00 : f32
    %2 = vector.broadcast %cst_1 : f32 to vector<32x17xf32>
    %c0_2 = arith.constant 0 : index
    %c0_3 = arith.constant 0 : index
    %c0_4 = arith.constant 0 : index
    %c0_5 = arith.constant 0 : index
    %3 = vector.load %arg2[%c0_2, %c0_3, %c0_4, %c0_5] : memref<1x4x24x18xbf16, #tpu.memory_space<vmem>>, vector<1x4x1x18xbf16>
    %4 = vector.shape_cast %3 : vector<1x4x1x18xbf16> to vector<4x18xbf16>
    %c0_6 = arith.constant 0 : index
    %c0_7 = arith.constant 0 : index
    %c0_8 = arith.constant 0 : index
    %c0_9 = arith.constant 0 : index
    %5 = vector.load %arg3[%c0_6, %c0_7, %c0_8, %c0_9] : memref<1x4x24x18xbf16, #tpu.memory_space<vmem>>, vector<1x4x1x18xbf16>
    %6 = vector.shape_cast %5 : vector<1x4x1x18xbf16> to vector<4x18xbf16>
    %7 = vector.extract_strided_slice %4 {offsets = [0, 0], sizes = [4, 17], strides = [1, 1]} : vector<4x18xbf16> to vector<4x17xbf16>
    %8 = vector.extract_strided_slice %4 {offsets = [0, 1], sizes = [4, 17], strides = [1, 1]} : vector<4x18xbf16> to vector<4x17xbf16>
    %9 = vector.extract_strided_slice %6 {offsets = [0, 0], sizes = [4, 17], strides = [1, 1]} : vector<4x18xbf16> to vector<4x17xbf16>
    %10 = vector.extract_strided_slice %6 {offsets = [0, 1], sizes = [4, 17], strides = [1, 1]} : vector<4x18xbf16> to vector<4x17xbf16>
    %11 = tpu.concatenate %7, %8, %9, %10 in 0 : vector<4x17xbf16>, vector<4x17xbf16>, vector<4x17xbf16>, vector<4x17xbf16> -> vector<16x17xbf16>
    %cst_10 = arith.constant dense<0.000000e+00> : vector<32x17xf32>
    %12 = tpu.matmul %0, %11, %cst_10 {dimension_numbers = #tpu.dot_dimension_numbers<[1], [0], [0], [1], [0, 0, 1, 1], [], []>} : vector<32x16xbf16>, vector<16x17xbf16>, vector<32x17xf32> -> vector<32x17xf32>
    %13 = arith.addf %1, %12 : vector<32x17xf32>
    %14 = arith.mulf %12, %12 : vector<32x17xf32>
    %15 = arith.addf %2, %14 : vector<32x17xf32>
    %c0_11 = arith.constant 0 : index
    %c0_12 = arith.constant 0 : index
    %c1 = arith.constant 1 : index
    %c0_13 = arith.constant 0 : index
    %16 = vector.load %arg2[%c0_11, %c0_12, %c1, %c0_13] : memref<1x4x24x18xbf16, #tpu.memory_space<vmem>>, vector<1x4x1x18xbf16>
    %17 = vector.shape_cast %16 : vector<1x4x1x18xbf16> to vector<4x18xbf16>
    %c0_14 = arith.constant 0 : index
    %c0_15 = arith.constant 0 : index
    %c1_16 = arith.constant 1 : index
    %c0_17 = arith.constant 0 : index
    %18 = vector.load %arg3[%c0_14, %c0_15, %c1_16, %c0_17] : memref<1x4x24x18xbf16, #tpu.memory_space<vmem>>, vector<1x4x1x18xbf16>
    %19 = vector.shape_cast %18 : vector<1x4x1x18xbf16> to vector<4x18xbf16>
    %20 = vector.extract_strided_slice %17 {offsets = [0, 0], sizes = [4, 17], strides = [1, 1]} : vector<4x18xbf16> to vector<4x17xbf16>
    %21 = vector.extract_strided_slice %17 {offsets = [0, 1], sizes = [4, 17], strides = [1, 1]} : vector<4x18xbf16> to vector<4x17xbf16>
    %22 = vector.extract_strided_slice %19 {offsets = [0, 0], sizes = [4, 17], strides = [1, 1]} : vector<4x18xbf16> to vector<4x17xbf16>
    %23 = vector.extract_strided_slice %19 {offsets = [0, 1], sizes = [4, 17], strides = [1, 1]} : vector<4x18xbf16> to vector<4x17xbf16>
    %24 = tpu.concatenate %20, %21, %22, %23 in 0 : vector<4x17xbf16>, vector<4x17xbf16>, vector<4x17xbf16>, vector<4x17xbf16> -> vector<16x17xbf16>
    %cst_18 = arith.constant dense<0.000000e+00> : vector<32x17xf32>
    %25 = tpu.matmul %0, %24, %cst_18 {dimension_numbers = #tpu.dot_dimension_numbers<[1], [0], [0], [1], [0, 0, 1, 1], [], []>} : vector<32x16xbf16>, vector<16x17xbf16>, vector<32x17xf32> -> vector<32x17xf32>
    %26 = arith.addf %13, %25 : vector<32x17xf32>
    %27 = arith.mulf %25, %25 : vector<32x17xf32>
    %28 = arith.addf %15, %27 : vector<32x17xf32>
    %c0_19 = arith.constant 0 : index
    %c0_20 = arith.constant 0 : index
    %c2 = arith.constant 2 : index
    %c0_21 = arith.constant 0 : index
    %29 = vector.load %arg2[%c0_19, %c0_20, %c2, %c0_21] : memref<1x4x24x18xbf16, #tpu.memory_space<vmem>>, vector<1x4x1x18xbf16>
    %30 = vector.shape_cast %29 : vector<1x4x1x18xbf16> to vector<4x18xbf16>
    %c0_22 = arith.constant 0 : index
    %c0_23 = arith.constant 0 : index
    %c2_24 = arith.constant 2 : index
    %c0_25 = arith.constant 0 : index
    %31 = vector.load %arg3[%c0_22, %c0_23, %c2_24, %c0_25] : memref<1x4x24x18xbf16, #tpu.memory_space<vmem>>, vector<1x4x1x18xbf16>
    %32 = vector.shape_cast %31 : vector<1x4x1x18xbf16> to vector<4x18xbf16>
    %33 = vector.extract_strided_slice %30 {offsets = [0, 0], sizes = [4, 17], strides = [1, 1]} : vector<4x18xbf16> to vector<4x17xbf16>
    %34 = vector.extract_strided_slice %30 {offsets = [0, 1], sizes = [4, 17], strides = [1, 1]} : vector<4x18xbf16> to vector<4x17xbf16>
    %35 = vector.extract_strided_slice %32 {offsets = [0, 0], sizes = [4, 17], strides = [1, 1]} : vector<4x18xbf16> to vector<4x17xbf16>
    %36 = vector.extract_strided_slice %32 {offsets = [0, 1], sizes = [4, 17], strides = [1, 1]} : vector<4x18xbf16> to vector<4x17xbf16>
    %37 = tpu.concatenate %33, %34, %35, %36 in 0 : vector<4x17xbf16>, vector<4x17xbf16>, vector<4x17xbf16>, vector<4x17xbf16> -> vector<16x17xbf16>
    %cst_26 = arith.constant dense<0.000000e+00> : vector<32x17xf32>
    %38 = tpu.matmul %0, %37, %cst_26 {dimension_numbers = #tpu.dot_dimension_numbers<[1], [0], [0], [1], [0, 0, 1, 1], [], []>} : vector<32x16xbf16>, vector<16x17xbf16>, vector<32x17xf32> -> vector<32x17xf32>
    %39 = arith.addf %26, %38 : vector<32x17xf32>
    %40 = arith.mulf %38, %38 : vector<32x17xf32>
    %41 = arith.addf %28, %40 : vector<32x17xf32>
    %c0_27 = arith.constant 0 : index
    %c0_28 = arith.constant 0 : index
    %c3 = arith.constant 3 : index
    %c0_29 = arith.constant 0 : index
    %42 = vector.load %arg2[%c0_27, %c0_28, %c3, %c0_29] : memref<1x4x24x18xbf16, #tpu.memory_space<vmem>>, vector<1x4x1x18xbf16>
    %43 = vector.shape_cast %42 : vector<1x4x1x18xbf16> to vector<4x18xbf16>
    %c0_30 = arith.constant 0 : index
    %c0_31 = arith.constant 0 : index
    %c3_32 = arith.constant 3 : index
    %c0_33 = arith.constant 0 : index
    %44 = vector.load %arg3[%c0_30, %c0_31, %c3_32, %c0_33] : memref<1x4x24x18xbf16, #tpu.memory_space<vmem>>, vector<1x4x1x18xbf16>
    %45 = vector.shape_cast %44 : vector<1x4x1x18xbf16> to vector<4x18xbf16>
    %46 = vector.extract_strided_slice %43 {offsets = [0, 0], sizes = [4, 17], strides = [1, 1]} : vector<4x18xbf16> to vector<4x17xbf16>
    %47 = vector.extract_strided_slice %43 {offsets = [0, 1], sizes = [4, 17], strides = [1, 1]} : vector<4x18xbf16> to vector<4x17xbf16>
    %48 = vector.extract_strided_slice %45 {offsets = [0, 0], sizes = [4, 17], strides = [1, 1]} : vector<4x18xbf16> to vector<4x17xbf16>
    %49 = vector.extract_strided_slice %45 {offsets = [0, 1], sizes = [4, 17], strides = [1, 1]} : vector<4x18xbf16> to vector<4x17xbf16>
    %50 = tpu.concatenate %46, %47, %48, %49 in 0 : vector<4x17xbf16>, vector<4x17xbf16>, vector<4x17xbf16>, vector<4x17xbf16> -> vector<16x17xbf16>
    %cst_34 = arith.constant dense<0.000000e+00> : vector<32x17xf32>
    %51 = tpu.matmul %0, %50, %cst_34 {dimension_numbers = #tpu.dot_dimension_numbers<[1], [0], [0], [1], [0, 0, 1, 1], [], []>} : vector<32x16xbf16>, vector<16x17xbf16>, vector<32x17xf32> -> vector<32x17xf32>
    %52 = arith.addf %39, %51 : vector<32x17xf32>
    %53 = arith.mulf %51, %51 : vector<32x17xf32>
    %54 = arith.addf %41, %53 : vector<32x17xf32>
    %c0_35 = arith.constant 0 : index
    %c0_36 = arith.constant 0 : index
    %c4 = arith.constant 4 : index
    %c0_37 = arith.constant 0 : index
    %55 = vector.load %arg2[%c0_35, %c0_36, %c4, %c0_37] : memref<1x4x24x18xbf16, #tpu.memory_space<vmem>>, vector<1x4x1x18xbf16>
    %56 = vector.shape_cast %55 : vector<1x4x1x18xbf16> to vector<4x18xbf16>
    %c0_38 = arith.constant 0 : index
    %c0_39 = arith.constant 0 : index
    %c4_40 = arith.constant 4 : index
    %c0_41 = arith.constant 0 : index
    %57 = vector.load %arg3[%c0_38, %c0_39, %c4_40, %c0_41] : memref<1x4x24x18xbf16, #tpu.memory_space<vmem>>, vector<1x4x1x18xbf16>
    %58 = vector.shape_cast %57 : vector<1x4x1x18xbf16> to vector<4x18xbf16>
    %59 = vector.extract_strided_slice %56 {offsets = [0, 0], sizes = [4, 17], strides = [1, 1]} : vector<4x18xbf16> to vector<4x17xbf16>
    %60 = vector.extract_strided_slice %56 {offsets = [0, 1], sizes = [4, 17], strides = [1, 1]} : vector<4x18xbf16> to vector<4x17xbf16>
    %61 = vector.extract_strided_slice %58 {offsets = [0, 0], sizes = [4, 17], strides = [1, 1]} : vector<4x18xbf16> to vector<4x17xbf16>
    %62 = vector.extract_strided_slice %58 {offsets = [0, 1], sizes = [4, 17], strides = [1, 1]} : vector<4x18xbf16> to vector<4x17xbf16>
    %63 = tpu.concatenate %59, %60, %61, %62 in 0 : vector<4x17xbf16>, vector<4x17xbf16>, vector<4x17xbf16>, vector<4x17xbf16> -> vector<16x17xbf16>
    %cst_42 = arith.constant dense<0.000000e+00> : vector<32x17xf32>
    %64 = tpu.matmul %0, %63, %cst_42 {dimension_numbers = #tpu.dot_dimension_numbers<[1], [0], [0], [1], [0, 0, 1, 1], [], []>} : vector<32x16xbf16>, vector<16x17xbf16>, vector<32x17xf32> -> vector<32x17xf32>
    %65 = arith.addf %52, %64 : vector<32x17xf32>
    %66 = arith.mulf %64, %64 : vector<32x17xf32>
    %67 = arith.addf %54, %66 : vector<32x17xf32>
    %c0_43 = arith.constant 0 : index
    %c0_44 = arith.constant 0 : index
    %c5 = arith.constant 5 : index
    %c0_45 = arith.constant 0 : index
    %68 = vector.load %arg2[%c0_43, %c0_44, %c5, %c0_45] : memref<1x4x24x18xbf16, #tpu.memory_space<vmem>>, vector<1x4x1x18xbf16>
    %69 = vector.shape_cast %68 : vector<1x4x1x18xbf16> to vector<4x18xbf16>
    %c0_46 = arith.constant 0 : index
    %c0_47 = arith.constant 0 : index
    %c5_48 = arith.constant 5 : index
    %c0_49 = arith.constant 0 : index
    %70 = vector.load %arg3[%c0_46, %c0_47, %c5_48, %c0_49] : memref<1x4x24x18xbf16, #tpu.memory_space<vmem>>, vector<1x4x1x18xbf16>
    %71 = vector.shape_cast %70 : vector<1x4x1x18xbf16> to vector<4x18xbf16>
    %72 = vector.extract_strided_slice %69 {offsets = [0, 0], sizes = [4, 17], strides = [1, 1]} : vector<4x18xbf16> to vector<4x17xbf16>
    %73 = vector.extract_strided_slice %69 {offsets = [0, 1], sizes = [4, 17], strides = [1, 1]} : vector<4x18xbf16> to vector<4x17xbf16>
    %74 = vector.extract_strided_slice %71 {offsets = [0, 0], sizes = [4, 17], strides = [1, 1]} : vector<4x18xbf16> to vector<4x17xbf16>
    %75 = vector.extract_strided_slice %71 {offsets = [0, 1], sizes = [4, 17], strides = [1, 1]} : vector<4x18xbf16> to vector<4x17xbf16>
    %76 = tpu.concatenate %72, %73, %74, %75 in 0 : vector<4x17xbf16>, vector<4x17xbf16>, vector<4x17xbf16>, vector<4x17xbf16> -> vector<16x17xbf16>
    %cst_50 = arith.constant dense<0.000000e+00> : vector<32x17xf32>
    %77 = tpu.matmul %0, %76, %cst_50 {dimension_numbers = #tpu.dot_dimension_numbers<[1], [0], [0], [1], [0, 0, 1, 1], [], []>} : vector<32x16xbf16>, vector<16x17xbf16>, vector<32x17xf32> -> vector<32x17xf32>
    %78 = arith.addf %65, %77 : vector<32x17xf32>
    %79 = arith.mulf %77, %77 : vector<32x17xf32>
    %80 = arith.addf %67, %79 : vector<32x17xf32>
    %c0_51 = arith.constant 0 : index
    %c0_52 = arith.constant 0 : index
    %c6 = arith.constant 6 : index
    %c0_53 = arith.constant 0 : index
    %81 = vector.load %arg2[%c0_51, %c0_52, %c6, %c0_53] : memref<1x4x24x18xbf16, #tpu.memory_space<vmem>>, vector<1x4x1x18xbf16>
    %82 = vector.shape_cast %81 : vector<1x4x1x18xbf16> to vector<4x18xbf16>
    %c0_54 = arith.constant 0 : index
    %c0_55 = arith.constant 0 : index
    %c6_56 = arith.constant 6 : index
    %c0_57 = arith.constant 0 : index
    %83 = vector.load %arg3[%c0_54, %c0_55, %c6_56, %c0_57] : memref<1x4x24x18xbf16, #tpu.memory_space<vmem>>, vector<1x4x1x18xbf16>
    %84 = vector.shape_cast %83 : vector<1x4x1x18xbf16> to vector<4x18xbf16>
    %85 = vector.extract_strided_slice %82 {offsets = [0, 0], sizes = [4, 17], strides = [1, 1]} : vector<4x18xbf16> to vector<4x17xbf16>
    %86 = vector.extract_strided_slice %82 {offsets = [0, 1], sizes = [4, 17], strides = [1, 1]} : vector<4x18xbf16> to vector<4x17xbf16>
    %87 = vector.extract_strided_slice %84 {offsets = [0, 0], sizes = [4, 17], strides = [1, 1]} : vector<4x18xbf16> to vector<4x17xbf16>
    %88 = vector.extract_strided_slice %84 {offsets = [0, 1], sizes = [4, 17], strides = [1, 1]} : vector<4x18xbf16> to vector<4x17xbf16>
    %89 = tpu.concatenate %85, %86, %87, %88 in 0 : vector<4x17xbf16>, vector<4x17xbf16>, vector<4x17xbf16>, vector<4x17xbf16> -> vector<16x17xbf16>
    %cst_58 = arith.constant dense<0.000000e+00> : vector<32x17xf32>
    %90 = tpu.matmul %0, %89, %cst_58 {dimension_numbers = #tpu.dot_dimension_numbers<[1], [0], [0], [1], [0, 0, 1, 1], [], []>} : vector<32x16xbf16>, vector<16x17xbf16>, vector<32x17xf32> -> vector<32x17xf32>
    %91 = arith.addf %78, %90 : vector<32x17xf32>
    %92 = arith.mulf %90, %90 : vector<32x17xf32>
    %93 = arith.addf %80, %92 : vector<32x17xf32>
    %c0_59 = arith.constant 0 : index
    %c0_60 = arith.constant 0 : index
    %c7 = arith.constant 7 : index
    %c0_61 = arith.constant 0 : index
    %94 = vector.load %arg2[%c0_59, %c0_60, %c7, %c0_61] : memref<1x4x24x18xbf16, #tpu.memory_space<vmem>>, vector<1x4x1x18xbf16>
    %95 = vector.shape_cast %94 : vector<1x4x1x18xbf16> to vector<4x18xbf16>
    %c0_62 = arith.constant 0 : index
    %c0_63 = arith.constant 0 : index
    %c7_64 = arith.constant 7 : index
    %c0_65 = arith.constant 0 : index
    %96 = vector.load %arg3[%c0_62, %c0_63, %c7_64, %c0_65] : memref<1x4x24x18xbf16, #tpu.memory_space<vmem>>, vector<1x4x1x18xbf16>
    %97 = vector.shape_cast %96 : vector<1x4x1x18xbf16> to vector<4x18xbf16>
    %98 = vector.extract_strided_slice %95 {offsets = [0, 0], sizes = [4, 17], strides = [1, 1]} : vector<4x18xbf16> to vector<4x17xbf16>
    %99 = vector.extract_strided_slice %95 {offsets = [0, 1], sizes = [4, 17], strides = [1, 1]} : vector<4x18xbf16> to vector<4x17xbf16>
    %100 = vector.extract_strided_slice %97 {offsets = [0, 0], sizes = [4, 17], strides = [1, 1]} : vector<4x18xbf16> to vector<4x17xbf16>
    %101 = vector.extract_strided_slice %97 {offsets = [0, 1], sizes = [4, 17], strides = [1, 1]} : vector<4x18xbf16> to vector<4x17xbf16>
    %102 = tpu.concatenate %98, %99, %100, %101 in 0 : vector<4x17xbf16>, vector<4x17xbf16>, vector<4x17xbf16>, vector<4x17xbf16> -> vector<16x17xbf16>
    %cst_66 = arith.constant dense<0.000000e+00> : vector<32x17xf32>
    %103 = tpu.matmul %0, %102, %cst_66 {dimension_numbers = #tpu.dot_dimension_numbers<[1], [0], [0], [1], [0, 0, 1, 1], [], []>} : vector<32x16xbf16>, vector<16x17xbf16>, vector<32x17xf32> -> vector<32x17xf32>
    %104 = arith.addf %91, %103 : vector<32x17xf32>
    %105 = arith.mulf %103, %103 : vector<32x17xf32>
    %106 = arith.addf %93, %105 : vector<32x17xf32>
    %c0_67 = arith.constant 0 : index
    %c0_68 = arith.constant 0 : index
    %c8 = arith.constant 8 : index
    %c0_69 = arith.constant 0 : index
    %107 = vector.load %arg2[%c0_67, %c0_68, %c8, %c0_69] : memref<1x4x24x18xbf16, #tpu.memory_space<vmem>>, vector<1x4x1x18xbf16>
    %108 = vector.shape_cast %107 : vector<1x4x1x18xbf16> to vector<4x18xbf16>
    %c0_70 = arith.constant 0 : index
    %c0_71 = arith.constant 0 : index
    %c8_72 = arith.constant 8 : index
    %c0_73 = arith.constant 0 : index
    %109 = vector.load %arg3[%c0_70, %c0_71, %c8_72, %c0_73] : memref<1x4x24x18xbf16, #tpu.memory_space<vmem>>, vector<1x4x1x18xbf16>
    %110 = vector.shape_cast %109 : vector<1x4x1x18xbf16> to vector<4x18xbf16>
    %111 = vector.extract_strided_slice %108 {offsets = [0, 0], sizes = [4, 17], strides = [1, 1]} : vector<4x18xbf16> to vector<4x17xbf16>
    %112 = vector.extract_strided_slice %108 {offsets = [0, 1], sizes = [4, 17], strides = [1, 1]} : vector<4x18xbf16> to vector<4x17xbf16>
    %113 = vector.extract_strided_slice %110 {offsets = [0, 0], sizes = [4, 17], strides = [1, 1]} : vector<4x18xbf16> to vector<4x17xbf16>
    %114 = vector.extract_strided_slice %110 {offsets = [0, 1], sizes = [4, 17], strides = [1, 1]} : vector<4x18xbf16> to vector<4x17xbf16>
    %115 = tpu.concatenate %111, %112, %113, %114 in 0 : vector<4x17xbf16>, vector<4x17xbf16>, vector<4x17xbf16>, vector<4x17xbf16> -> vector<16x17xbf16>
    %cst_74 = arith.constant dense<0.000000e+00> : vector<32x17xf32>
    %116 = tpu.matmul %0, %115, %cst_74 {dimension_numbers = #tpu.dot_dimension_numbers<[1], [0], [0], [1], [0, 0, 1, 1], [], []>} : vector<32x16xbf16>, vector<16x17xbf16>, vector<32x17xf32> -> vector<32x17xf32>
    %117 = arith.addf %104, %116 : vector<32x17xf32>
    %118 = arith.mulf %116, %116 : vector<32x17xf32>
    %119 = arith.addf %106, %118 : vector<32x17xf32>
    %c0_75 = arith.constant 0 : index
    %c0_76 = arith.constant 0 : index
    %c9 = arith.constant 9 : index
    %c0_77 = arith.constant 0 : index
    %120 = vector.load %arg2[%c0_75, %c0_76, %c9, %c0_77] : memref<1x4x24x18xbf16, #tpu.memory_space<vmem>>, vector<1x4x1x18xbf16>
    %121 = vector.shape_cast %120 : vector<1x4x1x18xbf16> to vector<4x18xbf16>
    %c0_78 = arith.constant 0 : index
    %c0_79 = arith.constant 0 : index
    %c9_80 = arith.constant 9 : index
    %c0_81 = arith.constant 0 : index
    %122 = vector.load %arg3[%c0_78, %c0_79, %c9_80, %c0_81] : memref<1x4x24x18xbf16, #tpu.memory_space<vmem>>, vector<1x4x1x18xbf16>
    %123 = vector.shape_cast %122 : vector<1x4x1x18xbf16> to vector<4x18xbf16>
    %124 = vector.extract_strided_slice %121 {offsets = [0, 0], sizes = [4, 17], strides = [1, 1]} : vector<4x18xbf16> to vector<4x17xbf16>
    %125 = vector.extract_strided_slice %121 {offsets = [0, 1], sizes = [4, 17], strides = [1, 1]} : vector<4x18xbf16> to vector<4x17xbf16>
    %126 = vector.extract_strided_slice %123 {offsets = [0, 0], sizes = [4, 17], strides = [1, 1]} : vector<4x18xbf16> to vector<4x17xbf16>
    %127 = vector.extract_strided_slice %123 {offsets = [0, 1], sizes = [4, 17], strides = [1, 1]} : vector<4x18xbf16> to vector<4x17xbf16>
    %128 = tpu.concatenate %124, %125, %126, %127 in 0 : vector<4x17xbf16>, vector<4x17xbf16>, vector<4x17xbf16>, vector<4x17xbf16> -> vector<16x17xbf16>
    %cst_82 = arith.constant dense<0.000000e+00> : vector<32x17xf32>
    %129 = tpu.matmul %0, %128, %cst_82 {dimension_numbers = #tpu.dot_dimension_numbers<[1], [0], [0], [1], [0, 0, 1, 1], [], []>} : vector<32x16xbf16>, vector<16x17xbf16>, vector<32x17xf32> -> vector<32x17xf32>
    %130 = arith.addf %117, %129 : vector<32x17xf32>
    %131 = arith.mulf %129, %129 : vector<32x17xf32>
    %132 = arith.addf %119, %131 : vector<32x17xf32>
    %c0_83 = arith.constant 0 : index
    %c0_84 = arith.constant 0 : index
    %c10 = arith.constant 10 : index
    %c0_85 = arith.constant 0 : index
    %133 = vector.load %arg2[%c0_83, %c0_84, %c10, %c0_85] : memref<1x4x24x18xbf16, #tpu.memory_space<vmem>>, vector<1x4x1x18xbf16>
    %134 = vector.shape_cast %133 : vector<1x4x1x18xbf16> to vector<4x18xbf16>
    %c0_86 = arith.constant 0 : index
    %c0_87 = arith.constant 0 : index
    %c10_88 = arith.constant 10 : index
    %c0_89 = arith.constant 0 : index
    %135 = vector.load %arg3[%c0_86, %c0_87, %c10_88, %c0_89] : memref<1x4x24x18xbf16, #tpu.memory_space<vmem>>, vector<1x4x1x18xbf16>
    %136 = vector.shape_cast %135 : vector<1x4x1x18xbf16> to vector<4x18xbf16>
    %137 = vector.extract_strided_slice %134 {offsets = [0, 0], sizes = [4, 17], strides = [1, 1]} : vector<4x18xbf16> to vector<4x17xbf16>
    %138 = vector.extract_strided_slice %134 {offsets = [0, 1], sizes = [4, 17], strides = [1, 1]} : vector<4x18xbf16> to vector<4x17xbf16>
    %139 = vector.extract_strided_slice %136 {offsets = [0, 0], sizes = [4, 17], strides = [1, 1]} : vector<4x18xbf16> to vector<4x17xbf16>
    %140 = vector.extract_strided_slice %136 {offsets = [0, 1], sizes = [4, 17], strides = [1, 1]} : vector<4x18xbf16> to vector<4x17xbf16>
    %141 = tpu.concatenate %137, %138, %139, %140 in 0 : vector<4x17xbf16>, vector<4x17xbf16>, vector<4x17xbf16>, vector<4x17xbf16> -> vector<16x17xbf16>
    %cst_90 = arith.constant dense<0.000000e+00> : vector<32x17xf32>
    %142 = tpu.matmul %0, %141, %cst_90 {dimension_numbers = #tpu.dot_dimension_numbers<[1], [0], [0], [1], [0, 0, 1, 1], [], []>} : vector<32x16xbf16>, vector<16x17xbf16>, vector<32x17xf32> -> vector<32x17xf32>
    %143 = arith.addf %130, %142 : vector<32x17xf32>
    %144 = arith.mulf %142, %142 : vector<32x17xf32>
    %145 = arith.addf %132, %144 : vector<32x17xf32>
    %c0_91 = arith.constant 0 : index
    %c0_92 = arith.constant 0 : index
    %c11 = arith.constant 11 : index
    %c0_93 = arith.constant 0 : index
    %146 = vector.load %arg2[%c0_91, %c0_92, %c11, %c0_93] : memref<1x4x24x18xbf16, #tpu.memory_space<vmem>>, vector<1x4x1x18xbf16>
    %147 = vector.shape_cast %146 : vector<1x4x1x18xbf16> to vector<4x18xbf16>
    %c0_94 = arith.constant 0 : index
    %c0_95 = arith.constant 0 : index
    %c11_96 = arith.constant 11 : index
    %c0_97 = arith.constant 0 : index
    %148 = vector.load %arg3[%c0_94, %c0_95, %c11_96, %c0_97] : memref<1x4x24x18xbf16, #tpu.memory_space<vmem>>, vector<1x4x1x18xbf16>
    %149 = vector.shape_cast %148 : vector<1x4x1x18xbf16> to vector<4x18xbf16>
    %150 = vector.extract_strided_slice %147 {offsets = [0, 0], sizes = [4, 17], strides = [1, 1]} : vector<4x18xbf16> to vector<4x17xbf16>
    %151 = vector.extract_strided_slice %147 {offsets = [0, 1], sizes = [4, 17], strides = [1, 1]} : vector<4x18xbf16> to vector<4x17xbf16>
    %152 = vector.extract_strided_slice %149 {offsets = [0, 0], sizes = [4, 17], strides = [1, 1]} : vector<4x18xbf16> to vector<4x17xbf16>
    %153 = vector.extract_strided_slice %149 {offsets = [0, 1], sizes = [4, 17], strides = [1, 1]} : vector<4x18xbf16> to vector<4x17xbf16>
    %154 = tpu.concatenate %150, %151, %152, %153 in 0 : vector<4x17xbf16>, vector<4x17xbf16>, vector<4x17xbf16>, vector<4x17xbf16> -> vector<16x17xbf16>
    %cst_98 = arith.constant dense<0.000000e+00> : vector<32x17xf32>
    %155 = tpu.matmul %0, %154, %cst_98 {dimension_numbers = #tpu.dot_dimension_numbers<[1], [0], [0], [1], [0, 0, 1, 1], [], []>} : vector<32x16xbf16>, vector<16x17xbf16>, vector<32x17xf32> -> vector<32x17xf32>
    %156 = arith.addf %143, %155 : vector<32x17xf32>
    %157 = arith.mulf %155, %155 : vector<32x17xf32>
    %158 = arith.addf %145, %157 : vector<32x17xf32>
    %c0_99 = arith.constant 0 : index
    %c0_100 = arith.constant 0 : index
    %c12 = arith.constant 12 : index
    %c0_101 = arith.constant 0 : index
    %159 = vector.load %arg2[%c0_99, %c0_100, %c12, %c0_101] : memref<1x4x24x18xbf16, #tpu.memory_space<vmem>>, vector<1x4x1x18xbf16>
    %160 = vector.shape_cast %159 : vector<1x4x1x18xbf16> to vector<4x18xbf16>
    %c0_102 = arith.constant 0 : index
    %c0_103 = arith.constant 0 : index
    %c12_104 = arith.constant 12 : index
    %c0_105 = arith.constant 0 : index
    %161 = vector.load %arg3[%c0_102, %c0_103, %c12_104, %c0_105] : memref<1x4x24x18xbf16, #tpu.memory_space<vmem>>, vector<1x4x1x18xbf16>
    %162 = vector.shape_cast %161 : vector<1x4x1x18xbf16> to vector<4x18xbf16>
    %163 = vector.extract_strided_slice %160 {offsets = [0, 0], sizes = [4, 17], strides = [1, 1]} : vector<4x18xbf16> to vector<4x17xbf16>
    %164 = vector.extract_strided_slice %160 {offsets = [0, 1], sizes = [4, 17], strides = [1, 1]} : vector<4x18xbf16> to vector<4x17xbf16>
    %165 = vector.extract_strided_slice %162 {offsets = [0, 0], sizes = [4, 17], strides = [1, 1]} : vector<4x18xbf16> to vector<4x17xbf16>
    %166 = vector.extract_strided_slice %162 {offsets = [0, 1], sizes = [4, 17], strides = [1, 1]} : vector<4x18xbf16> to vector<4x17xbf16>
    %167 = tpu.concatenate %163, %164, %165, %166 in 0 : vector<4x17xbf16>, vector<4x17xbf16>, vector<4x17xbf16>, vector<4x17xbf16> -> vector<16x17xbf16>
    %cst_106 = arith.constant dense<0.000000e+00> : vector<32x17xf32>
    %168 = tpu.matmul %0, %167, %cst_106 {dimension_numbers = #tpu.dot_dimension_numbers<[1], [0], [0], [1], [0, 0, 1, 1], [], []>} : vector<32x16xbf16>, vector<16x17xbf16>, vector<32x17xf32> -> vector<32x17xf32>
    %169 = arith.addf %156, %168 : vector<32x17xf32>
    %170 = arith.mulf %168, %168 : vector<32x17xf32>
    %171 = arith.addf %158, %170 : vector<32x17xf32>
    %c0_107 = arith.constant 0 : index
    %c0_108 = arith.constant 0 : index
    %c13 = arith.constant 13 : index
    %c0_109 = arith.constant 0 : index
    %172 = vector.load %arg2[%c0_107, %c0_108, %c13, %c0_109] : memref<1x4x24x18xbf16, #tpu.memory_space<vmem>>, vector<1x4x1x18xbf16>
    %173 = vector.shape_cast %172 : vector<1x4x1x18xbf16> to vector<4x18xbf16>
    %c0_110 = arith.constant 0 : index
    %c0_111 = arith.constant 0 : index
    %c13_112 = arith.constant 13 : index
    %c0_113 = arith.constant 0 : index
    %174 = vector.load %arg3[%c0_110, %c0_111, %c13_112, %c0_113] : memref<1x4x24x18xbf16, #tpu.memory_space<vmem>>, vector<1x4x1x18xbf16>
    %175 = vector.shape_cast %174 : vector<1x4x1x18xbf16> to vector<4x18xbf16>
    %176 = vector.extract_strided_slice %173 {offsets = [0, 0], sizes = [4, 17], strides = [1, 1]} : vector<4x18xbf16> to vector<4x17xbf16>
    %177 = vector.extract_strided_slice %173 {offsets = [0, 1], sizes = [4, 17], strides = [1, 1]} : vector<4x18xbf16> to vector<4x17xbf16>
    %178 = vector.extract_strided_slice %175 {offsets = [0, 0], sizes = [4, 17], strides = [1, 1]} : vector<4x18xbf16> to vector<4x17xbf16>
    %179 = vector.extract_strided_slice %175 {offsets = [0, 1], sizes = [4, 17], strides = [1, 1]} : vector<4x18xbf16> to vector<4x17xbf16>
    %180 = tpu.concatenate %176, %177, %178, %179 in 0 : vector<4x17xbf16>, vector<4x17xbf16>, vector<4x17xbf16>, vector<4x17xbf16> -> vector<16x17xbf16>
    %cst_114 = arith.constant dense<0.000000e+00> : vector<32x17xf32>
    %181 = tpu.matmul %0, %180, %cst_114 {dimension_numbers = #tpu.dot_dimension_numbers<[1], [0], [0], [1], [0, 0, 1, 1], [], []>} : vector<32x16xbf16>, vector<16x17xbf16>, vector<32x17xf32> -> vector<32x17xf32>
    %182 = arith.addf %169, %181 : vector<32x17xf32>
    %183 = arith.mulf %181, %181 : vector<32x17xf32>
    %184 = arith.addf %171, %183 : vector<32x17xf32>
    %c0_115 = arith.constant 0 : index
    %c0_116 = arith.constant 0 : index
    %c14 = arith.constant 14 : index
    %c0_117 = arith.constant 0 : index
    %185 = vector.load %arg2[%c0_115, %c0_116, %c14, %c0_117] : memref<1x4x24x18xbf16, #tpu.memory_space<vmem>>, vector<1x4x1x18xbf16>
    %186 = vector.shape_cast %185 : vector<1x4x1x18xbf16> to vector<4x18xbf16>
    %c0_118 = arith.constant 0 : index
    %c0_119 = arith.constant 0 : index
    %c14_120 = arith.constant 14 : index
    %c0_121 = arith.constant 0 : index
    %187 = vector.load %arg3[%c0_118, %c0_119, %c14_120, %c0_121] : memref<1x4x24x18xbf16, #tpu.memory_space<vmem>>, vector<1x4x1x18xbf16>
    %188 = vector.shape_cast %187 : vector<1x4x1x18xbf16> to vector<4x18xbf16>
    %189 = vector.extract_strided_slice %186 {offsets = [0, 0], sizes = [4, 17], strides = [1, 1]} : vector<4x18xbf16> to vector<4x17xbf16>
    %190 = vector.extract_strided_slice %186 {offsets = [0, 1], sizes = [4, 17], strides = [1, 1]} : vector<4x18xbf16> to vector<4x17xbf16>
    %191 = vector.extract_strided_slice %188 {offsets = [0, 0], sizes = [4, 17], strides = [1, 1]} : vector<4x18xbf16> to vector<4x17xbf16>
    %192 = vector.extract_strided_slice %188 {offsets = [0, 1], sizes = [4, 17], strides = [1, 1]} : vector<4x18xbf16> to vector<4x17xbf16>
    %193 = tpu.concatenate %189, %190, %191, %192 in 0 : vector<4x17xbf16>, vector<4x17xbf16>, vector<4x17xbf16>, vector<4x17xbf16> -> vector<16x17xbf16>
    %cst_122 = arith.constant dense<0.000000e+00> : vector<32x17xf32>
    %194 = tpu.matmul %0, %193, %cst_122 {dimension_numbers = #tpu.dot_dimension_numbers<[1], [0], [0], [1], [0, 0, 1, 1], [], []>} : vector<32x16xbf16>, vector<16x17xbf16>, vector<32x17xf32> -> vector<32x17xf32>
    %195 = arith.addf %182, %194 : vector<32x17xf32>
    %196 = arith.mulf %194, %194 : vector<32x17xf32>
    %197 = arith.addf %184, %196 : vector<32x17xf32>
    %c0_123 = arith.constant 0 : index
    %c0_124 = arith.constant 0 : index
    %c15 = arith.constant 15 : index
    %c0_125 = arith.constant 0 : index
    %198 = vector.load %arg2[%c0_123, %c0_124, %c15, %c0_125] : memref<1x4x24x18xbf16, #tpu.memory_space<vmem>>, vector<1x4x1x18xbf16>
    %199 = vector.shape_cast %198 : vector<1x4x1x18xbf16> to vector<4x18xbf16>
    %c0_126 = arith.constant 0 : index
    %c0_127 = arith.constant 0 : index
    %c15_128 = arith.constant 15 : index
    %c0_129 = arith.constant 0 : index
    %200 = vector.load %arg3[%c0_126, %c0_127, %c15_128, %c0_129] : memref<1x4x24x18xbf16, #tpu.memory_space<vmem>>, vector<1x4x1x18xbf16>
    %201 = vector.shape_cast %200 : vector<1x4x1x18xbf16> to vector<4x18xbf16>
    %202 = vector.extract_strided_slice %199 {offsets = [0, 0], sizes = [4, 17], strides = [1, 1]} : vector<4x18xbf16> to vector<4x17xbf16>
    %203 = vector.extract_strided_slice %199 {offsets = [0, 1], sizes = [4, 17], strides = [1, 1]} : vector<4x18xbf16> to vector<4x17xbf16>
    %204 = vector.extract_strided_slice %201 {offsets = [0, 0], sizes = [4, 17], strides = [1, 1]} : vector<4x18xbf16> to vector<4x17xbf16>
    %205 = vector.extract_strided_slice %201 {offsets = [0, 1], sizes = [4, 17], strides = [1, 1]} : vector<4x18xbf16> to vector<4x17xbf16>
    %206 = tpu.concatenate %202, %203, %204, %205 in 0 : vector<4x17xbf16>, vector<4x17xbf16>, vector<4x17xbf16>, vector<4x17xbf16> -> vector<16x17xbf16>
    %cst_130 = arith.constant dense<0.000000e+00> : vector<32x17xf32>
    %207 = tpu.matmul %0, %206, %cst_130 {dimension_numbers = #tpu.dot_dimension_numbers<[1], [0], [0], [1], [0, 0, 1, 1], [], []>} : vector<32x16xbf16>, vector<16x17xbf16>, vector<32x17xf32> -> vector<32x17xf32>
    %208 = arith.addf %195, %207 : vector<32x17xf32>
    %209 = arith.mulf %207, %207 : vector<32x17xf32>
    %210 = arith.addf %197, %209 : vector<32x17xf32>
    %c0_131 = arith.constant 0 : index
    %c0_132 = arith.constant 0 : index
    %c16 = arith.constant 16 : index
    %c0_133 = arith.constant 0 : index
    %211 = vector.load %arg2[%c0_131, %c0_132, %c16, %c0_133] : memref<1x4x24x18xbf16, #tpu.memory_space<vmem>>, vector<1x4x1x18xbf16>
    %212 = vector.shape_cast %211 : vector<1x4x1x18xbf16> to vector<4x18xbf16>
    %c0_134 = arith.constant 0 : index
    %c0_135 = arith.constant 0 : index
    %c16_136 = arith.constant 16 : index
    %c0_137 = arith.constant 0 : index
    %213 = vector.load %arg3[%c0_134, %c0_135, %c16_136, %c0_137] : memref<1x4x24x18xbf16, #tpu.memory_space<vmem>>, vector<1x4x1x18xbf16>
    %214 = vector.shape_cast %213 : vector<1x4x1x18xbf16> to vector<4x18xbf16>
    %215 = vector.extract_strided_slice %212 {offsets = [0, 0], sizes = [4, 17], strides = [1, 1]} : vector<4x18xbf16> to vector<4x17xbf16>
    %216 = vector.extract_strided_slice %212 {offsets = [0, 1], sizes = [4, 17], strides = [1, 1]} : vector<4x18xbf16> to vector<4x17xbf16>
    %217 = vector.extract_strided_slice %214 {offsets = [0, 0], sizes = [4, 17], strides = [1, 1]} : vector<4x18xbf16> to vector<4x17xbf16>
    %218 = vector.extract_strided_slice %214 {offsets = [0, 1], sizes = [4, 17], strides = [1, 1]} : vector<4x18xbf16> to vector<4x17xbf16>
    %219 = tpu.concatenate %215, %216, %217, %218 in 0 : vector<4x17xbf16>, vector<4x17xbf16>, vector<4x17xbf16>, vector<4x17xbf16> -> vector<16x17xbf16>
    %cst_138 = arith.constant dense<0.000000e+00> : vector<32x17xf32>
    %220 = tpu.matmul %0, %219, %cst_138 {dimension_numbers = #tpu.dot_dimension_numbers<[1], [0], [0], [1], [0, 0, 1, 1], [], []>} : vector<32x16xbf16>, vector<16x17xbf16>, vector<32x17xf32> -> vector<32x17xf32>
    %221 = arith.addf %208, %220 : vector<32x17xf32>
    %222 = arith.mulf %220, %220 : vector<32x17xf32>
    %223 = arith.addf %210, %222 : vector<32x17xf32>
    %c0_139 = arith.constant 0 : index
    %c0_140 = arith.constant 0 : index
    %c17 = arith.constant 17 : index
    %c0_141 = arith.constant 0 : index
    %224 = vector.load %arg2[%c0_139, %c0_140, %c17, %c0_141] : memref<1x4x24x18xbf16, #tpu.memory_space<vmem>>, vector<1x4x1x18xbf16>
    %225 = vector.shape_cast %224 : vector<1x4x1x18xbf16> to vector<4x18xbf16>
    %c0_142 = arith.constant 0 : index
    %c0_143 = arith.constant 0 : index
    %c17_144 = arith.constant 17 : index
    %c0_145 = arith.constant 0 : index
    %226 = vector.load %arg3[%c0_142, %c0_143, %c17_144, %c0_145] : memref<1x4x24x18xbf16, #tpu.memory_space<vmem>>, vector<1x4x1x18xbf16>
    %227 = vector.shape_cast %226 : vector<1x4x1x18xbf16> to vector<4x18xbf16>
    %228 = vector.extract_strided_slice %225 {offsets = [0, 0], sizes = [4, 17], strides = [1, 1]} : vector<4x18xbf16> to vector<4x17xbf16>
    %229 = vector.extract_strided_slice %225 {offsets = [0, 1], sizes = [4, 17], strides = [1, 1]} : vector<4x18xbf16> to vector<4x17xbf16>
    %230 = vector.extract_strided_slice %227 {offsets = [0, 0], sizes = [4, 17], strides = [1, 1]} : vector<4x18xbf16> to vector<4x17xbf16>
    %231 = vector.extract_strided_slice %227 {offsets = [0, 1], sizes = [4, 17], strides = [1, 1]} : vector<4x18xbf16> to vector<4x17xbf16>
    %232 = tpu.concatenate %228, %229, %230, %231 in 0 : vector<4x17xbf16>, vector<4x17xbf16>, vector<4x17xbf16>, vector<4x17xbf16> -> vector<16x17xbf16>
    %cst_146 = arith.constant dense<0.000000e+00> : vector<32x17xf32>
    %233 = tpu.matmul %0, %232, %cst_146 {dimension_numbers = #tpu.dot_dimension_numbers<[1], [0], [0], [1], [0, 0, 1, 1], [], []>} : vector<32x16xbf16>, vector<16x17xbf16>, vector<32x17xf32> -> vector<32x17xf32>
    %234 = arith.addf %221, %233 : vector<32x17xf32>
    %235 = arith.mulf %233, %233 : vector<32x17xf32>
    %236 = arith.addf %223, %235 : vector<32x17xf32>
    %c0_147 = arith.constant 0 : index
    %c0_148 = arith.constant 0 : index
    %c18 = arith.constant 18 : index
    %c0_149 = arith.constant 0 : index
    %237 = vector.load %arg2[%c0_147, %c0_148, %c18, %c0_149] : memref<1x4x24x18xbf16, #tpu.memory_space<vmem>>, vector<1x4x1x18xbf16>
    %238 = vector.shape_cast %237 : vector<1x4x1x18xbf16> to vector<4x18xbf16>
    %c0_150 = arith.constant 0 : index
    %c0_151 = arith.constant 0 : index
    %c18_152 = arith.constant 18 : index
    %c0_153 = arith.constant 0 : index
    %239 = vector.load %arg3[%c0_150, %c0_151, %c18_152, %c0_153] : memref<1x4x24x18xbf16, #tpu.memory_space<vmem>>, vector<1x4x1x18xbf16>
    %240 = vector.shape_cast %239 : vector<1x4x1x18xbf16> to vector<4x18xbf16>
    %241 = vector.extract_strided_slice %238 {offsets = [0, 0], sizes = [4, 17], strides = [1, 1]} : vector<4x18xbf16> to vector<4x17xbf16>
    %242 = vector.extract_strided_slice %238 {offsets = [0, 1], sizes = [4, 17], strides = [1, 1]} : vector<4x18xbf16> to vector<4x17xbf16>
    %243 = vector.extract_strided_slice %240 {offsets = [0, 0], sizes = [4, 17], strides = [1, 1]} : vector<4x18xbf16> to vector<4x17xbf16>
    %244 = vector.extract_strided_slice %240 {offsets = [0, 1], sizes = [4, 17], strides = [1, 1]} : vector<4x18xbf16> to vector<4x17xbf16>
    %245 = tpu.concatenate %241, %242, %243, %244 in 0 : vector<4x17xbf16>, vector<4x17xbf16>, vector<4x17xbf16>, vector<4x17xbf16> -> vector<16x17xbf16>
    %cst_154 = arith.constant dense<0.000000e+00> : vector<32x17xf32>
    %246 = tpu.matmul %0, %245, %cst_154 {dimension_numbers = #tpu.dot_dimension_numbers<[1], [0], [0], [1], [0, 0, 1, 1], [], []>} : vector<32x16xbf16>, vector<16x17xbf16>, vector<32x17xf32> -> vector<32x17xf32>
    %247 = arith.addf %234, %246 : vector<32x17xf32>
    %248 = arith.mulf %246, %246 : vector<32x17xf32>
    %249 = arith.addf %236, %248 : vector<32x17xf32>
    %c0_155 = arith.constant 0 : index
    %c0_156 = arith.constant 0 : index
    %c19 = arith.constant 19 : index
    %c0_157 = arith.constant 0 : index
    %250 = vector.load %arg2[%c0_155, %c0_156, %c19, %c0_157] : memref<1x4x24x18xbf16, #tpu.memory_space<vmem>>, vector<1x4x1x18xbf16>
    %251 = vector.shape_cast %250 : vector<1x4x1x18xbf16> to vector<4x18xbf16>
    %c0_158 = arith.constant 0 : index
    %c0_159 = arith.constant 0 : index
    %c19_160 = arith.constant 19 : index
    %c0_161 = arith.constant 0 : index
    %252 = vector.load %arg3[%c0_158, %c0_159, %c19_160, %c0_161] : memref<1x4x24x18xbf16, #tpu.memory_space<vmem>>, vector<1x4x1x18xbf16>
    %253 = vector.shape_cast %252 : vector<1x4x1x18xbf16> to vector<4x18xbf16>
    %254 = vector.extract_strided_slice %251 {offsets = [0, 0], sizes = [4, 17], strides = [1, 1]} : vector<4x18xbf16> to vector<4x17xbf16>
    %255 = vector.extract_strided_slice %251 {offsets = [0, 1], sizes = [4, 17], strides = [1, 1]} : vector<4x18xbf16> to vector<4x17xbf16>
    %256 = vector.extract_strided_slice %253 {offsets = [0, 0], sizes = [4, 17], strides = [1, 1]} : vector<4x18xbf16> to vector<4x17xbf16>
    %257 = vector.extract_strided_slice %253 {offsets = [0, 1], sizes = [4, 17], strides = [1, 1]} : vector<4x18xbf16> to vector<4x17xbf16>
    %258 = tpu.concatenate %254, %255, %256, %257 in 0 : vector<4x17xbf16>, vector<4x17xbf16>, vector<4x17xbf16>, vector<4x17xbf16> -> vector<16x17xbf16>
    %cst_162 = arith.constant dense<0.000000e+00> : vector<32x17xf32>
    %259 = tpu.matmul %0, %258, %cst_162 {dimension_numbers = #tpu.dot_dimension_numbers<[1], [0], [0], [1], [0, 0, 1, 1], [], []>} : vector<32x16xbf16>, vector<16x17xbf16>, vector<32x17xf32> -> vector<32x17xf32>
    %260 = arith.addf %247, %259 : vector<32x17xf32>
    %261 = arith.mulf %259, %259 : vector<32x17xf32>
    %262 = arith.addf %249, %261 : vector<32x17xf32>
    %c0_163 = arith.constant 0 : index
    %c0_164 = arith.constant 0 : index
    %c20 = arith.constant 20 : index
    %c0_165 = arith.constant 0 : index
    %263 = vector.load %arg2[%c0_163, %c0_164, %c20, %c0_165] : memref<1x4x24x18xbf16, #tpu.memory_space<vmem>>, vector<1x4x1x18xbf16>
    %264 = vector.shape_cast %263 : vector<1x4x1x18xbf16> to vector<4x18xbf16>
    %c0_166 = arith.constant 0 : index
    %c0_167 = arith.constant 0 : index
    %c20_168 = arith.constant 20 : index
    %c0_169 = arith.constant 0 : index
    %265 = vector.load %arg3[%c0_166, %c0_167, %c20_168, %c0_169] : memref<1x4x24x18xbf16, #tpu.memory_space<vmem>>, vector<1x4x1x18xbf16>
    %266 = vector.shape_cast %265 : vector<1x4x1x18xbf16> to vector<4x18xbf16>
    %267 = vector.extract_strided_slice %264 {offsets = [0, 0], sizes = [4, 17], strides = [1, 1]} : vector<4x18xbf16> to vector<4x17xbf16>
    %268 = vector.extract_strided_slice %264 {offsets = [0, 1], sizes = [4, 17], strides = [1, 1]} : vector<4x18xbf16> to vector<4x17xbf16>
    %269 = vector.extract_strided_slice %266 {offsets = [0, 0], sizes = [4, 17], strides = [1, 1]} : vector<4x18xbf16> to vector<4x17xbf16>
    %270 = vector.extract_strided_slice %266 {offsets = [0, 1], sizes = [4, 17], strides = [1, 1]} : vector<4x18xbf16> to vector<4x17xbf16>
    %271 = tpu.concatenate %267, %268, %269, %270 in 0 : vector<4x17xbf16>, vector<4x17xbf16>, vector<4x17xbf16>, vector<4x17xbf16> -> vector<16x17xbf16>
    %cst_170 = arith.constant dense<0.000000e+00> : vector<32x17xf32>
    %272 = tpu.matmul %0, %271, %cst_170 {dimension_numbers = #tpu.dot_dimension_numbers<[1], [0], [0], [1], [0, 0, 1, 1], [], []>} : vector<32x16xbf16>, vector<16x17xbf16>, vector<32x17xf32> -> vector<32x17xf32>
    %273 = arith.addf %260, %272 : vector<32x17xf32>
    %274 = arith.mulf %272, %272 : vector<32x17xf32>
    %275 = arith.addf %262, %274 : vector<32x17xf32>
    %c0_171 = arith.constant 0 : index
    %c0_172 = arith.constant 0 : index
    %c21 = arith.constant 21 : index
    %c0_173 = arith.constant 0 : index
    %276 = vector.load %arg2[%c0_171, %c0_172, %c21, %c0_173] : memref<1x4x24x18xbf16, #tpu.memory_space<vmem>>, vector<1x4x1x18xbf16>
    %277 = vector.shape_cast %276 : vector<1x4x1x18xbf16> to vector<4x18xbf16>
    %c0_174 = arith.constant 0 : index
    %c0_175 = arith.constant 0 : index
    %c21_176 = arith.constant 21 : index
    %c0_177 = arith.constant 0 : index
    %278 = vector.load %arg3[%c0_174, %c0_175, %c21_176, %c0_177] : memref<1x4x24x18xbf16, #tpu.memory_space<vmem>>, vector<1x4x1x18xbf16>
    %279 = vector.shape_cast %278 : vector<1x4x1x18xbf16> to vector<4x18xbf16>
    %280 = vector.extract_strided_slice %277 {offsets = [0, 0], sizes = [4, 17], strides = [1, 1]} : vector<4x18xbf16> to vector<4x17xbf16>
    %281 = vector.extract_strided_slice %277 {offsets = [0, 1], sizes = [4, 17], strides = [1, 1]} : vector<4x18xbf16> to vector<4x17xbf16>
    %282 = vector.extract_strided_slice %279 {offsets = [0, 0], sizes = [4, 17], strides = [1, 1]} : vector<4x18xbf16> to vector<4x17xbf16>
    %283 = vector.extract_strided_slice %279 {offsets = [0, 1], sizes = [4, 17], strides = [1, 1]} : vector<4x18xbf16> to vector<4x17xbf16>
    %284 = tpu.concatenate %280, %281, %282, %283 in 0 : vector<4x17xbf16>, vector<4x17xbf16>, vector<4x17xbf16>, vector<4x17xbf16> -> vector<16x17xbf16>
    %cst_178 = arith.constant dense<0.000000e+00> : vector<32x17xf32>
    %285 = tpu.matmul %0, %284, %cst_178 {dimension_numbers = #tpu.dot_dimension_numbers<[1], [0], [0], [1], [0, 0, 1, 1], [], []>} : vector<32x16xbf16>, vector<16x17xbf16>, vector<32x17xf32> -> vector<32x17xf32>
    %286 = arith.addf %273, %285 : vector<32x17xf32>
    %287 = arith.mulf %285, %285 : vector<32x17xf32>
    %288 = arith.addf %275, %287 : vector<32x17xf32>
    %c0_179 = arith.constant 0 : index
    %c0_180 = arith.constant 0 : index
    %c22 = arith.constant 22 : index
    %c0_181 = arith.constant 0 : index
    %289 = vector.load %arg2[%c0_179, %c0_180, %c22, %c0_181] : memref<1x4x24x18xbf16, #tpu.memory_space<vmem>>, vector<1x4x1x18xbf16>
    %290 = vector.shape_cast %289 : vector<1x4x1x18xbf16> to vector<4x18xbf16>
    %c0_182 = arith.constant 0 : index
    %c0_183 = arith.constant 0 : index
    %c22_184 = arith.constant 22 : index
    %c0_185 = arith.constant 0 : index
    %291 = vector.load %arg3[%c0_182, %c0_183, %c22_184, %c0_185] : memref<1x4x24x18xbf16, #tpu.memory_space<vmem>>, vector<1x4x1x18xbf16>
    %292 = vector.shape_cast %291 : vector<1x4x1x18xbf16> to vector<4x18xbf16>
    %293 = vector.extract_strided_slice %290 {offsets = [0, 0], sizes = [4, 17], strides = [1, 1]} : vector<4x18xbf16> to vector<4x17xbf16>
    %294 = vector.extract_strided_slice %290 {offsets = [0, 1], sizes = [4, 17], strides = [1, 1]} : vector<4x18xbf16> to vector<4x17xbf16>
    %295 = vector.extract_strided_slice %292 {offsets = [0, 0], sizes = [4, 17], strides = [1, 1]} : vector<4x18xbf16> to vector<4x17xbf16>
    %296 = vector.extract_strided_slice %292 {offsets = [0, 1], sizes = [4, 17], strides = [1, 1]} : vector<4x18xbf16> to vector<4x17xbf16>
    %297 = tpu.concatenate %293, %294, %295, %296 in 0 : vector<4x17xbf16>, vector<4x17xbf16>, vector<4x17xbf16>, vector<4x17xbf16> -> vector<16x17xbf16>
    %cst_186 = arith.constant dense<0.000000e+00> : vector<32x17xf32>
    %298 = tpu.matmul %0, %297, %cst_186 {dimension_numbers = #tpu.dot_dimension_numbers<[1], [0], [0], [1], [0, 0, 1, 1], [], []>} : vector<32x16xbf16>, vector<16x17xbf16>, vector<32x17xf32> -> vector<32x17xf32>
    %299 = arith.addf %286, %298 : vector<32x17xf32>
    %300 = arith.mulf %298, %298 : vector<32x17xf32>
    %301 = arith.addf %288, %300 : vector<32x17xf32>
    %c0_187 = arith.constant 0 : index
    %c0_188 = arith.constant 0 : index
    %c23 = arith.constant 23 : index
    %c0_189 = arith.constant 0 : index
    %302 = vector.load %arg2[%c0_187, %c0_188, %c23, %c0_189] : memref<1x4x24x18xbf16, #tpu.memory_space<vmem>>, vector<1x4x1x18xbf16>
    %303 = vector.shape_cast %302 : vector<1x4x1x18xbf16> to vector<4x18xbf16>
    %c0_190 = arith.constant 0 : index
    %c0_191 = arith.constant 0 : index
    %c23_192 = arith.constant 23 : index
    %c0_193 = arith.constant 0 : index
    %304 = vector.load %arg3[%c0_190, %c0_191, %c23_192, %c0_193] : memref<1x4x24x18xbf16, #tpu.memory_space<vmem>>, vector<1x4x1x18xbf16>
    %305 = vector.shape_cast %304 : vector<1x4x1x18xbf16> to vector<4x18xbf16>
    %306 = vector.extract_strided_slice %303 {offsets = [0, 0], sizes = [4, 17], strides = [1, 1]} : vector<4x18xbf16> to vector<4x17xbf16>
    %307 = vector.extract_strided_slice %303 {offsets = [0, 1], sizes = [4, 17], strides = [1, 1]} : vector<4x18xbf16> to vector<4x17xbf16>
    %308 = vector.extract_strided_slice %305 {offsets = [0, 0], sizes = [4, 17], strides = [1, 1]} : vector<4x18xbf16> to vector<4x17xbf16>
    %309 = vector.extract_strided_slice %305 {offsets = [0, 1], sizes = [4, 17], strides = [1, 1]} : vector<4x18xbf16> to vector<4x17xbf16>
    %310 = tpu.concatenate %306, %307, %308, %309 in 0 : vector<4x17xbf16>, vector<4x17xbf16>, vector<4x17xbf16>, vector<4x17xbf16> -> vector<16x17xbf16>
    %cst_194 = arith.constant dense<0.000000e+00> : vector<32x17xf32>
    %311 = tpu.matmul %0, %310, %cst_194 {dimension_numbers = #tpu.dot_dimension_numbers<[1], [0], [0], [1], [0, 0, 1, 1], [], []>} : vector<32x16xbf16>, vector<16x17xbf16>, vector<32x17xf32> -> vector<32x17xf32>
    %312 = arith.addf %299, %311 : vector<32x17xf32>
    %313 = arith.mulf %311, %311 : vector<32x17xf32>
    %314 = arith.addf %301, %313 : vector<32x17xf32>
    %c0_195 = arith.constant 0 : index
    %c0_196 = arith.constant 0 : index
    %c0_197 = arith.constant 0 : index
    %c0_198 = arith.constant 0 : index
    %315 = vector.load %arg5[%c0_195, %c0_196, %c0_197, %c0_198] : memref<1x1x32x17xf32, #tpu.memory_space<vmem>>, vector<1x1x32x17xf32>
    %316 = vector.shape_cast %315 : vector<1x1x32x17xf32> to vector<32x17xf32>
    %317 = vector.shape_cast %312 : vector<32x17xf32> to vector<1x1x32x17xf32>
    tpu.vector_store %arg5[%c0_195, %c0_196, %c0_197, %c0_198], %317 {strides = array<i32>} : memref<1x1x32x17xf32, #tpu.memory_space<vmem>>, vector<1x1x32x17xf32>,
    %c0_199 = arith.constant 0 : index
    %c0_200 = arith.constant 0 : index
    %c0_201 = arith.constant 0 : index
    %c0_202 = arith.constant 0 : index
    %318 = vector.load %arg6[%c0_199, %c0_200, %c0_201, %c0_202] : memref<1x1x32x17xf32, #tpu.memory_space<vmem>>, vector<1x1x32x17xf32>
    %319 = vector.shape_cast %318 : vector<1x1x32x17xf32> to vector<32x17xf32>
    %320 = vector.shape_cast %314 : vector<32x17xf32> to vector<1x1x32x17xf32>
    tpu.vector_store %arg6[%c0_199, %c0_200, %c0_201, %c0_202], %320 {strides = array<i32>} : memref<1x1x32x17xf32, #tpu.memory_space<vmem>>, vector<1x1x32x17xf32>,
    return
  }
  func.func @transform_0(%arg0: i32, %arg1: i32) -> (i32, i32, i32, i32) {
    %c0_i32 = arith.constant 0 : i32
    %c0_i32_0 = arith.constant 0 : i32
    %c0_i32_1 = arith.constant 0 : i32
    return %arg0, %c0_i32, %arg1, %c0_i32_0 : i32, i32, i32, i32
  }
  func.func @transform_1(%arg0: i32, %arg1: i32) -> (i32, i32, i32, i32) {
    %c0_i32 = arith.constant 0 : i32
    %c0_i32_0 = arith.constant 0 : i32
    %c0_i32_1 = arith.constant 0 : i32
    return %arg0, %c0_i32, %arg1, %c0_i32_0 : i32, i32, i32, i32
  }
  func.func @transform_2(%arg0: i32, %arg1: i32) -> (i32, i32) {
    %c0_i32 = arith.constant 0 : i32
    %c0_i32_0 = arith.constant 0 : i32
    %c0_i32_1 = arith.constant 0 : i32
    return %c0_i32, %c0_i32_0 : i32, i32
  }
  func.func @transform_3(%arg0: i32, %arg1: i32) -> (i32, i32, i32, i32) {
    %c0_i32 = arith.constant 0 : i32
    %c0_i32_0 = arith.constant 0 : i32
    %c0_i32_1 = arith.constant 0 : i32
    return %arg0, %arg1, %c0_i32, %c0_i32_0 : i32, i32, i32, i32
  }
  func.func @transform_4(%arg0: i32, %arg1: i32) -> (i32, i32, i32, i32) {
    %c0_i32 = arith.constant 0 : i32
    %c0_i32_0 = arith.constant 0 : i32
    %c0_i32_1 = arith.constant 0 : i32
    return %arg0, %arg1, %c0_i32, %c0_i32_0 : i32, i32, i32, i32
  }
}

module attributes {stable_mosaic.version = 11 : i64} {
  func.func @_apply_kernel(%arg0: i32, %arg1: i32, %arg2: memref<1x4x24x18xbf16, #tpu.memory_space<vmem>>, %arg3: memref<1x4x24x18xbf16, #tpu.memory_space<vmem>>, %arg4: memref<32x16xbf16, #tpu.memory_space<vmem>>, %arg5: memref<32x1xf32, #tpu.memory_space<vmem>>, %arg6: memref<32x1xf32, #tpu.memory_space<vmem>>, %arg7: memref<1x24x32x17xbf16, #tpu.memory_space<vmem>>) attributes {dimension_semantics = [#tpu.dimension_semantics<parallel>, #tpu.dimension_semantics<parallel>], iteration_bounds = array<i64: 2, 1>, scalar_prefetch = 0 : i64, scratch_operands = 0 : i64, tpu.core_type = #tpu.core_type<tc>, window_params = [{transform_indices = @transform_0, window_bounds = array<i64: 1, 4, 24, 18>}, {transform_indices = @transform_1, window_bounds = array<i64: 1, 4, 24, 18>}, {pipeline_mode = #tpu.pipeline_mode<synchronous>, transform_indices = @transform_2, window_bounds = array<i64: 32, 16>}, {pipeline_mode = #tpu.pipeline_mode<synchronous>, transform_indices = @transform_3, window_bounds = array<i64: 32, 1>}, {pipeline_mode = #tpu.pipeline_mode<synchronous>, transform_indices = @transform_4, window_bounds = array<i64: 32, 1>}, {transform_indices = @transform_5, window_bounds = array<i64: 1, 24, 32, 17>}]} {
    %c0 = arith.constant 0 : index
    %c0_0 = arith.constant 0 : index
    %0 = vector.load %arg4[%c0, %c0_0] : memref<32x16xbf16, #tpu.memory_space<vmem>>, vector<32x16xbf16>
    %c0_1 = arith.constant 0 : index
    %c0_2 = arith.constant 0 : index
    %1 = vector.load %arg5[%c0_1, %c0_2] : memref<32x1xf32, #tpu.memory_space<vmem>>, vector<32x1xf32>
    %c0_3 = arith.constant 0 : index
    %c0_4 = arith.constant 0 : index
    %2 = vector.load %arg6[%c0_3, %c0_4] : memref<32x1xf32, #tpu.memory_space<vmem>>, vector<32x1xf32>
    %c0_5 = arith.constant 0 : index
    %c0_6 = arith.constant 0 : index
    %c0_7 = arith.constant 0 : index
    %c0_8 = arith.constant 0 : index
    %3 = vector.load %arg2[%c0_5, %c0_6, %c0_7, %c0_8] : memref<1x4x24x18xbf16, #tpu.memory_space<vmem>>, vector<1x4x1x18xbf16>
    %4 = vector.shape_cast %3 : vector<1x4x1x18xbf16> to vector<4x18xbf16>
    %c0_9 = arith.constant 0 : index
    %c0_10 = arith.constant 0 : index
    %c0_11 = arith.constant 0 : index
    %c0_12 = arith.constant 0 : index
    %5 = vector.load %arg3[%c0_9, %c0_10, %c0_11, %c0_12] : memref<1x4x24x18xbf16, #tpu.memory_space<vmem>>, vector<1x4x1x18xbf16>
    %6 = vector.shape_cast %5 : vector<1x4x1x18xbf16> to vector<4x18xbf16>
    %7 = vector.extract_strided_slice %4 {offsets = [0, 0], sizes = [4, 17], strides = [1, 1]} : vector<4x18xbf16> to vector<4x17xbf16>
    %8 = vector.extract_strided_slice %4 {offsets = [0, 1], sizes = [4, 17], strides = [1, 1]} : vector<4x18xbf16> to vector<4x17xbf16>
    %9 = vector.extract_strided_slice %6 {offsets = [0, 0], sizes = [4, 17], strides = [1, 1]} : vector<4x18xbf16> to vector<4x17xbf16>
    %10 = vector.extract_strided_slice %6 {offsets = [0, 1], sizes = [4, 17], strides = [1, 1]} : vector<4x18xbf16> to vector<4x17xbf16>
    %11 = tpu.concatenate %7, %8, %9, %10 in 0 : vector<4x17xbf16>, vector<4x17xbf16>, vector<4x17xbf16>, vector<4x17xbf16> -> vector<16x17xbf16>
    %cst = arith.constant dense<0.000000e+00> : vector<32x17xf32>
    %12 = tpu.matmul %0, %11, %cst {dimension_numbers = #tpu.dot_dimension_numbers<[1], [0], [0], [1], [0, 0, 1, 1], [], []>} : vector<32x16xbf16>, vector<16x17xbf16>, vector<32x17xf32> -> vector<32x17xf32>
    %13 = vector.broadcast %1 : vector<32x1xf32> to vector<32x17xf32>
    %14 = arith.mulf %12, %13 : vector<32x17xf32>
    %15 = vector.broadcast %2 : vector<32x1xf32> to vector<32x17xf32>
    %16 = arith.addf %14, %15 : vector<32x17xf32>
    %cst_13 = arith.constant 0.000000e+00 : f32
    %17 = vector.broadcast %cst_13 : f32 to vector<32x17xf32>
    %18 = arith.maximumf %16, %17 : vector<32x17xf32>
    %19 = arith.truncf %18 : vector<32x17xf32> to vector<32x17xbf16>
    %c0_14 = arith.constant 0 : index
    %c0_15 = arith.constant 0 : index
    %c0_16 = arith.constant 0 : index
    %c0_17 = arith.constant 0 : index
    %20 = vector.load %arg7[%c0_14, %c0_15, %c0_16, %c0_17] : memref<1x24x32x17xbf16, #tpu.memory_space<vmem>>, vector<1x1x32x17xbf16>
    %21 = vector.shape_cast %20 : vector<1x1x32x17xbf16> to vector<32x17xbf16>
    %22 = vector.shape_cast %19 : vector<32x17xbf16> to vector<1x1x32x17xbf16>
    tpu.vector_store %arg7[%c0_14, %c0_15, %c0_16, %c0_17], %22 {strides = array<i32>} : memref<1x24x32x17xbf16, #tpu.memory_space<vmem>>, vector<1x1x32x17xbf16>,
    %c0_18 = arith.constant 0 : index
    %c0_19 = arith.constant 0 : index
    %c1 = arith.constant 1 : index
    %c0_20 = arith.constant 0 : index
    %23 = vector.load %arg2[%c0_18, %c0_19, %c1, %c0_20] : memref<1x4x24x18xbf16, #tpu.memory_space<vmem>>, vector<1x4x1x18xbf16>
    %24 = vector.shape_cast %23 : vector<1x4x1x18xbf16> to vector<4x18xbf16>
    %c0_21 = arith.constant 0 : index
    %c0_22 = arith.constant 0 : index
    %c1_23 = arith.constant 1 : index
    %c0_24 = arith.constant 0 : index
    %25 = vector.load %arg3[%c0_21, %c0_22, %c1_23, %c0_24] : memref<1x4x24x18xbf16, #tpu.memory_space<vmem>>, vector<1x4x1x18xbf16>
    %26 = vector.shape_cast %25 : vector<1x4x1x18xbf16> to vector<4x18xbf16>
    %27 = vector.extract_strided_slice %24 {offsets = [0, 0], sizes = [4, 17], strides = [1, 1]} : vector<4x18xbf16> to vector<4x17xbf16>
    %28 = vector.extract_strided_slice %24 {offsets = [0, 1], sizes = [4, 17], strides = [1, 1]} : vector<4x18xbf16> to vector<4x17xbf16>
    %29 = vector.extract_strided_slice %26 {offsets = [0, 0], sizes = [4, 17], strides = [1, 1]} : vector<4x18xbf16> to vector<4x17xbf16>
    %30 = vector.extract_strided_slice %26 {offsets = [0, 1], sizes = [4, 17], strides = [1, 1]} : vector<4x18xbf16> to vector<4x17xbf16>
    %31 = tpu.concatenate %27, %28, %29, %30 in 0 : vector<4x17xbf16>, vector<4x17xbf16>, vector<4x17xbf16>, vector<4x17xbf16> -> vector<16x17xbf16>
    %cst_25 = arith.constant dense<0.000000e+00> : vector<32x17xf32>
    %32 = tpu.matmul %0, %31, %cst_25 {dimension_numbers = #tpu.dot_dimension_numbers<[1], [0], [0], [1], [0, 0, 1, 1], [], []>} : vector<32x16xbf16>, vector<16x17xbf16>, vector<32x17xf32> -> vector<32x17xf32>
    %33 = vector.broadcast %1 : vector<32x1xf32> to vector<32x17xf32>
    %34 = arith.mulf %32, %33 : vector<32x17xf32>
    %35 = vector.broadcast %2 : vector<32x1xf32> to vector<32x17xf32>
    %36 = arith.addf %34, %35 : vector<32x17xf32>
    %cst_26 = arith.constant 0.000000e+00 : f32
    %37 = vector.broadcast %cst_26 : f32 to vector<32x17xf32>
    %38 = arith.maximumf %36, %37 : vector<32x17xf32>
    %39 = arith.truncf %38 : vector<32x17xf32> to vector<32x17xbf16>
    %c0_27 = arith.constant 0 : index
    %c1_28 = arith.constant 1 : index
    %c0_29 = arith.constant 0 : index
    %c0_30 = arith.constant 0 : index
    %40 = vector.load %arg7[%c0_27, %c1_28, %c0_29, %c0_30] : memref<1x24x32x17xbf16, #tpu.memory_space<vmem>>, vector<1x1x32x17xbf16>
    %41 = vector.shape_cast %40 : vector<1x1x32x17xbf16> to vector<32x17xbf16>
    %42 = vector.shape_cast %39 : vector<32x17xbf16> to vector<1x1x32x17xbf16>
    tpu.vector_store %arg7[%c0_27, %c1_28, %c0_29, %c0_30], %42 {strides = array<i32>} : memref<1x24x32x17xbf16, #tpu.memory_space<vmem>>, vector<1x1x32x17xbf16>,
    %c0_31 = arith.constant 0 : index
    %c0_32 = arith.constant 0 : index
    %c2 = arith.constant 2 : index
    %c0_33 = arith.constant 0 : index
    %43 = vector.load %arg2[%c0_31, %c0_32, %c2, %c0_33] : memref<1x4x24x18xbf16, #tpu.memory_space<vmem>>, vector<1x4x1x18xbf16>
    %44 = vector.shape_cast %43 : vector<1x4x1x18xbf16> to vector<4x18xbf16>
    %c0_34 = arith.constant 0 : index
    %c0_35 = arith.constant 0 : index
    %c2_36 = arith.constant 2 : index
    %c0_37 = arith.constant 0 : index
    %45 = vector.load %arg3[%c0_34, %c0_35, %c2_36, %c0_37] : memref<1x4x24x18xbf16, #tpu.memory_space<vmem>>, vector<1x4x1x18xbf16>
    %46 = vector.shape_cast %45 : vector<1x4x1x18xbf16> to vector<4x18xbf16>
    %47 = vector.extract_strided_slice %44 {offsets = [0, 0], sizes = [4, 17], strides = [1, 1]} : vector<4x18xbf16> to vector<4x17xbf16>
    %48 = vector.extract_strided_slice %44 {offsets = [0, 1], sizes = [4, 17], strides = [1, 1]} : vector<4x18xbf16> to vector<4x17xbf16>
    %49 = vector.extract_strided_slice %46 {offsets = [0, 0], sizes = [4, 17], strides = [1, 1]} : vector<4x18xbf16> to vector<4x17xbf16>
    %50 = vector.extract_strided_slice %46 {offsets = [0, 1], sizes = [4, 17], strides = [1, 1]} : vector<4x18xbf16> to vector<4x17xbf16>
    %51 = tpu.concatenate %47, %48, %49, %50 in 0 : vector<4x17xbf16>, vector<4x17xbf16>, vector<4x17xbf16>, vector<4x17xbf16> -> vector<16x17xbf16>
    %cst_38 = arith.constant dense<0.000000e+00> : vector<32x17xf32>
    %52 = tpu.matmul %0, %51, %cst_38 {dimension_numbers = #tpu.dot_dimension_numbers<[1], [0], [0], [1], [0, 0, 1, 1], [], []>} : vector<32x16xbf16>, vector<16x17xbf16>, vector<32x17xf32> -> vector<32x17xf32>
    %53 = vector.broadcast %1 : vector<32x1xf32> to vector<32x17xf32>
    %54 = arith.mulf %52, %53 : vector<32x17xf32>
    %55 = vector.broadcast %2 : vector<32x1xf32> to vector<32x17xf32>
    %56 = arith.addf %54, %55 : vector<32x17xf32>
    %cst_39 = arith.constant 0.000000e+00 : f32
    %57 = vector.broadcast %cst_39 : f32 to vector<32x17xf32>
    %58 = arith.maximumf %56, %57 : vector<32x17xf32>
    %59 = arith.truncf %58 : vector<32x17xf32> to vector<32x17xbf16>
    %c0_40 = arith.constant 0 : index
    %c2_41 = arith.constant 2 : index
    %c0_42 = arith.constant 0 : index
    %c0_43 = arith.constant 0 : index
    %60 = vector.load %arg7[%c0_40, %c2_41, %c0_42, %c0_43] : memref<1x24x32x17xbf16, #tpu.memory_space<vmem>>, vector<1x1x32x17xbf16>
    %61 = vector.shape_cast %60 : vector<1x1x32x17xbf16> to vector<32x17xbf16>
    %62 = vector.shape_cast %59 : vector<32x17xbf16> to vector<1x1x32x17xbf16>
    tpu.vector_store %arg7[%c0_40, %c2_41, %c0_42, %c0_43], %62 {strides = array<i32>} : memref<1x24x32x17xbf16, #tpu.memory_space<vmem>>, vector<1x1x32x17xbf16>,
    %c0_44 = arith.constant 0 : index
    %c0_45 = arith.constant 0 : index
    %c3 = arith.constant 3 : index
    %c0_46 = arith.constant 0 : index
    %63 = vector.load %arg2[%c0_44, %c0_45, %c3, %c0_46] : memref<1x4x24x18xbf16, #tpu.memory_space<vmem>>, vector<1x4x1x18xbf16>
    %64 = vector.shape_cast %63 : vector<1x4x1x18xbf16> to vector<4x18xbf16>
    %c0_47 = arith.constant 0 : index
    %c0_48 = arith.constant 0 : index
    %c3_49 = arith.constant 3 : index
    %c0_50 = arith.constant 0 : index
    %65 = vector.load %arg3[%c0_47, %c0_48, %c3_49, %c0_50] : memref<1x4x24x18xbf16, #tpu.memory_space<vmem>>, vector<1x4x1x18xbf16>
    %66 = vector.shape_cast %65 : vector<1x4x1x18xbf16> to vector<4x18xbf16>
    %67 = vector.extract_strided_slice %64 {offsets = [0, 0], sizes = [4, 17], strides = [1, 1]} : vector<4x18xbf16> to vector<4x17xbf16>
    %68 = vector.extract_strided_slice %64 {offsets = [0, 1], sizes = [4, 17], strides = [1, 1]} : vector<4x18xbf16> to vector<4x17xbf16>
    %69 = vector.extract_strided_slice %66 {offsets = [0, 0], sizes = [4, 17], strides = [1, 1]} : vector<4x18xbf16> to vector<4x17xbf16>
    %70 = vector.extract_strided_slice %66 {offsets = [0, 1], sizes = [4, 17], strides = [1, 1]} : vector<4x18xbf16> to vector<4x17xbf16>
    %71 = tpu.concatenate %67, %68, %69, %70 in 0 : vector<4x17xbf16>, vector<4x17xbf16>, vector<4x17xbf16>, vector<4x17xbf16> -> vector<16x17xbf16>
    %cst_51 = arith.constant dense<0.000000e+00> : vector<32x17xf32>
    %72 = tpu.matmul %0, %71, %cst_51 {dimension_numbers = #tpu.dot_dimension_numbers<[1], [0], [0], [1], [0, 0, 1, 1], [], []>} : vector<32x16xbf16>, vector<16x17xbf16>, vector<32x17xf32> -> vector<32x17xf32>
    %73 = vector.broadcast %1 : vector<32x1xf32> to vector<32x17xf32>
    %74 = arith.mulf %72, %73 : vector<32x17xf32>
    %75 = vector.broadcast %2 : vector<32x1xf32> to vector<32x17xf32>
    %76 = arith.addf %74, %75 : vector<32x17xf32>
    %cst_52 = arith.constant 0.000000e+00 : f32
    %77 = vector.broadcast %cst_52 : f32 to vector<32x17xf32>
    %78 = arith.maximumf %76, %77 : vector<32x17xf32>
    %79 = arith.truncf %78 : vector<32x17xf32> to vector<32x17xbf16>
    %c0_53 = arith.constant 0 : index
    %c3_54 = arith.constant 3 : index
    %c0_55 = arith.constant 0 : index
    %c0_56 = arith.constant 0 : index
    %80 = vector.load %arg7[%c0_53, %c3_54, %c0_55, %c0_56] : memref<1x24x32x17xbf16, #tpu.memory_space<vmem>>, vector<1x1x32x17xbf16>
    %81 = vector.shape_cast %80 : vector<1x1x32x17xbf16> to vector<32x17xbf16>
    %82 = vector.shape_cast %79 : vector<32x17xbf16> to vector<1x1x32x17xbf16>
    tpu.vector_store %arg7[%c0_53, %c3_54, %c0_55, %c0_56], %82 {strides = array<i32>} : memref<1x24x32x17xbf16, #tpu.memory_space<vmem>>, vector<1x1x32x17xbf16>,
    %c0_57 = arith.constant 0 : index
    %c0_58 = arith.constant 0 : index
    %c4 = arith.constant 4 : index
    %c0_59 = arith.constant 0 : index
    %83 = vector.load %arg2[%c0_57, %c0_58, %c4, %c0_59] : memref<1x4x24x18xbf16, #tpu.memory_space<vmem>>, vector<1x4x1x18xbf16>
    %84 = vector.shape_cast %83 : vector<1x4x1x18xbf16> to vector<4x18xbf16>
    %c0_60 = arith.constant 0 : index
    %c0_61 = arith.constant 0 : index
    %c4_62 = arith.constant 4 : index
    %c0_63 = arith.constant 0 : index
    %85 = vector.load %arg3[%c0_60, %c0_61, %c4_62, %c0_63] : memref<1x4x24x18xbf16, #tpu.memory_space<vmem>>, vector<1x4x1x18xbf16>
    %86 = vector.shape_cast %85 : vector<1x4x1x18xbf16> to vector<4x18xbf16>
    %87 = vector.extract_strided_slice %84 {offsets = [0, 0], sizes = [4, 17], strides = [1, 1]} : vector<4x18xbf16> to vector<4x17xbf16>
    %88 = vector.extract_strided_slice %84 {offsets = [0, 1], sizes = [4, 17], strides = [1, 1]} : vector<4x18xbf16> to vector<4x17xbf16>
    %89 = vector.extract_strided_slice %86 {offsets = [0, 0], sizes = [4, 17], strides = [1, 1]} : vector<4x18xbf16> to vector<4x17xbf16>
    %90 = vector.extract_strided_slice %86 {offsets = [0, 1], sizes = [4, 17], strides = [1, 1]} : vector<4x18xbf16> to vector<4x17xbf16>
    %91 = tpu.concatenate %87, %88, %89, %90 in 0 : vector<4x17xbf16>, vector<4x17xbf16>, vector<4x17xbf16>, vector<4x17xbf16> -> vector<16x17xbf16>
    %cst_64 = arith.constant dense<0.000000e+00> : vector<32x17xf32>
    %92 = tpu.matmul %0, %91, %cst_64 {dimension_numbers = #tpu.dot_dimension_numbers<[1], [0], [0], [1], [0, 0, 1, 1], [], []>} : vector<32x16xbf16>, vector<16x17xbf16>, vector<32x17xf32> -> vector<32x17xf32>
    %93 = vector.broadcast %1 : vector<32x1xf32> to vector<32x17xf32>
    %94 = arith.mulf %92, %93 : vector<32x17xf32>
    %95 = vector.broadcast %2 : vector<32x1xf32> to vector<32x17xf32>
    %96 = arith.addf %94, %95 : vector<32x17xf32>
    %cst_65 = arith.constant 0.000000e+00 : f32
    %97 = vector.broadcast %cst_65 : f32 to vector<32x17xf32>
    %98 = arith.maximumf %96, %97 : vector<32x17xf32>
    %99 = arith.truncf %98 : vector<32x17xf32> to vector<32x17xbf16>
    %c0_66 = arith.constant 0 : index
    %c4_67 = arith.constant 4 : index
    %c0_68 = arith.constant 0 : index
    %c0_69 = arith.constant 0 : index
    %100 = vector.load %arg7[%c0_66, %c4_67, %c0_68, %c0_69] : memref<1x24x32x17xbf16, #tpu.memory_space<vmem>>, vector<1x1x32x17xbf16>
    %101 = vector.shape_cast %100 : vector<1x1x32x17xbf16> to vector<32x17xbf16>
    %102 = vector.shape_cast %99 : vector<32x17xbf16> to vector<1x1x32x17xbf16>
    tpu.vector_store %arg7[%c0_66, %c4_67, %c0_68, %c0_69], %102 {strides = array<i32>} : memref<1x24x32x17xbf16, #tpu.memory_space<vmem>>, vector<1x1x32x17xbf16>,
    %c0_70 = arith.constant 0 : index
    %c0_71 = arith.constant 0 : index
    %c5 = arith.constant 5 : index
    %c0_72 = arith.constant 0 : index
    %103 = vector.load %arg2[%c0_70, %c0_71, %c5, %c0_72] : memref<1x4x24x18xbf16, #tpu.memory_space<vmem>>, vector<1x4x1x18xbf16>
    %104 = vector.shape_cast %103 : vector<1x4x1x18xbf16> to vector<4x18xbf16>
    %c0_73 = arith.constant 0 : index
    %c0_74 = arith.constant 0 : index
    %c5_75 = arith.constant 5 : index
    %c0_76 = arith.constant 0 : index
    %105 = vector.load %arg3[%c0_73, %c0_74, %c5_75, %c0_76] : memref<1x4x24x18xbf16, #tpu.memory_space<vmem>>, vector<1x4x1x18xbf16>
    %106 = vector.shape_cast %105 : vector<1x4x1x18xbf16> to vector<4x18xbf16>
    %107 = vector.extract_strided_slice %104 {offsets = [0, 0], sizes = [4, 17], strides = [1, 1]} : vector<4x18xbf16> to vector<4x17xbf16>
    %108 = vector.extract_strided_slice %104 {offsets = [0, 1], sizes = [4, 17], strides = [1, 1]} : vector<4x18xbf16> to vector<4x17xbf16>
    %109 = vector.extract_strided_slice %106 {offsets = [0, 0], sizes = [4, 17], strides = [1, 1]} : vector<4x18xbf16> to vector<4x17xbf16>
    %110 = vector.extract_strided_slice %106 {offsets = [0, 1], sizes = [4, 17], strides = [1, 1]} : vector<4x18xbf16> to vector<4x17xbf16>
    %111 = tpu.concatenate %107, %108, %109, %110 in 0 : vector<4x17xbf16>, vector<4x17xbf16>, vector<4x17xbf16>, vector<4x17xbf16> -> vector<16x17xbf16>
    %cst_77 = arith.constant dense<0.000000e+00> : vector<32x17xf32>
    %112 = tpu.matmul %0, %111, %cst_77 {dimension_numbers = #tpu.dot_dimension_numbers<[1], [0], [0], [1], [0, 0, 1, 1], [], []>} : vector<32x16xbf16>, vector<16x17xbf16>, vector<32x17xf32> -> vector<32x17xf32>
    %113 = vector.broadcast %1 : vector<32x1xf32> to vector<32x17xf32>
    %114 = arith.mulf %112, %113 : vector<32x17xf32>
    %115 = vector.broadcast %2 : vector<32x1xf32> to vector<32x17xf32>
    %116 = arith.addf %114, %115 : vector<32x17xf32>
    %cst_78 = arith.constant 0.000000e+00 : f32
    %117 = vector.broadcast %cst_78 : f32 to vector<32x17xf32>
    %118 = arith.maximumf %116, %117 : vector<32x17xf32>
    %119 = arith.truncf %118 : vector<32x17xf32> to vector<32x17xbf16>
    %c0_79 = arith.constant 0 : index
    %c5_80 = arith.constant 5 : index
    %c0_81 = arith.constant 0 : index
    %c0_82 = arith.constant 0 : index
    %120 = vector.load %arg7[%c0_79, %c5_80, %c0_81, %c0_82] : memref<1x24x32x17xbf16, #tpu.memory_space<vmem>>, vector<1x1x32x17xbf16>
    %121 = vector.shape_cast %120 : vector<1x1x32x17xbf16> to vector<32x17xbf16>
    %122 = vector.shape_cast %119 : vector<32x17xbf16> to vector<1x1x32x17xbf16>
    tpu.vector_store %arg7[%c0_79, %c5_80, %c0_81, %c0_82], %122 {strides = array<i32>} : memref<1x24x32x17xbf16, #tpu.memory_space<vmem>>, vector<1x1x32x17xbf16>,
    %c0_83 = arith.constant 0 : index
    %c0_84 = arith.constant 0 : index
    %c6 = arith.constant 6 : index
    %c0_85 = arith.constant 0 : index
    %123 = vector.load %arg2[%c0_83, %c0_84, %c6, %c0_85] : memref<1x4x24x18xbf16, #tpu.memory_space<vmem>>, vector<1x4x1x18xbf16>
    %124 = vector.shape_cast %123 : vector<1x4x1x18xbf16> to vector<4x18xbf16>
    %c0_86 = arith.constant 0 : index
    %c0_87 = arith.constant 0 : index
    %c6_88 = arith.constant 6 : index
    %c0_89 = arith.constant 0 : index
    %125 = vector.load %arg3[%c0_86, %c0_87, %c6_88, %c0_89] : memref<1x4x24x18xbf16, #tpu.memory_space<vmem>>, vector<1x4x1x18xbf16>
    %126 = vector.shape_cast %125 : vector<1x4x1x18xbf16> to vector<4x18xbf16>
    %127 = vector.extract_strided_slice %124 {offsets = [0, 0], sizes = [4, 17], strides = [1, 1]} : vector<4x18xbf16> to vector<4x17xbf16>
    %128 = vector.extract_strided_slice %124 {offsets = [0, 1], sizes = [4, 17], strides = [1, 1]} : vector<4x18xbf16> to vector<4x17xbf16>
    %129 = vector.extract_strided_slice %126 {offsets = [0, 0], sizes = [4, 17], strides = [1, 1]} : vector<4x18xbf16> to vector<4x17xbf16>
    %130 = vector.extract_strided_slice %126 {offsets = [0, 1], sizes = [4, 17], strides = [1, 1]} : vector<4x18xbf16> to vector<4x17xbf16>
    %131 = tpu.concatenate %127, %128, %129, %130 in 0 : vector<4x17xbf16>, vector<4x17xbf16>, vector<4x17xbf16>, vector<4x17xbf16> -> vector<16x17xbf16>
    %cst_90 = arith.constant dense<0.000000e+00> : vector<32x17xf32>
    %132 = tpu.matmul %0, %131, %cst_90 {dimension_numbers = #tpu.dot_dimension_numbers<[1], [0], [0], [1], [0, 0, 1, 1], [], []>} : vector<32x16xbf16>, vector<16x17xbf16>, vector<32x17xf32> -> vector<32x17xf32>
    %133 = vector.broadcast %1 : vector<32x1xf32> to vector<32x17xf32>
    %134 = arith.mulf %132, %133 : vector<32x17xf32>
    %135 = vector.broadcast %2 : vector<32x1xf32> to vector<32x17xf32>
    %136 = arith.addf %134, %135 : vector<32x17xf32>
    %cst_91 = arith.constant 0.000000e+00 : f32
    %137 = vector.broadcast %cst_91 : f32 to vector<32x17xf32>
    %138 = arith.maximumf %136, %137 : vector<32x17xf32>
    %139 = arith.truncf %138 : vector<32x17xf32> to vector<32x17xbf16>
    %c0_92 = arith.constant 0 : index
    %c6_93 = arith.constant 6 : index
    %c0_94 = arith.constant 0 : index
    %c0_95 = arith.constant 0 : index
    %140 = vector.load %arg7[%c0_92, %c6_93, %c0_94, %c0_95] : memref<1x24x32x17xbf16, #tpu.memory_space<vmem>>, vector<1x1x32x17xbf16>
    %141 = vector.shape_cast %140 : vector<1x1x32x17xbf16> to vector<32x17xbf16>
    %142 = vector.shape_cast %139 : vector<32x17xbf16> to vector<1x1x32x17xbf16>
    tpu.vector_store %arg7[%c0_92, %c6_93, %c0_94, %c0_95], %142 {strides = array<i32>} : memref<1x24x32x17xbf16, #tpu.memory_space<vmem>>, vector<1x1x32x17xbf16>,
    %c0_96 = arith.constant 0 : index
    %c0_97 = arith.constant 0 : index
    %c7 = arith.constant 7 : index
    %c0_98 = arith.constant 0 : index
    %143 = vector.load %arg2[%c0_96, %c0_97, %c7, %c0_98] : memref<1x4x24x18xbf16, #tpu.memory_space<vmem>>, vector<1x4x1x18xbf16>
    %144 = vector.shape_cast %143 : vector<1x4x1x18xbf16> to vector<4x18xbf16>
    %c0_99 = arith.constant 0 : index
    %c0_100 = arith.constant 0 : index
    %c7_101 = arith.constant 7 : index
    %c0_102 = arith.constant 0 : index
    %145 = vector.load %arg3[%c0_99, %c0_100, %c7_101, %c0_102] : memref<1x4x24x18xbf16, #tpu.memory_space<vmem>>, vector<1x4x1x18xbf16>
    %146 = vector.shape_cast %145 : vector<1x4x1x18xbf16> to vector<4x18xbf16>
    %147 = vector.extract_strided_slice %144 {offsets = [0, 0], sizes = [4, 17], strides = [1, 1]} : vector<4x18xbf16> to vector<4x17xbf16>
    %148 = vector.extract_strided_slice %144 {offsets = [0, 1], sizes = [4, 17], strides = [1, 1]} : vector<4x18xbf16> to vector<4x17xbf16>
    %149 = vector.extract_strided_slice %146 {offsets = [0, 0], sizes = [4, 17], strides = [1, 1]} : vector<4x18xbf16> to vector<4x17xbf16>
    %150 = vector.extract_strided_slice %146 {offsets = [0, 1], sizes = [4, 17], strides = [1, 1]} : vector<4x18xbf16> to vector<4x17xbf16>
    %151 = tpu.concatenate %147, %148, %149, %150 in 0 : vector<4x17xbf16>, vector<4x17xbf16>, vector<4x17xbf16>, vector<4x17xbf16> -> vector<16x17xbf16>
    %cst_103 = arith.constant dense<0.000000e+00> : vector<32x17xf32>
    %152 = tpu.matmul %0, %151, %cst_103 {dimension_numbers = #tpu.dot_dimension_numbers<[1], [0], [0], [1], [0, 0, 1, 1], [], []>} : vector<32x16xbf16>, vector<16x17xbf16>, vector<32x17xf32> -> vector<32x17xf32>
    %153 = vector.broadcast %1 : vector<32x1xf32> to vector<32x17xf32>
    %154 = arith.mulf %152, %153 : vector<32x17xf32>
    %155 = vector.broadcast %2 : vector<32x1xf32> to vector<32x17xf32>
    %156 = arith.addf %154, %155 : vector<32x17xf32>
    %cst_104 = arith.constant 0.000000e+00 : f32
    %157 = vector.broadcast %cst_104 : f32 to vector<32x17xf32>
    %158 = arith.maximumf %156, %157 : vector<32x17xf32>
    %159 = arith.truncf %158 : vector<32x17xf32> to vector<32x17xbf16>
    %c0_105 = arith.constant 0 : index
    %c7_106 = arith.constant 7 : index
    %c0_107 = arith.constant 0 : index
    %c0_108 = arith.constant 0 : index
    %160 = vector.load %arg7[%c0_105, %c7_106, %c0_107, %c0_108] : memref<1x24x32x17xbf16, #tpu.memory_space<vmem>>, vector<1x1x32x17xbf16>
    %161 = vector.shape_cast %160 : vector<1x1x32x17xbf16> to vector<32x17xbf16>
    %162 = vector.shape_cast %159 : vector<32x17xbf16> to vector<1x1x32x17xbf16>
    tpu.vector_store %arg7[%c0_105, %c7_106, %c0_107, %c0_108], %162 {strides = array<i32>} : memref<1x24x32x17xbf16, #tpu.memory_space<vmem>>, vector<1x1x32x17xbf16>,
    %c0_109 = arith.constant 0 : index
    %c0_110 = arith.constant 0 : index
    %c8 = arith.constant 8 : index
    %c0_111 = arith.constant 0 : index
    %163 = vector.load %arg2[%c0_109, %c0_110, %c8, %c0_111] : memref<1x4x24x18xbf16, #tpu.memory_space<vmem>>, vector<1x4x1x18xbf16>
    %164 = vector.shape_cast %163 : vector<1x4x1x18xbf16> to vector<4x18xbf16>
    %c0_112 = arith.constant 0 : index
    %c0_113 = arith.constant 0 : index
    %c8_114 = arith.constant 8 : index
    %c0_115 = arith.constant 0 : index
    %165 = vector.load %arg3[%c0_112, %c0_113, %c8_114, %c0_115] : memref<1x4x24x18xbf16, #tpu.memory_space<vmem>>, vector<1x4x1x18xbf16>
    %166 = vector.shape_cast %165 : vector<1x4x1x18xbf16> to vector<4x18xbf16>
    %167 = vector.extract_strided_slice %164 {offsets = [0, 0], sizes = [4, 17], strides = [1, 1]} : vector<4x18xbf16> to vector<4x17xbf16>
    %168 = vector.extract_strided_slice %164 {offsets = [0, 1], sizes = [4, 17], strides = [1, 1]} : vector<4x18xbf16> to vector<4x17xbf16>
    %169 = vector.extract_strided_slice %166 {offsets = [0, 0], sizes = [4, 17], strides = [1, 1]} : vector<4x18xbf16> to vector<4x17xbf16>
    %170 = vector.extract_strided_slice %166 {offsets = [0, 1], sizes = [4, 17], strides = [1, 1]} : vector<4x18xbf16> to vector<4x17xbf16>
    %171 = tpu.concatenate %167, %168, %169, %170 in 0 : vector<4x17xbf16>, vector<4x17xbf16>, vector<4x17xbf16>, vector<4x17xbf16> -> vector<16x17xbf16>
    %cst_116 = arith.constant dense<0.000000e+00> : vector<32x17xf32>
    %172 = tpu.matmul %0, %171, %cst_116 {dimension_numbers = #tpu.dot_dimension_numbers<[1], [0], [0], [1], [0, 0, 1, 1], [], []>} : vector<32x16xbf16>, vector<16x17xbf16>, vector<32x17xf32> -> vector<32x17xf32>
    %173 = vector.broadcast %1 : vector<32x1xf32> to vector<32x17xf32>
    %174 = arith.mulf %172, %173 : vector<32x17xf32>
    %175 = vector.broadcast %2 : vector<32x1xf32> to vector<32x17xf32>
    %176 = arith.addf %174, %175 : vector<32x17xf32>
    %cst_117 = arith.constant 0.000000e+00 : f32
    %177 = vector.broadcast %cst_117 : f32 to vector<32x17xf32>
    %178 = arith.maximumf %176, %177 : vector<32x17xf32>
    %179 = arith.truncf %178 : vector<32x17xf32> to vector<32x17xbf16>
    %c0_118 = arith.constant 0 : index
    %c8_119 = arith.constant 8 : index
    %c0_120 = arith.constant 0 : index
    %c0_121 = arith.constant 0 : index
    %180 = vector.load %arg7[%c0_118, %c8_119, %c0_120, %c0_121] : memref<1x24x32x17xbf16, #tpu.memory_space<vmem>>, vector<1x1x32x17xbf16>
    %181 = vector.shape_cast %180 : vector<1x1x32x17xbf16> to vector<32x17xbf16>
    %182 = vector.shape_cast %179 : vector<32x17xbf16> to vector<1x1x32x17xbf16>
    tpu.vector_store %arg7[%c0_118, %c8_119, %c0_120, %c0_121], %182 {strides = array<i32>} : memref<1x24x32x17xbf16, #tpu.memory_space<vmem>>, vector<1x1x32x17xbf16>,
    %c0_122 = arith.constant 0 : index
    %c0_123 = arith.constant 0 : index
    %c9 = arith.constant 9 : index
    %c0_124 = arith.constant 0 : index
    %183 = vector.load %arg2[%c0_122, %c0_123, %c9, %c0_124] : memref<1x4x24x18xbf16, #tpu.memory_space<vmem>>, vector<1x4x1x18xbf16>
    %184 = vector.shape_cast %183 : vector<1x4x1x18xbf16> to vector<4x18xbf16>
    %c0_125 = arith.constant 0 : index
    %c0_126 = arith.constant 0 : index
    %c9_127 = arith.constant 9 : index
    %c0_128 = arith.constant 0 : index
    %185 = vector.load %arg3[%c0_125, %c0_126, %c9_127, %c0_128] : memref<1x4x24x18xbf16, #tpu.memory_space<vmem>>, vector<1x4x1x18xbf16>
    %186 = vector.shape_cast %185 : vector<1x4x1x18xbf16> to vector<4x18xbf16>
    %187 = vector.extract_strided_slice %184 {offsets = [0, 0], sizes = [4, 17], strides = [1, 1]} : vector<4x18xbf16> to vector<4x17xbf16>
    %188 = vector.extract_strided_slice %184 {offsets = [0, 1], sizes = [4, 17], strides = [1, 1]} : vector<4x18xbf16> to vector<4x17xbf16>
    %189 = vector.extract_strided_slice %186 {offsets = [0, 0], sizes = [4, 17], strides = [1, 1]} : vector<4x18xbf16> to vector<4x17xbf16>
    %190 = vector.extract_strided_slice %186 {offsets = [0, 1], sizes = [4, 17], strides = [1, 1]} : vector<4x18xbf16> to vector<4x17xbf16>
    %191 = tpu.concatenate %187, %188, %189, %190 in 0 : vector<4x17xbf16>, vector<4x17xbf16>, vector<4x17xbf16>, vector<4x17xbf16> -> vector<16x17xbf16>
    %cst_129 = arith.constant dense<0.000000e+00> : vector<32x17xf32>
    %192 = tpu.matmul %0, %191, %cst_129 {dimension_numbers = #tpu.dot_dimension_numbers<[1], [0], [0], [1], [0, 0, 1, 1], [], []>} : vector<32x16xbf16>, vector<16x17xbf16>, vector<32x17xf32> -> vector<32x17xf32>
    %193 = vector.broadcast %1 : vector<32x1xf32> to vector<32x17xf32>
    %194 = arith.mulf %192, %193 : vector<32x17xf32>
    %195 = vector.broadcast %2 : vector<32x1xf32> to vector<32x17xf32>
    %196 = arith.addf %194, %195 : vector<32x17xf32>
    %cst_130 = arith.constant 0.000000e+00 : f32
    %197 = vector.broadcast %cst_130 : f32 to vector<32x17xf32>
    %198 = arith.maximumf %196, %197 : vector<32x17xf32>
    %199 = arith.truncf %198 : vector<32x17xf32> to vector<32x17xbf16>
    %c0_131 = arith.constant 0 : index
    %c9_132 = arith.constant 9 : index
    %c0_133 = arith.constant 0 : index
    %c0_134 = arith.constant 0 : index
    %200 = vector.load %arg7[%c0_131, %c9_132, %c0_133, %c0_134] : memref<1x24x32x17xbf16, #tpu.memory_space<vmem>>, vector<1x1x32x17xbf16>
    %201 = vector.shape_cast %200 : vector<1x1x32x17xbf16> to vector<32x17xbf16>
    %202 = vector.shape_cast %199 : vector<32x17xbf16> to vector<1x1x32x17xbf16>
    tpu.vector_store %arg7[%c0_131, %c9_132, %c0_133, %c0_134], %202 {strides = array<i32>} : memref<1x24x32x17xbf16, #tpu.memory_space<vmem>>, vector<1x1x32x17xbf16>,
    %c0_135 = arith.constant 0 : index
    %c0_136 = arith.constant 0 : index
    %c10 = arith.constant 10 : index
    %c0_137 = arith.constant 0 : index
    %203 = vector.load %arg2[%c0_135, %c0_136, %c10, %c0_137] : memref<1x4x24x18xbf16, #tpu.memory_space<vmem>>, vector<1x4x1x18xbf16>
    %204 = vector.shape_cast %203 : vector<1x4x1x18xbf16> to vector<4x18xbf16>
    %c0_138 = arith.constant 0 : index
    %c0_139 = arith.constant 0 : index
    %c10_140 = arith.constant 10 : index
    %c0_141 = arith.constant 0 : index
    %205 = vector.load %arg3[%c0_138, %c0_139, %c10_140, %c0_141] : memref<1x4x24x18xbf16, #tpu.memory_space<vmem>>, vector<1x4x1x18xbf16>
    %206 = vector.shape_cast %205 : vector<1x4x1x18xbf16> to vector<4x18xbf16>
    %207 = vector.extract_strided_slice %204 {offsets = [0, 0], sizes = [4, 17], strides = [1, 1]} : vector<4x18xbf16> to vector<4x17xbf16>
    %208 = vector.extract_strided_slice %204 {offsets = [0, 1], sizes = [4, 17], strides = [1, 1]} : vector<4x18xbf16> to vector<4x17xbf16>
    %209 = vector.extract_strided_slice %206 {offsets = [0, 0], sizes = [4, 17], strides = [1, 1]} : vector<4x18xbf16> to vector<4x17xbf16>
    %210 = vector.extract_strided_slice %206 {offsets = [0, 1], sizes = [4, 17], strides = [1, 1]} : vector<4x18xbf16> to vector<4x17xbf16>
    %211 = tpu.concatenate %207, %208, %209, %210 in 0 : vector<4x17xbf16>, vector<4x17xbf16>, vector<4x17xbf16>, vector<4x17xbf16> -> vector<16x17xbf16>
    %cst_142 = arith.constant dense<0.000000e+00> : vector<32x17xf32>
    %212 = tpu.matmul %0, %211, %cst_142 {dimension_numbers = #tpu.dot_dimension_numbers<[1], [0], [0], [1], [0, 0, 1, 1], [], []>} : vector<32x16xbf16>, vector<16x17xbf16>, vector<32x17xf32> -> vector<32x17xf32>
    %213 = vector.broadcast %1 : vector<32x1xf32> to vector<32x17xf32>
    %214 = arith.mulf %212, %213 : vector<32x17xf32>
    %215 = vector.broadcast %2 : vector<32x1xf32> to vector<32x17xf32>
    %216 = arith.addf %214, %215 : vector<32x17xf32>
    %cst_143 = arith.constant 0.000000e+00 : f32
    %217 = vector.broadcast %cst_143 : f32 to vector<32x17xf32>
    %218 = arith.maximumf %216, %217 : vector<32x17xf32>
    %219 = arith.truncf %218 : vector<32x17xf32> to vector<32x17xbf16>
    %c0_144 = arith.constant 0 : index
    %c10_145 = arith.constant 10 : index
    %c0_146 = arith.constant 0 : index
    %c0_147 = arith.constant 0 : index
    %220 = vector.load %arg7[%c0_144, %c10_145, %c0_146, %c0_147] : memref<1x24x32x17xbf16, #tpu.memory_space<vmem>>, vector<1x1x32x17xbf16>
    %221 = vector.shape_cast %220 : vector<1x1x32x17xbf16> to vector<32x17xbf16>
    %222 = vector.shape_cast %219 : vector<32x17xbf16> to vector<1x1x32x17xbf16>
    tpu.vector_store %arg7[%c0_144, %c10_145, %c0_146, %c0_147], %222 {strides = array<i32>} : memref<1x24x32x17xbf16, #tpu.memory_space<vmem>>, vector<1x1x32x17xbf16>,
    %c0_148 = arith.constant 0 : index
    %c0_149 = arith.constant 0 : index
    %c11 = arith.constant 11 : index
    %c0_150 = arith.constant 0 : index
    %223 = vector.load %arg2[%c0_148, %c0_149, %c11, %c0_150] : memref<1x4x24x18xbf16, #tpu.memory_space<vmem>>, vector<1x4x1x18xbf16>
    %224 = vector.shape_cast %223 : vector<1x4x1x18xbf16> to vector<4x18xbf16>
    %c0_151 = arith.constant 0 : index
    %c0_152 = arith.constant 0 : index
    %c11_153 = arith.constant 11 : index
    %c0_154 = arith.constant 0 : index
    %225 = vector.load %arg3[%c0_151, %c0_152, %c11_153, %c0_154] : memref<1x4x24x18xbf16, #tpu.memory_space<vmem>>, vector<1x4x1x18xbf16>
    %226 = vector.shape_cast %225 : vector<1x4x1x18xbf16> to vector<4x18xbf16>
    %227 = vector.extract_strided_slice %224 {offsets = [0, 0], sizes = [4, 17], strides = [1, 1]} : vector<4x18xbf16> to vector<4x17xbf16>
    %228 = vector.extract_strided_slice %224 {offsets = [0, 1], sizes = [4, 17], strides = [1, 1]} : vector<4x18xbf16> to vector<4x17xbf16>
    %229 = vector.extract_strided_slice %226 {offsets = [0, 0], sizes = [4, 17], strides = [1, 1]} : vector<4x18xbf16> to vector<4x17xbf16>
    %230 = vector.extract_strided_slice %226 {offsets = [0, 1], sizes = [4, 17], strides = [1, 1]} : vector<4x18xbf16> to vector<4x17xbf16>
    %231 = tpu.concatenate %227, %228, %229, %230 in 0 : vector<4x17xbf16>, vector<4x17xbf16>, vector<4x17xbf16>, vector<4x17xbf16> -> vector<16x17xbf16>
    %cst_155 = arith.constant dense<0.000000e+00> : vector<32x17xf32>
    %232 = tpu.matmul %0, %231, %cst_155 {dimension_numbers = #tpu.dot_dimension_numbers<[1], [0], [0], [1], [0, 0, 1, 1], [], []>} : vector<32x16xbf16>, vector<16x17xbf16>, vector<32x17xf32> -> vector<32x17xf32>
    %233 = vector.broadcast %1 : vector<32x1xf32> to vector<32x17xf32>
    %234 = arith.mulf %232, %233 : vector<32x17xf32>
    %235 = vector.broadcast %2 : vector<32x1xf32> to vector<32x17xf32>
    %236 = arith.addf %234, %235 : vector<32x17xf32>
    %cst_156 = arith.constant 0.000000e+00 : f32
    %237 = vector.broadcast %cst_156 : f32 to vector<32x17xf32>
    %238 = arith.maximumf %236, %237 : vector<32x17xf32>
    %239 = arith.truncf %238 : vector<32x17xf32> to vector<32x17xbf16>
    %c0_157 = arith.constant 0 : index
    %c11_158 = arith.constant 11 : index
    %c0_159 = arith.constant 0 : index
    %c0_160 = arith.constant 0 : index
    %240 = vector.load %arg7[%c0_157, %c11_158, %c0_159, %c0_160] : memref<1x24x32x17xbf16, #tpu.memory_space<vmem>>, vector<1x1x32x17xbf16>
    %241 = vector.shape_cast %240 : vector<1x1x32x17xbf16> to vector<32x17xbf16>
    %242 = vector.shape_cast %239 : vector<32x17xbf16> to vector<1x1x32x17xbf16>
    tpu.vector_store %arg7[%c0_157, %c11_158, %c0_159, %c0_160], %242 {strides = array<i32>} : memref<1x24x32x17xbf16, #tpu.memory_space<vmem>>, vector<1x1x32x17xbf16>,
    %c0_161 = arith.constant 0 : index
    %c0_162 = arith.constant 0 : index
    %c12 = arith.constant 12 : index
    %c0_163 = arith.constant 0 : index
    %243 = vector.load %arg2[%c0_161, %c0_162, %c12, %c0_163] : memref<1x4x24x18xbf16, #tpu.memory_space<vmem>>, vector<1x4x1x18xbf16>
    %244 = vector.shape_cast %243 : vector<1x4x1x18xbf16> to vector<4x18xbf16>
    %c0_164 = arith.constant 0 : index
    %c0_165 = arith.constant 0 : index
    %c12_166 = arith.constant 12 : index
    %c0_167 = arith.constant 0 : index
    %245 = vector.load %arg3[%c0_164, %c0_165, %c12_166, %c0_167] : memref<1x4x24x18xbf16, #tpu.memory_space<vmem>>, vector<1x4x1x18xbf16>
    %246 = vector.shape_cast %245 : vector<1x4x1x18xbf16> to vector<4x18xbf16>
    %247 = vector.extract_strided_slice %244 {offsets = [0, 0], sizes = [4, 17], strides = [1, 1]} : vector<4x18xbf16> to vector<4x17xbf16>
    %248 = vector.extract_strided_slice %244 {offsets = [0, 1], sizes = [4, 17], strides = [1, 1]} : vector<4x18xbf16> to vector<4x17xbf16>
    %249 = vector.extract_strided_slice %246 {offsets = [0, 0], sizes = [4, 17], strides = [1, 1]} : vector<4x18xbf16> to vector<4x17xbf16>
    %250 = vector.extract_strided_slice %246 {offsets = [0, 1], sizes = [4, 17], strides = [1, 1]} : vector<4x18xbf16> to vector<4x17xbf16>
    %251 = tpu.concatenate %247, %248, %249, %250 in 0 : vector<4x17xbf16>, vector<4x17xbf16>, vector<4x17xbf16>, vector<4x17xbf16> -> vector<16x17xbf16>
    %cst_168 = arith.constant dense<0.000000e+00> : vector<32x17xf32>
    %252 = tpu.matmul %0, %251, %cst_168 {dimension_numbers = #tpu.dot_dimension_numbers<[1], [0], [0], [1], [0, 0, 1, 1], [], []>} : vector<32x16xbf16>, vector<16x17xbf16>, vector<32x17xf32> -> vector<32x17xf32>
    %253 = vector.broadcast %1 : vector<32x1xf32> to vector<32x17xf32>
    %254 = arith.mulf %252, %253 : vector<32x17xf32>
    %255 = vector.broadcast %2 : vector<32x1xf32> to vector<32x17xf32>
    %256 = arith.addf %254, %255 : vector<32x17xf32>
    %cst_169 = arith.constant 0.000000e+00 : f32
    %257 = vector.broadcast %cst_169 : f32 to vector<32x17xf32>
    %258 = arith.maximumf %256, %257 : vector<32x17xf32>
    %259 = arith.truncf %258 : vector<32x17xf32> to vector<32x17xbf16>
    %c0_170 = arith.constant 0 : index
    %c12_171 = arith.constant 12 : index
    %c0_172 = arith.constant 0 : index
    %c0_173 = arith.constant 0 : index
    %260 = vector.load %arg7[%c0_170, %c12_171, %c0_172, %c0_173] : memref<1x24x32x17xbf16, #tpu.memory_space<vmem>>, vector<1x1x32x17xbf16>
    %261 = vector.shape_cast %260 : vector<1x1x32x17xbf16> to vector<32x17xbf16>
    %262 = vector.shape_cast %259 : vector<32x17xbf16> to vector<1x1x32x17xbf16>
    tpu.vector_store %arg7[%c0_170, %c12_171, %c0_172, %c0_173], %262 {strides = array<i32>} : memref<1x24x32x17xbf16, #tpu.memory_space<vmem>>, vector<1x1x32x17xbf16>,
    %c0_174 = arith.constant 0 : index
    %c0_175 = arith.constant 0 : index
    %c13 = arith.constant 13 : index
    %c0_176 = arith.constant 0 : index
    %263 = vector.load %arg2[%c0_174, %c0_175, %c13, %c0_176] : memref<1x4x24x18xbf16, #tpu.memory_space<vmem>>, vector<1x4x1x18xbf16>
    %264 = vector.shape_cast %263 : vector<1x4x1x18xbf16> to vector<4x18xbf16>
    %c0_177 = arith.constant 0 : index
    %c0_178 = arith.constant 0 : index
    %c13_179 = arith.constant 13 : index
    %c0_180 = arith.constant 0 : index
    %265 = vector.load %arg3[%c0_177, %c0_178, %c13_179, %c0_180] : memref<1x4x24x18xbf16, #tpu.memory_space<vmem>>, vector<1x4x1x18xbf16>
    %266 = vector.shape_cast %265 : vector<1x4x1x18xbf16> to vector<4x18xbf16>
    %267 = vector.extract_strided_slice %264 {offsets = [0, 0], sizes = [4, 17], strides = [1, 1]} : vector<4x18xbf16> to vector<4x17xbf16>
    %268 = vector.extract_strided_slice %264 {offsets = [0, 1], sizes = [4, 17], strides = [1, 1]} : vector<4x18xbf16> to vector<4x17xbf16>
    %269 = vector.extract_strided_slice %266 {offsets = [0, 0], sizes = [4, 17], strides = [1, 1]} : vector<4x18xbf16> to vector<4x17xbf16>
    %270 = vector.extract_strided_slice %266 {offsets = [0, 1], sizes = [4, 17], strides = [1, 1]} : vector<4x18xbf16> to vector<4x17xbf16>
    %271 = tpu.concatenate %267, %268, %269, %270 in 0 : vector<4x17xbf16>, vector<4x17xbf16>, vector<4x17xbf16>, vector<4x17xbf16> -> vector<16x17xbf16>
    %cst_181 = arith.constant dense<0.000000e+00> : vector<32x17xf32>
    %272 = tpu.matmul %0, %271, %cst_181 {dimension_numbers = #tpu.dot_dimension_numbers<[1], [0], [0], [1], [0, 0, 1, 1], [], []>} : vector<32x16xbf16>, vector<16x17xbf16>, vector<32x17xf32> -> vector<32x17xf32>
    %273 = vector.broadcast %1 : vector<32x1xf32> to vector<32x17xf32>
    %274 = arith.mulf %272, %273 : vector<32x17xf32>
    %275 = vector.broadcast %2 : vector<32x1xf32> to vector<32x17xf32>
    %276 = arith.addf %274, %275 : vector<32x17xf32>
    %cst_182 = arith.constant 0.000000e+00 : f32
    %277 = vector.broadcast %cst_182 : f32 to vector<32x17xf32>
    %278 = arith.maximumf %276, %277 : vector<32x17xf32>
    %279 = arith.truncf %278 : vector<32x17xf32> to vector<32x17xbf16>
    %c0_183 = arith.constant 0 : index
    %c13_184 = arith.constant 13 : index
    %c0_185 = arith.constant 0 : index
    %c0_186 = arith.constant 0 : index
    %280 = vector.load %arg7[%c0_183, %c13_184, %c0_185, %c0_186] : memref<1x24x32x17xbf16, #tpu.memory_space<vmem>>, vector<1x1x32x17xbf16>
    %281 = vector.shape_cast %280 : vector<1x1x32x17xbf16> to vector<32x17xbf16>
    %282 = vector.shape_cast %279 : vector<32x17xbf16> to vector<1x1x32x17xbf16>
    tpu.vector_store %arg7[%c0_183, %c13_184, %c0_185, %c0_186], %282 {strides = array<i32>} : memref<1x24x32x17xbf16, #tpu.memory_space<vmem>>, vector<1x1x32x17xbf16>,
    %c0_187 = arith.constant 0 : index
    %c0_188 = arith.constant 0 : index
    %c14 = arith.constant 14 : index
    %c0_189 = arith.constant 0 : index
    %283 = vector.load %arg2[%c0_187, %c0_188, %c14, %c0_189] : memref<1x4x24x18xbf16, #tpu.memory_space<vmem>>, vector<1x4x1x18xbf16>
    %284 = vector.shape_cast %283 : vector<1x4x1x18xbf16> to vector<4x18xbf16>
    %c0_190 = arith.constant 0 : index
    %c0_191 = arith.constant 0 : index
    %c14_192 = arith.constant 14 : index
    %c0_193 = arith.constant 0 : index
    %285 = vector.load %arg3[%c0_190, %c0_191, %c14_192, %c0_193] : memref<1x4x24x18xbf16, #tpu.memory_space<vmem>>, vector<1x4x1x18xbf16>
    %286 = vector.shape_cast %285 : vector<1x4x1x18xbf16> to vector<4x18xbf16>
    %287 = vector.extract_strided_slice %284 {offsets = [0, 0], sizes = [4, 17], strides = [1, 1]} : vector<4x18xbf16> to vector<4x17xbf16>
    %288 = vector.extract_strided_slice %284 {offsets = [0, 1], sizes = [4, 17], strides = [1, 1]} : vector<4x18xbf16> to vector<4x17xbf16>
    %289 = vector.extract_strided_slice %286 {offsets = [0, 0], sizes = [4, 17], strides = [1, 1]} : vector<4x18xbf16> to vector<4x17xbf16>
    %290 = vector.extract_strided_slice %286 {offsets = [0, 1], sizes = [4, 17], strides = [1, 1]} : vector<4x18xbf16> to vector<4x17xbf16>
    %291 = tpu.concatenate %287, %288, %289, %290 in 0 : vector<4x17xbf16>, vector<4x17xbf16>, vector<4x17xbf16>, vector<4x17xbf16> -> vector<16x17xbf16>
    %cst_194 = arith.constant dense<0.000000e+00> : vector<32x17xf32>
    %292 = tpu.matmul %0, %291, %cst_194 {dimension_numbers = #tpu.dot_dimension_numbers<[1], [0], [0], [1], [0, 0, 1, 1], [], []>} : vector<32x16xbf16>, vector<16x17xbf16>, vector<32x17xf32> -> vector<32x17xf32>
    %293 = vector.broadcast %1 : vector<32x1xf32> to vector<32x17xf32>
    %294 = arith.mulf %292, %293 : vector<32x17xf32>
    %295 = vector.broadcast %2 : vector<32x1xf32> to vector<32x17xf32>
    %296 = arith.addf %294, %295 : vector<32x17xf32>
    %cst_195 = arith.constant 0.000000e+00 : f32
    %297 = vector.broadcast %cst_195 : f32 to vector<32x17xf32>
    %298 = arith.maximumf %296, %297 : vector<32x17xf32>
    %299 = arith.truncf %298 : vector<32x17xf32> to vector<32x17xbf16>
    %c0_196 = arith.constant 0 : index
    %c14_197 = arith.constant 14 : index
    %c0_198 = arith.constant 0 : index
    %c0_199 = arith.constant 0 : index
    %300 = vector.load %arg7[%c0_196, %c14_197, %c0_198, %c0_199] : memref<1x24x32x17xbf16, #tpu.memory_space<vmem>>, vector<1x1x32x17xbf16>
    %301 = vector.shape_cast %300 : vector<1x1x32x17xbf16> to vector<32x17xbf16>
    %302 = vector.shape_cast %299 : vector<32x17xbf16> to vector<1x1x32x17xbf16>
    tpu.vector_store %arg7[%c0_196, %c14_197, %c0_198, %c0_199], %302 {strides = array<i32>} : memref<1x24x32x17xbf16, #tpu.memory_space<vmem>>, vector<1x1x32x17xbf16>,
    %c0_200 = arith.constant 0 : index
    %c0_201 = arith.constant 0 : index
    %c15 = arith.constant 15 : index
    %c0_202 = arith.constant 0 : index
    %303 = vector.load %arg2[%c0_200, %c0_201, %c15, %c0_202] : memref<1x4x24x18xbf16, #tpu.memory_space<vmem>>, vector<1x4x1x18xbf16>
    %304 = vector.shape_cast %303 : vector<1x4x1x18xbf16> to vector<4x18xbf16>
    %c0_203 = arith.constant 0 : index
    %c0_204 = arith.constant 0 : index
    %c15_205 = arith.constant 15 : index
    %c0_206 = arith.constant 0 : index
    %305 = vector.load %arg3[%c0_203, %c0_204, %c15_205, %c0_206] : memref<1x4x24x18xbf16, #tpu.memory_space<vmem>>, vector<1x4x1x18xbf16>
    %306 = vector.shape_cast %305 : vector<1x4x1x18xbf16> to vector<4x18xbf16>
    %307 = vector.extract_strided_slice %304 {offsets = [0, 0], sizes = [4, 17], strides = [1, 1]} : vector<4x18xbf16> to vector<4x17xbf16>
    %308 = vector.extract_strided_slice %304 {offsets = [0, 1], sizes = [4, 17], strides = [1, 1]} : vector<4x18xbf16> to vector<4x17xbf16>
    %309 = vector.extract_strided_slice %306 {offsets = [0, 0], sizes = [4, 17], strides = [1, 1]} : vector<4x18xbf16> to vector<4x17xbf16>
    %310 = vector.extract_strided_slice %306 {offsets = [0, 1], sizes = [4, 17], strides = [1, 1]} : vector<4x18xbf16> to vector<4x17xbf16>
    %311 = tpu.concatenate %307, %308, %309, %310 in 0 : vector<4x17xbf16>, vector<4x17xbf16>, vector<4x17xbf16>, vector<4x17xbf16> -> vector<16x17xbf16>
    %cst_207 = arith.constant dense<0.000000e+00> : vector<32x17xf32>
    %312 = tpu.matmul %0, %311, %cst_207 {dimension_numbers = #tpu.dot_dimension_numbers<[1], [0], [0], [1], [0, 0, 1, 1], [], []>} : vector<32x16xbf16>, vector<16x17xbf16>, vector<32x17xf32> -> vector<32x17xf32>
    %313 = vector.broadcast %1 : vector<32x1xf32> to vector<32x17xf32>
    %314 = arith.mulf %312, %313 : vector<32x17xf32>
    %315 = vector.broadcast %2 : vector<32x1xf32> to vector<32x17xf32>
    %316 = arith.addf %314, %315 : vector<32x17xf32>
    %cst_208 = arith.constant 0.000000e+00 : f32
    %317 = vector.broadcast %cst_208 : f32 to vector<32x17xf32>
    %318 = arith.maximumf %316, %317 : vector<32x17xf32>
    %319 = arith.truncf %318 : vector<32x17xf32> to vector<32x17xbf16>
    %c0_209 = arith.constant 0 : index
    %c15_210 = arith.constant 15 : index
    %c0_211 = arith.constant 0 : index
    %c0_212 = arith.constant 0 : index
    %320 = vector.load %arg7[%c0_209, %c15_210, %c0_211, %c0_212] : memref<1x24x32x17xbf16, #tpu.memory_space<vmem>>, vector<1x1x32x17xbf16>
    %321 = vector.shape_cast %320 : vector<1x1x32x17xbf16> to vector<32x17xbf16>
    %322 = vector.shape_cast %319 : vector<32x17xbf16> to vector<1x1x32x17xbf16>
    tpu.vector_store %arg7[%c0_209, %c15_210, %c0_211, %c0_212], %322 {strides = array<i32>} : memref<1x24x32x17xbf16, #tpu.memory_space<vmem>>, vector<1x1x32x17xbf16>,
    %c0_213 = arith.constant 0 : index
    %c0_214 = arith.constant 0 : index
    %c16 = arith.constant 16 : index
    %c0_215 = arith.constant 0 : index
    %323 = vector.load %arg2[%c0_213, %c0_214, %c16, %c0_215] : memref<1x4x24x18xbf16, #tpu.memory_space<vmem>>, vector<1x4x1x18xbf16>
    %324 = vector.shape_cast %323 : vector<1x4x1x18xbf16> to vector<4x18xbf16>
    %c0_216 = arith.constant 0 : index
    %c0_217 = arith.constant 0 : index
    %c16_218 = arith.constant 16 : index
    %c0_219 = arith.constant 0 : index
    %325 = vector.load %arg3[%c0_216, %c0_217, %c16_218, %c0_219] : memref<1x4x24x18xbf16, #tpu.memory_space<vmem>>, vector<1x4x1x18xbf16>
    %326 = vector.shape_cast %325 : vector<1x4x1x18xbf16> to vector<4x18xbf16>
    %327 = vector.extract_strided_slice %324 {offsets = [0, 0], sizes = [4, 17], strides = [1, 1]} : vector<4x18xbf16> to vector<4x17xbf16>
    %328 = vector.extract_strided_slice %324 {offsets = [0, 1], sizes = [4, 17], strides = [1, 1]} : vector<4x18xbf16> to vector<4x17xbf16>
    %329 = vector.extract_strided_slice %326 {offsets = [0, 0], sizes = [4, 17], strides = [1, 1]} : vector<4x18xbf16> to vector<4x17xbf16>
    %330 = vector.extract_strided_slice %326 {offsets = [0, 1], sizes = [4, 17], strides = [1, 1]} : vector<4x18xbf16> to vector<4x17xbf16>
    %331 = tpu.concatenate %327, %328, %329, %330 in 0 : vector<4x17xbf16>, vector<4x17xbf16>, vector<4x17xbf16>, vector<4x17xbf16> -> vector<16x17xbf16>
    %cst_220 = arith.constant dense<0.000000e+00> : vector<32x17xf32>
    %332 = tpu.matmul %0, %331, %cst_220 {dimension_numbers = #tpu.dot_dimension_numbers<[1], [0], [0], [1], [0, 0, 1, 1], [], []>} : vector<32x16xbf16>, vector<16x17xbf16>, vector<32x17xf32> -> vector<32x17xf32>
    %333 = vector.broadcast %1 : vector<32x1xf32> to vector<32x17xf32>
    %334 = arith.mulf %332, %333 : vector<32x17xf32>
    %335 = vector.broadcast %2 : vector<32x1xf32> to vector<32x17xf32>
    %336 = arith.addf %334, %335 : vector<32x17xf32>
    %cst_221 = arith.constant 0.000000e+00 : f32
    %337 = vector.broadcast %cst_221 : f32 to vector<32x17xf32>
    %338 = arith.maximumf %336, %337 : vector<32x17xf32>
    %339 = arith.truncf %338 : vector<32x17xf32> to vector<32x17xbf16>
    %c0_222 = arith.constant 0 : index
    %c16_223 = arith.constant 16 : index
    %c0_224 = arith.constant 0 : index
    %c0_225 = arith.constant 0 : index
    %340 = vector.load %arg7[%c0_222, %c16_223, %c0_224, %c0_225] : memref<1x24x32x17xbf16, #tpu.memory_space<vmem>>, vector<1x1x32x17xbf16>
    %341 = vector.shape_cast %340 : vector<1x1x32x17xbf16> to vector<32x17xbf16>
    %342 = vector.shape_cast %339 : vector<32x17xbf16> to vector<1x1x32x17xbf16>
    tpu.vector_store %arg7[%c0_222, %c16_223, %c0_224, %c0_225], %342 {strides = array<i32>} : memref<1x24x32x17xbf16, #tpu.memory_space<vmem>>, vector<1x1x32x17xbf16>,
    %c0_226 = arith.constant 0 : index
    %c0_227 = arith.constant 0 : index
    %c17 = arith.constant 17 : index
    %c0_228 = arith.constant 0 : index
    %343 = vector.load %arg2[%c0_226, %c0_227, %c17, %c0_228] : memref<1x4x24x18xbf16, #tpu.memory_space<vmem>>, vector<1x4x1x18xbf16>
    %344 = vector.shape_cast %343 : vector<1x4x1x18xbf16> to vector<4x18xbf16>
    %c0_229 = arith.constant 0 : index
    %c0_230 = arith.constant 0 : index
    %c17_231 = arith.constant 17 : index
    %c0_232 = arith.constant 0 : index
    %345 = vector.load %arg3[%c0_229, %c0_230, %c17_231, %c0_232] : memref<1x4x24x18xbf16, #tpu.memory_space<vmem>>, vector<1x4x1x18xbf16>
    %346 = vector.shape_cast %345 : vector<1x4x1x18xbf16> to vector<4x18xbf16>
    %347 = vector.extract_strided_slice %344 {offsets = [0, 0], sizes = [4, 17], strides = [1, 1]} : vector<4x18xbf16> to vector<4x17xbf16>
    %348 = vector.extract_strided_slice %344 {offsets = [0, 1], sizes = [4, 17], strides = [1, 1]} : vector<4x18xbf16> to vector<4x17xbf16>
    %349 = vector.extract_strided_slice %346 {offsets = [0, 0], sizes = [4, 17], strides = [1, 1]} : vector<4x18xbf16> to vector<4x17xbf16>
    %350 = vector.extract_strided_slice %346 {offsets = [0, 1], sizes = [4, 17], strides = [1, 1]} : vector<4x18xbf16> to vector<4x17xbf16>
    %351 = tpu.concatenate %347, %348, %349, %350 in 0 : vector<4x17xbf16>, vector<4x17xbf16>, vector<4x17xbf16>, vector<4x17xbf16> -> vector<16x17xbf16>
    %cst_233 = arith.constant dense<0.000000e+00> : vector<32x17xf32>
    %352 = tpu.matmul %0, %351, %cst_233 {dimension_numbers = #tpu.dot_dimension_numbers<[1], [0], [0], [1], [0, 0, 1, 1], [], []>} : vector<32x16xbf16>, vector<16x17xbf16>, vector<32x17xf32> -> vector<32x17xf32>
    %353 = vector.broadcast %1 : vector<32x1xf32> to vector<32x17xf32>
    %354 = arith.mulf %352, %353 : vector<32x17xf32>
    %355 = vector.broadcast %2 : vector<32x1xf32> to vector<32x17xf32>
    %356 = arith.addf %354, %355 : vector<32x17xf32>
    %cst_234 = arith.constant 0.000000e+00 : f32
    %357 = vector.broadcast %cst_234 : f32 to vector<32x17xf32>
    %358 = arith.maximumf %356, %357 : vector<32x17xf32>
    %359 = arith.truncf %358 : vector<32x17xf32> to vector<32x17xbf16>
    %c0_235 = arith.constant 0 : index
    %c17_236 = arith.constant 17 : index
    %c0_237 = arith.constant 0 : index
    %c0_238 = arith.constant 0 : index
    %360 = vector.load %arg7[%c0_235, %c17_236, %c0_237, %c0_238] : memref<1x24x32x17xbf16, #tpu.memory_space<vmem>>, vector<1x1x32x17xbf16>
    %361 = vector.shape_cast %360 : vector<1x1x32x17xbf16> to vector<32x17xbf16>
    %362 = vector.shape_cast %359 : vector<32x17xbf16> to vector<1x1x32x17xbf16>
    tpu.vector_store %arg7[%c0_235, %c17_236, %c0_237, %c0_238], %362 {strides = array<i32>} : memref<1x24x32x17xbf16, #tpu.memory_space<vmem>>, vector<1x1x32x17xbf16>,
    %c0_239 = arith.constant 0 : index
    %c0_240 = arith.constant 0 : index
    %c18 = arith.constant 18 : index
    %c0_241 = arith.constant 0 : index
    %363 = vector.load %arg2[%c0_239, %c0_240, %c18, %c0_241] : memref<1x4x24x18xbf16, #tpu.memory_space<vmem>>, vector<1x4x1x18xbf16>
    %364 = vector.shape_cast %363 : vector<1x4x1x18xbf16> to vector<4x18xbf16>
    %c0_242 = arith.constant 0 : index
    %c0_243 = arith.constant 0 : index
    %c18_244 = arith.constant 18 : index
    %c0_245 = arith.constant 0 : index
    %365 = vector.load %arg3[%c0_242, %c0_243, %c18_244, %c0_245] : memref<1x4x24x18xbf16, #tpu.memory_space<vmem>>, vector<1x4x1x18xbf16>
    %366 = vector.shape_cast %365 : vector<1x4x1x18xbf16> to vector<4x18xbf16>
    %367 = vector.extract_strided_slice %364 {offsets = [0, 0], sizes = [4, 17], strides = [1, 1]} : vector<4x18xbf16> to vector<4x17xbf16>
    %368 = vector.extract_strided_slice %364 {offsets = [0, 1], sizes = [4, 17], strides = [1, 1]} : vector<4x18xbf16> to vector<4x17xbf16>
    %369 = vector.extract_strided_slice %366 {offsets = [0, 0], sizes = [4, 17], strides = [1, 1]} : vector<4x18xbf16> to vector<4x17xbf16>
    %370 = vector.extract_strided_slice %366 {offsets = [0, 1], sizes = [4, 17], strides = [1, 1]} : vector<4x18xbf16> to vector<4x17xbf16>
    %371 = tpu.concatenate %367, %368, %369, %370 in 0 : vector<4x17xbf16>, vector<4x17xbf16>, vector<4x17xbf16>, vector<4x17xbf16> -> vector<16x17xbf16>
    %cst_246 = arith.constant dense<0.000000e+00> : vector<32x17xf32>
    %372 = tpu.matmul %0, %371, %cst_246 {dimension_numbers = #tpu.dot_dimension_numbers<[1], [0], [0], [1], [0, 0, 1, 1], [], []>} : vector<32x16xbf16>, vector<16x17xbf16>, vector<32x17xf32> -> vector<32x17xf32>
    %373 = vector.broadcast %1 : vector<32x1xf32> to vector<32x17xf32>
    %374 = arith.mulf %372, %373 : vector<32x17xf32>
    %375 = vector.broadcast %2 : vector<32x1xf32> to vector<32x17xf32>
    %376 = arith.addf %374, %375 : vector<32x17xf32>
    %cst_247 = arith.constant 0.000000e+00 : f32
    %377 = vector.broadcast %cst_247 : f32 to vector<32x17xf32>
    %378 = arith.maximumf %376, %377 : vector<32x17xf32>
    %379 = arith.truncf %378 : vector<32x17xf32> to vector<32x17xbf16>
    %c0_248 = arith.constant 0 : index
    %c18_249 = arith.constant 18 : index
    %c0_250 = arith.constant 0 : index
    %c0_251 = arith.constant 0 : index
    %380 = vector.load %arg7[%c0_248, %c18_249, %c0_250, %c0_251] : memref<1x24x32x17xbf16, #tpu.memory_space<vmem>>, vector<1x1x32x17xbf16>
    %381 = vector.shape_cast %380 : vector<1x1x32x17xbf16> to vector<32x17xbf16>
    %382 = vector.shape_cast %379 : vector<32x17xbf16> to vector<1x1x32x17xbf16>
    tpu.vector_store %arg7[%c0_248, %c18_249, %c0_250, %c0_251], %382 {strides = array<i32>} : memref<1x24x32x17xbf16, #tpu.memory_space<vmem>>, vector<1x1x32x17xbf16>,
    %c0_252 = arith.constant 0 : index
    %c0_253 = arith.constant 0 : index
    %c19 = arith.constant 19 : index
    %c0_254 = arith.constant 0 : index
    %383 = vector.load %arg2[%c0_252, %c0_253, %c19, %c0_254] : memref<1x4x24x18xbf16, #tpu.memory_space<vmem>>, vector<1x4x1x18xbf16>
    %384 = vector.shape_cast %383 : vector<1x4x1x18xbf16> to vector<4x18xbf16>
    %c0_255 = arith.constant 0 : index
    %c0_256 = arith.constant 0 : index
    %c19_257 = arith.constant 19 : index
    %c0_258 = arith.constant 0 : index
    %385 = vector.load %arg3[%c0_255, %c0_256, %c19_257, %c0_258] : memref<1x4x24x18xbf16, #tpu.memory_space<vmem>>, vector<1x4x1x18xbf16>
    %386 = vector.shape_cast %385 : vector<1x4x1x18xbf16> to vector<4x18xbf16>
    %387 = vector.extract_strided_slice %384 {offsets = [0, 0], sizes = [4, 17], strides = [1, 1]} : vector<4x18xbf16> to vector<4x17xbf16>
    %388 = vector.extract_strided_slice %384 {offsets = [0, 1], sizes = [4, 17], strides = [1, 1]} : vector<4x18xbf16> to vector<4x17xbf16>
    %389 = vector.extract_strided_slice %386 {offsets = [0, 0], sizes = [4, 17], strides = [1, 1]} : vector<4x18xbf16> to vector<4x17xbf16>
    %390 = vector.extract_strided_slice %386 {offsets = [0, 1], sizes = [4, 17], strides = [1, 1]} : vector<4x18xbf16> to vector<4x17xbf16>
    %391 = tpu.concatenate %387, %388, %389, %390 in 0 : vector<4x17xbf16>, vector<4x17xbf16>, vector<4x17xbf16>, vector<4x17xbf16> -> vector<16x17xbf16>
    %cst_259 = arith.constant dense<0.000000e+00> : vector<32x17xf32>
    %392 = tpu.matmul %0, %391, %cst_259 {dimension_numbers = #tpu.dot_dimension_numbers<[1], [0], [0], [1], [0, 0, 1, 1], [], []>} : vector<32x16xbf16>, vector<16x17xbf16>, vector<32x17xf32> -> vector<32x17xf32>
    %393 = vector.broadcast %1 : vector<32x1xf32> to vector<32x17xf32>
    %394 = arith.mulf %392, %393 : vector<32x17xf32>
    %395 = vector.broadcast %2 : vector<32x1xf32> to vector<32x17xf32>
    %396 = arith.addf %394, %395 : vector<32x17xf32>
    %cst_260 = arith.constant 0.000000e+00 : f32
    %397 = vector.broadcast %cst_260 : f32 to vector<32x17xf32>
    %398 = arith.maximumf %396, %397 : vector<32x17xf32>
    %399 = arith.truncf %398 : vector<32x17xf32> to vector<32x17xbf16>
    %c0_261 = arith.constant 0 : index
    %c19_262 = arith.constant 19 : index
    %c0_263 = arith.constant 0 : index
    %c0_264 = arith.constant 0 : index
    %400 = vector.load %arg7[%c0_261, %c19_262, %c0_263, %c0_264] : memref<1x24x32x17xbf16, #tpu.memory_space<vmem>>, vector<1x1x32x17xbf16>
    %401 = vector.shape_cast %400 : vector<1x1x32x17xbf16> to vector<32x17xbf16>
    %402 = vector.shape_cast %399 : vector<32x17xbf16> to vector<1x1x32x17xbf16>
    tpu.vector_store %arg7[%c0_261, %c19_262, %c0_263, %c0_264], %402 {strides = array<i32>} : memref<1x24x32x17xbf16, #tpu.memory_space<vmem>>, vector<1x1x32x17xbf16>,
    %c0_265 = arith.constant 0 : index
    %c0_266 = arith.constant 0 : index
    %c20 = arith.constant 20 : index
    %c0_267 = arith.constant 0 : index
    %403 = vector.load %arg2[%c0_265, %c0_266, %c20, %c0_267] : memref<1x4x24x18xbf16, #tpu.memory_space<vmem>>, vector<1x4x1x18xbf16>
    %404 = vector.shape_cast %403 : vector<1x4x1x18xbf16> to vector<4x18xbf16>
    %c0_268 = arith.constant 0 : index
    %c0_269 = arith.constant 0 : index
    %c20_270 = arith.constant 20 : index
    %c0_271 = arith.constant 0 : index
    %405 = vector.load %arg3[%c0_268, %c0_269, %c20_270, %c0_271] : memref<1x4x24x18xbf16, #tpu.memory_space<vmem>>, vector<1x4x1x18xbf16>
    %406 = vector.shape_cast %405 : vector<1x4x1x18xbf16> to vector<4x18xbf16>
    %407 = vector.extract_strided_slice %404 {offsets = [0, 0], sizes = [4, 17], strides = [1, 1]} : vector<4x18xbf16> to vector<4x17xbf16>
    %408 = vector.extract_strided_slice %404 {offsets = [0, 1], sizes = [4, 17], strides = [1, 1]} : vector<4x18xbf16> to vector<4x17xbf16>
    %409 = vector.extract_strided_slice %406 {offsets = [0, 0], sizes = [4, 17], strides = [1, 1]} : vector<4x18xbf16> to vector<4x17xbf16>
    %410 = vector.extract_strided_slice %406 {offsets = [0, 1], sizes = [4, 17], strides = [1, 1]} : vector<4x18xbf16> to vector<4x17xbf16>
    %411 = tpu.concatenate %407, %408, %409, %410 in 0 : vector<4x17xbf16>, vector<4x17xbf16>, vector<4x17xbf16>, vector<4x17xbf16> -> vector<16x17xbf16>
    %cst_272 = arith.constant dense<0.000000e+00> : vector<32x17xf32>
    %412 = tpu.matmul %0, %411, %cst_272 {dimension_numbers = #tpu.dot_dimension_numbers<[1], [0], [0], [1], [0, 0, 1, 1], [], []>} : vector<32x16xbf16>, vector<16x17xbf16>, vector<32x17xf32> -> vector<32x17xf32>
    %413 = vector.broadcast %1 : vector<32x1xf32> to vector<32x17xf32>
    %414 = arith.mulf %412, %413 : vector<32x17xf32>
    %415 = vector.broadcast %2 : vector<32x1xf32> to vector<32x17xf32>
    %416 = arith.addf %414, %415 : vector<32x17xf32>
    %cst_273 = arith.constant 0.000000e+00 : f32
    %417 = vector.broadcast %cst_273 : f32 to vector<32x17xf32>
    %418 = arith.maximumf %416, %417 : vector<32x17xf32>
    %419 = arith.truncf %418 : vector<32x17xf32> to vector<32x17xbf16>
    %c0_274 = arith.constant 0 : index
    %c20_275 = arith.constant 20 : index
    %c0_276 = arith.constant 0 : index
    %c0_277 = arith.constant 0 : index
    %420 = vector.load %arg7[%c0_274, %c20_275, %c0_276, %c0_277] : memref<1x24x32x17xbf16, #tpu.memory_space<vmem>>, vector<1x1x32x17xbf16>
    %421 = vector.shape_cast %420 : vector<1x1x32x17xbf16> to vector<32x17xbf16>
    %422 = vector.shape_cast %419 : vector<32x17xbf16> to vector<1x1x32x17xbf16>
    tpu.vector_store %arg7[%c0_274, %c20_275, %c0_276, %c0_277], %422 {strides = array<i32>} : memref<1x24x32x17xbf16, #tpu.memory_space<vmem>>, vector<1x1x32x17xbf16>,
    %c0_278 = arith.constant 0 : index
    %c0_279 = arith.constant 0 : index
    %c21 = arith.constant 21 : index
    %c0_280 = arith.constant 0 : index
    %423 = vector.load %arg2[%c0_278, %c0_279, %c21, %c0_280] : memref<1x4x24x18xbf16, #tpu.memory_space<vmem>>, vector<1x4x1x18xbf16>
    %424 = vector.shape_cast %423 : vector<1x4x1x18xbf16> to vector<4x18xbf16>
    %c0_281 = arith.constant 0 : index
    %c0_282 = arith.constant 0 : index
    %c21_283 = arith.constant 21 : index
    %c0_284 = arith.constant 0 : index
    %425 = vector.load %arg3[%c0_281, %c0_282, %c21_283, %c0_284] : memref<1x4x24x18xbf16, #tpu.memory_space<vmem>>, vector<1x4x1x18xbf16>
    %426 = vector.shape_cast %425 : vector<1x4x1x18xbf16> to vector<4x18xbf16>
    %427 = vector.extract_strided_slice %424 {offsets = [0, 0], sizes = [4, 17], strides = [1, 1]} : vector<4x18xbf16> to vector<4x17xbf16>
    %428 = vector.extract_strided_slice %424 {offsets = [0, 1], sizes = [4, 17], strides = [1, 1]} : vector<4x18xbf16> to vector<4x17xbf16>
    %429 = vector.extract_strided_slice %426 {offsets = [0, 0], sizes = [4, 17], strides = [1, 1]} : vector<4x18xbf16> to vector<4x17xbf16>
    %430 = vector.extract_strided_slice %426 {offsets = [0, 1], sizes = [4, 17], strides = [1, 1]} : vector<4x18xbf16> to vector<4x17xbf16>
    %431 = tpu.concatenate %427, %428, %429, %430 in 0 : vector<4x17xbf16>, vector<4x17xbf16>, vector<4x17xbf16>, vector<4x17xbf16> -> vector<16x17xbf16>
    %cst_285 = arith.constant dense<0.000000e+00> : vector<32x17xf32>
    %432 = tpu.matmul %0, %431, %cst_285 {dimension_numbers = #tpu.dot_dimension_numbers<[1], [0], [0], [1], [0, 0, 1, 1], [], []>} : vector<32x16xbf16>, vector<16x17xbf16>, vector<32x17xf32> -> vector<32x17xf32>
    %433 = vector.broadcast %1 : vector<32x1xf32> to vector<32x17xf32>
    %434 = arith.mulf %432, %433 : vector<32x17xf32>
    %435 = vector.broadcast %2 : vector<32x1xf32> to vector<32x17xf32>
    %436 = arith.addf %434, %435 : vector<32x17xf32>
    %cst_286 = arith.constant 0.000000e+00 : f32
    %437 = vector.broadcast %cst_286 : f32 to vector<32x17xf32>
    %438 = arith.maximumf %436, %437 : vector<32x17xf32>
    %439 = arith.truncf %438 : vector<32x17xf32> to vector<32x17xbf16>
    %c0_287 = arith.constant 0 : index
    %c21_288 = arith.constant 21 : index
    %c0_289 = arith.constant 0 : index
    %c0_290 = arith.constant 0 : index
    %440 = vector.load %arg7[%c0_287, %c21_288, %c0_289, %c0_290] : memref<1x24x32x17xbf16, #tpu.memory_space<vmem>>, vector<1x1x32x17xbf16>
    %441 = vector.shape_cast %440 : vector<1x1x32x17xbf16> to vector<32x17xbf16>
    %442 = vector.shape_cast %439 : vector<32x17xbf16> to vector<1x1x32x17xbf16>
    tpu.vector_store %arg7[%c0_287, %c21_288, %c0_289, %c0_290], %442 {strides = array<i32>} : memref<1x24x32x17xbf16, #tpu.memory_space<vmem>>, vector<1x1x32x17xbf16>,
    %c0_291 = arith.constant 0 : index
    %c0_292 = arith.constant 0 : index
    %c22 = arith.constant 22 : index
    %c0_293 = arith.constant 0 : index
    %443 = vector.load %arg2[%c0_291, %c0_292, %c22, %c0_293] : memref<1x4x24x18xbf16, #tpu.memory_space<vmem>>, vector<1x4x1x18xbf16>
    %444 = vector.shape_cast %443 : vector<1x4x1x18xbf16> to vector<4x18xbf16>
    %c0_294 = arith.constant 0 : index
    %c0_295 = arith.constant 0 : index
    %c22_296 = arith.constant 22 : index
    %c0_297 = arith.constant 0 : index
    %445 = vector.load %arg3[%c0_294, %c0_295, %c22_296, %c0_297] : memref<1x4x24x18xbf16, #tpu.memory_space<vmem>>, vector<1x4x1x18xbf16>
    %446 = vector.shape_cast %445 : vector<1x4x1x18xbf16> to vector<4x18xbf16>
    %447 = vector.extract_strided_slice %444 {offsets = [0, 0], sizes = [4, 17], strides = [1, 1]} : vector<4x18xbf16> to vector<4x17xbf16>
    %448 = vector.extract_strided_slice %444 {offsets = [0, 1], sizes = [4, 17], strides = [1, 1]} : vector<4x18xbf16> to vector<4x17xbf16>
    %449 = vector.extract_strided_slice %446 {offsets = [0, 0], sizes = [4, 17], strides = [1, 1]} : vector<4x18xbf16> to vector<4x17xbf16>
    %450 = vector.extract_strided_slice %446 {offsets = [0, 1], sizes = [4, 17], strides = [1, 1]} : vector<4x18xbf16> to vector<4x17xbf16>
    %451 = tpu.concatenate %447, %448, %449, %450 in 0 : vector<4x17xbf16>, vector<4x17xbf16>, vector<4x17xbf16>, vector<4x17xbf16> -> vector<16x17xbf16>
    %cst_298 = arith.constant dense<0.000000e+00> : vector<32x17xf32>
    %452 = tpu.matmul %0, %451, %cst_298 {dimension_numbers = #tpu.dot_dimension_numbers<[1], [0], [0], [1], [0, 0, 1, 1], [], []>} : vector<32x16xbf16>, vector<16x17xbf16>, vector<32x17xf32> -> vector<32x17xf32>
    %453 = vector.broadcast %1 : vector<32x1xf32> to vector<32x17xf32>
    %454 = arith.mulf %452, %453 : vector<32x17xf32>
    %455 = vector.broadcast %2 : vector<32x1xf32> to vector<32x17xf32>
    %456 = arith.addf %454, %455 : vector<32x17xf32>
    %cst_299 = arith.constant 0.000000e+00 : f32
    %457 = vector.broadcast %cst_299 : f32 to vector<32x17xf32>
    %458 = arith.maximumf %456, %457 : vector<32x17xf32>
    %459 = arith.truncf %458 : vector<32x17xf32> to vector<32x17xbf16>
    %c0_300 = arith.constant 0 : index
    %c22_301 = arith.constant 22 : index
    %c0_302 = arith.constant 0 : index
    %c0_303 = arith.constant 0 : index
    %460 = vector.load %arg7[%c0_300, %c22_301, %c0_302, %c0_303] : memref<1x24x32x17xbf16, #tpu.memory_space<vmem>>, vector<1x1x32x17xbf16>
    %461 = vector.shape_cast %460 : vector<1x1x32x17xbf16> to vector<32x17xbf16>
    %462 = vector.shape_cast %459 : vector<32x17xbf16> to vector<1x1x32x17xbf16>
    tpu.vector_store %arg7[%c0_300, %c22_301, %c0_302, %c0_303], %462 {strides = array<i32>} : memref<1x24x32x17xbf16, #tpu.memory_space<vmem>>, vector<1x1x32x17xbf16>,
    %c0_304 = arith.constant 0 : index
    %c0_305 = arith.constant 0 : index
    %c23 = arith.constant 23 : index
    %c0_306 = arith.constant 0 : index
    %463 = vector.load %arg2[%c0_304, %c0_305, %c23, %c0_306] : memref<1x4x24x18xbf16, #tpu.memory_space<vmem>>, vector<1x4x1x18xbf16>
    %464 = vector.shape_cast %463 : vector<1x4x1x18xbf16> to vector<4x18xbf16>
    %c0_307 = arith.constant 0 : index
    %c0_308 = arith.constant 0 : index
    %c23_309 = arith.constant 23 : index
    %c0_310 = arith.constant 0 : index
    %465 = vector.load %arg3[%c0_307, %c0_308, %c23_309, %c0_310] : memref<1x4x24x18xbf16, #tpu.memory_space<vmem>>, vector<1x4x1x18xbf16>
    %466 = vector.shape_cast %465 : vector<1x4x1x18xbf16> to vector<4x18xbf16>
    %467 = vector.extract_strided_slice %464 {offsets = [0, 0], sizes = [4, 17], strides = [1, 1]} : vector<4x18xbf16> to vector<4x17xbf16>
    %468 = vector.extract_strided_slice %464 {offsets = [0, 1], sizes = [4, 17], strides = [1, 1]} : vector<4x18xbf16> to vector<4x17xbf16>
    %469 = vector.extract_strided_slice %466 {offsets = [0, 0], sizes = [4, 17], strides = [1, 1]} : vector<4x18xbf16> to vector<4x17xbf16>
    %470 = vector.extract_strided_slice %466 {offsets = [0, 1], sizes = [4, 17], strides = [1, 1]} : vector<4x18xbf16> to vector<4x17xbf16>
    %471 = tpu.concatenate %467, %468, %469, %470 in 0 : vector<4x17xbf16>, vector<4x17xbf16>, vector<4x17xbf16>, vector<4x17xbf16> -> vector<16x17xbf16>
    %cst_311 = arith.constant dense<0.000000e+00> : vector<32x17xf32>
    %472 = tpu.matmul %0, %471, %cst_311 {dimension_numbers = #tpu.dot_dimension_numbers<[1], [0], [0], [1], [0, 0, 1, 1], [], []>} : vector<32x16xbf16>, vector<16x17xbf16>, vector<32x17xf32> -> vector<32x17xf32>
    %473 = vector.broadcast %1 : vector<32x1xf32> to vector<32x17xf32>
    %474 = arith.mulf %472, %473 : vector<32x17xf32>
    %475 = vector.broadcast %2 : vector<32x1xf32> to vector<32x17xf32>
    %476 = arith.addf %474, %475 : vector<32x17xf32>
    %cst_312 = arith.constant 0.000000e+00 : f32
    %477 = vector.broadcast %cst_312 : f32 to vector<32x17xf32>
    %478 = arith.maximumf %476, %477 : vector<32x17xf32>
    %479 = arith.truncf %478 : vector<32x17xf32> to vector<32x17xbf16>
    %c0_313 = arith.constant 0 : index
    %c23_314 = arith.constant 23 : index
    %c0_315 = arith.constant 0 : index
    %c0_316 = arith.constant 0 : index
    %480 = vector.load %arg7[%c0_313, %c23_314, %c0_315, %c0_316] : memref<1x24x32x17xbf16, #tpu.memory_space<vmem>>, vector<1x1x32x17xbf16>
    %481 = vector.shape_cast %480 : vector<1x1x32x17xbf16> to vector<32x17xbf16>
    %482 = vector.shape_cast %479 : vector<32x17xbf16> to vector<1x1x32x17xbf16>
    tpu.vector_store %arg7[%c0_313, %c23_314, %c0_315, %c0_316], %482 {strides = array<i32>} : memref<1x24x32x17xbf16, #tpu.memory_space<vmem>>, vector<1x1x32x17xbf16>,
    return
  }
  func.func @transform_0(%arg0: i32, %arg1: i32) -> (i32, i32, i32, i32) {
    %c0_i32 = arith.constant 0 : i32
    %c0_i32_0 = arith.constant 0 : i32
    %c0_i32_1 = arith.constant 0 : i32
    return %arg0, %c0_i32, %arg1, %c0_i32_0 : i32, i32, i32, i32
  }
  func.func @transform_1(%arg0: i32, %arg1: i32) -> (i32, i32, i32, i32) {
    %c0_i32 = arith.constant 0 : i32
    %c0_i32_0 = arith.constant 0 : i32
    %c0_i32_1 = arith.constant 0 : i32
    return %arg0, %c0_i32, %arg1, %c0_i32_0 : i32, i32, i32, i32
  }
  func.func @transform_2(%arg0: i32, %arg1: i32) -> (i32, i32) {
    %c0_i32 = arith.constant 0 : i32
    %c0_i32_0 = arith.constant 0 : i32
    %c0_i32_1 = arith.constant 0 : i32
    return %c0_i32, %c0_i32_0 : i32, i32
  }
  func.func @transform_3(%arg0: i32, %arg1: i32) -> (i32, i32) {
    %c0_i32 = arith.constant 0 : i32
    %c0_i32_0 = arith.constant 0 : i32
    %c0_i32_1 = arith.constant 0 : i32
    return %c0_i32, %c0_i32_0 : i32, i32
  }
  func.func @transform_4(%arg0: i32, %arg1: i32) -> (i32, i32) {
    %c0_i32 = arith.constant 0 : i32
    %c0_i32_0 = arith.constant 0 : i32
    %c0_i32_1 = arith.constant 0 : i32
    return %c0_i32, %c0_i32_0 : i32, i32
  }
  func.func @transform_5(%arg0: i32, %arg1: i32) -> (i32, i32, i32, i32) {
    %c0_i32 = arith.constant 0 : i32
    %c0_i32_0 = arith.constant 0 : i32
    %c0_i32_1 = arith.constant 0 : i32
    return %arg0, %arg1, %c0_i32, %c0_i32_0 : i32, i32, i32, i32
  }
}

</mosaic_0001>

<llo_original>
// kernel: tile.18
$region0: #{tile.18}
  #allocation0 [shape = 's32[1]{0}', space=sflag, size = 0x4, scoped, tag = 'scoped memory for tile.18']
  %s0 = inlined_call_operand.vmem [shape: f32[8], index: 0, kind: input, shape index: {}]
  %s1 = inlined_call_operand.vmem [shape: f32[4,8], index: 1, kind: output, shape index: {}]
  // Predicated region
  $region2: #{tile.18} parent=0 // pred_check
    _
  $region3: #{tile.18} parent=0 // pred_check_branch
    %3 = sbr.rel (0) target = $region5
  $region4: #{tile.18} parent=0 // pred_region
    _
  $region5: #{tile.18} parent=0 // pred_fallthru
    _
  %v4 = vld [vmem:[%s0] ss:$0 sm:$0xff]
  %5 = vst [vmem:[%s1] sm:$0xf] %v4

// kernel: tile.0
$region0: #{tile.0}
  %s0 = inlined_call_operand.vmem [shape: f32[4,8], index: 0, kind: input, shape index: {}]
  %s1 = inlined_call_operand.vmem [shape: f32[32,1], index: 1, kind: output, shape index: {}]
  $region1: #{tile.0} parent=0
    #allocation0 [shape = 'u8[4096]{0}', space=vmem, size = 0x1000, scoped, tag = 'scoped mem for input reshape']
    %s3 = ssub.s32 16, 1
    %v4 = vld [vmem:[%s0] sm:%s3]
    %5 = vst [vmem:[#allocation0] sm:%s3] %v4
    %v6 = vld [vmem:[#allocation0] sm:$0xf]
    %vm7 = vcmask 7168
    %8 = vst.msk [vmem:[%s1] ss:$8 sm:$0xf] %vm7, %v6
    %v9 = vld [vmem:[#allocation0] sm:$0xf]
    %10 = vrot.lane.b32.xlu0 %v9, 127
    %v11 = vpop.permute.xlu0 %10
    %vm12 = vcmask 7168
    %s13 = scalar_lea.vmem %s1, 1
    %14 = vst.msk [vmem:[%s13] ss:$8 sm:$0xf] %vm12, %v11
    %v15 = vld [vmem:[#allocation0] sm:$0xf]
    %16 = vrot.lane.b32.xlu0 %v15, 126
    %v17 = vpop.permute.xlu0 %16
    %vm18 = vcmask 7168
    %s19 = scalar_lea.vmem %s1, 2
    %20 = vst.msk [vmem:[%s19] ss:$8 sm:$0xf] %vm18, %v17
    %v21 = vld [vmem:[#allocation0] sm:$0xf]
    %22 = vrot.lane.b32.xlu0 %v21, 125
    %v23 = vpop.permute.xlu0 %22
    %vm24 = vcmask 7168
    %s25 = scalar_lea.vmem %s1, 3
    %26 = vst.msk [vmem:[%s25] ss:$8 sm:$0xf] %vm24, %v23
    %v27 = vld [vmem:[#allocation0] sm:$0xf]
    %28 = vrot.lane.b32.xlu0 %v27, 124
    %v29 = vpop.permute.xlu0 %28
    %vm30 = vcmask 7168
    %s31 = scalar_lea.vmem %s1, 4
    %32 = vst.msk [vmem:[%s31] ss:$8 sm:$0xf] %vm30, %v29
    %v33 = vld [vmem:[#allocation0] sm:$0xf]
    %34 = vrot.lane.b32.xlu0 %v33, 123
    %v35 = vpop.permute.xlu0 %34
    %vm36 = vcmask 7168
    %s37 = scalar_lea.vmem %s1, 5
    %38 = vst.msk [vmem:[%s37] ss:$8 sm:$0xf] %vm36, %v35
    %v39 = vld [vmem:[#allocation0] sm:$0xf]
    %40 = vrot.lane.b32.xlu0 %v39, 122
    %v41 = vpop.permute.xlu0 %40
    %vm42 = vcmask 7168
    %s43 = scalar_lea.vmem %s1, 6
    %44 = vst.msk [vmem:[%s43] ss:$8 sm:$0xf] %vm42, %v41
    %v45 = vld [vmem:[#allocation0] sm:$0xf]
    %46 = vrot.lane.b32.xlu0 %v45, 121
    %v47 = vpop.permute.xlu0 %46
    %vm48 = vcmask 7168
    %s49 = scalar_lea.vmem %s1, 7
    %50 = vst.msk [vmem:[%s49] ss:$8 sm:$0xf] %vm48, %v47

// kernel: upconv_block_forward.2
$region0: #{upconv_block_forward.2}
  #allocation0 [shape = 'u32[]', space=smem, size = 0x4, offset = 0x4, fixed_abs, tag = 'smem constant byte address 0x4 - core index']
  #allocation1 [shape = 'u32[72,128]{1,0:T(1,128)}', space=vmem, size = 0x9000, scoped, tag = 'internal scratch']
  %s0 = inlined_call_operand.vmem [shape: bf16[2,4,24,18], index: 0, kind: input, shape index: {}]
  %s1 = inlined_call_operand.vmem [shape: bf16[2,4,24,18], index: 1, kind: input, shape index: {}]
  %s2 = inlined_call_operand.vmem [shape: bf16[32,16], index: 2, kind: input, shape index: {}]
  %s3 = inlined_call_operand.vmem [shape: f32[2,1,32,17], index: 3, kind: output, shape index: {0}]
  %s4 = inlined_call_operand.vmem [shape: f32[2,1,32,17], index: 4, kind: output, shape index: {1}]
  %5 = xla_tuple %s3, %s4
  %s6 = sld [smem:[#allocation0]]
  $region53: #{upconv_block_forward.2} parent=0
    _
  %s8 = ssub.s32 1, %s6
  %s9 = scalar_select 0, %s8, %s6
  loop: start=0, step=1, limit=4
  $region2: #{upconv_block_forward.2} parent=0 // loop_pre_header
    _
  $region3: #{upconv_block_forward.2} parent=0 // loop_header
    %s11 = sphi 0, %s15
    %p12 = scmp.ge.s32.totalorder %s11, 4
    %s18 = sphi 0, %s30
    %s19 = sphi 0, %s26
    %s20 = sphi 0, %s18
    %s21 = sphi 0, %s19
    %s22 = sphi 0, %s20
    %s23 = sphi 0, %s21
    %s35 = sphi 0, %s37
    %s38 = sphi 0, %s35
    %s39 = sphi 0, %s38
    %s55 = sphi 0, %s39
    %s63 = sphi 0, %s65
    %s66 = sphi 0, %s63
    %s67 = sphi 0, %s66
    %s83 = sphi 0, %s67
    %s87 = sphi 0, %s87
    %s89 = sphi 0, %s87
    %s90 = sphi 0, %s89
    %s104 = sphi 0, %s90
    %s112 = sphi 0, %s114
    %s115 = sphi 0, %s112
    %s116 = sphi 0, %s115
    %s132 = sphi 0, %s116
    %s140 = sphi 0, %s142
    %s143 = sphi 0, %s140
    %s144 = sphi 0, %s143
    %s160 = sphi 0, %s144
  $region4: #{upconv_block_forward.2} parent=0 // loop_header_branch
    %14 = sbr.rel (%p12) target = $region8
  $region5: #{upconv_block_forward.2} parent=0 // loop_body
    %s16 = ssub.s32 %s11, 1
    %s17 = ssub.s32 %s11, 2
    %s24 = sadd.s32 1, %s19
    %p25 = scmp.ge.s32.totalorder %s24, 1
    %s26 = scalar_select %p25, 0, %s24
    %s27 = sadd.s32 1, %s18
    %s28 = scalar_select %p25, %s27, %s18
    %p29 = scmp.ge.s32.totalorder %s28, 2
    %s30 = scalar_select %p29, 0, %s28
    %s31 = ssub.s32 %s18, %s30
    %s32 = ssub.s32 %s19, %s26
    %s33 = sor.u32 %s31, %s32
    %p34 = scmp.eq.s32.totalorder %s33, 0
    %s36 = sadd.s32 %s35, 1
    %s37 = scalar_select %p34, %s35, %s36
    %p40 = pneg %p34
    %p41 = scmp.eq.s32.totalorder %s11, 1
    %p42 = por %p40, %p41
    %p43 = scmp.ne.s32.totalorder %s35, %s38
    %p44 = scmp.eq.s32.totalorder %s11, 0
    %p45 = por %p43, %p44
    %p46 = scmp.ne.s32.totalorder %s35, %s38
    %p47 = scmp.eq.s32.totalorder %s16, 1
    %p48 = por %p46, %p47
    %p49 = scmp.ne.s32.totalorder %s38, %s39
    %p50 = scmp.eq.s32.totalorder %s16, 0
    %p51 = por %p49, %p50
    %p52 = scmp.ne.s32.totalorder %s38, %s39
    %p53 = scmp.eq.s32.totalorder %s17, 1
    %p54 = por %p52, %p53
    %p56 = scmp.ne.s32.totalorder %s39, %s55
    %p57 = scmp.eq.s32.totalorder %s17, 0
    %p58 = por %p56, %p57
    %s59 = ssub.s32 %s18, %s30
    %s60 = ssub.s32 %s19, %s26
    %s61 = sor.u32 %s59, %s60
    %p62 = scmp.eq.s32.totalorder %s61, 0
    %s64 = sadd.s32 %s63, 1
    %s65 = scalar_select %p62, %s63, %s64
    %p68 = pneg %p62
    %p69 = scmp.eq.s32.totalorder %s11, 1
    %p70 = por %p68, %p69
    %p71 = scmp.ne.s32.totalorder %s63, %s66
    %p72 = scmp.eq.s32.totalorder %s11, 0
    %p73 = por %p71, %p72
    %p74 = scmp.ne.s32.totalorder %s63, %s66
    %p75 = scmp.eq.s32.totalorder %s16, 1
    %p76 = por %p74, %p75
    %p77 = scmp.ne.s32.totalorder %s66, %s67
    %p78 = scmp.eq.s32.totalorder %s16, 0
    %p79 = por %p77, %p78
    %p80 = scmp.ne.s32.totalorder %s66, %s67
    %p81 = scmp.eq.s32.totalorder %s17, 1
    %p82 = por %p80, %p81
    %p84 = scmp.ne.s32.totalorder %s67, %s83
    %p85 = scmp.eq.s32.totalorder %s17, 0
    %p86 = por %p84, %p85
    %s88 = sadd.s32 %s87, 1
    %p91 = scmp.eq.s32.totalorder %s11, 1
    %p92 = scmp.ne.s32.totalorder %s87, %s89
    %p93 = scmp.eq.s32.totalorder %s11, 0
    %p94 = por %p92, %p93
    %p95 = scmp.ne.s32.totalorder %s87, %s89
    %p96 = scmp.eq.s32.totalorder %s16, 1
    %p97 = por %p95, %p96
    %p98 = scmp.ne.s32.totalorder %s89, %s90
    %p99 = scmp.eq.s32.totalorder %s16, 0
    %p100 = por %p98, %p99
    %p101 = scmp.ne.s32.totalorder %s89, %s90
    %p102 = scmp.eq.s32.totalorder %s17, 1
    %p103 = por %p101, %p102
    %p105 = scmp.ne.s32.totalorder %s90, %s104
    %p106 = scmp.eq.s32.totalorder %s17, 0
    %p107 = por %p105, %p106
    %s108 = ssub.s32 %s18, %s30
    %s109 = ssub.s32 %s19, %s26
    %s110 = sor.u32 %s108, %s109
    %p111 = scmp.eq.s32.totalorder %s110, 0
    %s113 = sadd.s32 %s112, 1
    %s114 = scalar_select %p111, %s112, %s113
    %p117 = pneg %p111
    %p118 = scmp.eq.s32.totalorder %s11, 1
    %p119 = por %p117, %p118
    %p120 = scmp.ne.s32.totalorder %s112, %s115
    %p121 = scmp.eq.s32.totalorder %s11, 0
    %p122 = por %p120, %p121
    %p123 = scmp.ne.s32.totalorder %s112, %s115
    %p124 = scmp.eq.s32.totalorder %s16, 1
    %p125 = por %p123, %p124
    %p126 = scmp.ne.s32.totalorder %s115, %s116
    %p127 = scmp.eq.s32.totalorder %s16, 0
    %p128 = por %p126, %p127
    %p129 = scmp.ne.s32.totalorder %s115, %s116
    %p130 = scmp.eq.s32.totalorder %s17, 1
    %p131 = por %p129, %p130
    %p133 = scmp.ne.s32.totalorder %s116, %s132
    %p134 = scmp.eq.s32.totalorder %s17, 0
    %p135 = por %p133, %p134
    %s136 = ssub.s32 %s18, %s30
    %s137 = ssub.s32 %s19, %s26
    %s138 = sor.u32 %s136, %s137
    %p139 = scmp.eq.s32.totalorder %s138, 0
    %s141 = sadd.s32 %s140, 1
    %s142 = scalar_select %p139, %s140, %s141
    %p145 = pneg %p139
    %p146 = scmp.eq.s32.totalorder %s11, 1
    %p147 = por %p145, %p146
    %p148 = scmp.ne.s32.totalorder %s140, %s143
    %p149 = scmp.eq.s32.totalorder %s11, 0
    %p150 = por %p148, %p149
    %p151 = scmp.ne.s32.totalorder %s140, %s143
    %p152 = scmp.eq.s32.totalorder %s16, 1
    %p153 = por %p151, %p152
    %p154 = scmp.ne.s32.totalorder %s143, %s144
    %p155 = scmp.eq.s32.totalorder %s16, 0
    %p156 = por %p154, %p155
    %p157 = scmp.ne.s32.totalorder %s143, %s144
    %p158 = scmp.eq.s32.totalorder %s17, 1
    %p159 = por %p157, %p158
    %p161 = scmp.ne.s32.totalorder %s144, %s160
    %p162 = scmp.eq.s32.totalorder %s17, 0
    %p163 = por %p161, %p162
    %p164 = scmp.le.s32.totalorder 1, %s11
    %p165 = scmp.lt.s32.totalorder %s11, 3
    %p166 = pnand %p164, %p165
    %p167 = pneg %p166
    // Predicated region
    $region9: #{upconv_block_forward.2} parent=5 // pred_check
      _
    $region10: #{upconv_block_forward.2} parent=5 // pred_check_branch
      %169 = sbr.rel (%p166) target = $region12
    $region11: #{upconv_block_forward.2} parent=5 // pred_region
      %s170 = ssub.s32 %s11, 1
      // Predicated region
      $region13: #{upconv_block_forward.2} parent=11 // pred_check
        %p171 = pneg %p100
      $region14: #{upconv_block_forward.2} parent=11 // pred_check_branch
        %173 = sbr.rel (%p171) target = $region16
      $region15: #{upconv_block_forward.2} parent=11 // pred_region
        _
      $region16: #{upconv_block_forward.2} parent=11 // pred_fallthru
        _
    $region12: #{upconv_block_forward.2} parent=5 // pred_fallthru
      _
    %p174 = scmp.lt.s32.totalorder %s11, 2
    // Predicated region
    $region17: #{upconv_block_forward.2} parent=5 // pred_check
      %p175 = pneg %p174
    $region18: #{upconv_block_forward.2} parent=5 // pred_check_branch
      %177 = sbr.rel (%p175) target = $region20
    $region19: #{upconv_block_forward.2} parent=5 // pred_region
      // Predicated region
      $region21: #{upconv_block_forward.2} parent=19 // pred_check
        %p178 = pneg %p45
      $region22: #{upconv_block_forward.2} parent=19 // pred_check_branch
        %180 = sbr.rel (%p178) target = $region24
      $region23: #{upconv_block_forward.2} parent=19 // pred_region
        %s181 = smul.u32 3, %s19
        %p182 = scmp.lt.s32.totalorder %s18, 1
        %s183 = scalar_select %p182, %s18, 1
        %p184 = scmp.lt.s32.totalorder %s181, 2
        %s185 = scalar_select %p184, %s181, 2
        %s186 = smul.addr %s183, 12
        %s187 = sadd.s32 %s185, %s186
        %s188 = smul.addr %s187, 4
        %s189 = scalar_lea.vmem %s0, %s188
        %s190 = smul.u32 3, %s19
      $region24: #{upconv_block_forward.2} parent=19 // pred_fallthru
        _
      // Predicated region
      $region25: #{upconv_block_forward.2} parent=19 // pred_check
        %p191 = pneg %p73
      $region26: #{upconv_block_forward.2} parent=19 // pred_check_branch
        %193 = sbr.rel (%p191) target = $region28
      $region27: #{upconv_block_forward.2} parent=19 // pred_region
        %s194 = smul.u32 3, %s19
        %p195 = scmp.lt.s32.totalorder %s18, 1
        %s196 = scalar_select %p195, %s18, 1
        %p197 = scmp.lt.s32.totalorder %s194, 2
        %s198 = scalar_select %p197, %s194, 2
        %s199 = smul.addr %s196, 12
        %s200 = sadd.s32 %s198, %s199
        %s201 = smul.addr %s200, 4
        %s202 = scalar_lea.vmem %s1, %s201
        %s203 = smul.u32 3, %s19
      $region28: #{upconv_block_forward.2} parent=19 // pred_fallthru
        _
    $region20: #{upconv_block_forward.2} parent=5 // pred_fallthru
      _
    %p204 = scmp.le.s32.totalorder 1, %s11
    %p205 = scmp.lt.s32.totalorder %s11, 3
    %p206 = pnand %p204, %p205
    %p207 = pneg %p206
    // Predicated region
    $region29: #{upconv_block_forward.2} parent=5 // pred_check
      _
    $region30: #{upconv_block_forward.2} parent=5 // pred_check_branch
      %209 = sbr.rel (%p206) target = $region32
    $region31: #{upconv_block_forward.2} parent=5 // pred_region
      %s210 = ssub.s32 %s11, 1
      %s211 = smul.u32 3, %s21
      %p212 = scmp.lt.s32.totalorder %s20, 1
      %s213 = scalar_select %p212, %s20, 1
      %p214 = scmp.lt.s32.totalorder %s211, 2
      %s215 = scalar_select %p214, %s211, 2
      %s216 = smul.addr %s213, 12
      %s217 = sadd.s32 %s215, %s216
      %s218 = smul.addr %s217, 4
      %s219 = scalar_lea.vmem %s0, %s218
      %p220 = pneg %p51
      %p221 = pneg %p48
      %s222 = smul.u32 3, %s21
      %p223 = scmp.lt.s32.totalorder %s20, 1
      %s224 = scalar_select %p223, %s20, 1
      %p225 = scmp.lt.s32.totalorder %s222, 2
      %s226 = scalar_select %p225, %s222, 2
      %s227 = smul.addr %s224, 12
      %s228 = sadd.s32 %s226, %s227
      %s229 = smul.addr %s228, 4
      %s230 = scalar_lea.vmem %s1, %s229
      %p231 = pneg %p79
      %p232 = pneg %p76
      %p233 = pneg %p100
      %p234 = pneg %p97
      %p235 = pneg %p128
      %p236 = pneg %p125
      %p237 = scmp.lt.s32.totalorder %s20, 1
      %s238 = scalar_select %p237, %s20, 1
      %p239 = scmp.lt.s32.totalorder %s21, 0
      %s240 = scalar_select %p239, %s21, 0
      %s241 = smul.addr %s240, 4
      %s242 = smul.addr %s238, 4
      %s243 = sadd.s32 %s241, %s242
      %s244 = smul.addr %s243, 8
      %s245 = scalar_lea.vmem %s3, %s244
      %p246 = pneg %p156
      %p247 = pneg %p153
      %p248 = scmp.lt.s32.totalorder %s20, 1
      %s249 = scalar_select %p248, %s20, 1
      %p250 = scmp.lt.s32.totalorder %s21, 0
      %s251 = scalar_select %p250, %s21, 0
      %s252 = smul.addr %s251, 4
      %s253 = smul.addr %s249, 4
      %s254 = sadd.s32 %s252, %s253
      %s255 = smul.addr %s254, 8
      %s256 = scalar_lea.vmem %s4, %s255
      %s257 = smul.u32 3, %s21
      %p258 = scmp.lt.s32.totalorder %s20, 1
      %s259 = scalar_select %p258, %s20, 1
      %p260 = scmp.lt.s32.totalorder %s257, 2
      %s261 = scalar_select %p260, %s257, 2
      %s262 = smul.addr %s259, 12
      %s263 = sadd.s32 %s261, %s262
      %s264 = smul.addr %s263, 4
      %s265 = scalar_lea.vmem %s0, %s264
      %s266 = smul.u32 3, %s21
      %s267 = smul.u32 3, %s21
      %p268 = scmp.lt.s32.totalorder %s20, 1
      %s269 = scalar_select %p268, %s20, 1
      %p270 = scmp.lt.s32.totalorder %s267, 2
      %s271 = scalar_select %p270, %s267, 2
      %s272 = smul.addr %s269, 12
      %s273 = sadd.s32 %s271, %s272
      %s274 = smul.addr %s273, 4
      %s275 = scalar_lea.vmem %s1, %s274
      %s276 = smul.u32 3, %s21
      %p277 = scmp.lt.s32.totalorder %s20, 1
      %s278 = scalar_select %p277, %s20, 1
      %p279 = scmp.lt.s32.totalorder %s21, 0
      %s280 = scalar_select %p279, %s21, 0
      %s281 = smul.addr %s280, 4
      %s282 = smul.addr %s278, 4
      %s283 = sadd.s32 %s281, %s282
      %s284 = smul.addr %s283, 8
      %s285 = scalar_lea.vmem %s3, %s284
      %p286 = scmp.lt.s32.totalorder %s20, 1
      %s287 = scalar_select %p286, %s20, 1
      %p288 = scmp.lt.s32.totalorder %s21, 0
      %s289 = scalar_select %p288, %s21, 0
      %s290 = smul.addr %s289, 4
      %s291 = smul.addr %s287, 4
      %s292 = sadd.s32 %s290, %s291
      %s293 = smul.addr %s292, 8
      %s294 = scalar_lea.vmem %s4, %s293
      %v296 = vld [vmem:[%s2] sm:$0xf]
      %v297 = vld [vmem:[%s2 + $0x4] sm:$0xf]
      %v298 = vld [vmem:[%s2 + $0x8] sm:$0xf]
      %v299 = vld [vmem:[%s2 + $0xc] sm:$0xf]
      %v300 = vld [vmem:[%s265] sm:$0x1]
      %v301 = vld [vmem:[%s265 + $0xc] sm:$0x1]
      %v302 = vld [vmem:[%s265 + $0x18] sm:$0x1]
      %v303 = vld [vmem:[%s265 + $0x24] sm:$0x1]
      %v304 = vld [vmem:[%s275] sm:$0x1]
      %v305 = vld [vmem:[%s275 + $0xc] sm:$0x1]
      %v306 = vld [vmem:[%s275 + $0x18] sm:$0x1]
      %v307 = vld [vmem:[%s275 + $0x24] sm:$0x1]
      %v312 = vunpack.c.l.b16 %v300
      %v313 = vunpack.c.l.b16 %v301
      %v314 = vunpack.c.l.b16 %v302
      %v315 = vunpack.c.l.b16 %v303
      %v316 = vpack.c.b16 %v312, %v312
      %v317 = vpack.c.b16 %v313, %v313
      %v318 = vpack.c.b16 %v314, %v314
      %v319 = vpack.c.b16 %v315, %v315
      %v320 = vunpack.c.l.b16 %v316
      %v321 = vunpack.c.l.b16 %v317
      %v322 = vunpack.c.l.b16 %v318
      %v323 = vunpack.c.l.b16 %v319
      %v324 = vrot.slane %v321, 7
      %vm325 = vcmask 1041409
      %v326 = vsel %vm325, %v324, %v320
      %v327 = vrot.slane %v322, 6
      %vm328 = vcmask 1042434
      %v329 = vsel %vm328, %v327, %v326
      %v330 = vrot.slane %v323, 5
      %vm331 = vcmask 1043459
      %v332 = vsel %vm331, %v330, %v329
      %v333 = vpack.c.b16 %v332, %v332
      %v334 = vrot.slane %v320, 4
      %v335 = vrot.slane %v321, 3
      %vm336 = vcmask 1045509
      %v337 = vsel %vm336, %v335, %v334
      %v338 = vrot.slane %v322, 2
      %vm339 = vcmask 1046534
      %v340 = vsel %vm339, %v338, %v337
      %v341 = vrot.slane %v323, 1
      %vm342 = vcmask 1047559
      %v343 = vsel %vm342, %v341, %v340
      %v344 = vpack.c.b16 %v343, %v343
      %345 = vrot.lane.b32.xlu0 %v344, 127
      %v346 = vpop.permute.xlu0 %345
      %v351 = vunpack.c.l.b16 %v304
      %v352 = vunpack.c.l.b16 %v305
      %v353 = vunpack.c.l.b16 %v306
      %v354 = vunpack.c.l.b16 %v307
      %v355 = vpack.c.b16 %v351, %v351
      %v356 = vpack.c.b16 %v352, %v352
      %v357 = vpack.c.b16 %v353, %v353
      %v358 = vpack.c.b16 %v354, %v354
      %v359 = vunpack.c.h.b16 %v355
      %v360 = vunpack.c.h.b16 %v356
      %v361 = vunpack.c.h.b16 %v357
      %v362 = vunpack.c.h.b16 %v358
      %v363 = vrot.slane %v360, 7
      %v364 = vsel %vm325, %v363, %v359
      %v365 = vrot.slane %v361, 6
      %v366 = vsel %vm328, %v365, %v364
      %v367 = vrot.slane %v362, 5
      %v368 = vsel %vm331, %v367, %v366
      %v369 = vpack.c.b16 %v368, %v368
      %v370 = vunpack.c.l.b16 %v355
      %v371 = vunpack.c.l.b16 %v356
      %v372 = vunpack.c.l.b16 %v357
      %v373 = vunpack.c.l.b16 %v358
      %v374 = vrot.slane %v370, 4
      %v375 = vrot.slane %v371, 3
      %v376 = vsel %vm336, %v375, %v374
      %v377 = vrot.slane %v372, 2
      %v378 = vsel %vm339, %v377, %v376
      %v379 = vrot.slane %v373, 1
      %v380 = vsel %vm342, %v379, %v378
      %v381 = vpack.c.b16 %v380, %v380
      %382 = vrot.lane.b32.xlu0 %v381, 127
      %v383 = vpop.permute.xlu0 %382
      %vm384 = vcmask 1041408
      %v387 = vsel %vm384, %v333, %v346
      %vm388 = vcmask 1043456
      %v390 = vsel %vm388, %v387, %v369
      %vm391 = vcmask 1045504
      %v393 = vsel %vm391, %v390, %v383
      %v399 = vunpack.c.l.b16 %v296
      %v400 = vunpack.c.l.b16 %v297
      %v401 = vunpack.c.l.b16 %v298
      %v402 = vunpack.c.l.b16 %v299
      %v403 = vpack.c.b16 %v400, %v399
      %v404 = vpack.c.b16 %v402, %v401
      %vm405 = vcmask 130048
      %v407 = vsel %vm405, %v403, 0
      %v410 = vsel %vm405, %v404, 0
      %412 = vmatpush.bf16.msra.mxu0 0
      %413 = vmatpush.bf16.msra.mxu0 0
      %414 = vmatpush.bf16.msra.mxu0 0
      %415 = vmatpush.bf16.msra.mxu0 0
      %416 = vmatpush.bf16.msra.mxu0 0
      %417 = vmatpush.bf16.msra.mxu0 0
      %418 = vmatpush.bf16.msra.mxu0 0
      %419 = vmatpush.bf16.msra.mxu0 %v393
      %420 = vmatmul.bf16.gmra.mxu0 %v407
      %v421 = vpop.f32.mrf.mxu0
      %v422 = vadd.f32 0.0, %v421
      %v423 = vpop.f32.mrf.mxu0
      %v424 = vadd.f32 0.0, %v423
      %425 = vmatmul.bf16.gmra.mxu0 %v410
      %v426 = vpop.f32.mrf.mxu0
      %v427 = vadd.f32 0.0, %v426
      %v428 = vpop.f32.mrf.mxu0
      %v429 = vadd.f32 0.0, %v428
      %430 = vdwg.mxu0
      %v431 = vadd.f32 %v422, 0.0
      %v432 = vadd.f32 %v424, 0.0
      %v433 = vadd.f32 %v427, 0.0
      %v434 = vadd.f32 %v429, 0.0
      %v435 = vmul.f32 %v422, %v422
      %v436 = vmul.f32 %v424, %v424
      %v437 = vmul.f32 %v427, %v427
      %v438 = vmul.f32 %v429, %v429
      %v439 = vadd.f32 %v435, 0.0
      %v440 = vadd.f32 %v436, 0.0
      %v441 = vadd.f32 %v437, 0.0
      %v442 = vadd.f32 %v438, 0.0
      %v443 = vrot.slane %v320, 1
      %v444 = vsel %vm325, %v321, %v443
      %v445 = vrot.slane %v322, 7
      %v446 = vsel %vm328, %v445, %v444
      %v447 = vrot.slane %v323, 6
      %v448 = vsel %vm331, %v447, %v446
      %v449 = vpack.c.b16 %v448, %v448
      %v450 = vrot.slane %v320, 5
      %v451 = vrot.slane %v321, 4
      %v452 = vsel %vm336, %v451, %v450
      %v453 = vrot.slane %v322, 3
      %v454 = vsel %vm339, %v453, %v452
      %v455 = vrot.slane %v323, 2
      %v456 = vsel %vm342, %v455, %v454
      %v457 = vpack.c.b16 %v456, %v456
      %458 = vrot.lane.b32.xlu0 %v457, 127
      %v459 = vpop.permute.xlu0 %458
      %v460 = vrot.slane %v370, 1
      %v461 = vsel %vm325, %v371, %v460
      %v462 = vrot.slane %v372, 7
      %v463 = vsel %vm328, %v462, %v461
      %v464 = vrot.slane %v373, 6
      %v465 = vsel %vm331, %v464, %v463
      %v466 = vpack.c.b16 %v465, %v465
      %v467 = vrot.slane %v370, 5
      %v468 = vrot.slane %v371, 4
      %v469 = vsel %vm336, %v468, %v467
      %v470 = vrot.slane %v372, 3
      %v471 = vsel %vm339, %v470, %v469
      %v472 = vrot.slane %v373, 2
      %v473 = vsel %vm342, %v472, %v471
      %v474 = vpack.c.b16 %v473, %v473
      %475 = vrot.lane.b32.xlu0 %v474, 127
      %v476 = vpop.permute.xlu0 %475
      %v479 = vsel %vm384, %v449, %v459
      %v481 = vsel %vm388, %v479, %v466
      %v483 = vsel %vm391, %v481, %v476
      %485 = vmatpush.bf16.msra.mxu0 0
      %486 = vmatpush.bf16.msra.mxu0 0
      %487 = vmatpush.bf16.msra.mxu0 0
      %488 = vmatpush.bf16.msra.mxu0 0
      %489 = vmatpush.bf16.msra.mxu0 0
      %490 = vmatpush.bf16.msra.mxu0 0
      %491 = vmatpush.bf16.msra.mxu0 0
      %492 = vmatpush.bf16.msra.mxu0 %v483
      %493 = vmatmul.bf16.gmra.mxu0 %v407
      %v494 = vpop.f32.mrf.mxu0
      %v495 = vadd.f32 0.0, %v494
      %v496 = vpop.f32.mrf.mxu0
      %v497 = vadd.f32 0.0, %v496
      %498 = vmatmul.bf16.gmra.mxu0 %v410
      %v499 = vpop.f32.mrf.mxu0
      %v500 = vadd.f32 0.0, %v499
      %v501 = vpop.f32.mrf.mxu0
      %v502 = vadd.f32 0.0, %v501
      %503 = vdwg.mxu0
      %v504 = vadd.f32 %v431, %v495
      %v505 = vadd.f32 %v432, %v497
      %v506 = vadd.f32 %v433, %v500
      %v507 = vadd.f32 %v434, %v502
      %v508 = vmul.f32 %v495, %v495
      %v509 = vmul.f32 %v497, %v497
      %v510 = vmul.f32 %v500, %v500
      %v511 = vmul.f32 %v502, %v502
      %v512 = vadd.f32 %v439, %v508
      %v513 = vadd.f32 %v440, %v509
      %v514 = vadd.f32 %v441, %v510
      %v515 = vadd.f32 %v442, %v511
      %v516 = vld [vmem:[%s265] sm:$0x2]
      %v517 = vld [vmem:[%s265 + $0xc] sm:$0x2]
      %v518 = vld [vmem:[%s265 + $0x18] sm:$0x2]
      %v519 = vld [vmem:[%s265 + $0x24] sm:$0x2]
      %v520 = vld [vmem:[%s275] sm:$0x2]
      %v521 = vld [vmem:[%s275 + $0xc] sm:$0x2]
      %v522 = vld [vmem:[%s275 + $0x18] sm:$0x2]
      %v523 = vld [vmem:[%s275 + $0x24] sm:$0x2]
      %v528 = vunpack.c.l.b16 %v516
      %v529 = vunpack.c.l.b16 %v517
      %v530 = vunpack.c.l.b16 %v518
      %v531 = vunpack.c.l.b16 %v519
      %v532 = vpack.c.b16 %v528, %v528
      %v533 = vpack.c.b16 %v529, %v529
      %v534 = vpack.c.b16 %v530, %v530
      %v535 = vpack.c.b16 %v531, %v531
      %v536 = vunpack.c.l.b16 %v532
      %v537 = vunpack.c.l.b16 %v533
      %v538 = vunpack.c.l.b16 %v534
      %v539 = vunpack.c.l.b16 %v535
      %v540 = vrot.slane %v536, 2
      %v541 = vrot.slane %v537, 1
      %v542 = vsel %vm325, %v541, %v540
      %v543 = vsel %vm328, %v538, %v542
      %v544 = vrot.slane %v539, 7
      %v545 = vsel %vm331, %v544, %v543
      %v546 = vpack.c.b16 %v545, %v545
      %v547 = vrot.slane %v536, 6
      %v548 = vrot.slane %v537, 5
      %v549 = vsel %vm336, %v548, %v547
      %v550 = vrot.slane %v538, 4
      %v551 = vsel %vm339, %v550, %v549
      %v552 = vrot.slane %v539, 3
      %v553 = vsel %vm342, %v552, %v551
      %v554 = vpack.c.b16 %v553, %v553
      %555 = vrot.lane.b32.xlu0 %v554, 127
      %v556 = vpop.permute.xlu0 %555
      %v561 = vunpack.c.l.b16 %v520
      %v562 = vunpack.c.l.b16 %v521
      %v563 = vunpack.c.l.b16 %v522
      %v564 = vunpack.c.l.b16 %v523
      %v565 = vpack.c.b16 %v561, %v561
      %v566 = vpack.c.b16 %v562, %v562
      %v567 = vpack.c.b16 %v563, %v563
      %v568 = vpack.c.b16 %v564, %v564
      %v569 = vunpack.c.l.b16 %v565
      %v570 = vunpack.c.l.b16 %v566
      %v571 = vunpack.c.l.b16 %v567
      %v572 = vunpack.c.l.b16 %v568
      %v573 = vrot.slane %v569, 2
      %v574 = vrot.slane %v570, 1
      %v575 = vsel %vm325, %v574, %v573
      %v576 = vsel %vm328, %v571, %v575
      %v577 = vrot.slane %v572, 7
      %v578 = vsel %vm331, %v577, %v576
      %v579 = vpack.c.b16 %v578, %v578
      %v580 = vrot.slane %v569, 6
      %v581 = vrot.slane %v570, 5
      %v582 = vsel %vm336, %v581, %v580
      %v583 = vrot.slane %v571, 4
      %v584 = vsel %vm339, %v583, %v582
      %v585 = vrot.slane %v572, 3
      %v586 = vsel %vm342, %v585, %v584
      %v587 = vpack.c.b16 %v586, %v586
      %588 = vrot.lane.b32.xlu0 %v587, 127
      %v589 = vpop.permute.xlu0 %588
      %v592 = vsel %vm384, %v546, %v556
      %v594 = vsel %vm388, %v592, %v579
      %v596 = vsel %vm391, %v594, %v589
      %598 = vmatpush.bf16.msra.mxu0 0
      %599 = vmatpush.bf16.msra.mxu0 0
      %600 = vmatpush.bf16.msra.mxu0 0
      %601 = vmatpush.bf16.msra.mxu0 0
      %602 = vmatpush.bf16.msra.mxu0 0
      %603 = vmatpush.bf16.msra.mxu0 0
      %604 = vmatpush.bf16.msra.mxu0 0
      %605 = vmatpush.bf16.msra.mxu0 %v596
      %606 = vmatmul.bf16.gmra.mxu0 %v407
      %v607 = vpop.f32.mrf.mxu0
      %v608 = vadd.f32 0.0, %v607
      %v609 = vpop.f32.mrf.mxu0
      %v610 = vadd.f32 0.0, %v609
      %611 = vmatmul.bf16.gmra.mxu0 %v410
      %v612 = vpop.f32.mrf.mxu0
      %v613 = vadd.f32 0.0, %v612
      %v614 = vpop.f32.mrf.mxu0
      %v615 = vadd.f32 0.0, %v614
      %616 = vdwg.mxu0
      %v617 = vadd.f32 %v504, %v608
      %v618 = vadd.f32 %v505, %v610
      %v619 = vadd.f32 %v506, %v613
      %v620 = vadd.f32 %v507, %v615
      %v621 = vmul.f32 %v608, %v608
      %v622 = vmul.f32 %v610, %v610
      %v623 = vmul.f32 %v613, %v613
      %v624 = vmul.f32 %v615, %v615
      %v625 = vadd.f32 %v512, %v621
      %v626 = vadd.f32 %v513, %v622
      %v627 = vadd.f32 %v514, %v623
      %v628 = vadd.f32 %v515, %v624
      %v629 = vrot.slane %v536, 3
      %v630 = vrot.slane %v537, 2
      %v631 = vsel %vm325, %v630, %v629
      %v632 = vrot.slane %v538, 1
      %v633 = vsel %vm328, %v632, %v631
      %v634 = vsel %vm331, %v539, %v633
      %v635 = vpack.c.b16 %v634, %v634
      %v636 = vrot.slane %v536, 7
      %v637 = vrot.slane %v537, 6
      %v638 = vsel %vm336, %v637, %v636
      %v639 = vrot.slane %v538, 5
      %v640 = vsel %vm339, %v639, %v638
      %v641 = vrot.slane %v539, 4
      %v642 = vsel %vm342, %v641, %v640
      %v643 = vpack.c.b16 %v642, %v642
      %644 = vrot.lane.b32.xlu0 %v643, 127
      %v645 = vpop.permute.xlu0 %644
      %v646 = vrot.slane %v569, 3
      %v647 = vrot.slane %v570, 2
      %v648 = vsel %vm325, %v647, %v646
      %v649 = vrot.slane %v571, 1
      %v650 = vsel %vm328, %v649, %v648
      %v651 = vsel %vm331, %v572, %v650
      %v652 = vpack.c.b16 %v651, %v651
      %v653 = vrot.slane %v569, 7
      %v654 = vrot.slane %v570, 6
      %v655 = vsel %vm336, %v654, %v653
      %v656 = vrot.slane %v571, 5
      %v657 = vsel %vm339, %v656, %v655
      %v658 = vrot.slane %v572, 4
      %v659 = vsel %vm342, %v658, %v657
      %v660 = vpack.c.b16 %v659, %v659
      %661 = vrot.lane.b32.xlu0 %v660, 127
      %v662 = vpop.permute.xlu0 %661
      %v665 = vsel %vm384, %v635, %v645
      %v667 = vsel %vm388, %v665, %v652
      %v669 = vsel %vm391, %v667, %v662
      %671 = vmatpush.bf16.msra.mxu0 0
      %672 = vmatpush.bf16.msra.mxu0 0
      %673 = vmatpush.bf16.msra.mxu0 0
      %674 = vmatpush.bf16.msra.mxu0 0
      %675 = vmatpush.bf16.msra.mxu0 0
      %676 = vmatpush.bf16.msra.mxu0 0
      %677 = vmatpush.bf16.msra.mxu0 0
      %678 = vmatpush.bf16.msra.mxu0 %v669
      %679 = vmatmul.bf16.gmra.mxu0 %v407
      %v680 = vpop.f32.mrf.mxu0
      %v681 = vadd.f32 0.0, %v680
      %v682 = vpop.f32.mrf.mxu0
      %v683 = vadd.f32 0.0, %v682
      %684 = vmatmul.bf16.gmra.mxu0 %v410
      %v685 = vpop.f32.mrf.mxu0
      %v686 = vadd.f32 0.0, %v685
      %v687 = vpop.f32.mrf.mxu0
      %v688 = vadd.f32 0.0, %v687
      %689 = vdwg.mxu0
      %v690 = vadd.f32 %v617, %v681
      %v691 = vadd.f32 %v618, %v683
      %v692 = vadd.f32 %v619, %v686
      %v693 = vadd.f32 %v620, %v688
      %v694 = vmul.f32 %v681, %v681
      %v695 = vmul.f32 %v683, %v683
      %v696 = vmul.f32 %v686, %v686
      %v697 = vmul.f32 %v688, %v688
      %v698 = vadd.f32 %v625, %v694
      %v699 = vadd.f32 %v626, %v695
      %v700 = vadd.f32 %v627, %v696
      %v701 = vadd.f32 %v628, %v697
      %v702 = vld [vmem:[%s265] sm:$0x4]
      %v703 = vld [vmem:[%s265 + $0xc] sm:$0x4]
      %v704 = vld [vmem:[%s265 + $0x18] sm:$0x4]
      %v705 = vld [vmem:[%s265 + $0x24] sm:$0x4]
      %v706 = vld [vmem:[%s275] sm:$0x4]
      %v707 = vld [vmem:[%s275 + $0xc] sm:$0x4]
      %v708 = vld [vmem:[%s275 + $0x18] sm:$0x4]
      %v709 = vld [vmem:[%s275 + $0x24] sm:$0x4]
      %v714 = vunpack.c.l.b16 %v702
      %v715 = vunpack.c.l.b16 %v703
      %v716 = vunpack.c.l.b16 %v704
      %v717 = vunpack.c.l.b16 %v705
      %v718 = vpack.c.b16 %v714, %v714
      %v719 = vpack.c.b16 %v715, %v715
      %v720 = vpack.c.b16 %v716, %v716
      %v721 = vpack.c.b16 %v717, %v717
      %v722 = vunpack.c.l.b16 %v718
      %v723 = vunpack.c.l.b16 %v719
      %v724 = vunpack.c.l.b16 %v720
      %v725 = vunpack.c.l.b16 %v721
      %v726 = vrot.slane %v722, 4
      %v727 = vrot.slane %v723, 3
      %v728 = vsel %vm325, %v727, %v726
      %v729 = vrot.slane %v724, 2
      %v730 = vsel %vm328, %v729, %v728
      %v731 = vrot.slane %v725, 1
      %v732 = vsel %vm331, %v731, %v730
      %v733 = vpack.c.b16 %v732, %v732
      %v734 = vrot.slane %v723, 7
      %v735 = vsel %vm336, %v734, %v722
      %v736 = vrot.slane %v724, 6
      %v737 = vsel %vm339, %v736, %v735
      %v738 = vrot.slane %v725, 5
      %v739 = vsel %vm342, %v738, %v737
      %v740 = vpack.c.b16 %v739, %v739
      %741 = vrot.lane.b32.xlu0 %v740, 127
      %v742 = vpop.permute.xlu0 %741
      %v747 = vunpack.c.l.b16 %v706
      %v748 = vunpack.c.l.b16 %v707
      %v749 = vunpack.c.l.b16 %v708
      %v750 = vunpack.c.l.b16 %v709
      %v751 = vpack.c.b16 %v747, %v747
      %v752 = vpack.c.b16 %v748, %v748
      %v753 = vpack.c.b16 %v749, %v749
      %v754 = vpack.c.b16 %v750, %v750
      %v755 = vunpack.c.l.b16 %v751
      %v756 = vunpack.c.l.b16 %v752
      %v757 = vunpack.c.l.b16 %v753
      %v758 = vunpack.c.l.b16 %v754
      %v759 = vrot.slane %v755, 4
      %v760 = vrot.slane %v756, 3
      %v761 = vsel %vm325, %v760, %v759
      %v762 = vrot.slane %v757, 2
      %v763 = vsel %vm328, %v762, %v761
      %v764 = vrot.slane %v758, 1
      %v765 = vsel %vm331, %v764, %v763
      %v766 = vpack.c.b16 %v765, %v765
      %v767 = vunpack.c.h.b16 %v751
      %v768 = vunpack.c.h.b16 %v752
      %v769 = vunpack.c.h.b16 %v753
      %v770 = vunpack.c.h.b16 %v754
      %v771 = vrot.slane %v768, 7
      %v772 = vsel %vm336, %v771, %v767
      %v773 = vrot.slane %v769, 6
      %v774 = vsel %vm339, %v773, %v772
      %v775 = vrot.slane %v770, 5
      %v776 = vsel %vm342, %v775, %v774
      %v777 = vpack.c.b16 %v776, %v776
      %778 = vrot.lane.b32.xlu0 %v777, 127
      %v779 = vpop.permute.xlu0 %778
      %v782 = vsel %vm384, %v733, %v742
      %v784 = vsel %vm388, %v782, %v766
      %v786 = vsel %vm391, %v784, %v779
      %788 = vmatpush.bf16.msra.mxu0 0
      %789 = vmatpush.bf16.msra.mxu0 0
      %790 = vmatpush.bf16.msra.mxu0 0
      %791 = vmatpush.bf16.msra.mxu0 0
      %792 = vmatpush.bf16.msra.mxu0 0
      %793 = vmatpush.bf16.msra.mxu0 0
      %794 = vmatpush.bf16.msra.mxu0 0
      %795 = vmatpush.bf16.msra.mxu0 %v786
      %796 = vmatmul.bf16.gmra.mxu0 %v407
      %v797 = vpop.f32.mrf.mxu0
      %v798 = vadd.f32 0.0, %v797
      %v799 = vpop.f32.mrf.mxu0
      %v800 = vadd.f32 0.0, %v799
      %801 = vmatmul.bf16.gmra.mxu0 %v410
      %v802 = vpop.f32.mrf.mxu0
      %v803 = vadd.f32 0.0, %v802
      %v804 = vpop.f32.mrf.mxu0
      %v805 = vadd.f32 0.0, %v804
      %806 = vdwg.mxu0
      %v807 = vadd.f32 %v690, %v798
      %v808 = vadd.f32 %v691, %v800
      %v809 = vadd.f32 %v692, %v803
      %v810 = vadd.f32 %v693, %v805
      %v811 = vmul.f32 %v798, %v798
      %v812 = vmul.f32 %v800, %v800
      %v813 = vmul.f32 %v803, %v803
      %v814 = vmul.f32 %v805, %v805
      %v815 = vadd.f32 %v698, %v811
      %v816 = vadd.f32 %v699, %v812
      %v817 = vadd.f32 %v700, %v813
      %v818 = vadd.f32 %v701, %v814
      %v819 = vrot.slane %v722, 5
      %v820 = vrot.slane %v723, 4
      %v821 = vsel %vm325, %v820, %v819
      %v822 = vrot.slane %v724, 3
      %v823 = vsel %vm328, %v822, %v821
      %v824 = vrot.slane %v725, 2
      %v825 = vsel %vm331, %v824, %v823
      %v826 = vpack.c.b16 %v825, %v825
      %v827 = vrot.slane %v722, 1
      %v828 = vsel %vm336, %v723, %v827
      %v829 = vrot.slane %v724, 7
      %v830 = vsel %vm339, %v829, %v828
      %v831 = vrot.slane %v725, 6
      %v832 = vsel %vm342, %v831, %v830
      %v833 = vpack.c.b16 %v832, %v832
      %834 = vrot.lane.b32.xlu0 %v833, 127
      %v835 = vpop.permute.xlu0 %834
      %v836 = vrot.slane %v755, 5
      %v837 = vrot.slane %v756, 4
      %v838 = vsel %vm325, %v837, %v836
      %v839 = vrot.slane %v757, 3
      %v840 = vsel %vm328, %v839, %v838
      %v841 = vrot.slane %v758, 2
      %v842 = vsel %vm331, %v841, %v840
      %v843 = vpack.c.b16 %v842, %v842
      %v844 = vrot.slane %v755, 1
      %v845 = vsel %vm336, %v756, %v844
      %v846 = vrot.slane %v757, 7
      %v847 = vsel %vm339, %v846, %v845
      %v848 = vrot.slane %v758, 6
      %v849 = vsel %vm342, %v848, %v847
      %v850 = vpack.c.b16 %v849, %v849
      %851 = vrot.lane.b32.xlu0 %v850, 127
      %v852 = vpop.permute.xlu0 %851
      %v855 = vsel %vm384, %v826, %v835
      %v857 = vsel %vm388, %v855, %v843
      %v859 = vsel %vm391, %v857, %v852
      %861 = vmatpush.bf16.msra.mxu0 0
      %862 = vmatpush.bf16.msra.mxu0 0
      %863 = vmatpush.bf16.msra.mxu0 0
      %864 = vmatpush.bf16.msra.mxu0 0
      %865 = vmatpush.bf16.msra.mxu0 0
      %866 = vmatpush.bf16.msra.mxu0 0
      %867 = vmatpush.bf16.msra.mxu0 0
      %868 = vmatpush.bf16.msra.mxu0 %v859
      %869 = vmatmul.bf16.gmra.mxu0 %v407
      %v870 = vpop.f32.mrf.mxu0
      %v871 = vadd.f32 0.0, %v870
      %v872 = vpop.f32.mrf.mxu0
      %v873 = vadd.f32 0.0, %v872
      %874 = vmatmul.bf16.gmra.mxu0 %v410
      %v875 = vpop.f32.mrf.mxu0
      %v876 = vadd.f32 0.0, %v875
      %v877 = vpop.f32.mrf.mxu0
      %v878 = vadd.f32 0.0, %v877
      %879 = vdwg.mxu0
      %v880 = vadd.f32 %v807, %v871
      %v881 = vadd.f32 %v808, %v873
      %v882 = vadd.f32 %v809, %v876
      %v883 = vadd.f32 %v810, %v878
      %v884 = vmul.f32 %v871, %v871
      %v885 = vmul.f32 %v873, %v873
      %v886 = vmul.f32 %v876, %v876
      %v887 = vmul.f32 %v878, %v878
      %v888 = vadd.f32 %v815, %v884
      %v889 = vadd.f32 %v816, %v885
      %v890 = vadd.f32 %v817, %v886
      %v891 = vadd.f32 %v818, %v887
      %v892 = vld [vmem:[%s265] sm:$0x8]
      %v893 = vld [vmem:[%s265 + $0xc] sm:$0x8]
      %v894 = vld [vmem:[%s265 + $0x18] sm:$0x8]
      %v895 = vld [vmem:[%s265 + $0x24] sm:$0x8]
      %v896 = vld [vmem:[%s275] sm:$0x8]
      %v897 = vld [vmem:[%s275 + $0xc] sm:$0x8]
      %v898 = vld [vmem:[%s275 + $0x18] sm:$0x8]
      %v899 = vld [vmem:[%s275 + $0x24] sm:$0x8]
      %v904 = vunpack.c.l.b16 %v892
      %v905 = vunpack.c.l.b16 %v893
      %v906 = vunpack.c.l.b16 %v894
      %v907 = vunpack.c.l.b16 %v895
      %v908 = vpack.c.b16 %v904, %v904
      %v909 = vpack.c.b16 %v905, %v905
      %v910 = vpack.c.b16 %v906, %v906
      %v911 = vpack.c.b16 %v907, %v907
      %v912 = vunpack.c.l.b16 %v908
      %v913 = vunpack.c.l.b16 %v909
      %v914 = vunpack.c.l.b16 %v910
      %v915 = vunpack.c.l.b16 %v911
      %v916 = vrot.slane %v912, 6
      %v917 = vrot.slane %v913, 5
      %v918 = vsel %vm325, %v917, %v916
      %v919 = vrot.slane %v914, 4
      %v920 = vsel %vm328, %v919, %v918
      %v921 = vrot.slane %v915, 3
      %v922 = vsel %vm331, %v921, %v920
      %v923 = vpack.c.b16 %v922, %v922
      %v924 = vrot.slane %v912, 2
      %v925 = vrot.slane %v913, 1
      %v926 = vsel %vm336, %v925, %v924
      %v927 = vsel %vm339, %v914, %v926
      %v928 = vrot.slane %v915, 7
      %v929 = vsel %vm342, %v928, %v927
      %v930 = vpack.c.b16 %v929, %v929
      %931 = vrot.lane.b32.xlu0 %v930, 127
      %v932 = vpop.permute.xlu0 %931
      %v937 = vunpack.c.l.b16 %v896
      %v938 = vunpack.c.l.b16 %v897
      %v939 = vunpack.c.l.b16 %v898
      %v940 = vunpack.c.l.b16 %v899
      %v941 = vpack.c.b16 %v937, %v937
      %v942 = vpack.c.b16 %v938, %v938
      %v943 = vpack.c.b16 %v939, %v939
      %v944 = vpack.c.b16 %v940, %v940
      %v945 = vunpack.c.l.b16 %v941
      %v946 = vunpack.c.l.b16 %v942
      %v947 = vunpack.c.l.b16 %v943
      %v948 = vunpack.c.l.b16 %v944
      %v949 = vrot.slane %v945, 6
      %v950 = vrot.slane %v946, 5
      %v951 = vsel %vm325, %v950, %v949
      %v952 = vrot.slane %v947, 4
      %v953 = vsel %vm328, %v952, %v951
      %v954 = vrot.slane %v948, 3
      %v955 = vsel %vm331, %v954, %v953
      %v956 = vpack.c.b16 %v955, %v955
      %v957 = vrot.slane %v945, 2
      %v958 = vrot.slane %v946, 1
      %v959 = vsel %vm336, %v958, %v957
      %v960 = vsel %vm339, %v947, %v959
      %v961 = vrot.slane %v948, 7
      %v962 = vsel %vm342, %v961, %v960
      %v963 = vpack.c.b16 %v962, %v962
      %964 = vrot.lane.b32.xlu0 %v963, 127
      %v965 = vpop.permute.xlu0 %964
      %v968 = vsel %vm384, %v923, %v932
      %v970 = vsel %vm388, %v968, %v956
      %v972 = vsel %vm391, %v970, %v965
      %974 = vmatpush.bf16.msra.mxu0 0
      %975 = vmatpush.bf16.msra.mxu0 0
      %976 = vmatpush.bf16.msra.mxu0 0
      %977 = vmatpush.bf16.msra.mxu0 0
      %978 = vmatpush.bf16.msra.mxu0 0
      %979 = vmatpush.bf16.msra.mxu0 0
      %980 = vmatpush.bf16.msra.mxu0 0
      %981 = vmatpush.bf16.msra.mxu0 %v972
      %982 = vmatmul.bf16.gmra.mxu0 %v407
      %v983 = vpop.f32.mrf.mxu0
      %v984 = vadd.f32 0.0, %v983
      %v985 = vpop.f32.mrf.mxu0
      %v986 = vadd.f32 0.0, %v985
      %987 = vmatmul.bf16.gmra.mxu0 %v410
      %v988 = vpop.f32.mrf.mxu0
      %v989 = vadd.f32 0.0, %v988
      %v990 = vpop.f32.mrf.mxu0
      %v991 = vadd.f32 0.0, %v990
      %992 = vdwg.mxu0
      %v993 = vadd.f32 %v880, %v984
      %v994 = vadd.f32 %v881, %v986
      %v995 = vadd.f32 %v882, %v989
      %v996 = vadd.f32 %v883, %v991
      %v997 = vmul.f32 %v984, %v984
      %v998 = vmul.f32 %v986, %v986
      %v999 = vmul.f32 %v989, %v989
      %v1000 = vmul.f32 %v991, %v991
      %v1001 = vadd.f32 %v888, %v997
      %v1002 = vadd.f32 %v889, %v998
      %v1003 = vadd.f32 %v890, %v999
      %v1004 = vadd.f32 %v891, %v1000
      %v1005 = vrot.slane %v912, 7
      %v1006 = vrot.slane %v913, 6
      %v1007 = vsel %vm325, %v1006, %v1005
      %v1008 = vrot.slane %v914, 5
      %v1009 = vsel %vm328, %v1008, %v1007
      %v1010 = vrot.slane %v915, 4
      %v1011 = vsel %vm331, %v1010, %v1009
      %v1012 = vpack.c.b16 %v1011, %v1011
      %v1013 = vrot.slane %v912, 3
      %v1014 = vrot.slane %v913, 2
      %v1015 = vsel %vm336, %v1014, %v1013
      %v1016 = vrot.slane %v914, 1
      %v1017 = vsel %vm339, %v1016, %v1015
      %v1018 = vsel %vm342, %v915, %v1017
      %v1019 = vpack.c.b16 %v1018, %v1018
      %1020 = vrot.lane.b32.xlu0 %v1019, 127
      %v1021 = vpop.permute.xlu0 %1020
      %v1022 = vrot.slane %v945, 7
      %v1023 = vrot.slane %v946, 6
      %v1024 = vsel %vm325, %v1023, %v1022
      %v1025 = vrot.slane %v947, 5
      %v1026 = vsel %vm328, %v1025, %v1024
      %v1027 = vrot.slane %v948, 4
      %v1028 = vsel %vm331, %v1027, %v1026
      %v1029 = vpack.c.b16 %v1028, %v1028
      %v1030 = vrot.slane %v945, 3
      %v1031 = vrot.slane %v946, 2
      %v1032 = vsel %vm336, %v1031, %v1030
      %v1033 = vrot.slane %v947, 1
      %v1034 = vsel %vm339, %v1033, %v1032
      %v1035 = vsel %vm342, %v948, %v1034
      %v1036 = vpack.c.b16 %v1035, %v1035
      %1037 = vrot.lane.b32.xlu0 %v1036, 127
      %v1038 = vpop.permute.xlu0 %1037
      %v1041 = vsel %vm384, %v1012, %v1021
      %v1043 = vsel %vm388, %v1041, %v1029
      %v1045 = vsel %vm391, %v1043, %v1038
      %1047 = vmatpush.bf16.msra.mxu0 0
      %1048 = vmatpush.bf16.msra.mxu0 0
      %1049 = vmatpush.bf16.msra.mxu0 0
      %1050 = vmatpush.bf16.msra.mxu0 0
      %1051 = vmatpush.bf16.msra.mxu0 0
      %1052 = vmatpush.bf16.msra.mxu0 0
      %1053 = vmatpush.bf16.msra.mxu0 0
      %1054 = vmatpush.bf16.msra.mxu0 %v1045
      %1055 = vmatmul.bf16.gmra.mxu0 %v407
      %v1056 = vpop.f32.mrf.mxu0
      %v1057 = vadd.f32 0.0, %v1056
      %v1058 = vpop.f32.mrf.mxu0
      %v1059 = vadd.f32 0.0, %v1058
      %1060 = vmatmul.bf16.gmra.mxu0 %v410
      %v1061 = vpop.f32.mrf.mxu0
      %v1062 = vadd.f32 0.0, %v1061
      %v1063 = vpop.f32.mrf.mxu0
      %v1064 = vadd.f32 0.0, %v1063
      %1065 = vdwg.mxu0
      %v1066 = vadd.f32 %v993, %v1057
      %v1067 = vadd.f32 %v994, %v1059
      %v1068 = vadd.f32 %v995, %v1062
      %v1069 = vadd.f32 %v996, %v1064
      %v1070 = vmul.f32 %v1057, %v1057
      %v1071 = vmul.f32 %v1059, %v1059
      %v1072 = vmul.f32 %v1062, %v1062
      %v1073 = vmul.f32 %v1064, %v1064
      %v1074 = vadd.f32 %v1001, %v1070
      %v1075 = vadd.f32 %v1002, %v1071
      %v1076 = vadd.f32 %v1003, %v1072
      %v1077 = vadd.f32 %v1004, %v1073
      %v1078 = vld [vmem:[%s265 + $0x4] sm:$0x1]
      %v1079 = vld [vmem:[%s265 + $0x10] sm:$0x1]
      %v1080 = vld [vmem:[%s265 + $0x1c] sm:$0x1]
      %v1081 = vld [vmem:[%s265 + $0x28] sm:$0x1]
      %v1082 = vld [vmem:[%s275 + $0x4] sm:$0x1]
      %v1083 = vld [vmem:[%s275 + $0x10] sm:$0x1]
      %v1084 = vld [vmem:[%s275 + $0x1c] sm:$0x1]
      %v1085 = vld [vmem:[%s275 + $0x28] sm:$0x1]
      %v1090 = vunpack.c.l.b16 %v1078
      %v1091 = vunpack.c.l.b16 %v1079
      %v1092 = vunpack.c.l.b16 %v1080
      %v1093 = vunpack.c.l.b16 %v1081
      %v1094 = vpack.c.b16 %v1090, %v1090
      %v1095 = vpack.c.b16 %v1091, %v1091
      %v1096 = vpack.c.b16 %v1092, %v1092
      %v1097 = vpack.c.b16 %v1093, %v1093
      %v1098 = vunpack.c.l.b16 %v1094
      %v1099 = vunpack.c.l.b16 %v1095
      %v1100 = vunpack.c.l.b16 %v1096
      %v1101 = vunpack.c.l.b16 %v1097
      %v1102 = vrot.slane %v1099, 7
      %v1103 = vsel %vm325, %v1102, %v1098
      %v1104 = vrot.slane %v1100, 6
      %v1105 = vsel %vm328, %v1104, %v1103
      %v1106 = vrot.slane %v1101, 5
      %v1107 = vsel %vm331, %v1106, %v1105
      %v1108 = vpack.c.b16 %v1107, %v1107
      %v1109 = vrot.slane %v1098, 4
      %v1110 = vrot.slane %v1099, 3
      %v1111 = vsel %vm336, %v1110, %v1109
      %v1112 = vrot.slane %v1100, 2
      %v1113 = vsel %vm339, %v1112, %v1111
      %v1114 = vrot.slane %v1101, 1
      %v1115 = vsel %vm342, %v1114, %v1113
      %v1116 = vpack.c.b16 %v1115, %v1115
      %1117 = vrot.lane.b32.xlu0 %v1116, 127
      %v1118 = vpop.permute.xlu0 %1117
      %v1123 = vunpack.c.l.b16 %v1082
      %v1124 = vunpack.c.l.b16 %v1083
      %v1125 = vunpack.c.l.b16 %v1084
      %v1126 = vunpack.c.l.b16 %v1085
      %v1127 = vpack.c.b16 %v1123, %v1123
      %v1128 = vpack.c.b16 %v1124, %v1124
      %v1129 = vpack.c.b16 %v1125, %v1125
      %v1130 = vpack.c.b16 %v1126, %v1126
      %v1131 = vunpack.c.h.b16 %v1127
      %v1132 = vunpack.c.h.b16 %v1128
      %v1133 = vunpack.c.h.b16 %v1129
      %v1134 = vunpack.c.h.b16 %v1130
      %v1135 = vrot.slane %v1132, 7
      %v1136 = vsel %vm325, %v1135, %v1131
      %v1137 = vrot.slane %v1133, 6
      %v1138 = vsel %vm328, %v1137, %v1136
      %v1139 = vrot.slane %v1134, 5
      %v1140 = vsel %vm331, %v1139, %v1138
      %v1141 = vpack.c.b16 %v1140, %v1140
      %v1142 = vunpack.c.l.b16 %v1127
      %v1143 = vunpack.c.l.b16 %v1128
      %v1144 = vunpack.c.l.b16 %v1129
      %v1145 = vunpack.c.l.b16 %v1130
      %v1146 = vrot.slane %v1142, 4
      %v1147 = vrot.slane %v1143, 3
      %v1148 = vsel %vm336, %v1147, %v1146
      %v1149 = vrot.slane %v1144, 2
      %v1150 = vsel %vm339, %v1149, %v1148
      %v1151 = vrot.slane %v1145, 1
      %v1152 = vsel %vm342, %v1151, %v1150
      %v1153 = vpack.c.b16 %v1152, %v1152
      %1154 = vrot.lane.b32.xlu0 %v1153, 127
      %v1155 = vpop.permute.xlu0 %1154
      %v1158 = vsel %vm384, %v1108, %v1118
      %v1160 = vsel %vm388, %v1158, %v1141
      %v1162 = vsel %vm391, %v1160, %v1155
      %1164 = vmatpush.bf16.msra.mxu0 0
      %1165 = vmatpush.bf16.msra.mxu0 0
      %1166 = vmatpush.bf16.msra.mxu0 0
      %1167 = vmatpush.bf16.msra.mxu0 0
      %1168 = vmatpush.bf16.msra.mxu0 0
      %1169 = vmatpush.bf16.msra.mxu0 0
      %1170 = vmatpush.bf16.msra.mxu0 0
      %1171 = vmatpush.bf16.msra.mxu0 %v1162
      %1172 = vmatmul.bf16.gmra.mxu0 %v407
      %v1173 = vpop.f32.mrf.mxu0
      %v1174 = vadd.f32 0.0, %v1173
      %v1175 = vpop.f32.mrf.mxu0
      %v1176 = vadd.f32 0.0, %v1175
      %1177 = vmatmul.bf16.gmra.mxu0 %v410
      %v1178 = vpop.f32.mrf.mxu0
      %v1179 = vadd.f32 0.0, %v1178
      %v1180 = vpop.f32.mrf.mxu0
      %v1181 = vadd.f32 0.0, %v1180
      %1182 = vdwg.mxu0
      %v1183 = vadd.f32 %v1066, %v1174
      %v1184 = vadd.f32 %v1067, %v1176
      %v1185 = vadd.f32 %v1068, %v1179
      %v1186 = vadd.f32 %v1069, %v1181
      %v1187 = vmul.f32 %v1174, %v1174
      %v1188 = vmul.f32 %v1176, %v1176
      %v1189 = vmul.f32 %v1179, %v1179
      %v1190 = vmul.f32 %v1181, %v1181
      %v1191 = vadd.f32 %v1074, %v1187
      %v1192 = vadd.f32 %v1075, %v1188
      %v1193 = vadd.f32 %v1076, %v1189
      %v1194 = vadd.f32 %v1077, %v1190
      %v1195 = vrot.slane %v1098, 1
      %v1196 = vsel %vm325, %v1099, %v1195
      %v1197 = vrot.slane %v1100, 7
      %v1198 = vsel %vm328, %v1197, %v1196
      %v1199 = vrot.slane %v1101, 6
      %v1200 = vsel %vm331, %v1199, %v1198
      %v1201 = vpack.c.b16 %v1200, %v1200
      %v1202 = vrot.slane %v1098, 5
      %v1203 = vrot.slane %v1099, 4
      %v1204 = vsel %vm336, %v1203, %v1202
      %v1205 = vrot.slane %v1100, 3
      %v1206 = vsel %vm339, %v1205, %v1204
      %v1207 = vrot.slane %v1101, 2
      %v1208 = vsel %vm342, %v1207, %v1206
      %v1209 = vpack.c.b16 %v1208, %v1208
      %1210 = vrot.lane.b32.xlu0 %v1209, 127
      %v1211 = vpop.permute.xlu0 %1210
      %v1212 = vrot.slane %v1142, 1
      %v1213 = vsel %vm325, %v1143, %v1212
      %v1214 = vrot.slane %v1144, 7
      %v1215 = vsel %vm328, %v1214, %v1213
      %v1216 = vrot.slane %v1145, 6
      %v1217 = vsel %vm331, %v1216, %v1215
      %v1218 = vpack.c.b16 %v1217, %v1217
      %v1219 = vrot.slane %v1142, 5
      %v1220 = vrot.slane %v1143, 4
      %v1221 = vsel %vm336, %v1220, %v1219
      %v1222 = vrot.slane %v1144, 3
      %v1223 = vsel %vm339, %v1222, %v1221
      %v1224 = vrot.slane %v1145, 2
      %v1225 = vsel %vm342, %v1224, %v1223
      %v1226 = vpack.c.b16 %v1225, %v1225
      %1227 = vrot.lane.b32.xlu0 %v1226, 127
      %v1228 = vpop.permute.xlu0 %1227
      %v1231 = vsel %vm384, %v1201, %v1211
      %v1233 = vsel %vm388, %v1231, %v1218
      %v1235 = vsel %vm391, %v1233, %v1228
      %1237 = vmatpush.bf16.msra.mxu0 0
      %1238 = vmatpush.bf16.msra.mxu0 0
      %1239 = vmatpush.bf16.msra.mxu0 0
      %1240 = vmatpush.bf16.msra.mxu0 0
      %1241 = vmatpush.bf16.msra.mxu0 0
      %1242 = vmatpush.bf16.msra.mxu0 0
      %1243 = vmatpush.bf16.msra.mxu0 0
      %1244 = vmatpush.bf16.msra.mxu0 %v1235
      %1245 = vmatmul.bf16.gmra.mxu0 %v407
      %v1246 = vpop.f32.mrf.mxu0
      %v1247 = vadd.f32 0.0, %v1246
      %v1248 = vpop.f32.mrf.mxu0
      %v1249 = vadd.f32 0.0, %v1248
      %1250 = vmatmul.bf16.gmra.mxu0 %v410
      %v1251 = vpop.f32.mrf.mxu0
      %v1252 = vadd.f32 0.0, %v1251
      %v1253 = vpop.f32.mrf.mxu0
      %v1254 = vadd.f32 0.0, %v1253
      %1255 = vdwg.mxu0
      %v1256 = vadd.f32 %v1183, %v1247
      %v1257 = vadd.f32 %v1184, %v1249
      %v1258 = vadd.f32 %v1185, %v1252
      %v1259 = vadd.f32 %v1186, %v1254
      %v1260 = vmul.f32 %v1247, %v1247
      %v1261 = vmul.f32 %v1249, %v1249
      %v1262 = vmul.f32 %v1252, %v1252
      %v1263 = vmul.f32 %v1254, %v1254
      %v1264 = vadd.f32 %v1191, %v1260
      %v1265 = vadd.f32 %v1192, %v1261
      %v1266 = vadd.f32 %v1193, %v1262
      %v1267 = vadd.f32 %v1194, %v1263
      %v1268 = vld [vmem:[%s265 + $0x4] sm:$0x2]
      %v1269 = vld [vmem:[%s265 + $0x10] sm:$0x2]
      %v1270 = vld [vmem:[%s265 + $0x1c] sm:$0x2]
      %v1271 = vld [vmem:[%s265 + $0x28] sm:$0x2]
      %v1272 = vld [vmem:[%s275 + $0x4] sm:$0x2]
      %v1273 = vld [vmem:[%s275 + $0x10] sm:$0x2]
      %v1274 = vld [vmem:[%s275 + $0x1c] sm:$0x2]
      %v1275 = vld [vmem:[%s275 + $0x28] sm:$0x2]
      %v1280 = vunpack.c.l.b16 %v1268
      %v1281 = vunpack.c.l.b16 %v1269
      %v1282 = vunpack.c.l.b16 %v1270
      %v1283 = vunpack.c.l.b16 %v1271
      %v1284 = vpack.c.b16 %v1280, %v1280
      %v1285 = vpack.c.b16 %v1281, %v1281
      %v1286 = vpack.c.b16 %v1282, %v1282
      %v1287 = vpack.c.b16 %v1283, %v1283
      %v1288 = vunpack.c.l.b16 %v1284
      %v1289 = vunpack.c.l.b16 %v1285
      %v1290 = vunpack.c.l.b16 %v1286
      %v1291 = vunpack.c.l.b16 %v1287
      %v1292 = vrot.slane %v1288, 2
      %v1293 = vrot.slane %v1289, 1
      %v1294 = vsel %vm325, %v1293, %v1292
      %v1295 = vsel %vm328, %v1290, %v1294
      %v1296 = vrot.slane %v1291, 7
      %v1297 = vsel %vm331, %v1296, %v1295
      %v1298 = vpack.c.b16 %v1297, %v1297
      %v1299 = vrot.slane %v1288, 6
      %v1300 = vrot.slane %v1289, 5
      %v1301 = vsel %vm336, %v1300, %v1299
      %v1302 = vrot.slane %v1290, 4
      %v1303 = vsel %vm339, %v1302, %v1301
      %v1304 = vrot.slane %v1291, 3
      %v1305 = vsel %vm342, %v1304, %v1303
      %v1306 = vpack.c.b16 %v1305, %v1305
      %1307 = vrot.lane.b32.xlu0 %v1306, 127
      %v1308 = vpop.permute.xlu0 %1307
      %v1313 = vunpack.c.l.b16 %v1272
      %v1314 = vunpack.c.l.b16 %v1273
      %v1315 = vunpack.c.l.b16 %v1274
      %v1316 = vunpack.c.l.b16 %v1275
      %v1317 = vpack.c.b16 %v1313, %v1313
      %v1318 = vpack.c.b16 %v1314, %v1314
      %v1319 = vpack.c.b16 %v1315, %v1315
      %v1320 = vpack.c.b16 %v1316, %v1316
      %v1321 = vunpack.c.l.b16 %v1317
      %v1322 = vunpack.c.l.b16 %v1318
      %v1323 = vunpack.c.l.b16 %v1319
      %v1324 = vunpack.c.l.b16 %v1320
      %v1325 = vrot.slane %v1321, 2
      %v1326 = vrot.slane %v1322, 1
      %v1327 = vsel %vm325, %v1326, %v1325
      %v1328 = vsel %vm328, %v1323, %v1327
      %v1329 = vrot.slane %v1324, 7
      %v1330 = vsel %vm331, %v1329, %v1328
      %v1331 = vpack.c.b16 %v1330, %v1330
      %v1332 = vrot.slane %v1321, 6
      %v1333 = vrot.slane %v1322, 5
      %v1334 = vsel %vm336, %v1333, %v1332
      %v1335 = vrot.slane %v1323, 4
      %v1336 = vsel %vm339, %v1335, %v1334
      %v1337 = vrot.slane %v1324, 3
      %v1338 = vsel %vm342, %v1337, %v1336
      %v1339 = vpack.c.b16 %v1338, %v1338
      %1340 = vrot.lane.b32.xlu0 %v1339, 127
      %v1341 = vpop.permute.xlu0 %1340
      %v1344 = vsel %vm384, %v1298, %v1308
      %v1346 = vsel %vm388, %v1344, %v1331
      %v1348 = vsel %vm391, %v1346, %v1341
      %1350 = vmatpush.bf16.msra.mxu0 0
      %1351 = vmatpush.bf16.msra.mxu0 0
      %1352 = vmatpush.bf16.msra.mxu0 0
      %1353 = vmatpush.bf16.msra.mxu0 0
      %1354 = vmatpush.bf16.msra.mxu0 0
      %1355 = vmatpush.bf16.msra.mxu0 0
      %1356 = vmatpush.bf16.msra.mxu0 0
      %1357 = vmatpush.bf16.msra.mxu0 %v1348
      %1358 = vmatmul.bf16.gmra.mxu0 %v407
      %v1359 = vpop.f32.mrf.mxu0
      %v1360 = vadd.f32 0.0, %v1359
      %v1361 = vpop.f32.mrf.mxu0
      %v1362 = vadd.f32 0.0, %v1361
      %1363 = vmatmul.bf16.gmra.mxu0 %v410
      %v1364 = vpop.f32.mrf.mxu0
      %v1365 = vadd.f32 0.0, %v1364
      %v1366 = vpop.f32.mrf.mxu0
      %v1367 = vadd.f32 0.0, %v1366
      %1368 = vdwg.mxu0
      %v1369 = vadd.f32 %v1256, %v1360
      %v1370 = vadd.f32 %v1257, %v1362
      %v1371 = vadd.f32 %v1258, %v1365
      %v1372 = vadd.f32 %v1259, %v1367
      %v1373 = vmul.f32 %v1360, %v1360
      %v1374 = vmul.f32 %v1362, %v1362
      %v1375 = vmul.f32 %v1365, %v1365
      %v1376 = vmul.f32 %v1367, %v1367
      %v1377 = vadd.f32 %v1264, %v1373
      %v1378 = vadd.f32 %v1265, %v1374
      %v1379 = vadd.f32 %v1266, %v1375
      %v1380 = vadd.f32 %v1267, %v1376
      %v1381 = vrot.slane %v1288, 3
      %v1382 = vrot.slane %v1289, 2
      %v1383 = vsel %vm325, %v1382, %v1381
      %v1384 = vrot.slane %v1290, 1
      %v1385 = vsel %vm328, %v1384, %v1383
      %v1386 = vsel %vm331, %v1291, %v1385
      %v1387 = vpack.c.b16 %v1386, %v1386
      %v1388 = vrot.slane %v1288, 7
      %v1389 = vrot.slane %v1289, 6
      %v1390 = vsel %vm336, %v1389, %v1388
      %v1391 = vrot.slane %v1290, 5
      %v1392 = vsel %vm339, %v1391, %v1390
      %v1393 = vrot.slane %v1291, 4
      %v1394 = vsel %vm342, %v1393, %v1392
      %v1395 = vpack.c.b16 %v1394, %v1394
      %1396 = vrot.lane.b32.xlu0 %v1395, 127
      %v1397 = vpop.permute.xlu0 %1396
      %v1398 = vrot.slane %v1321, 3
      %v1399 = vrot.slane %v1322, 2
      %v1400 = vsel %vm325, %v1399, %v1398
      %v1401 = vrot.slane %v1323, 1
      %v1402 = vsel %vm328, %v1401, %v1400
      %v1403 = vsel %vm331, %v1324, %v1402
      %v1404 = vpack.c.b16 %v1403, %v1403
      %v1405 = vrot.slane %v1321, 7
      %v1406 = vrot.slane %v1322, 6
      %v1407 = vsel %vm336, %v1406, %v1405
      %v1408 = vrot.slane %v1323, 5
      %v1409 = vsel %vm339, %v1408, %v1407
      %v1410 = vrot.slane %v1324, 4
      %v1411 = vsel %vm342, %v1410, %v1409
      %v1412 = vpack.c.b16 %v1411, %v1411
      %1413 = vrot.lane.b32.xlu0 %v1412, 127
      %v1414 = vpop.permute.xlu0 %1413
      %v1417 = vsel %vm384, %v1387, %v1397
      %v1419 = vsel %vm388, %v1417, %v1404
      %v1421 = vsel %vm391, %v1419, %v1414
      %1423 = vmatpush.bf16.msra.mxu0 0
      %1424 = vmatpush.bf16.msra.mxu0 0
      %1425 = vmatpush.bf16.msra.mxu0 0
      %1426 = vmatpush.bf16.msra.mxu0 0
      %1427 = vmatpush.bf16.msra.mxu0 0
      %1428 = vmatpush.bf16.msra.mxu0 0
      %1429 = vmatpush.bf16.msra.mxu0 0
      %1430 = vmatpush.bf16.msra.mxu0 %v1421
      %1431 = vmatmul.bf16.gmra.mxu0 %v407
      %v1432 = vpop.f32.mrf.mxu0
      %v1433 = vadd.f32 0.0, %v1432
      %v1434 = vpop.f32.mrf.mxu0
      %v1435 = vadd.f32 0.0, %v1434
      %1436 = vmatmul.bf16.gmra.mxu0 %v410
      %v1437 = vpop.f32.mrf.mxu0
      %v1438 = vadd.f32 0.0, %v1437
      %v1439 = vpop.f32.mrf.mxu0
      %v1440 = vadd.f32 0.0, %v1439
      %1441 = vdwg.mxu0
      %v1442 = vadd.f32 %v1369, %v1433
      %v1443 = vadd.f32 %v1370, %v1435
      %v1444 = vadd.f32 %v1371, %v1438
      %v1445 = vadd.f32 %v1372, %v1440
      %v1446 = vmul.f32 %v1433, %v1433
      %v1447 = vmul.f32 %v1435, %v1435
      %v1448 = vmul.f32 %v1438, %v1438
      %v1449 = vmul.f32 %v1440, %v1440
      %v1450 = vadd.f32 %v1377, %v1446
      %v1451 = vadd.f32 %v1378, %v1447
      %v1452 = vadd.f32 %v1379, %v1448
      %v1453 = vadd.f32 %v1380, %v1449
      %v1454 = vld [vmem:[%s265 + $0x4] sm:$0x4]
      %v1455 = vld [vmem:[%s265 + $0x10] sm:$0x4]
      %v1456 = vld [vmem:[%s265 + $0x1c] sm:$0x4]
      %v1457 = vld [vmem:[%s265 + $0x28] sm:$0x4]
      %v1458 = vld [vmem:[%s275 + $0x4] sm:$0x4]
      %v1459 = vld [vmem:[%s275 + $0x10] sm:$0x4]
      %v1460 = vld [vmem:[%s275 + $0x1c] sm:$0x4]
      %v1461 = vld [vmem:[%s275 + $0x28] sm:$0x4]
      %v1466 = vunpack.c.l.b16 %v1454
      %v1467 = vunpack.c.l.b16 %v1455
      %v1468 = vunpack.c.l.b16 %v1456
      %v1469 = vunpack.c.l.b16 %v1457
      %v1470 = vpack.c.b16 %v1466, %v1466
      %v1471 = vpack.c.b16 %v1467, %v1467
      %v1472 = vpack.c.b16 %v1468, %v1468
      %v1473 = vpack.c.b16 %v1469, %v1469
      %v1474 = vunpack.c.l.b16 %v1470
      %v1475 = vunpack.c.l.b16 %v1471
      %v1476 = vunpack.c.l.b16 %v1472
      %v1477 = vunpack.c.l.b16 %v1473
      %v1478 = vrot.slane %v1474, 4
      %v1479 = vrot.slane %v1475, 3
      %v1480 = vsel %vm325, %v1479, %v1478
      %v1481 = vrot.slane %v1476, 2
      %v1482 = vsel %vm328, %v1481, %v1480
      %v1483 = vrot.slane %v1477, 1
      %v1484 = vsel %vm331, %v1483, %v1482
      %v1485 = vpack.c.b16 %v1484, %v1484
      %v1486 = vrot.slane %v1475, 7
      %v1487 = vsel %vm336, %v1486, %v1474
      %v1488 = vrot.slane %v1476, 6
      %v1489 = vsel %vm339, %v1488, %v1487
      %v1490 = vrot.slane %v1477, 5
      %v1491 = vsel %vm342, %v1490, %v1489
      %v1492 = vpack.c.b16 %v1491, %v1491
      %1493 = vrot.lane.b32.xlu0 %v1492, 127
      %v1494 = vpop.permute.xlu0 %1493
      %v1499 = vunpack.c.l.b16 %v1458
      %v1500 = vunpack.c.l.b16 %v1459
      %v1501 = vunpack.c.l.b16 %v1460
      %v1502 = vunpack.c.l.b16 %v1461
      %v1503 = vpack.c.b16 %v1499, %v1499
      %v1504 = vpack.c.b16 %v1500, %v1500
      %v1505 = vpack.c.b16 %v1501, %v1501
      %v1506 = vpack.c.b16 %v1502, %v1502
      %v1507 = vunpack.c.l.b16 %v1503
      %v1508 = vunpack.c.l.b16 %v1504
      %v1509 = vunpack.c.l.b16 %v1505
      %v1510 = vunpack.c.l.b16 %v1506
      %v1511 = vrot.slane %v1507, 4
      %v1512 = vrot.slane %v1508, 3
      %v1513 = vsel %vm325, %v1512, %v1511
      %v1514 = vrot.slane %v1509, 2
      %v1515 = vsel %vm328, %v1514, %v1513
      %v1516 = vrot.slane %v1510, 1
      %v1517 = vsel %vm331, %v1516, %v1515
      %v1518 = vpack.c.b16 %v1517, %v1517
      %v1519 = vunpack.c.h.b16 %v1503
      %v1520 = vunpack.c.h.b16 %v1504
      %v1521 = vunpack.c.h.b16 %v1505
      %v1522 = vunpack.c.h.b16 %v1506
      %v1523 = vrot.slane %v1520, 7
      %v1524 = vsel %vm336, %v1523, %v1519
      %v1525 = vrot.slane %v1521, 6
      %v1526 = vsel %vm339, %v1525, %v1524
      %v1527 = vrot.slane %v1522, 5
      %v1528 = vsel %vm342, %v1527, %v1526
      %v1529 = vpack.c.b16 %v1528, %v1528
      %1530 = vrot.lane.b32.xlu0 %v1529, 127
      %v1531 = vpop.permute.xlu0 %1530
      %v1534 = vsel %vm384, %v1485, %v1494
      %v1536 = vsel %vm388, %v1534, %v1518
      %v1538 = vsel %vm391, %v1536, %v1531
      %1540 = vmatpush.bf16.msra.mxu0 0
      %1541 = vmatpush.bf16.msra.mxu0 0
      %1542 = vmatpush.bf16.msra.mxu0 0
      %1543 = vmatpush.bf16.msra.mxu0 0
      %1544 = vmatpush.bf16.msra.mxu0 0
      %1545 = vmatpush.bf16.msra.mxu0 0
      %1546 = vmatpush.bf16.msra.mxu0 0
      %1547 = vmatpush.bf16.msra.mxu0 %v1538
      %1548 = vmatmul.bf16.gmra.mxu0 %v407
      %v1549 = vpop.f32.mrf.mxu0
      %v1550 = vadd.f32 0.0, %v1549
      %v1551 = vpop.f32.mrf.mxu0
      %v1552 = vadd.f32 0.0, %v1551
      %1553 = vmatmul.bf16.gmra.mxu0 %v410
      %v1554 = vpop.f32.mrf.mxu0
      %v1555 = vadd.f32 0.0, %v1554
      %v1556 = vpop.f32.mrf.mxu0
      %v1557 = vadd.f32 0.0, %v1556
      %1558 = vdwg.mxu0
      %v1559 = vadd.f32 %v1442, %v1550
      %v1560 = vadd.f32 %v1443, %v1552
      %v1561 = vadd.f32 %v1444, %v1555
      %v1562 = vadd.f32 %v1445, %v1557
      %v1563 = vmul.f32 %v1550, %v1550
      %v1564 = vmul.f32 %v1552, %v1552
      %v1565 = vmul.f32 %v1555, %v1555
      %v1566 = vmul.f32 %v1557, %v1557
      %v1567 = vadd.f32 %v1450, %v1563
      %v1568 = vadd.f32 %v1451, %v1564
      %v1569 = vadd.f32 %v1452, %v1565
      %v1570 = vadd.f32 %v1453, %v1566
      %v1571 = vrot.slane %v1474, 5
      %v1572 = vrot.slane %v1475, 4
      %v1573 = vsel %vm325, %v1572, %v1571
      %v1574 = vrot.slane %v1476, 3
      %v1575 = vsel %vm328, %v1574, %v1573
      %v1576 = vrot.slane %v1477, 2
      %v1577 = vsel %vm331, %v1576, %v1575
      %v1578 = vpack.c.b16 %v1577, %v1577
      %v1579 = vrot.slane %v1474, 1
      %v1580 = vsel %vm336, %v1475, %v1579
      %v1581 = vrot.slane %v1476, 7
      %v1582 = vsel %vm339, %v1581, %v1580
      %v1583 = vrot.slane %v1477, 6
      %v1584 = vsel %vm342, %v1583, %v1582
      %v1585 = vpack.c.b16 %v1584, %v1584
      %1586 = vrot.lane.b32.xlu0 %v1585, 127
      %v1587 = vpop.permute.xlu0 %1586
      %v1588 = vrot.slane %v1507, 5
      %v1589 = vrot.slane %v1508, 4
      %v1590 = vsel %vm325, %v1589, %v1588
      %v1591 = vrot.slane %v1509, 3
      %v1592 = vsel %vm328, %v1591, %v1590
      %v1593 = vrot.slane %v1510, 2
      %v1594 = vsel %vm331, %v1593, %v1592
      %v1595 = vpack.c.b16 %v1594, %v1594
      %v1596 = vrot.slane %v1507, 1
      %v1597 = vsel %vm336, %v1508, %v1596
      %v1598 = vrot.slane %v1509, 7
      %v1599 = vsel %vm339, %v1598, %v1597
      %v1600 = vrot.slane %v1510, 6
      %v1601 = vsel %vm342, %v1600, %v1599
      %v1602 = vpack.c.b16 %v1601, %v1601
      %1603 = vrot.lane.b32.xlu0 %v1602, 127
      %v1604 = vpop.permute.xlu0 %1603
      %v1607 = vsel %vm384, %v1578, %v1587
      %v1609 = vsel %vm388, %v1607, %v1595
      %v1611 = vsel %vm391, %v1609, %v1604
      %1613 = vmatpush.bf16.msra.mxu0 0
      %1614 = vmatpush.bf16.msra.mxu0 0
      %1615 = vmatpush.bf16.msra.mxu0 0
      %1616 = vmatpush.bf16.msra.mxu0 0
      %1617 = vmatpush.bf16.msra.mxu0 0
      %1618 = vmatpush.bf16.msra.mxu0 0
      %1619 = vmatpush.bf16.msra.mxu0 0
      %1620 = vmatpush.bf16.msra.mxu0 %v1611
      %1621 = vmatmul.bf16.gmra.mxu0 %v407
      %v1622 = vpop.f32.mrf.mxu0
      %v1623 = vadd.f32 0.0, %v1622
      %v1624 = vpop.f32.mrf.mxu0
      %v1625 = vadd.f32 0.0, %v1624
      %1626 = vmatmul.bf16.gmra.mxu0 %v410
      %v1627 = vpop.f32.mrf.mxu0
      %v1628 = vadd.f32 0.0, %v1627
      %v1629 = vpop.f32.mrf.mxu0
      %v1630 = vadd.f32 0.0, %v1629
      %1631 = vdwg.mxu0
      %v1632 = vadd.f32 %v1559, %v1623
      %v1633 = vadd.f32 %v1560, %v1625
      %v1634 = vadd.f32 %v1561, %v1628
      %v1635 = vadd.f32 %v1562, %v1630
      %v1636 = vmul.f32 %v1623, %v1623
      %v1637 = vmul.f32 %v1625, %v1625
      %v1638 = vmul.f32 %v1628, %v1628
      %v1639 = vmul.f32 %v1630, %v1630
      %v1640 = vadd.f32 %v1567, %v1636
      %v1641 = vadd.f32 %v1568, %v1637
      %v1642 = vadd.f32 %v1569, %v1638
      %v1643 = vadd.f32 %v1570, %v1639
      %v1644 = vld [vmem:[%s265 + $0x4] sm:$0x8]
      %v1645 = vld [vmem:[%s265 + $0x10] sm:$0x8]
      %v1646 = vld [vmem:[%s265 + $0x1c] sm:$0x8]
      %v1647 = vld [vmem:[%s265 + $0x28] sm:$0x8]
      %v1648 = vld [vmem:[%s275 + $0x4] sm:$0x8]
      %v1649 = vld [vmem:[%s275 + $0x10] sm:$0x8]
      %v1650 = vld [vmem:[%s275 + $0x1c] sm:$0x8]
      %v1651 = vld [vmem:[%s275 + $0x28] sm:$0x8]
      %v1656 = vunpack.c.l.b16 %v1644
      %v1657 = vunpack.c.l.b16 %v1645
      %v1658 = vunpack.c.l.b16 %v1646
      %v1659 = vunpack.c.l.b16 %v1647
      %v1660 = vpack.c.b16 %v1656, %v1656
      %v1661 = vpack.c.b16 %v1657, %v1657
      %v1662 = vpack.c.b16 %v1658, %v1658
      %v1663 = vpack.c.b16 %v1659, %v1659
      %v1664 = vunpack.c.l.b16 %v1660
      %v1665 = vunpack.c.l.b16 %v1661
      %v1666 = vunpack.c.l.b16 %v1662
      %v1667 = vunpack.c.l.b16 %v1663
      %v1668 = vrot.slane %v1664, 6
      %v1669 = vrot.slane %v1665, 5
      %v1670 = vsel %vm325, %v1669, %v1668
      %v1671 = vrot.slane %v1666, 4
      %v1672 = vsel %vm328, %v1671, %v1670
      %v1673 = vrot.slane %v1667, 3
      %v1674 = vsel %vm331, %v1673, %v1672
      %v1675 = vpack.c.b16 %v1674, %v1674
      %v1676 = vrot.slane %v1664, 2
      %v1677 = vrot.slane %v1665, 1
      %v1678 = vsel %vm336, %v1677, %v1676
      %v1679 = vsel %vm339, %v1666, %v1678
      %v1680 = vrot.slane %v1667, 7
      %v1681 = vsel %vm342, %v1680, %v1679
      %v1682 = vpack.c.b16 %v1681, %v1681
      %1683 = vrot.lane.b32.xlu0 %v1682, 127
      %v1684 = vpop.permute.xlu0 %1683
      %v1689 = vunpack.c.l.b16 %v1648
      %v1690 = vunpack.c.l.b16 %v1649
      %v1691 = vunpack.c.l.b16 %v1650
      %v1692 = vunpack.c.l.b16 %v1651
      %v1693 = vpack.c.b16 %v1689, %v1689
      %v1694 = vpack.c.b16 %v1690, %v1690
      %v1695 = vpack.c.b16 %v1691, %v1691
      %v1696 = vpack.c.b16 %v1692, %v1692
      %v1697 = vunpack.c.l.b16 %v1693
      %v1698 = vunpack.c.l.b16 %v1694
      %v1699 = vunpack.c.l.b16 %v1695
      %v1700 = vunpack.c.l.b16 %v1696
      %v1701 = vrot.slane %v1697, 6
      %v1702 = vrot.slane %v1698, 5
      %v1703 = vsel %vm325, %v1702, %v1701
      %v1704 = vrot.slane %v1699, 4
      %v1705 = vsel %vm328, %v1704, %v1703
      %v1706 = vrot.slane %v1700, 3
      %v1707 = vsel %vm331, %v1706, %v1705
      %v1708 = vpack.c.b16 %v1707, %v1707
      %v1709 = vrot.slane %v1697, 2
      %v1710 = vrot.slane %v1698, 1
      %v1711 = vsel %vm336, %v1710, %v1709
      %v1712 = vsel %vm339, %v1699, %v1711
      %v1713 = vrot.slane %v1700, 7
      %v1714 = vsel %vm342, %v1713, %v1712
      %v1715 = vpack.c.b16 %v1714, %v1714
      %1716 = vrot.lane.b32.xlu0 %v1715, 127
      %v1717 = vpop.permute.xlu0 %1716
      %v1720 = vsel %vm384, %v1675, %v1684
      %v1722 = vsel %vm388, %v1720, %v1708
      %v1724 = vsel %vm391, %v1722, %v1717
      %1726 = vmatpush.bf16.msra.mxu0 0
      %1727 = vmatpush.bf16.msra.mxu0 0
      %1728 = vmatpush.bf16.msra.mxu0 0
      %1729 = vmatpush.bf16.msra.mxu0 0
      %1730 = vmatpush.bf16.msra.mxu0 0
      %1731 = vmatpush.bf16.msra.mxu0 0
      %1732 = vmatpush.bf16.msra.mxu0 0
      %1733 = vmatpush.bf16.msra.mxu0 %v1724
      %1734 = vmatmul.bf16.gmra.mxu0 %v407
      %v1735 = vpop.f32.mrf.mxu0
      %v1736 = vadd.f32 0.0, %v1735
      %v1737 = vpop.f32.mrf.mxu0
      %v1738 = vadd.f32 0.0, %v1737
      %1739 = vmatmul.bf16.gmra.mxu0 %v410
      %v1740 = vpop.f32.mrf.mxu0
      %v1741 = vadd.f32 0.0, %v1740
      %v1742 = vpop.f32.mrf.mxu0
      %v1743 = vadd.f32 0.0, %v1742
      %1744 = vdwg.mxu0
      %v1745 = vadd.f32 %v1632, %v1736
      %v1746 = vadd.f32 %v1633, %v1738
      %v1747 = vadd.f32 %v1634, %v1741
      %v1748 = vadd.f32 %v1635, %v1743
      %v1749 = vmul.f32 %v1736, %v1736
      %v1750 = vmul.f32 %v1738, %v1738
      %v1751 = vmul.f32 %v1741, %v1741
      %v1752 = vmul.f32 %v1743, %v1743
      %v1753 = vadd.f32 %v1640, %v1749
      %v1754 = vadd.f32 %v1641, %v1750
      %v1755 = vadd.f32 %v1642, %v1751
      %v1756 = vadd.f32 %v1643, %v1752
      %v1757 = vrot.slane %v1664, 7
      %v1758 = vrot.slane %v1665, 6
      %v1759 = vsel %vm325, %v1758, %v1757
      %v1760 = vrot.slane %v1666, 5
      %v1761 = vsel %vm328, %v1760, %v1759
      %v1762 = vrot.slane %v1667, 4
      %v1763 = vsel %vm331, %v1762, %v1761
      %v1764 = vpack.c.b16 %v1763, %v1763
      %v1765 = vrot.slane %v1664, 3
      %v1766 = vrot.slane %v1665, 2
      %v1767 = vsel %vm336, %v1766, %v1765
      %v1768 = vrot.slane %v1666, 1
      %v1769 = vsel %vm339, %v1768, %v1767
      %v1770 = vsel %vm342, %v1667, %v1769
      %v1771 = vpack.c.b16 %v1770, %v1770
      %1772 = vrot.lane.b32.xlu0 %v1771, 127
      %v1773 = vpop.permute.xlu0 %1772
      %v1774 = vrot.slane %v1697, 7
      %v1775 = vrot.slane %v1698, 6
      %v1776 = vsel %vm325, %v1775, %v1774
      %v1777 = vrot.slane %v1699, 5
      %v1778 = vsel %vm328, %v1777, %v1776
      %v1779 = vrot.slane %v1700, 4
      %v1780 = vsel %vm331, %v1779, %v1778
      %v1781 = vpack.c.b16 %v1780, %v1780
      %v1782 = vrot.slane %v1697, 3
      %v1783 = vrot.slane %v1698, 2
      %v1784 = vsel %vm336, %v1783, %v1782
      %v1785 = vrot.slane %v1699, 1
      %v1786 = vsel %vm339, %v1785, %v1784
      %v1787 = vsel %vm342, %v1700, %v1786
      %v1788 = vpack.c.b16 %v1787, %v1787
      %1789 = vrot.lane.b32.xlu0 %v1788, 127
      %v1790 = vpop.permute.xlu0 %1789
      %v1793 = vsel %vm384, %v1764, %v1773
      %v1795 = vsel %vm388, %v1793, %v1781
      %v1797 = vsel %vm391, %v1795, %v1790
      %1799 = vmatpush.bf16.msra.mxu0 0
      %1800 = vmatpush.bf16.msra.mxu0 0
      %1801 = vmatpush.bf16.msra.mxu0 0
      %1802 = vmatpush.bf16.msra.mxu0 0
      %1803 = vmatpush.bf16.msra.mxu0 0
      %1804 = vmatpush.bf16.msra.mxu0 0
      %1805 = vmatpush.bf16.msra.mxu0 0
      %1806 = vmatpush.bf16.msra.mxu0 %v1797
      %1807 = vmatmul.bf16.gmra.mxu0 %v407
      %v1808 = vpop.f32.mrf.mxu0
      %v1809 = vadd.f32 0.0, %v1808
      %v1810 = vpop.f32.mrf.mxu0
      %v1811 = vadd.f32 0.0, %v1810
      %1812 = vmatmul.bf16.gmra.mxu0 %v410
      %v1813 = vpop.f32.mrf.mxu0
      %v1814 = vadd.f32 0.0, %v1813
      %v1815 = vpop.f32.mrf.mxu0
      %v1816 = vadd.f32 0.0, %v1815
      %1817 = vdwg.mxu0
      %v1818 = vadd.f32 %v1745, %v1809
      %v1819 = vadd.f32 %v1746, %v1811
      %v1820 = vadd.f32 %v1747, %v1814
      %v1821 = vadd.f32 %v1748, %v1816
      %v1822 = vmul.f32 %v1809, %v1809
      %v1823 = vmul.f32 %v1811, %v1811
      %v1824 = vmul.f32 %v1814, %v1814
      %v1825 = vmul.f32 %v1816, %v1816
      %v1826 = vadd.f32 %v1753, %v1822
      %v1827 = vadd.f32 %v1754, %v1823
      %v1828 = vadd.f32 %v1755, %v1824
      %v1829 = vadd.f32 %v1756, %v1825
      %v1830 = vld [vmem:[%s265 + $0x8] sm:$0x1]
      %v1831 = vld [vmem:[%s265 + $0x14] sm:$0x1]
      %v1832 = vld [vmem:[%s265 + $0x20] sm:$0x1]
      %v1833 = vld [vmem:[%s265 + $0x2c] sm:$0x1]
      %v1834 = vld [vmem:[%s275 + $0x8] sm:$0x1]
      %v1835 = vld [vmem:[%s275 + $0x14] sm:$0x1]
      %v1836 = vld [vmem:[%s275 + $0x20] sm:$0x1]
      %v1837 = vld [vmem:[%s275 + $0x2c] sm:$0x1]
      %v1842 = vunpack.c.l.b16 %v1830
      %v1843 = vunpack.c.l.b16 %v1831
      %v1844 = vunpack.c.l.b16 %v1832
      %v1845 = vunpack.c.l.b16 %v1833
      %v1846 = vpack.c.b16 %v1842, %v1842
      %v1847 = vpack.c.b16 %v1843, %v1843
      %v1848 = vpack.c.b16 %v1844, %v1844
      %v1849 = vpack.c.b16 %v1845, %v1845
      %v1850 = vunpack.c.l.b16 %v1846
      %v1851 = vunpack.c.l.b16 %v1847
      %v1852 = vunpack.c.l.b16 %v1848
      %v1853 = vunpack.c.l.b16 %v1849
      %v1854 = vrot.slane %v1851, 7
      %v1855 = vsel %vm325, %v1854, %v1850
      %v1856 = vrot.slane %v1852, 6
      %v1857 = vsel %vm328, %v1856, %v1855
      %v1858 = vrot.slane %v1853, 5
      %v1859 = vsel %vm331, %v1858, %v1857
      %v1860 = vpack.c.b16 %v1859, %v1859
      %v1861 = vrot.slane %v1850, 4
      %v1862 = vrot.slane %v1851, 3
      %v1863 = vsel %vm336, %v1862, %v1861
      %v1864 = vrot.slane %v1852, 2
      %v1865 = vsel %vm339, %v1864, %v1863
      %v1866 = vrot.slane %v1853, 1
      %v1867 = vsel %vm342, %v1866, %v1865
      %v1868 = vpack.c.b16 %v1867, %v1867
      %1869 = vrot.lane.b32.xlu0 %v1868, 127
      %v1870 = vpop.permute.xlu0 %1869
      %v1875 = vunpack.c.l.b16 %v1834
      %v1876 = vunpack.c.l.b16 %v1835
      %v1877 = vunpack.c.l.b16 %v1836
      %v1878 = vunpack.c.l.b16 %v1837
      %v1879 = vpack.c.b16 %v1875, %v1875
      %v1880 = vpack.c.b16 %v1876, %v1876
      %v1881 = vpack.c.b16 %v1877, %v1877
      %v1882 = vpack.c.b16 %v1878, %v1878
      %v1883 = vunpack.c.h.b16 %v1879
      %v1884 = vunpack.c.h.b16 %v1880
      %v1885 = vunpack.c.h.b16 %v1881
      %v1886 = vunpack.c.h.b16 %v1882
      %v1887 = vrot.slane %v1884, 7
      %v1888 = vsel %vm325, %v1887, %v1883
      %v1889 = vrot.slane %v1885, 6
      %v1890 = vsel %vm328, %v1889, %v1888
      %v1891 = vrot.slane %v1886, 5
      %v1892 = vsel %vm331, %v1891, %v1890
      %v1893 = vpack.c.b16 %v1892, %v1892
      %v1894 = vunpack.c.l.b16 %v1879
      %v1895 = vunpack.c.l.b16 %v1880
      %v1896 = vunpack.c.l.b16 %v1881
      %v1897 = vunpack.c.l.b16 %v1882
      %v1898 = vrot.slane %v1894, 4
      %v1899 = vrot.slane %v1895, 3
      %v1900 = vsel %vm336, %v1899, %v1898
      %v1901 = vrot.slane %v1896, 2
      %v1902 = vsel %vm339, %v1901, %v1900
      %v1903 = vrot.slane %v1897, 1
      %v1904 = vsel %vm342, %v1903, %v1902
      %v1905 = vpack.c.b16 %v1904, %v1904
      %1906 = vrot.lane.b32.xlu0 %v1905, 127
      %v1907 = vpop.permute.xlu0 %1906
      %v1910 = vsel %vm384, %v1860, %v1870
      %v1912 = vsel %vm388, %v1910, %v1893
      %v1914 = vsel %vm391, %v1912, %v1907
      %1916 = vmatpush.bf16.msra.mxu0 0
      %1917 = vmatpush.bf16.msra.mxu0 0
      %1918 = vmatpush.bf16.msra.mxu0 0
      %1919 = vmatpush.bf16.msra.mxu0 0
      %1920 = vmatpush.bf16.msra.mxu0 0
      %1921 = vmatpush.bf16.msra.mxu0 0
      %1922 = vmatpush.bf16.msra.mxu0 0
      %1923 = vmatpush.bf16.msra.mxu0 %v1914
      %1924 = vmatmul.bf16.gmra.mxu0 %v407
      %v1925 = vpop.f32.mrf.mxu0
      %v1926 = vadd.f32 0.0, %v1925
      %v1927 = vpop.f32.mrf.mxu0
      %v1928 = vadd.f32 0.0, %v1927
      %1929 = vmatmul.bf16.gmra.mxu0 %v410
      %v1930 = vpop.f32.mrf.mxu0
      %v1931 = vadd.f32 0.0, %v1930
      %v1932 = vpop.f32.mrf.mxu0
      %v1933 = vadd.f32 0.0, %v1932
      %1934 = vdwg.mxu0
      %v1935 = vadd.f32 %v1818, %v1926
      %v1936 = vadd.f32 %v1819, %v1928
      %v1937 = vadd.f32 %v1820, %v1931
      %v1938 = vadd.f32 %v1821, %v1933
      %v1939 = vmul.f32 %v1926, %v1926
      %v1940 = vmul.f32 %v1928, %v1928
      %v1941 = vmul.f32 %v1931, %v1931
      %v1942 = vmul.f32 %v1933, %v1933
      %v1943 = vadd.f32 %v1826, %v1939
      %v1944 = vadd.f32 %v1827, %v1940
      %v1945 = vadd.f32 %v1828, %v1941
      %v1946 = vadd.f32 %v1829, %v1942
      %v1947 = vrot.slane %v1850, 1
      %v1948 = vsel %vm325, %v1851, %v1947
      %v1949 = vrot.slane %v1852, 7
      %v1950 = vsel %vm328, %v1949, %v1948
      %v1951 = vrot.slane %v1853, 6
      %v1952 = vsel %vm331, %v1951, %v1950
      %v1953 = vpack.c.b16 %v1952, %v1952
      %v1954 = vrot.slane %v1850, 5
      %v1955 = vrot.slane %v1851, 4
      %v1956 = vsel %vm336, %v1955, %v1954
      %v1957 = vrot.slane %v1852, 3
      %v1958 = vsel %vm339, %v1957, %v1956
      %v1959 = vrot.slane %v1853, 2
      %v1960 = vsel %vm342, %v1959, %v1958
      %v1961 = vpack.c.b16 %v1960, %v1960
      %1962 = vrot.lane.b32.xlu0 %v1961, 127
      %v1963 = vpop.permute.xlu0 %1962
      %v1964 = vrot.slane %v1894, 1
      %v1965 = vsel %vm325, %v1895, %v1964
      %v1966 = vrot.slane %v1896, 7
      %v1967 = vsel %vm328, %v1966, %v1965
      %v1968 = vrot.slane %v1897, 6
      %v1969 = vsel %vm331, %v1968, %v1967
      %v1970 = vpack.c.b16 %v1969, %v1969
      %v1971 = vrot.slane %v1894, 5
      %v1972 = vrot.slane %v1895, 4
      %v1973 = vsel %vm336, %v1972, %v1971
      %v1974 = vrot.slane %v1896, 3
      %v1975 = vsel %vm339, %v1974, %v1973
      %v1976 = vrot.slane %v1897, 2
      %v1977 = vsel %vm342, %v1976, %v1975
      %v1978 = vpack.c.b16 %v1977, %v1977
      %1979 = vrot.lane.b32.xlu0 %v1978, 127
      %v1980 = vpop.permute.xlu0 %1979
      %v1983 = vsel %vm384, %v1953, %v1963
      %v1985 = vsel %vm388, %v1983, %v1970
      %v1987 = vsel %vm391, %v1985, %v1980
      %1989 = vmatpush.bf16.msra.mxu0 0
      %1990 = vmatpush.bf16.msra.mxu0 0
      %1991 = vmatpush.bf16.msra.mxu0 0
      %1992 = vmatpush.bf16.msra.mxu0 0
      %1993 = vmatpush.bf16.msra.mxu0 0
      %1994 = vmatpush.bf16.msra.mxu0 0
      %1995 = vmatpush.bf16.msra.mxu0 0
      %1996 = vmatpush.bf16.msra.mxu0 %v1987
      %1997 = vmatmul.bf16.gmra.mxu0 %v407
      %v1998 = vpop.f32.mrf.mxu0
      %v1999 = vadd.f32 0.0, %v1998
      %v2000 = vpop.f32.mrf.mxu0
      %v2001 = vadd.f32 0.0, %v2000
      %2002 = vmatmul.bf16.gmra.mxu0 %v410
      %v2003 = vpop.f32.mrf.mxu0
      %v2004 = vadd.f32 0.0, %v2003
      %v2005 = vpop.f32.mrf.mxu0
      %v2006 = vadd.f32 0.0, %v2005
      %2007 = vdwg.mxu0
      %v2008 = vadd.f32 %v1935, %v1999
      %v2009 = vadd.f32 %v1936, %v2001
      %v2010 = vadd.f32 %v1937, %v2004
      %v2011 = vadd.f32 %v1938, %v2006
      %v2012 = vmul.f32 %v1999, %v1999
      %v2013 = vmul.f32 %v2001, %v2001
      %v2014 = vmul.f32 %v2004, %v2004
      %v2015 = vmul.f32 %v2006, %v2006
      %v2016 = vadd.f32 %v1943, %v2012
      %v2017 = vadd.f32 %v1944, %v2013
      %v2018 = vadd.f32 %v1945, %v2014
      %v2019 = vadd.f32 %v1946, %v2015
      %v2020 = vld [vmem:[%s265 + $0x8] sm:$0x2]
      %v2021 = vld [vmem:[%s265 + $0x14] sm:$0x2]
      %v2022 = vld [vmem:[%s265 + $0x20] sm:$0x2]
      %v2023 = vld [vmem:[%s265 + $0x2c] sm:$0x2]
      %v2024 = vld [vmem:[%s275 + $0x8] sm:$0x2]
      %v2025 = vld [vmem:[%s275 + $0x14] sm:$0x2]
      %v2026 = vld [vmem:[%s275 + $0x20] sm:$0x2]
      %v2027 = vld [vmem:[%s275 + $0x2c] sm:$0x2]
      %v2032 = vunpack.c.l.b16 %v2020
      %v2033 = vunpack.c.l.b16 %v2021
      %v2034 = vunpack.c.l.b16 %v2022
      %v2035 = vunpack.c.l.b16 %v2023
      %v2036 = vpack.c.b16 %v2032, %v2032
      %v2037 = vpack.c.b16 %v2033, %v2033
      %v2038 = vpack.c.b16 %v2034, %v2034
      %v2039 = vpack.c.b16 %v2035, %v2035
      %v2040 = vunpack.c.l.b16 %v2036
      %v2041 = vunpack.c.l.b16 %v2037
      %v2042 = vunpack.c.l.b16 %v2038
      %v2043 = vunpack.c.l.b16 %v2039
      %v2044 = vrot.slane %v2040, 2
      %v2045 = vrot.slane %v2041, 1
      %v2046 = vsel %vm325, %v2045, %v2044
      %v2047 = vsel %vm328, %v2042, %v2046
      %v2048 = vrot.slane %v2043, 7
      %v2049 = vsel %vm331, %v2048, %v2047
      %v2050 = vpack.c.b16 %v2049, %v2049
      %v2051 = vrot.slane %v2040, 6
      %v2052 = vrot.slane %v2041, 5
      %v2053 = vsel %vm336, %v2052, %v2051
      %v2054 = vrot.slane %v2042, 4
      %v2055 = vsel %vm339, %v2054, %v2053
      %v2056 = vrot.slane %v2043, 3
      %v2057 = vsel %vm342, %v2056, %v2055
      %v2058 = vpack.c.b16 %v2057, %v2057
      %2059 = vrot.lane.b32.xlu0 %v2058, 127
      %v2060 = vpop.permute.xlu0 %2059
      %v2065 = vunpack.c.l.b16 %v2024
      %v2066 = vunpack.c.l.b16 %v2025
      %v2067 = vunpack.c.l.b16 %v2026
      %v2068 = vunpack.c.l.b16 %v2027
      %v2069 = vpack.c.b16 %v2065, %v2065
      %v2070 = vpack.c.b16 %v2066, %v2066
      %v2071 = vpack.c.b16 %v2067, %v2067
      %v2072 = vpack.c.b16 %v2068, %v2068
      %v2073 = vunpack.c.l.b16 %v2069
      %v2074 = vunpack.c.l.b16 %v2070
      %v2075 = vunpack.c.l.b16 %v2071
      %v2076 = vunpack.c.l.b16 %v2072
      %v2077 = vrot.slane %v2073, 2
      %v2078 = vrot.slane %v2074, 1
      %v2079 = vsel %vm325, %v2078, %v2077
      %v2080 = vsel %vm328, %v2075, %v2079
      %v2081 = vrot.slane %v2076, 7
      %v2082 = vsel %vm331, %v2081, %v2080
      %v2083 = vpack.c.b16 %v2082, %v2082
      %v2084 = vrot.slane %v2073, 6
      %v2085 = vrot.slane %v2074, 5
      %v2086 = vsel %vm336, %v2085, %v2084
      %v2087 = vrot.slane %v2075, 4
      %v2088 = vsel %vm339, %v2087, %v2086
      %v2089 = vrot.slane %v2076, 3
      %v2090 = vsel %vm342, %v2089, %v2088
      %v2091 = vpack.c.b16 %v2090, %v2090
      %2092 = vrot.lane.b32.xlu0 %v2091, 127
      %v2093 = vpop.permute.xlu0 %2092
      %v2096 = vsel %vm384, %v2050, %v2060
      %v2098 = vsel %vm388, %v2096, %v2083
      %v2100 = vsel %vm391, %v2098, %v2093
      %2102 = vmatpush.bf16.msra.mxu0 0
      %2103 = vmatpush.bf16.msra.mxu0 0
      %2104 = vmatpush.bf16.msra.mxu0 0
      %2105 = vmatpush.bf16.msra.mxu0 0
      %2106 = vmatpush.bf16.msra.mxu0 0
      %2107 = vmatpush.bf16.msra.mxu0 0
      %2108 = vmatpush.bf16.msra.mxu0 0
      %2109 = vmatpush.bf16.msra.mxu0 %v2100
      %2110 = vmatmul.bf16.gmra.mxu0 %v407
      %v2111 = vpop.f32.mrf.mxu0
      %v2112 = vadd.f32 0.0, %v2111
      %v2113 = vpop.f32.mrf.mxu0
      %v2114 = vadd.f32 0.0, %v2113
      %2115 = vmatmul.bf16.gmra.mxu0 %v410
      %v2116 = vpop.f32.mrf.mxu0
      %v2117 = vadd.f32 0.0, %v2116
      %v2118 = vpop.f32.mrf.mxu0
      %v2119 = vadd.f32 0.0, %v2118
      %2120 = vdwg.mxu0
      %v2121 = vadd.f32 %v2008, %v2112
      %v2122 = vadd.f32 %v2009, %v2114
      %v2123 = vadd.f32 %v2010, %v2117
      %v2124 = vadd.f32 %v2011, %v2119
      %v2125 = vmul.f32 %v2112, %v2112
      %v2126 = vmul.f32 %v2114, %v2114
      %v2127 = vmul.f32 %v2117, %v2117
      %v2128 = vmul.f32 %v2119, %v2119
      %v2129 = vadd.f32 %v2016, %v2125
      %v2130 = vadd.f32 %v2017, %v2126
      %v2131 = vadd.f32 %v2018, %v2127
      %v2132 = vadd.f32 %v2019, %v2128
      %v2133 = vrot.slane %v2040, 3
      %v2134 = vrot.slane %v2041, 2
      %v2135 = vsel %vm325, %v2134, %v2133
      %v2136 = vrot.slane %v2042, 1
      %v2137 = vsel %vm328, %v2136, %v2135
      %v2138 = vsel %vm331, %v2043, %v2137
      %v2139 = vpack.c.b16 %v2138, %v2138
      %v2140 = vrot.slane %v2040, 7
      %v2141 = vrot.slane %v2041, 6
      %v2142 = vsel %vm336, %v2141, %v2140
      %v2143 = vrot.slane %v2042, 5
      %v2144 = vsel %vm339, %v2143, %v2142
      %v2145 = vrot.slane %v2043, 4
      %v2146 = vsel %vm342, %v2145, %v2144
      %v2147 = vpack.c.b16 %v2146, %v2146
      %2148 = vrot.lane.b32.xlu0 %v2147, 127
      %v2149 = vpop.permute.xlu0 %2148
      %v2150 = vrot.slane %v2073, 3
      %v2151 = vrot.slane %v2074, 2
      %v2152 = vsel %vm325, %v2151, %v2150
      %v2153 = vrot.slane %v2075, 1
      %v2154 = vsel %vm328, %v2153, %v2152
      %v2155 = vsel %vm331, %v2076, %v2154
      %v2156 = vpack.c.b16 %v2155, %v2155
      %v2157 = vrot.slane %v2073, 7
      %v2158 = vrot.slane %v2074, 6
      %v2159 = vsel %vm336, %v2158, %v2157
      %v2160 = vrot.slane %v2075, 5
      %v2161 = vsel %vm339, %v2160, %v2159
      %v2162 = vrot.slane %v2076, 4
      %v2163 = vsel %vm342, %v2162, %v2161
      %v2164 = vpack.c.b16 %v2163, %v2163
      %2165 = vrot.lane.b32.xlu0 %v2164, 127
      %v2166 = vpop.permute.xlu0 %2165
      %v2169 = vsel %vm384, %v2139, %v2149
      %v2171 = vsel %vm388, %v2169, %v2156
      %v2173 = vsel %vm391, %v2171, %v2166
      %2175 = vmatpush.bf16.msra.mxu0 0
      %2176 = vmatpush.bf16.msra.mxu0 0
      %2177 = vmatpush.bf16.msra.mxu0 0
      %2178 = vmatpush.bf16.msra.mxu0 0
      %2179 = vmatpush.bf16.msra.mxu0 0
      %2180 = vmatpush.bf16.msra.mxu0 0
      %2181 = vmatpush.bf16.msra.mxu0 0
      %2182 = vmatpush.bf16.msra.mxu0 %v2173
      %2183 = vmatmul.bf16.gmra.mxu0 %v407
      %v2184 = vpop.f32.mrf.mxu0
      %v2185 = vadd.f32 0.0, %v2184
      %v2186 = vpop.f32.mrf.mxu0
      %v2187 = vadd.f32 0.0, %v2186
      %2188 = vmatmul.bf16.gmra.mxu0 %v410
      %v2189 = vpop.f32.mrf.mxu0
      %v2190 = vadd.f32 0.0, %v2189
      %v2191 = vpop.f32.mrf.mxu0
      %v2192 = vadd.f32 0.0, %v2191
      %2193 = vdwg.mxu0
      %v2194 = vadd.f32 %v2121, %v2185
      %v2195 = vadd.f32 %v2122, %v2187
      %v2196 = vadd.f32 %v2123, %v2190
      %v2197 = vadd.f32 %v2124, %v2192
      %v2198 = vmul.f32 %v2185, %v2185
      %v2199 = vmul.f32 %v2187, %v2187
      %v2200 = vmul.f32 %v2190, %v2190
      %v2201 = vmul.f32 %v2192, %v2192
      %v2202 = vadd.f32 %v2129, %v2198
      %v2203 = vadd.f32 %v2130, %v2199
      %v2204 = vadd.f32 %v2131, %v2200
      %v2205 = vadd.f32 %v2132, %v2201
      %v2206 = vld [vmem:[%s265 + $0x8] sm:$0x4]
      %v2207 = vld [vmem:[%s265 + $0x14] sm:$0x4]
      %v2208 = vld [vmem:[%s265 + $0x20] sm:$0x4]
      %v2209 = vld [vmem:[%s265 + $0x2c] sm:$0x4]
      %v2210 = vld [vmem:[%s275 + $0x8] sm:$0x4]
      %v2211 = vld [vmem:[%s275 + $0x14] sm:$0x4]
      %v2212 = vld [vmem:[%s275 + $0x20] sm:$0x4]
      %v2213 = vld [vmem:[%s275 + $0x2c] sm:$0x4]
      %v2218 = vunpack.c.l.b16 %v2206
      %v2219 = vunpack.c.l.b16 %v2207
      %v2220 = vunpack.c.l.b16 %v2208
      %v2221 = vunpack.c.l.b16 %v2209
      %v2222 = vpack.c.b16 %v2218, %v2218
      %v2223 = vpack.c.b16 %v2219, %v2219
      %v2224 = vpack.c.b16 %v2220, %v2220
      %v2225 = vpack.c.b16 %v2221, %v2221
      %v2226 = vunpack.c.l.b16 %v2222
      %v2227 = vunpack.c.l.b16 %v2223
      %v2228 = vunpack.c.l.b16 %v2224
      %v2229 = vunpack.c.l.b16 %v2225
      %v2230 = vrot.slane %v2226, 4
      %v2231 = vrot.slane %v2227, 3
      %v2232 = vsel %vm325, %v2231, %v2230
      %v2233 = vrot.slane %v2228, 2
      %v2234 = vsel %vm328, %v2233, %v2232
      %v2235 = vrot.slane %v2229, 1
      %v2236 = vsel %vm331, %v2235, %v2234
      %v2237 = vpack.c.b16 %v2236, %v2236
      %v2238 = vrot.slane %v2227, 7
      %v2239 = vsel %vm336, %v2238, %v2226
      %v2240 = vrot.slane %v2228, 6
      %v2241 = vsel %vm339, %v2240, %v2239
      %v2242 = vrot.slane %v2229, 5
      %v2243 = vsel %vm342, %v2242, %v2241
      %v2244 = vpack.c.b16 %v2243, %v2243
      %2245 = vrot.lane.b32.xlu0 %v2244, 127
      %v2246 = vpop.permute.xlu0 %2245
      %v2251 = vunpack.c.l.b16 %v2210
      %v2252 = vunpack.c.l.b16 %v2211
      %v2253 = vunpack.c.l.b16 %v2212
      %v2254 = vunpack.c.l.b16 %v2213
      %v2255 = vpack.c.b16 %v2251, %v2251
      %v2256 = vpack.c.b16 %v2252, %v2252
      %v2257 = vpack.c.b16 %v2253, %v2253
      %v2258 = vpack.c.b16 %v2254, %v2254
      %v2259 = vunpack.c.l.b16 %v2255
      %v2260 = vunpack.c.l.b16 %v2256
      %v2261 = vunpack.c.l.b16 %v2257
      %v2262 = vunpack.c.l.b16 %v2258
      %v2263 = vrot.slane %v2259, 4
      %v2264 = vrot.slane %v2260, 3
      %v2265 = vsel %vm325, %v2264, %v2263
      %v2266 = vrot.slane %v2261, 2
      %v2267 = vsel %vm328, %v2266, %v2265
      %v2268 = vrot.slane %v2262, 1
      %v2269 = vsel %vm331, %v2268, %v2267
      %v2270 = vpack.c.b16 %v2269, %v2269
      %v2271 = vunpack.c.h.b16 %v2255
      %v2272 = vunpack.c.h.b16 %v2256
      %v2273 = vunpack.c.h.b16 %v2257
      %v2274 = vunpack.c.h.b16 %v2258
      %v2275 = vrot.slane %v2272, 7
      %v2276 = vsel %vm336, %v2275, %v2271
      %v2277 = vrot.slane %v2273, 6
      %v2278 = vsel %vm339, %v2277, %v2276
      %v2279 = vrot.slane %v2274, 5
      %v2280 = vsel %vm342, %v2279, %v2278
      %v2281 = vpack.c.b16 %v2280, %v2280
      %2282 = vrot.lane.b32.xlu0 %v2281, 127
      %v2283 = vpop.permute.xlu0 %2282
      %v2286 = vsel %vm384, %v2237, %v2246
      %v2288 = vsel %vm388, %v2286, %v2270
      %v2290 = vsel %vm391, %v2288, %v2283
      %2292 = vmatpush.bf16.msra.mxu0 0
      %2293 = vmatpush.bf16.msra.mxu0 0
      %2294 = vmatpush.bf16.msra.mxu0 0
      %2295 = vmatpush.bf16.msra.mxu0 0
      %2296 = vmatpush.bf16.msra.mxu0 0
      %2297 = vmatpush.bf16.msra.mxu0 0
      %2298 = vmatpush.bf16.msra.mxu0 0
      %2299 = vmatpush.bf16.msra.mxu0 %v2290
      %2300 = vmatmul.bf16.gmra.mxu0 %v407
      %v2301 = vpop.f32.mrf.mxu0
      %v2302 = vadd.f32 0.0, %v2301
      %v2303 = vpop.f32.mrf.mxu0
      %v2304 = vadd.f32 0.0, %v2303
      %2305 = vmatmul.bf16.gmra.mxu0 %v410
      %v2306 = vpop.f32.mrf.mxu0
      %v2307 = vadd.f32 0.0, %v2306
      %v2308 = vpop.f32.mrf.mxu0
      %v2309 = vadd.f32 0.0, %v2308
      %2310 = vdwg.mxu0
      %v2311 = vadd.f32 %v2194, %v2302
      %v2312 = vadd.f32 %v2195, %v2304
      %v2313 = vadd.f32 %v2196, %v2307
      %v2314 = vadd.f32 %v2197, %v2309
      %v2315 = vmul.f32 %v2302, %v2302
      %v2316 = vmul.f32 %v2304, %v2304
      %v2317 = vmul.f32 %v2307, %v2307
      %v2318 = vmul.f32 %v2309, %v2309
      %v2319 = vadd.f32 %v2202, %v2315
      %v2320 = vadd.f32 %v2203, %v2316
      %v2321 = vadd.f32 %v2204, %v2317
      %v2322 = vadd.f32 %v2205, %v2318
      %v2323 = vrot.slane %v2226, 5
      %v2324 = vrot.slane %v2227, 4
      %v2325 = vsel %vm325, %v2324, %v2323
      %v2326 = vrot.slane %v2228, 3
      %v2327 = vsel %vm328, %v2326, %v2325
      %v2328 = vrot.slane %v2229, 2
      %v2329 = vsel %vm331, %v2328, %v2327
      %v2330 = vpack.c.b16 %v2329, %v2329
      %v2331 = vrot.slane %v2226, 1
      %v2332 = vsel %vm336, %v2227, %v2331
      %v2333 = vrot.slane %v2228, 7
      %v2334 = vsel %vm339, %v2333, %v2332
      %v2335 = vrot.slane %v2229, 6
      %v2336 = vsel %vm342, %v2335, %v2334
      %v2337 = vpack.c.b16 %v2336, %v2336
      %2338 = vrot.lane.b32.xlu0 %v2337, 127
      %v2339 = vpop.permute.xlu0 %2338
      %v2340 = vrot.slane %v2259, 5
      %v2341 = vrot.slane %v2260, 4
      %v2342 = vsel %vm325, %v2341, %v2340
      %v2343 = vrot.slane %v2261, 3
      %v2344 = vsel %vm328, %v2343, %v2342
      %v2345 = vrot.slane %v2262, 2
      %v2346 = vsel %vm331, %v2345, %v2344
      %v2347 = vpack.c.b16 %v2346, %v2346
      %v2348 = vrot.slane %v2259, 1
      %v2349 = vsel %vm336, %v2260, %v2348
      %v2350 = vrot.slane %v2261, 7
      %v2351 = vsel %vm339, %v2350, %v2349
      %v2352 = vrot.slane %v2262, 6
      %v2353 = vsel %vm342, %v2352, %v2351
      %v2354 = vpack.c.b16 %v2353, %v2353
      %2355 = vrot.lane.b32.xlu0 %v2354, 127
      %v2356 = vpop.permute.xlu0 %2355
      %v2359 = vsel %vm384, %v2330, %v2339
      %v2361 = vsel %vm388, %v2359, %v2347
      %v2363 = vsel %vm391, %v2361, %v2356
      %2365 = vmatpush.bf16.msra.mxu0 0
      %2366 = vmatpush.bf16.msra.mxu0 0
      %2367 = vmatpush.bf16.msra.mxu0 0
      %2368 = vmatpush.bf16.msra.mxu0 0
      %2369 = vmatpush.bf16.msra.mxu0 0
      %2370 = vmatpush.bf16.msra.mxu0 0
      %2371 = vmatpush.bf16.msra.mxu0 0
      %2372 = vmatpush.bf16.msra.mxu0 %v2363
      %2373 = vmatmul.bf16.gmra.mxu0 %v407
      %v2374 = vpop.f32.mrf.mxu0
      %v2375 = vadd.f32 0.0, %v2374
      %v2376 = vpop.f32.mrf.mxu0
      %v2377 = vadd.f32 0.0, %v2376
      %2378 = vmatmul.bf16.gmra.mxu0 %v410
      %v2379 = vpop.f32.mrf.mxu0
      %v2380 = vadd.f32 0.0, %v2379
      %v2381 = vpop.f32.mrf.mxu0
      %v2382 = vadd.f32 0.0, %v2381
      %2383 = vdwg.mxu0
      %v2384 = vadd.f32 %v2311, %v2375
      %v2385 = vadd.f32 %v2312, %v2377
      %v2386 = vadd.f32 %v2313, %v2380
      %v2387 = vadd.f32 %v2314, %v2382
      %v2388 = vmul.f32 %v2375, %v2375
      %v2389 = vmul.f32 %v2377, %v2377
      %v2390 = vmul.f32 %v2380, %v2380
      %v2391 = vmul.f32 %v2382, %v2382
      %v2392 = vadd.f32 %v2319, %v2388
      %v2393 = vadd.f32 %v2320, %v2389
      %v2394 = vadd.f32 %v2321, %v2390
      %v2395 = vadd.f32 %v2322, %v2391
      %v2396 = vld [vmem:[%s265 + $0x8] sm:$0x8]
      %v2397 = vld [vmem:[%s265 + $0x14] sm:$0x8]
      %v2398 = vld [vmem:[%s265 + $0x20] sm:$0x8]
      %v2399 = vld [vmem:[%s265 + $0x2c] sm:$0x8]
      %v2400 = vld [vmem:[%s275 + $0x8] sm:$0x8]
      %v2401 = vld [vmem:[%s275 + $0x14] sm:$0x8]
      %v2402 = vld [vmem:[%s275 + $0x20] sm:$0x8]
      %v2403 = vld [vmem:[%s275 + $0x2c] sm:$0x8]
      %v2408 = vunpack.c.l.b16 %v2396
      %v2409 = vunpack.c.l.b16 %v2397
      %v2410 = vunpack.c.l.b16 %v2398
      %v2411 = vunpack.c.l.b16 %v2399
      %v2412 = vpack.c.b16 %v2408, %v2408
      %v2413 = vpack.c.b16 %v2409, %v2409
      %v2414 = vpack.c.b16 %v2410, %v2410
      %v2415 = vpack.c.b16 %v2411, %v2411
      %v2416 = vunpack.c.l.b16 %v2412
      %v2417 = vunpack.c.l.b16 %v2413
      %v2418 = vunpack.c.l.b16 %v2414
      %v2419 = vunpack.c.l.b16 %v2415
      %v2420 = vrot.slane %v2416, 6
      %v2421 = vrot.slane %v2417, 5
      %v2422 = vsel %vm325, %v2421, %v2420
      %v2423 = vrot.slane %v2418, 4
      %v2424 = vsel %vm328, %v2423, %v2422
      %v2425 = vrot.slane %v2419, 3
      %v2426 = vsel %vm331, %v2425, %v2424
      %v2427 = vpack.c.b16 %v2426, %v2426
      %v2428 = vrot.slane %v2416, 2
      %v2429 = vrot.slane %v2417, 1
      %v2430 = vsel %vm336, %v2429, %v2428
      %v2431 = vsel %vm339, %v2418, %v2430
      %v2432 = vrot.slane %v2419, 7
      %v2433 = vsel %vm342, %v2432, %v2431
      %v2434 = vpack.c.b16 %v2433, %v2433
      %2435 = vrot.lane.b32.xlu0 %v2434, 127
      %v2436 = vpop.permute.xlu0 %2435
      %v2441 = vunpack.c.l.b16 %v2400
      %v2442 = vunpack.c.l.b16 %v2401
      %v2443 = vunpack.c.l.b16 %v2402
      %v2444 = vunpack.c.l.b16 %v2403
      %v2445 = vpack.c.b16 %v2441, %v2441
      %v2446 = vpack.c.b16 %v2442, %v2442
      %v2447 = vpack.c.b16 %v2443, %v2443
      %v2448 = vpack.c.b16 %v2444, %v2444
      %v2449 = vunpack.c.l.b16 %v2445
      %v2450 = vunpack.c.l.b16 %v2446
      %v2451 = vunpack.c.l.b16 %v2447
      %v2452 = vunpack.c.l.b16 %v2448
      %v2453 = vrot.slane %v2449, 6
      %v2454 = vrot.slane %v2450, 5
      %v2455 = vsel %vm325, %v2454, %v2453
      %v2456 = vrot.slane %v2451, 4
      %v2457 = vsel %vm328, %v2456, %v2455
      %v2458 = vrot.slane %v2452, 3
      %v2459 = vsel %vm331, %v2458, %v2457
      %v2460 = vpack.c.b16 %v2459, %v2459
      %v2461 = vrot.slane %v2449, 2
      %v2462 = vrot.slane %v2450, 1
      %v2463 = vsel %vm336, %v2462, %v2461
      %v2464 = vsel %vm339, %v2451, %v2463
      %v2465 = vrot.slane %v2452, 7
      %v2466 = vsel %vm342, %v2465, %v2464
      %v2467 = vpack.c.b16 %v2466, %v2466
      %2468 = vrot.lane.b32.xlu0 %v2467, 127
      %v2469 = vpop.permute.xlu0 %2468
      %v2472 = vsel %vm384, %v2427, %v2436
      %v2474 = vsel %vm388, %v2472, %v2460
      %v2476 = vsel %vm391, %v2474, %v2469
      %2478 = vmatpush.bf16.msra.mxu0 0
      %2479 = vmatpush.bf16.msra.mxu0 0
      %2480 = vmatpush.bf16.msra.mxu0 0
      %2481 = vmatpush.bf16.msra.mxu0 0
      %2482 = vmatpush.bf16.msra.mxu0 0
      %2483 = vmatpush.bf16.msra.mxu0 0
      %2484 = vmatpush.bf16.msra.mxu0 0
      %2485 = vmatpush.bf16.msra.mxu0 %v2476
      %2486 = vmatmul.bf16.gmra.mxu0 %v407
      %v2487 = vpop.f32.mrf.mxu0
      %v2488 = vadd.f32 0.0, %v2487
      %v2489 = vpop.f32.mrf.mxu0
      %v2490 = vadd.f32 0.0, %v2489
      %2491 = vmatmul.bf16.gmra.mxu0 %v410
      %v2492 = vpop.f32.mrf.mxu0
      %v2493 = vadd.f32 0.0, %v2492
      %v2494 = vpop.f32.mrf.mxu0
      %v2495 = vadd.f32 0.0, %v2494
      %2496 = vdwg.mxu0
      %v2497 = vadd.f32 %v2384, %v2488
      %v2498 = vadd.f32 %v2385, %v2490
      %v2499 = vadd.f32 %v2386, %v2493
      %v2500 = vadd.f32 %v2387, %v2495
      %v2501 = vmul.f32 %v2488, %v2488
      %v2502 = vmul.f32 %v2490, %v2490
      %v2503 = vmul.f32 %v2493, %v2493
      %v2504 = vmul.f32 %v2495, %v2495
      %v2505 = vadd.f32 %v2392, %v2501
      %v2506 = vadd.f32 %v2393, %v2502
      %v2507 = vadd.f32 %v2394, %v2503
      %v2508 = vadd.f32 %v2395, %v2504
      %v2509 = vrot.slane %v2416, 7
      %v2510 = vrot.slane %v2417, 6
      %v2511 = vsel %vm325, %v2510, %v2509
      %v2512 = vrot.slane %v2418, 5
      %v2513 = vsel %vm328, %v2512, %v2511
      %v2514 = vrot.slane %v2419, 4
      %v2515 = vsel %vm331, %v2514, %v2513
      %v2516 = vpack.c.b16 %v2515, %v2515
      %v2517 = vrot.slane %v2416, 3
      %v2518 = vrot.slane %v2417, 2
      %v2519 = vsel %vm336, %v2518, %v2517
      %v2520 = vrot.slane %v2418, 1
      %v2521 = vsel %vm339, %v2520, %v2519
      %v2522 = vsel %vm342, %v2419, %v2521
      %v2523 = vpack.c.b16 %v2522, %v2522
      %2524 = vrot.lane.b32.xlu0 %v2523, 127
      %v2525 = vpop.permute.xlu0 %2524
      %v2526 = vrot.slane %v2449, 7
      %v2527 = vrot.slane %v2450, 6
      %v2528 = vsel %vm325, %v2527, %v2526
      %v2529 = vrot.slane %v2451, 5
      %v2530 = vsel %vm328, %v2529, %v2528
      %v2531 = vrot.slane %v2452, 4
      %v2532 = vsel %vm331, %v2531, %v2530
      %v2533 = vpack.c.b16 %v2532, %v2532
      %v2534 = vrot.slane %v2449, 3
      %v2535 = vrot.slane %v2450, 2
      %v2536 = vsel %vm336, %v2535, %v2534
      %v2537 = vrot.slane %v2451, 1
      %v2538 = vsel %vm339, %v2537, %v2536
      %v2539 = vsel %vm342, %v2452, %v2538
      %v2540 = vpack.c.b16 %v2539, %v2539
      %2541 = vrot.lane.b32.xlu0 %v2540, 127
      %v2542 = vpop.permute.xlu0 %2541
      %v2545 = vsel %vm384, %v2516, %v2525
      %v2547 = vsel %vm388, %v2545, %v2533
      %v2549 = vsel %vm391, %v2547, %v2542
      %2551 = vmatpush.bf16.msra.mxu0 0
      %2552 = vmatpush.bf16.msra.mxu0 0
      %2553 = vmatpush.bf16.msra.mxu0 0
      %2554 = vmatpush.bf16.msra.mxu0 0
      %2555 = vmatpush.bf16.msra.mxu0 0
      %2556 = vmatpush.bf16.msra.mxu0 0
      %2557 = vmatpush.bf16.msra.mxu0 0
      %2558 = vmatpush.bf16.msra.mxu0 %v2549
      %2559 = vmatmul.bf16.gmra.mxu0 %v407
      %v2560 = vpop.f32.mrf.mxu0
      %v2561 = vadd.f32 0.0, %v2560
      %v2562 = vpop.f32.mrf.mxu0
      %v2563 = vadd.f32 0.0, %v2562
      %2564 = vmatmul.bf16.gmra.mxu0 %v410
      %v2565 = vpop.f32.mrf.mxu0
      %v2566 = vadd.f32 0.0, %v2565
      %v2567 = vpop.f32.mrf.mxu0
      %v2568 = vadd.f32 0.0, %v2567
      %2569 = vdwg.mxu0
      %v2570 = vadd.f32 %v2497, %v2561
      %v2571 = vadd.f32 %v2498, %v2563
      %v2572 = vadd.f32 %v2499, %v2566
      %v2573 = vadd.f32 %v2500, %v2568
      %v2574 = vmul.f32 %v2561, %v2561
      %v2575 = vmul.f32 %v2563, %v2563
      %v2576 = vmul.f32 %v2566, %v2566
      %v2577 = vmul.f32 %v2568, %v2568
      %v2578 = vadd.f32 %v2505, %v2574
      %v2579 = vadd.f32 %v2506, %v2575
      %v2580 = vadd.f32 %v2507, %v2576
      %v2581 = vadd.f32 %v2508, %v2577
      %vm2582 = vcmask 138240
      %2583 = vst.msk [vmem:[%s285] sm:$0xff] %vm2582, %v2570
      %2584 = vst.msk [vmem:[%s285 + $0x8] sm:$0xff] %vm2582, %v2571
      %2585 = vst.msk [vmem:[%s285 + $0x10] sm:$0xff] %vm2582, %v2572
      %2586 = vst.msk [vmem:[%s285 + $0x18] sm:$0xff] %vm2582, %v2573
      %2587 = vst.msk [vmem:[%s294] sm:$0xff] %vm2582, %v2578
      %2588 = vst.msk [vmem:[%s294 + $0x8] sm:$0xff] %vm2582, %v2579
      %2589 = vst.msk [vmem:[%s294 + $0x10] sm:$0xff] %vm2582, %v2580
      %2590 = vst.msk [vmem:[%s294 + $0x18] sm:$0xff] %vm2582, %v2581
      %p2591 = scmp.lt.s32.totalorder %s20, 1
      %s2592 = scalar_select %p2591, %s20, 1
      %p2593 = scmp.lt.s32.totalorder %s21, 0
      %s2594 = scalar_select %p2593, %s21, 0
      %s2595 = smul.addr %s2594, 4
      %s2596 = smul.addr %s2592, 4
      %s2597 = sadd.s32 %s2595, %s2596
      %s2598 = smul.addr %s2597, 8
      %s2599 = scalar_lea.vmem %s3, %s2598
      %p2600 = scmp.lt.s32.totalorder %s20, 1
      %s2601 = scalar_select %p2600, %s20, 1
      %p2602 = scmp.lt.s32.totalorder %s21, 0
      %s2603 = scalar_select %p2602, %s21, 0
      %s2604 = smul.addr %s2603, 4
      %s2605 = smul.addr %s2601, 4
      %s2606 = sadd.s32 %s2604, %s2605
      %s2607 = smul.addr %s2606, 8
      %s2608 = scalar_lea.vmem %s4, %s2607
      // Predicated region
      $region33: #{upconv_block_forward.2} parent=31 // pred_check
        %p2609 = pneg %p125
      $region34: #{upconv_block_forward.2} parent=31 // pred_check_branch
        %2611 = sbr.rel (%p2609) target = $region36
      $region35: #{upconv_block_forward.2} parent=31 // pred_region
        _
      $region36: #{upconv_block_forward.2} parent=31 // pred_fallthru
        _
      // Predicated region
      $region37: #{upconv_block_forward.2} parent=31 // pred_check
        %p2612 = pneg %p153
      $region38: #{upconv_block_forward.2} parent=31 // pred_check_branch
        %2614 = sbr.rel (%p2612) target = $region40
      $region39: #{upconv_block_forward.2} parent=31 // pred_region
        _
      $region40: #{upconv_block_forward.2} parent=31 // pred_fallthru
        _
    $region32: #{upconv_block_forward.2} parent=5 // pred_fallthru
      _
    %p2615 = scmp.le.s32.totalorder 2, %s11
    // Predicated region
    $region41: #{upconv_block_forward.2} parent=5 // pred_check
      %p2616 = pneg %p2615
    $region42: #{upconv_block_forward.2} parent=5 // pred_check_branch
      %2618 = sbr.rel (%p2616) target = $region44
    $region43: #{upconv_block_forward.2} parent=5 // pred_region
      %s2619 = ssub.s32 %s11, 2
      // Predicated region
      $region45: #{upconv_block_forward.2} parent=43 // pred_check
        %p2620 = pneg %p131
      $region46: #{upconv_block_forward.2} parent=43 // pred_check_branch
        %2622 = sbr.rel (%p2620) target = $region48
      $region47: #{upconv_block_forward.2} parent=43 // pred_region
        %p2623 = scmp.lt.s32.totalorder %s22, 1
        %s2624 = scalar_select %p2623, %s22, 1
        %p2625 = scmp.lt.s32.totalorder %s23, 0
        %s2626 = scalar_select %p2625, %s23, 0
        %s2627 = smul.addr %s2626, 4
        %s2628 = smul.addr %s2624, 4
        %s2629 = sadd.s32 %s2627, %s2628
        %s2630 = smul.addr %s2629, 8
        %s2631 = scalar_lea.vmem %s3, %s2630
      $region48: #{upconv_block_forward.2} parent=43 // pred_fallthru
        _
      // Predicated region
      $region49: #{upconv_block_forward.2} parent=43 // pred_check
        %p2632 = pneg %p159
      $region50: #{upconv_block_forward.2} parent=43 // pred_check_branch
        %2634 = sbr.rel (%p2632) target = $region52
      $region51: #{upconv_block_forward.2} parent=43 // pred_region
        %p2635 = scmp.lt.s32.totalorder %s22, 1
        %s2636 = scalar_select %p2635, %s22, 1
        %p2637 = scmp.lt.s32.totalorder %s23, 0
        %s2638 = scalar_select %p2637, %s23, 0
        %s2639 = smul.addr %s2638, 4
        %s2640 = smul.addr %s2636, 4
        %s2641 = sadd.s32 %s2639, %s2640
        %s2642 = smul.addr %s2641, 8
        %s2643 = scalar_lea.vmem %s4, %s2642
      $region52: #{upconv_block_forward.2} parent=43 // pred_fallthru
        _
    $region44: #{upconv_block_forward.2} parent=5 // pred_fallthru
      _
  $region6: #{upconv_block_forward.2} parent=0 // loop_footer
    %s15 = sadd.s32 1, %s11
  $region7: #{upconv_block_forward.2} parent=0 // loop_footer_branch
    %10 = sbr.rel target = $region3
  $region8: #{upconv_block_forward.2} parent=0 // loop_exit
    _

// kernel: upconv_block_forward.3
$region0: #{upconv_block_forward.3}
  #allocation0 [shape = 'u32[]', space=smem, size = 0x4, offset = 0x4, fixed_abs, tag = 'smem constant byte address 0x4 - core index']
  #allocation1 [shape = 'u32[72,128]{1,0:T(1,128)}', space=vmem, size = 0x9000, scoped, tag = 'internal scratch']
  %s0 = inlined_call_operand.vmem [shape: bf16[2,4,24,18], index: 0, kind: input, shape index: {}]
  %s1 = inlined_call_operand.vmem [shape: bf16[2,4,24,18], index: 1, kind: input, shape index: {}]
  %s2 = inlined_call_operand.vmem [shape: bf16[32,16], index: 2, kind: input, shape index: {}]
  %s3 = inlined_call_operand.vmem [shape: f32[32,1], index: 3, kind: input, shape index: {}]
  %s4 = inlined_call_operand.vmem [shape: f32[32,1], index: 4, kind: input, shape index: {}]
  %s5 = inlined_call_operand.vmem [shape: bf16[2,24,32,17], index: 5, kind: output, shape index: {}]
  %s6 = sld [smem:[#allocation0]]
  $region53: #{upconv_block_forward.3} parent=0
    _
  %s8 = ssub.s32 1, %s6
  %s9 = scalar_select 0, %s8, %s6
  loop: start=0, step=1, limit=4
  $region2: #{upconv_block_forward.3} parent=0 // loop_pre_header
    _
  $region3: #{upconv_block_forward.3} parent=0 // loop_header
    %s11 = sphi 0, %s15
    %p12 = scmp.ge.s32.totalorder %s11, 4
    %s18 = sphi 0, %s30
    %s19 = sphi 0, %s26
    %s20 = sphi 0, %s18
    %s21 = sphi 0, %s19
    %s22 = sphi 0, %s20
    %s23 = sphi 0, %s21
    %s35 = sphi 0, %s37
    %s38 = sphi 0, %s35
    %s39 = sphi 0, %s38
    %s55 = sphi 0, %s39
    %s63 = sphi 0, %s65
    %s66 = sphi 0, %s63
    %s67 = sphi 0, %s66
    %s83 = sphi 0, %s67
    %s87 = sphi 0, %s87
    %s89 = sphi 0, %s87
    %s90 = sphi 0, %s89
    %s104 = sphi 0, %s90
    %s108 = sphi 0, %s108
    %s110 = sphi 0, %s108
    %s111 = sphi 0, %s110
    %s125 = sphi 0, %s111
    %s129 = sphi 0, %s129
    %s131 = sphi 0, %s129
    %s132 = sphi 0, %s131
    %s146 = sphi 0, %s132
    %s154 = sphi 0, %s156
    %s157 = sphi 0, %s154
    %s158 = sphi 0, %s157
    %s174 = sphi 0, %s158
  $region4: #{upconv_block_forward.3} parent=0 // loop_header_branch
    %14 = sbr.rel (%p12) target = $region8
  $region5: #{upconv_block_forward.3} parent=0 // loop_body
    %s16 = ssub.s32 %s11, 1
    %s17 = ssub.s32 %s11, 2
    %s24 = sadd.s32 1, %s19
    %p25 = scmp.ge.s32.totalorder %s24, 1
    %s26 = scalar_select %p25, 0, %s24
    %s27 = sadd.s32 1, %s18
    %s28 = scalar_select %p25, %s27, %s18
    %p29 = scmp.ge.s32.totalorder %s28, 2
    %s30 = scalar_select %p29, 0, %s28
    %s31 = ssub.s32 %s18, %s30
    %s32 = ssub.s32 %s19, %s26
    %s33 = sor.u32 %s31, %s32
    %p34 = scmp.eq.s32.totalorder %s33, 0
    %s36 = sadd.s32 %s35, 1
    %s37 = scalar_select %p34, %s35, %s36
    %p40 = pneg %p34
    %p41 = scmp.eq.s32.totalorder %s11, 1
    %p42 = por %p40, %p41
    %p43 = scmp.ne.s32.totalorder %s35, %s38
    %p44 = scmp.eq.s32.totalorder %s11, 0
    %p45 = por %p43, %p44
    %p46 = scmp.ne.s32.totalorder %s35, %s38
    %p47 = scmp.eq.s32.totalorder %s16, 1
    %p48 = por %p46, %p47
    %p49 = scmp.ne.s32.totalorder %s38, %s39
    %p50 = scmp.eq.s32.totalorder %s16, 0
    %p51 = por %p49, %p50
    %p52 = scmp.ne.s32.totalorder %s38, %s39
    %p53 = scmp.eq.s32.totalorder %s17, 1
    %p54 = por %p52, %p53
    %p56 = scmp.ne.s32.totalorder %s39, %s55
    %p57 = scmp.eq.s32.totalorder %s17, 0
    %p58 = por %p56, %p57
    %s59 = ssub.s32 %s18, %s30
    %s60 = ssub.s32 %s19, %s26
    %s61 = sor.u32 %s59, %s60
    %p62 = scmp.eq.s32.totalorder %s61, 0
    %s64 = sadd.s32 %s63, 1
    %s65 = scalar_select %p62, %s63, %s64
    %p68 = pneg %p62
    %p69 = scmp.eq.s32.totalorder %s11, 1
    %p70 = por %p68, %p69
    %p71 = scmp.ne.s32.totalorder %s63, %s66
    %p72 = scmp.eq.s32.totalorder %s11, 0
    %p73 = por %p71, %p72
    %p74 = scmp.ne.s32.totalorder %s63, %s66
    %p75 = scmp.eq.s32.totalorder %s16, 1
    %p76 = por %p74, %p75
    %p77 = scmp.ne.s32.totalorder %s66, %s67
    %p78 = scmp.eq.s32.totalorder %s16, 0
    %p79 = por %p77, %p78
    %p80 = scmp.ne.s32.totalorder %s66, %s67
    %p81 = scmp.eq.s32.totalorder %s17, 1
    %p82 = por %p80, %p81
    %p84 = scmp.ne.s32.totalorder %s67, %s83
    %p85 = scmp.eq.s32.totalorder %s17, 0
    %p86 = por %p84, %p85
    %s88 = sadd.s32 %s87, 1
    %p91 = scmp.eq.s32.totalorder %s11, 1
    %p92 = scmp.ne.s32.totalorder %s87, %s89
    %p93 = scmp.eq.s32.totalorder %s11, 0
    %p94 = por %p92, %p93
    %p95 = scmp.ne.s32.totalorder %s87, %s89
    %p96 = scmp.eq.s32.totalorder %s16, 1
    %p97 = por %p95, %p96
    %p98 = scmp.ne.s32.totalorder %s89, %s90
    %p99 = scmp.eq.s32.totalorder %s16, 0
    %p100 = por %p98, %p99
    %p101 = scmp.ne.s32.totalorder %s89, %s90
    %p102 = scmp.eq.s32.totalorder %s17, 1
    %p103 = por %p101, %p102
    %p105 = scmp.ne.s32.totalorder %s90, %s104
    %p106 = scmp.eq.s32.totalorder %s17, 0
    %p107 = por %p105, %p106
    %s109 = sadd.s32 %s108, 1
    %p112 = scmp.eq.s32.totalorder %s11, 1
    %p113 = scmp.ne.s32.totalorder %s108, %s110
    %p114 = scmp.eq.s32.totalorder %s11, 0
    %p115 = por %p113, %p114
    %p116 = scmp.ne.s32.totalorder %s108, %s110
    %p117 = scmp.eq.s32.totalorder %s16, 1
    %p118 = por %p116, %p117
    %p119 = scmp.ne.s32.totalorder %s110, %s111
    %p120 = scmp.eq.s32.totalorder %s16, 0
    %p121 = por %p119, %p120
    %p122 = scmp.ne.s32.totalorder %s110, %s111
    %p123 = scmp.eq.s32.totalorder %s17, 1
    %p124 = por %p122, %p123
    %p126 = scmp.ne.s32.totalorder %s111, %s125
    %p127 = scmp.eq.s32.totalorder %s17, 0
    %p128 = por %p126, %p127
    %s130 = sadd.s32 %s129, 1
    %p133 = scmp.eq.s32.totalorder %s11, 1
    %p134 = scmp.ne.s32.totalorder %s129, %s131
    %p135 = scmp.eq.s32.totalorder %s11, 0
    %p136 = por %p134, %p135
    %p137 = scmp.ne.s32.totalorder %s129, %s131
    %p138 = scmp.eq.s32.totalorder %s16, 1
    %p139 = por %p137, %p138
    %p140 = scmp.ne.s32.totalorder %s131, %s132
    %p141 = scmp.eq.s32.totalorder %s16, 0
    %p142 = por %p140, %p141
    %p143 = scmp.ne.s32.totalorder %s131, %s132
    %p144 = scmp.eq.s32.totalorder %s17, 1
    %p145 = por %p143, %p144
    %p147 = scmp.ne.s32.totalorder %s132, %s146
    %p148 = scmp.eq.s32.totalorder %s17, 0
    %p149 = por %p147, %p148
    %s150 = ssub.s32 %s18, %s30
    %s151 = ssub.s32 %s19, %s26
    %s152 = sor.u32 %s150, %s151
    %p153 = scmp.eq.s32.totalorder %s152, 0
    %s155 = sadd.s32 %s154, 1
    %s156 = scalar_select %p153, %s154, %s155
    %p159 = pneg %p153
    %p160 = scmp.eq.s32.totalorder %s11, 1
    %p161 = por %p159, %p160
    %p162 = scmp.ne.s32.totalorder %s154, %s157
    %p163 = scmp.eq.s32.totalorder %s11, 0
    %p164 = por %p162, %p163
    %p165 = scmp.ne.s32.totalorder %s154, %s157
    %p166 = scmp.eq.s32.totalorder %s16, 1
    %p167 = por %p165, %p166
    %p168 = scmp.ne.s32.totalorder %s157, %s158
    %p169 = scmp.eq.s32.totalorder %s16, 0
    %p170 = por %p168, %p169
    %p171 = scmp.ne.s32.totalorder %s157, %s158
    %p172 = scmp.eq.s32.totalorder %s17, 1
    %p173 = por %p171, %p172
    %p175 = scmp.ne.s32.totalorder %s158, %s174
    %p176 = scmp.eq.s32.totalorder %s17, 0
    %p177 = por %p175, %p176
    %p178 = scmp.le.s32.totalorder 1, %s11
    %p179 = scmp.lt.s32.totalorder %s11, 3
    %p180 = pnand %p178, %p179
    %p181 = pneg %p180
    // Predicated region
    $region9: #{upconv_block_forward.3} parent=5 // pred_check
      _
    $region10: #{upconv_block_forward.3} parent=5 // pred_check_branch
      %183 = sbr.rel (%p180) target = $region12
    $region11: #{upconv_block_forward.3} parent=5 // pred_region
      %s184 = ssub.s32 %s11, 1
      // Predicated region
      $region13: #{upconv_block_forward.3} parent=11 // pred_check
        %p185 = pneg %p100
      $region14: #{upconv_block_forward.3} parent=11 // pred_check_branch
        %187 = sbr.rel (%p185) target = $region16
      $region15: #{upconv_block_forward.3} parent=11 // pred_region
        _
      $region16: #{upconv_block_forward.3} parent=11 // pred_fallthru
        _
      // Predicated region
      $region17: #{upconv_block_forward.3} parent=11 // pred_check
        %p188 = pneg %p121
      $region18: #{upconv_block_forward.3} parent=11 // pred_check_branch
        %190 = sbr.rel (%p188) target = $region20
      $region19: #{upconv_block_forward.3} parent=11 // pred_region
        _
      $region20: #{upconv_block_forward.3} parent=11 // pred_fallthru
        _
      // Predicated region
      $region21: #{upconv_block_forward.3} parent=11 // pred_check
        %p191 = pneg %p142
      $region22: #{upconv_block_forward.3} parent=11 // pred_check_branch
        %193 = sbr.rel (%p191) target = $region24
      $region23: #{upconv_block_forward.3} parent=11 // pred_region
        _
      $region24: #{upconv_block_forward.3} parent=11 // pred_fallthru
        _
    $region12: #{upconv_block_forward.3} parent=5 // pred_fallthru
      _
    %p194 = scmp.lt.s32.totalorder %s11, 2
    // Predicated region
    $region25: #{upconv_block_forward.3} parent=5 // pred_check
      %p195 = pneg %p194
    $region26: #{upconv_block_forward.3} parent=5 // pred_check_branch
      %197 = sbr.rel (%p195) target = $region28
    $region27: #{upconv_block_forward.3} parent=5 // pred_region
      // Predicated region
      $region29: #{upconv_block_forward.3} parent=27 // pred_check
        %p198 = pneg %p45
      $region30: #{upconv_block_forward.3} parent=27 // pred_check_branch
        %200 = sbr.rel (%p198) target = $region32
      $region31: #{upconv_block_forward.3} parent=27 // pred_region
        %s201 = smul.u32 3, %s19
        %p202 = scmp.lt.s32.totalorder %s18, 1
        %s203 = scalar_select %p202, %s18, 1
        %p204 = scmp.lt.s32.totalorder %s201, 2
        %s205 = scalar_select %p204, %s201, 2
        %s206 = smul.addr %s203, 12
        %s207 = sadd.s32 %s205, %s206
        %s208 = smul.addr %s207, 4
        %s209 = scalar_lea.vmem %s0, %s208
        %s210 = smul.u32 3, %s19
      $region32: #{upconv_block_forward.3} parent=27 // pred_fallthru
        _
      // Predicated region
      $region33: #{upconv_block_forward.3} parent=27 // pred_check
        %p211 = pneg %p73
      $region34: #{upconv_block_forward.3} parent=27 // pred_check_branch
        %213 = sbr.rel (%p211) target = $region36
      $region35: #{upconv_block_forward.3} parent=27 // pred_region
        %s214 = smul.u32 3, %s19
        %p215 = scmp.lt.s32.totalorder %s18, 1
        %s216 = scalar_select %p215, %s18, 1
        %p217 = scmp.lt.s32.totalorder %s214, 2
        %s218 = scalar_select %p217, %s214, 2
        %s219 = smul.addr %s216, 12
        %s220 = sadd.s32 %s218, %s219
        %s221 = smul.addr %s220, 4
        %s222 = scalar_lea.vmem %s1, %s221
        %s223 = smul.u32 3, %s19
      $region36: #{upconv_block_forward.3} parent=27 // pred_fallthru
        _
    $region28: #{upconv_block_forward.3} parent=5 // pred_fallthru
      _
    %p224 = scmp.le.s32.totalorder 1, %s11
    %p225 = scmp.lt.s32.totalorder %s11, 3
    %p226 = pnand %p224, %p225
    %p227 = pneg %p226
    // Predicated region
    $region37: #{upconv_block_forward.3} parent=5 // pred_check
      _
    $region38: #{upconv_block_forward.3} parent=5 // pred_check_branch
      %229 = sbr.rel (%p226) target = $region40
    $region39: #{upconv_block_forward.3} parent=5 // pred_region
      %s230 = ssub.s32 %s11, 1
      %s231 = smul.u32 3, %s21
      %p232 = scmp.lt.s32.totalorder %s20, 1
      %s233 = scalar_select %p232, %s20, 1
      %p234 = scmp.lt.s32.totalorder %s231, 2
      %s235 = scalar_select %p234, %s231, 2
      %s236 = smul.addr %s233, 12
      %s237 = sadd.s32 %s235, %s236
      %s238 = smul.addr %s237, 4
      %s239 = scalar_lea.vmem %s0, %s238
      %p240 = pneg %p51
      %p241 = pneg %p48
      %s242 = smul.u32 3, %s21
      %p243 = scmp.lt.s32.totalorder %s20, 1
      %s244 = scalar_select %p243, %s20, 1
      %p245 = scmp.lt.s32.totalorder %s242, 2
      %s246 = scalar_select %p245, %s242, 2
      %s247 = smul.addr %s244, 12
      %s248 = sadd.s32 %s246, %s247
      %s249 = smul.addr %s248, 4
      %s250 = scalar_lea.vmem %s1, %s249
      %p251 = pneg %p79
      %p252 = pneg %p76
      %p253 = pneg %p100
      %p254 = pneg %p97
      %p255 = pneg %p121
      %p256 = pneg %p118
      %p257 = pneg %p142
      %p258 = pneg %p139
      %p259 = pneg %p170
      %p260 = pneg %p167
      %s261 = smul.u32 24, %s21
      %p262 = scmp.lt.s32.totalorder %s20, 1
      %s263 = scalar_select %p262, %s20, 1
      %p264 = scmp.lt.s32.totalorder %s261, 23
      %s265 = scalar_select %p264, %s261, 23
      %s266 = smul.addr %s265, 4
      %s267 = smul.addr %s263, 96
      %s268 = sadd.s32 %s266, %s267
      %s269 = smul.addr %s268, 4
      %s270 = scalar_lea.vmem %s5, %s269
      %s271 = smul.u32 3, %s21
      %p272 = scmp.lt.s32.totalorder %s20, 1
      %s273 = scalar_select %p272, %s20, 1
      %p274 = scmp.lt.s32.totalorder %s271, 2
      %s275 = scalar_select %p274, %s271, 2
      %s276 = smul.addr %s273, 12
      %s277 = sadd.s32 %s275, %s276
      %s278 = smul.addr %s277, 4
      %s279 = scalar_lea.vmem %s0, %s278
      %s280 = smul.u32 3, %s21
      %s281 = smul.u32 3, %s21
      %p282 = scmp.lt.s32.totalorder %s20, 1
      %s283 = scalar_select %p282, %s20, 1
      %p284 = scmp.lt.s32.totalorder %s281, 2
      %s285 = scalar_select %p284, %s281, 2
      %s286 = smul.addr %s283, 12
      %s287 = sadd.s32 %s285, %s286
      %s288 = smul.addr %s287, 4
      %s289 = scalar_lea.vmem %s1, %s288
      %s290 = smul.u32 3, %s21
      %s291 = smul.u32 24, %s21
      %p292 = scmp.lt.s32.totalorder %s20, 1
      %s293 = scalar_select %p292, %s20, 1
      %p294 = scmp.lt.s32.totalorder %s291, 23
      %s295 = scalar_select %p294, %s291, 23
      %s296 = smul.addr %s295, 4
      %s297 = smul.addr %s293, 96
      %s298 = sadd.s32 %s296, %s297
      %s299 = smul.addr %s298, 4
      %s300 = scalar_lea.vmem %s5, %s299
      %s301 = smul.u32 24, %s21
      %v303 = vld [vmem:[%s2] sm:$0xf]
      %v304 = vld [vmem:[%s2 + $0x4] sm:$0xf]
      %v305 = vld [vmem:[%s2 + $0x8] sm:$0xf]
      %v306 = vld [vmem:[%s2 + $0xc] sm:$0xf]
      %v307 = vld [vmem:[%s3] sm:$0xff]
      %v308 = vld [vmem:[%s3 + $0x8] sm:$0xff]
      %v309 = vld [vmem:[%s3 + $0x10] sm:$0xff]
      %v310 = vld [vmem:[%s3 + $0x18] sm:$0xff]
      %v311 = vld [vmem:[%s4] sm:$0xff]
      %v312 = vld [vmem:[%s4 + $0x8] sm:$0xff]
      %v313 = vld [vmem:[%s4 + $0x10] sm:$0xff]
      %v314 = vld [vmem:[%s4 + $0x18] sm:$0xff]
      %v315 = vld [vmem:[%s279] sm:$0x1]
      %v316 = vld [vmem:[%s279 + $0xc] sm:$0x1]
      %v317 = vld [vmem:[%s279 + $0x18] sm:$0x1]
      %v318 = vld [vmem:[%s279 + $0x24] sm:$0x1]
      %v319 = vld [vmem:[%s289] sm:$0x1]
      %v320 = vld [vmem:[%s289 + $0xc] sm:$0x1]
      %v321 = vld [vmem:[%s289 + $0x18] sm:$0x1]
      %v322 = vld [vmem:[%s289 + $0x24] sm:$0x1]
      %v327 = vunpack.c.l.b16 %v315
      %v328 = vunpack.c.l.b16 %v316
      %v329 = vunpack.c.l.b16 %v317
      %v330 = vunpack.c.l.b16 %v318
      %v331 = vpack.c.b16 %v327, %v327
      %v332 = vpack.c.b16 %v328, %v328
      %v333 = vpack.c.b16 %v329, %v329
      %v334 = vpack.c.b16 %v330, %v330
      %v335 = vunpack.c.l.b16 %v331
      %v336 = vunpack.c.l.b16 %v332
      %v337 = vunpack.c.l.b16 %v333
      %v338 = vunpack.c.l.b16 %v334
      %v339 = vrot.slane %v336, 7
      %vm340 = vcmask 1041409
      %v341 = vsel %vm340, %v339, %v335
      %v342 = vrot.slane %v337, 6
      %vm343 = vcmask 1042434
      %v344 = vsel %vm343, %v342, %v341
      %v345 = vrot.slane %v338, 5
      %vm346 = vcmask 1043459
      %v347 = vsel %vm346, %v345, %v344
      %v348 = vpack.c.b16 %v347, %v347
      %v349 = vrot.slane %v335, 4
      %v350 = vrot.slane %v336, 3
      %vm351 = vcmask 1045509
      %v352 = vsel %vm351, %v350, %v349
      %v353 = vrot.slane %v337, 2
      %vm354 = vcmask 1046534
      %v355 = vsel %vm354, %v353, %v352
      %v356 = vrot.slane %v338, 1
      %vm357 = vcmask 1047559
      %v358 = vsel %vm357, %v356, %v355
      %v359 = vpack.c.b16 %v358, %v358
      %360 = vrot.lane.b32.xlu0 %v359, 127
      %v361 = vpop.permute.xlu0 %360
      %v366 = vunpack.c.l.b16 %v319
      %v367 = vunpack.c.l.b16 %v320
      %v368 = vunpack.c.l.b16 %v321
      %v369 = vunpack.c.l.b16 %v322
      %v370 = vpack.c.b16 %v366, %v366
      %v371 = vpack.c.b16 %v367, %v367
      %v372 = vpack.c.b16 %v368, %v368
      %v373 = vpack.c.b16 %v369, %v369
      %v374 = vunpack.c.h.b16 %v370
      %v375 = vunpack.c.h.b16 %v371
      %v376 = vunpack.c.h.b16 %v372
      %v377 = vunpack.c.h.b16 %v373
      %v378 = vrot.slane %v375, 7
      %v379 = vsel %vm340, %v378, %v374
      %v380 = vrot.slane %v376, 6
      %v381 = vsel %vm343, %v380, %v379
      %v382 = vrot.slane %v377, 5
      %v383 = vsel %vm346, %v382, %v381
      %v384 = vpack.c.b16 %v383, %v383
      %v385 = vunpack.c.l.b16 %v370
      %v386 = vunpack.c.l.b16 %v371
      %v387 = vunpack.c.l.b16 %v372
      %v388 = vunpack.c.l.b16 %v373
      %v389 = vrot.slane %v385, 4
      %v390 = vrot.slane %v386, 3
      %v391 = vsel %vm351, %v390, %v389
      %v392 = vrot.slane %v387, 2
      %v393 = vsel %vm354, %v392, %v391
      %v394 = vrot.slane %v388, 1
      %v395 = vsel %vm357, %v394, %v393
      %v396 = vpack.c.b16 %v395, %v395
      %397 = vrot.lane.b32.xlu0 %v396, 127
      %v398 = vpop.permute.xlu0 %397
      %vm399 = vcmask 1041408
      %v402 = vsel %vm399, %v348, %v361
      %vm403 = vcmask 1043456
      %v405 = vsel %vm403, %v402, %v384
      %vm406 = vcmask 1045504
      %v408 = vsel %vm406, %v405, %v398
      %v414 = vunpack.c.l.b16 %v303
      %v415 = vunpack.c.l.b16 %v304
      %v416 = vunpack.c.l.b16 %v305
      %v417 = vunpack.c.l.b16 %v306
      %v418 = vpack.c.b16 %v415, %v414
      %v419 = vpack.c.b16 %v417, %v416
      %vm420 = vcmask 130048
      %v422 = vsel %vm420, %v418, 0
      %v425 = vsel %vm420, %v419, 0
      %427 = vmatpush.bf16.msra.mxu0 0
      %428 = vmatpush.bf16.msra.mxu0 0
      %429 = vmatpush.bf16.msra.mxu0 0
      %430 = vmatpush.bf16.msra.mxu0 0
      %431 = vmatpush.bf16.msra.mxu0 0
      %432 = vmatpush.bf16.msra.mxu0 0
      %433 = vmatpush.bf16.msra.mxu0 0
      %434 = vmatpush.bf16.msra.mxu0 %v408
      %435 = vmatmul.bf16.gmra.mxu0 %v422
      %v436 = vpop.f32.mrf.mxu0
      %v437 = vadd.f32 0.0, %v436
      %v438 = vpop.f32.mrf.mxu0
      %v439 = vadd.f32 0.0, %v438
      %440 = vmatmul.bf16.gmra.mxu0 %v425
      %v441 = vpop.f32.mrf.mxu0
      %v442 = vadd.f32 0.0, %v441
      %v443 = vpop.f32.mrf.mxu0
      %v444 = vadd.f32 0.0, %v443
      %445 = vdwg.mxu0
      %447 = vset.pattern.permute.xlu0 0
      %448 = vperm.xlu0 %447, %v307
      %v449 = vpop.permute.xlu0 %448
      %452 = vset.pattern.permute.xlu0 0
      %453 = vperm.xlu0 %452, %v308
      %v454 = vpop.permute.xlu0 %453
      %457 = vset.pattern.permute.xlu0 0
      %458 = vperm.xlu0 %457, %v309
      %v459 = vpop.permute.xlu0 %458
      %462 = vset.pattern.permute.xlu0 0
      %463 = vperm.xlu0 %462, %v310
      %v464 = vpop.permute.xlu0 %463
      %v466 = vmul.f32 %v437, %v449
      %v467 = vmul.f32 %v439, %v454
      %v468 = vmul.f32 %v442, %v459
      %v469 = vmul.f32 %v444, %v464
      %471 = vset.pattern.permute.xlu0 0
      %472 = vperm.xlu0 %471, %v311
      %v473 = vpop.permute.xlu0 %472
      %476 = vset.pattern.permute.xlu0 0
      %477 = vperm.xlu0 %476, %v312
      %v478 = vpop.permute.xlu0 %477
      %481 = vset.pattern.permute.xlu0 0
      %482 = vperm.xlu0 %481, %v313
      %v483 = vpop.permute.xlu0 %482
      %486 = vset.pattern.permute.xlu0 0
      %487 = vperm.xlu0 %486, %v314
      %v488 = vpop.permute.xlu0 %487
      %v490 = vadd.f32 %v466, %v473
      %v491 = vadd.f32 %v467, %v478
      %v492 = vadd.f32 %v468, %v483
      %v493 = vadd.f32 %v469, %v488
      %v494 = vmax.f32 %v490, 0.0
      %v495 = vmax.f32 %v491, 0.0
      %v496 = vmax.f32 %v492, 0.0
      %v497 = vmax.f32 %v493, 0.0
      %v498 = vpack.c.bf16 %v494, %v494
      %v499 = vpack.c.bf16 %v495, %v495
      %v500 = vpack.c.bf16 %v496, %v496
      %v501 = vpack.c.bf16 %v497, %v497
      %vm502 = vcmask 134144
      %503 = vst.msk [vmem:[%s300] sm:$0xf] %vm502, %v498
      %504 = vst.msk [vmem:[%s300 + $0x4] sm:$0xf] %vm502, %v499
      %505 = vst.msk [vmem:[%s300 + $0x8] sm:$0xf] %vm502, %v500
      %506 = vst.msk [vmem:[%s300 + $0xc] sm:$0xf] %vm502, %v501
      %v507 = vld [vmem:[%s279] sm:$0x1]
      %v508 = vld [vmem:[%s279 + $0xc] sm:$0x1]
      %v509 = vld [vmem:[%s279 + $0x18] sm:$0x1]
      %v510 = vld [vmem:[%s279 + $0x24] sm:$0x1]
      %v511 = vld [vmem:[%s289] sm:$0x1]
      %v512 = vld [vmem:[%s289 + $0xc] sm:$0x1]
      %v513 = vld [vmem:[%s289 + $0x18] sm:$0x1]
      %v514 = vld [vmem:[%s289 + $0x24] sm:$0x1]
      %v519 = vunpack.c.l.b16 %v507
      %v520 = vunpack.c.l.b16 %v508
      %v521 = vunpack.c.l.b16 %v509
      %v522 = vunpack.c.l.b16 %v510
      %v523 = vpack.c.b16 %v519, %v519
      %v524 = vpack.c.b16 %v520, %v520
      %v525 = vpack.c.b16 %v521, %v521
      %v526 = vpack.c.b16 %v522, %v522
      %v527 = vunpack.c.l.b16 %v523
      %v528 = vunpack.c.l.b16 %v524
      %v529 = vunpack.c.l.b16 %v525
      %v530 = vunpack.c.l.b16 %v526
      %v531 = vrot.slane %v527, 1
      %v532 = vsel %vm340, %v528, %v531
      %v533 = vrot.slane %v529, 7
      %v534 = vsel %vm343, %v533, %v532
      %v535 = vrot.slane %v530, 6
      %v536 = vsel %vm346, %v535, %v534
      %v537 = vpack.c.b16 %v536, %v536
      %v538 = vrot.slane %v527, 5
      %v539 = vrot.slane %v528, 4
      %v540 = vsel %vm351, %v539, %v538
      %v541 = vrot.slane %v529, 3
      %v542 = vsel %vm354, %v541, %v540
      %v543 = vrot.slane %v530, 2
      %v544 = vsel %vm357, %v543, %v542
      %v545 = vpack.c.b16 %v544, %v544
      %546 = vrot.lane.b32.xlu0 %v545, 127
      %v547 = vpop.permute.xlu0 %546
      %v552 = vunpack.c.l.b16 %v511
      %v553 = vunpack.c.l.b16 %v512
      %v554 = vunpack.c.l.b16 %v513
      %v555 = vunpack.c.l.b16 %v514
      %v556 = vpack.c.b16 %v552, %v552
      %v557 = vpack.c.b16 %v553, %v553
      %v558 = vpack.c.b16 %v554, %v554
      %v559 = vpack.c.b16 %v555, %v555
      %v560 = vunpack.c.l.b16 %v556
      %v561 = vunpack.c.l.b16 %v557
      %v562 = vunpack.c.l.b16 %v558
      %v563 = vunpack.c.l.b16 %v559
      %v564 = vrot.slane %v560, 1
      %v565 = vsel %vm340, %v561, %v564
      %v566 = vrot.slane %v562, 7
      %v567 = vsel %vm343, %v566, %v565
      %v568 = vrot.slane %v563, 6
      %v569 = vsel %vm346, %v568, %v567
      %v570 = vpack.c.b16 %v569, %v569
      %v571 = vrot.slane %v560, 5
      %v572 = vrot.slane %v561, 4
      %v573 = vsel %vm351, %v572, %v571
      %v574 = vrot.slane %v562, 3
      %v575 = vsel %vm354, %v574, %v573
      %v576 = vrot.slane %v563, 2
      %v577 = vsel %vm357, %v576, %v575
      %v578 = vpack.c.b16 %v577, %v577
      %579 = vrot.lane.b32.xlu0 %v578, 127
      %v580 = vpop.permute.xlu0 %579
      %v583 = vsel %vm399, %v537, %v547
      %v585 = vsel %vm403, %v583, %v570
      %v587 = vsel %vm406, %v585, %v580
      %589 = vmatpush.bf16.msra.mxu0 0
      %590 = vmatpush.bf16.msra.mxu0 0
      %591 = vmatpush.bf16.msra.mxu0 0
      %592 = vmatpush.bf16.msra.mxu0 0
      %593 = vmatpush.bf16.msra.mxu0 0
      %594 = vmatpush.bf16.msra.mxu0 0
      %595 = vmatpush.bf16.msra.mxu0 0
      %596 = vmatpush.bf16.msra.mxu0 %v587
      %597 = vmatmul.bf16.gmra.mxu0 %v422
      %v598 = vpop.f32.mrf.mxu0
      %v599 = vadd.f32 0.0, %v598
      %v600 = vpop.f32.mrf.mxu0
      %v601 = vadd.f32 0.0, %v600
      %602 = vmatmul.bf16.gmra.mxu0 %v425
      %v603 = vpop.f32.mrf.mxu0
      %v604 = vadd.f32 0.0, %v603
      %v605 = vpop.f32.mrf.mxu0
      %v606 = vadd.f32 0.0, %v605
      %607 = vdwg.mxu0
      %v608 = vmul.f32 %v599, %v449
      %v609 = vmul.f32 %v601, %v454
      %v610 = vmul.f32 %v604, %v459
      %v611 = vmul.f32 %v606, %v464
      %v612 = vadd.f32 %v608, %v473
      %v613 = vadd.f32 %v609, %v478
      %v614 = vadd.f32 %v610, %v483
      %v615 = vadd.f32 %v611, %v488
      %v616 = vmax.f32 %v612, 0.0
      %v617 = vmax.f32 %v613, 0.0
      %v618 = vmax.f32 %v614, 0.0
      %v619 = vmax.f32 %v615, 0.0
      %v620 = vpack.c.bf16 %v616, %v616
      %v621 = vpack.c.bf16 %v617, %v617
      %v622 = vpack.c.bf16 %v618, %v618
      %v623 = vpack.c.bf16 %v619, %v619
      %s624 = scalar_lea.vmem %s300, 16
      %625 = vst.msk [vmem:[%s624] sm:$0xf] %vm502, %v620
      %626 = vst.msk [vmem:[%s624 + $0x4] sm:$0xf] %vm502, %v621
      %627 = vst.msk [vmem:[%s624 + $0x8] sm:$0xf] %vm502, %v622
      %628 = vst.msk [vmem:[%s624 + $0xc] sm:$0xf] %vm502, %v623
      %v629 = vld [vmem:[%s279] sm:$0x2]
      %v630 = vld [vmem:[%s279 + $0xc] sm:$0x2]
      %v631 = vld [vmem:[%s279 + $0x18] sm:$0x2]
      %v632 = vld [vmem:[%s279 + $0x24] sm:$0x2]
      %v633 = vld [vmem:[%s289] sm:$0x2]
      %v634 = vld [vmem:[%s289 + $0xc] sm:$0x2]
      %v635 = vld [vmem:[%s289 + $0x18] sm:$0x2]
      %v636 = vld [vmem:[%s289 + $0x24] sm:$0x2]
      %v641 = vunpack.c.l.b16 %v629
      %v642 = vunpack.c.l.b16 %v630
      %v643 = vunpack.c.l.b16 %v631
      %v644 = vunpack.c.l.b16 %v632
      %v645 = vpack.c.b16 %v641, %v641
      %v646 = vpack.c.b16 %v642, %v642
      %v647 = vpack.c.b16 %v643, %v643
      %v648 = vpack.c.b16 %v644, %v644
      %v649 = vunpack.c.l.b16 %v645
      %v650 = vunpack.c.l.b16 %v646
      %v651 = vunpack.c.l.b16 %v647
      %v652 = vunpack.c.l.b16 %v648
      %v653 = vrot.slane %v649, 2
      %v654 = vrot.slane %v650, 1
      %v655 = vsel %vm340, %v654, %v653
      %v656 = vsel %vm343, %v651, %v655
      %v657 = vrot.slane %v652, 7
      %v658 = vsel %vm346, %v657, %v656
      %v659 = vpack.c.b16 %v658, %v658
      %v660 = vrot.slane %v649, 6
      %v661 = vrot.slane %v650, 5
      %v662 = vsel %vm351, %v661, %v660
      %v663 = vrot.slane %v651, 4
      %v664 = vsel %vm354, %v663, %v662
      %v665 = vrot.slane %v652, 3
      %v666 = vsel %vm357, %v665, %v664
      %v667 = vpack.c.b16 %v666, %v666
      %668 = vrot.lane.b32.xlu0 %v667, 127
      %v669 = vpop.permute.xlu0 %668
      %v674 = vunpack.c.l.b16 %v633
      %v675 = vunpack.c.l.b16 %v634
      %v676 = vunpack.c.l.b16 %v635
      %v677 = vunpack.c.l.b16 %v636
      %v678 = vpack.c.b16 %v674, %v674
      %v679 = vpack.c.b16 %v675, %v675
      %v680 = vpack.c.b16 %v676, %v676
      %v681 = vpack.c.b16 %v677, %v677
      %v682 = vunpack.c.l.b16 %v678
      %v683 = vunpack.c.l.b16 %v679
      %v684 = vunpack.c.l.b16 %v680
      %v685 = vunpack.c.l.b16 %v681
      %v686 = vrot.slane %v682, 2
      %v687 = vrot.slane %v683, 1
      %v688 = vsel %vm340, %v687, %v686
      %v689 = vsel %vm343, %v684, %v688
      %v690 = vrot.slane %v685, 7
      %v691 = vsel %vm346, %v690, %v689
      %v692 = vpack.c.b16 %v691, %v691
      %v693 = vrot.slane %v682, 6
      %v694 = vrot.slane %v683, 5
      %v695 = vsel %vm351, %v694, %v693
      %v696 = vrot.slane %v684, 4
      %v697 = vsel %vm354, %v696, %v695
      %v698 = vrot.slane %v685, 3
      %v699 = vsel %vm357, %v698, %v697
      %v700 = vpack.c.b16 %v699, %v699
      %701 = vrot.lane.b32.xlu0 %v700, 127
      %v702 = vpop.permute.xlu0 %701
      %v705 = vsel %vm399, %v659, %v669
      %v707 = vsel %vm403, %v705, %v692
      %v709 = vsel %vm406, %v707, %v702
      %711 = vmatpush.bf16.msra.mxu0 0
      %712 = vmatpush.bf16.msra.mxu0 0
      %713 = vmatpush.bf16.msra.mxu0 0
      %714 = vmatpush.bf16.msra.mxu0 0
      %715 = vmatpush.bf16.msra.mxu0 0
      %716 = vmatpush.bf16.msra.mxu0 0
      %717 = vmatpush.bf16.msra.mxu0 0
      %718 = vmatpush.bf16.msra.mxu0 %v709
      %719 = vmatmul.bf16.gmra.mxu0 %v422
      %v720 = vpop.f32.mrf.mxu0
      %v721 = vadd.f32 0.0, %v720
      %v722 = vpop.f32.mrf.mxu0
      %v723 = vadd.f32 0.0, %v722
      %724 = vmatmul.bf16.gmra.mxu0 %v425
      %v725 = vpop.f32.mrf.mxu0
      %v726 = vadd.f32 0.0, %v725
      %v727 = vpop.f32.mrf.mxu0
      %v728 = vadd.f32 0.0, %v727
      %729 = vdwg.mxu0
      %v730 = vmul.f32 %v721, %v449
      %v731 = vmul.f32 %v723, %v454
      %v732 = vmul.f32 %v726, %v459
      %v733 = vmul.f32 %v728, %v464
      %v734 = vadd.f32 %v730, %v473
      %v735 = vadd.f32 %v731, %v478
      %v736 = vadd.f32 %v732, %v483
      %v737 = vadd.f32 %v733, %v488
      %v738 = vmax.f32 %v734, 0.0
      %v739 = vmax.f32 %v735, 0.0
      %v740 = vmax.f32 %v736, 0.0
      %v741 = vmax.f32 %v737, 0.0
      %v742 = vpack.c.bf16 %v738, %v738
      %v743 = vpack.c.bf16 %v739, %v739
      %v744 = vpack.c.bf16 %v740, %v740
      %v745 = vpack.c.bf16 %v741, %v741
      %s746 = scalar_lea.vmem %s300, 32
      %747 = vst.msk [vmem:[%s746] sm:$0xf] %vm502, %v742
      %748 = vst.msk [vmem:[%s746 + $0x4] sm:$0xf] %vm502, %v743
      %749 = vst.msk [vmem:[%s746 + $0x8] sm:$0xf] %vm502, %v744
      %750 = vst.msk [vmem:[%s746 + $0xc] sm:$0xf] %vm502, %v745
      %v751 = vld [vmem:[%s279] sm:$0x2]
      %v752 = vld [vmem:[%s279 + $0xc] sm:$0x2]
      %v753 = vld [vmem:[%s279 + $0x18] sm:$0x2]
      %v754 = vld [vmem:[%s279 + $0x24] sm:$0x2]
      %v755 = vld [vmem:[%s289] sm:$0x2]
      %v756 = vld [vmem:[%s289 + $0xc] sm:$0x2]
      %v757 = vld [vmem:[%s289 + $0x18] sm:$0x2]
      %v758 = vld [vmem:[%s289 + $0x24] sm:$0x2]
      %v763 = vunpack.c.l.b16 %v751
      %v764 = vunpack.c.l.b16 %v752
      %v765 = vunpack.c.l.b16 %v753
      %v766 = vunpack.c.l.b16 %v754
      %v767 = vpack.c.b16 %v763, %v763
      %v768 = vpack.c.b16 %v764, %v764
      %v769 = vpack.c.b16 %v765, %v765
      %v770 = vpack.c.b16 %v766, %v766
      %v771 = vunpack.c.l.b16 %v767
      %v772 = vunpack.c.l.b16 %v768
      %v773 = vunpack.c.l.b16 %v769
      %v774 = vunpack.c.l.b16 %v770
      %v775 = vrot.slane %v771, 3
      %v776 = vrot.slane %v772, 2
      %v777 = vsel %vm340, %v776, %v775
      %v778 = vrot.slane %v773, 1
      %v779 = vsel %vm343, %v778, %v777
      %v780 = vsel %vm346, %v774, %v779
      %v781 = vpack.c.b16 %v780, %v780
      %v782 = vrot.slane %v771, 7
      %v783 = vrot.slane %v772, 6
      %v784 = vsel %vm351, %v783, %v782
      %v785 = vrot.slane %v773, 5
      %v786 = vsel %vm354, %v785, %v784
      %v787 = vrot.slane %v774, 4
      %v788 = vsel %vm357, %v787, %v786
      %v789 = vpack.c.b16 %v788, %v788
      %790 = vrot.lane.b32.xlu0 %v789, 127
      %v791 = vpop.permute.xlu0 %790
      %v796 = vunpack.c.l.b16 %v755
      %v797 = vunpack.c.l.b16 %v756
      %v798 = vunpack.c.l.b16 %v757
      %v799 = vunpack.c.l.b16 %v758
      %v800 = vpack.c.b16 %v796, %v796
      %v801 = vpack.c.b16 %v797, %v797
      %v802 = vpack.c.b16 %v798, %v798
      %v803 = vpack.c.b16 %v799, %v799
      %v804 = vunpack.c.l.b16 %v800
      %v805 = vunpack.c.l.b16 %v801
      %v806 = vunpack.c.l.b16 %v802
      %v807 = vunpack.c.l.b16 %v803
      %v808 = vrot.slane %v804, 3
      %v809 = vrot.slane %v805, 2
      %v810 = vsel %vm340, %v809, %v808
      %v811 = vrot.slane %v806, 1
      %v812 = vsel %vm343, %v811, %v810
      %v813 = vsel %vm346, %v807, %v812
      %v814 = vpack.c.b16 %v813, %v813
      %v815 = vrot.slane %v804, 7
      %v816 = vrot.slane %v805, 6
      %v817 = vsel %vm351, %v816, %v815
      %v818 = vrot.slane %v806, 5
      %v819 = vsel %vm354, %v818, %v817
      %v820 = vrot.slane %v807, 4
      %v821 = vsel %vm357, %v820, %v819
      %v822 = vpack.c.b16 %v821, %v821
      %823 = vrot.lane.b32.xlu0 %v822, 127
      %v824 = vpop.permute.xlu0 %823
      %v827 = vsel %vm399, %v781, %v791
      %v829 = vsel %vm403, %v827, %v814
      %v831 = vsel %vm406, %v829, %v824
      %833 = vmatpush.bf16.msra.mxu0 0
      %834 = vmatpush.bf16.msra.mxu0 0
      %835 = vmatpush.bf16.msra.mxu0 0
      %836 = vmatpush.bf16.msra.mxu0 0
      %837 = vmatpush.bf16.msra.mxu0 0
      %838 = vmatpush.bf16.msra.mxu0 0
      %839 = vmatpush.bf16.msra.mxu0 0
      %840 = vmatpush.bf16.msra.mxu0 %v831
      %841 = vmatmul.bf16.gmra.mxu0 %v422
      %v842 = vpop.f32.mrf.mxu0
      %v843 = vadd.f32 0.0, %v842
      %v844 = vpop.f32.mrf.mxu0
      %v845 = vadd.f32 0.0, %v844
      %846 = vmatmul.bf16.gmra.mxu0 %v425
      %v847 = vpop.f32.mrf.mxu0
      %v848 = vadd.f32 0.0, %v847
      %v849 = vpop.f32.mrf.mxu0
      %v850 = vadd.f32 0.0, %v849
      %851 = vdwg.mxu0
      %v852 = vmul.f32 %v843, %v449
      %v853 = vmul.f32 %v845, %v454
      %v854 = vmul.f32 %v848, %v459
      %v855 = vmul.f32 %v850, %v464
      %v856 = vadd.f32 %v852, %v473
      %v857 = vadd.f32 %v853, %v478
      %v858 = vadd.f32 %v854, %v483
      %v859 = vadd.f32 %v855, %v488
      %v860 = vmax.f32 %v856, 0.0
      %v861 = vmax.f32 %v857, 0.0
      %v862 = vmax.f32 %v858, 0.0
      %v863 = vmax.f32 %v859, 0.0
      %v864 = vpack.c.bf16 %v860, %v860
      %v865 = vpack.c.bf16 %v861, %v861
      %v866 = vpack.c.bf16 %v862, %v862
      %v867 = vpack.c.bf16 %v863, %v863
      %s868 = scalar_lea.vmem %s300, 48
      %869 = vst.msk [vmem:[%s868] sm:$0xf] %vm502, %v864
      %870 = vst.msk [vmem:[%s868 + $0x4] sm:$0xf] %vm502, %v865
      %871 = vst.msk [vmem:[%s868 + $0x8] sm:$0xf] %vm502, %v866
      %872 = vst.msk [vmem:[%s868 + $0xc] sm:$0xf] %vm502, %v867
      %v873 = vld [vmem:[%s279] sm:$0x4]
      %v874 = vld [vmem:[%s279 + $0xc] sm:$0x4]
      %v875 = vld [vmem:[%s279 + $0x18] sm:$0x4]
      %v876 = vld [vmem:[%s279 + $0x24] sm:$0x4]
      %v877 = vld [vmem:[%s289] sm:$0x4]
      %v878 = vld [vmem:[%s289 + $0xc] sm:$0x4]
      %v879 = vld [vmem:[%s289 + $0x18] sm:$0x4]
      %v880 = vld [vmem:[%s289 + $0x24] sm:$0x4]
      %v885 = vunpack.c.l.b16 %v873
      %v886 = vunpack.c.l.b16 %v874
      %v887 = vunpack.c.l.b16 %v875
      %v888 = vunpack.c.l.b16 %v876
      %v889 = vpack.c.b16 %v885, %v885
      %v890 = vpack.c.b16 %v886, %v886
      %v891 = vpack.c.b16 %v887, %v887
      %v892 = vpack.c.b16 %v888, %v888
      %v893 = vunpack.c.l.b16 %v889
      %v894 = vunpack.c.l.b16 %v890
      %v895 = vunpack.c.l.b16 %v891
      %v896 = vunpack.c.l.b16 %v892
      %v897 = vrot.slane %v893, 4
      %v898 = vrot.slane %v894, 3
      %v899 = vsel %vm340, %v898, %v897
      %v900 = vrot.slane %v895, 2
      %v901 = vsel %vm343, %v900, %v899
      %v902 = vrot.slane %v896, 1
      %v903 = vsel %vm346, %v902, %v901
      %v904 = vpack.c.b16 %v903, %v903
      %v905 = vrot.slane %v894, 7
      %v906 = vsel %vm351, %v905, %v893
      %v907 = vrot.slane %v895, 6
      %v908 = vsel %vm354, %v907, %v906
      %v909 = vrot.slane %v896, 5
      %v910 = vsel %vm357, %v909, %v908
      %v911 = vpack.c.b16 %v910, %v910
      %912 = vrot.lane.b32.xlu0 %v911, 127
      %v913 = vpop.permute.xlu0 %912
      %v918 = vunpack.c.l.b16 %v877
      %v919 = vunpack.c.l.b16 %v878
      %v920 = vunpack.c.l.b16 %v879
      %v921 = vunpack.c.l.b16 %v880
      %v922 = vpack.c.b16 %v918, %v918
      %v923 = vpack.c.b16 %v919, %v919
      %v924 = vpack.c.b16 %v920, %v920
      %v925 = vpack.c.b16 %v921, %v921
      %v926 = vunpack.c.l.b16 %v922
      %v927 = vunpack.c.l.b16 %v923
      %v928 = vunpack.c.l.b16 %v924
      %v929 = vunpack.c.l.b16 %v925
      %v930 = vrot.slane %v926, 4
      %v931 = vrot.slane %v927, 3
      %v932 = vsel %vm340, %v931, %v930
      %v933 = vrot.slane %v928, 2
      %v934 = vsel %vm343, %v933, %v932
      %v935 = vrot.slane %v929, 1
      %v936 = vsel %vm346, %v935, %v934
      %v937 = vpack.c.b16 %v936, %v936
      %v938 = vunpack.c.h.b16 %v922
      %v939 = vunpack.c.h.b16 %v923
      %v940 = vunpack.c.h.b16 %v924
      %v941 = vunpack.c.h.b16 %v925
      %v942 = vrot.slane %v939, 7
      %v943 = vsel %vm351, %v942, %v938
      %v944 = vrot.slane %v940, 6
      %v945 = vsel %vm354, %v944, %v943
      %v946 = vrot.slane %v941, 5
      %v947 = vsel %vm357, %v946, %v945
      %v948 = vpack.c.b16 %v947, %v947
      %949 = vrot.lane.b32.xlu0 %v948, 127
      %v950 = vpop.permute.xlu0 %949
      %v953 = vsel %vm399, %v904, %v913
      %v955 = vsel %vm403, %v953, %v937
      %v957 = vsel %vm406, %v955, %v950
      %959 = vmatpush.bf16.msra.mxu0 0
      %960 = vmatpush.bf16.msra.mxu0 0
      %961 = vmatpush.bf16.msra.mxu0 0
      %962 = vmatpush.bf16.msra.mxu0 0
      %963 = vmatpush.bf16.msra.mxu0 0
      %964 = vmatpush.bf16.msra.mxu0 0
      %965 = vmatpush.bf16.msra.mxu0 0
      %966 = vmatpush.bf16.msra.mxu0 %v957
      %967 = vmatmul.bf16.gmra.mxu0 %v422
      %v968 = vpop.f32.mrf.mxu0
      %v969 = vadd.f32 0.0, %v968
      %v970 = vpop.f32.mrf.mxu0
      %v971 = vadd.f32 0.0, %v970
      %972 = vmatmul.bf16.gmra.mxu0 %v425
      %v973 = vpop.f32.mrf.mxu0
      %v974 = vadd.f32 0.0, %v973
      %v975 = vpop.f32.mrf.mxu0
      %v976 = vadd.f32 0.0, %v975
      %977 = vdwg.mxu0
      %v978 = vmul.f32 %v969, %v449
      %v979 = vmul.f32 %v971, %v454
      %v980 = vmul.f32 %v974, %v459
      %v981 = vmul.f32 %v976, %v464
      %v982 = vadd.f32 %v978, %v473
      %v983 = vadd.f32 %v979, %v478
      %v984 = vadd.f32 %v980, %v483
      %v985 = vadd.f32 %v981, %v488
      %v986 = vmax.f32 %v982, 0.0
      %v987 = vmax.f32 %v983, 0.0
      %v988 = vmax.f32 %v984, 0.0
      %v989 = vmax.f32 %v985, 0.0
      %v990 = vpack.c.bf16 %v986, %v986
      %v991 = vpack.c.bf16 %v987, %v987
      %v992 = vpack.c.bf16 %v988, %v988
      %v993 = vpack.c.bf16 %v989, %v989
      %s994 = scalar_lea.vmem %s300, 64
      %995 = vst.msk [vmem:[%s994] sm:$0xf] %vm502, %v990
      %996 = vst.msk [vmem:[%s994 + $0x4] sm:$0xf] %vm502, %v991
      %997 = vst.msk [vmem:[%s994 + $0x8] sm:$0xf] %vm502, %v992
      %998 = vst.msk [vmem:[%s994 + $0xc] sm:$0xf] %vm502, %v993
      %v999 = vld [vmem:[%s279] sm:$0x4]
      %v1000 = vld [vmem:[%s279 + $0xc] sm:$0x4]
      %v1001 = vld [vmem:[%s279 + $0x18] sm:$0x4]
      %v1002 = vld [vmem:[%s279 + $0x24] sm:$0x4]
      %v1003 = vld [vmem:[%s289] sm:$0x4]
      %v1004 = vld [vmem:[%s289 + $0xc] sm:$0x4]
      %v1005 = vld [vmem:[%s289 + $0x18] sm:$0x4]
      %v1006 = vld [vmem:[%s289 + $0x24] sm:$0x4]
      %v1011 = vunpack.c.l.b16 %v999
      %v1012 = vunpack.c.l.b16 %v1000
      %v1013 = vunpack.c.l.b16 %v1001
      %v1014 = vunpack.c.l.b16 %v1002
      %v1015 = vpack.c.b16 %v1011, %v1011
      %v1016 = vpack.c.b16 %v1012, %v1012
      %v1017 = vpack.c.b16 %v1013, %v1013
      %v1018 = vpack.c.b16 %v1014, %v1014
      %v1019 = vunpack.c.l.b16 %v1015
      %v1020 = vunpack.c.l.b16 %v1016
      %v1021 = vunpack.c.l.b16 %v1017
      %v1022 = vunpack.c.l.b16 %v1018
      %v1023 = vrot.slane %v1019, 5
      %v1024 = vrot.slane %v1020, 4
      %v1025 = vsel %vm340, %v1024, %v1023
      %v1026 = vrot.slane %v1021, 3
      %v1027 = vsel %vm343, %v1026, %v1025
      %v1028 = vrot.slane %v1022, 2
      %v1029 = vsel %vm346, %v1028, %v1027
      %v1030 = vpack.c.b16 %v1029, %v1029
      %v1031 = vrot.slane %v1019, 1
      %v1032 = vsel %vm351, %v1020, %v1031
      %v1033 = vrot.slane %v1021, 7
      %v1034 = vsel %vm354, %v1033, %v1032
      %v1035 = vrot.slane %v1022, 6
      %v1036 = vsel %vm357, %v1035, %v1034
      %v1037 = vpack.c.b16 %v1036, %v1036
      %1038 = vrot.lane.b32.xlu0 %v1037, 127
      %v1039 = vpop.permute.xlu0 %1038
      %v1044 = vunpack.c.l.b16 %v1003
      %v1045 = vunpack.c.l.b16 %v1004
      %v1046 = vunpack.c.l.b16 %v1005
      %v1047 = vunpack.c.l.b16 %v1006
      %v1048 = vpack.c.b16 %v1044, %v1044
      %v1049 = vpack.c.b16 %v1045, %v1045
      %v1050 = vpack.c.b16 %v1046, %v1046
      %v1051 = vpack.c.b16 %v1047, %v1047
      %v1052 = vunpack.c.l.b16 %v1048
      %v1053 = vunpack.c.l.b16 %v1049
      %v1054 = vunpack.c.l.b16 %v1050
      %v1055 = vunpack.c.l.b16 %v1051
      %v1056 = vrot.slane %v1052, 5
      %v1057 = vrot.slane %v1053, 4
      %v1058 = vsel %vm340, %v1057, %v1056
      %v1059 = vrot.slane %v1054, 3
      %v1060 = vsel %vm343, %v1059, %v1058
      %v1061 = vrot.slane %v1055, 2
      %v1062 = vsel %vm346, %v1061, %v1060
      %v1063 = vpack.c.b16 %v1062, %v1062
      %v1064 = vrot.slane %v1052, 1
      %v1065 = vsel %vm351, %v1053, %v1064
      %v1066 = vrot.slane %v1054, 7
      %v1067 = vsel %vm354, %v1066, %v1065
      %v1068 = vrot.slane %v1055, 6
      %v1069 = vsel %vm357, %v1068, %v1067
      %v1070 = vpack.c.b16 %v1069, %v1069
      %1071 = vrot.lane.b32.xlu0 %v1070, 127
      %v1072 = vpop.permute.xlu0 %1071
      %v1075 = vsel %vm399, %v1030, %v1039
      %v1077 = vsel %vm403, %v1075, %v1063
      %v1079 = vsel %vm406, %v1077, %v1072
      %1081 = vmatpush.bf16.msra.mxu0 0
      %1082 = vmatpush.bf16.msra.mxu0 0
      %1083 = vmatpush.bf16.msra.mxu0 0
      %1084 = vmatpush.bf16.msra.mxu0 0
      %1085 = vmatpush.bf16.msra.mxu0 0
      %1086 = vmatpush.bf16.msra.mxu0 0
      %1087 = vmatpush.bf16.msra.mxu0 0
      %1088 = vmatpush.bf16.msra.mxu0 %v1079
      %1089 = vmatmul.bf16.gmra.mxu0 %v422
      %v1090 = vpop.f32.mrf.mxu0
      %v1091 = vadd.f32 0.0, %v1090
      %v1092 = vpop.f32.mrf.mxu0
      %v1093 = vadd.f32 0.0, %v1092
      %1094 = vmatmul.bf16.gmra.mxu0 %v425
      %v1095 = vpop.f32.mrf.mxu0
      %v1096 = vadd.f32 0.0, %v1095
      %v1097 = vpop.f32.mrf.mxu0
      %v1098 = vadd.f32 0.0, %v1097
      %1099 = vdwg.mxu0
      %v1100 = vmul.f32 %v1091, %v449
      %v1101 = vmul.f32 %v1093, %v454
      %v1102 = vmul.f32 %v1096, %v459
      %v1103 = vmul.f32 %v1098, %v464
      %v1104 = vadd.f32 %v1100, %v473
      %v1105 = vadd.f32 %v1101, %v478
      %v1106 = vadd.f32 %v1102, %v483
      %v1107 = vadd.f32 %v1103, %v488
      %v1108 = vmax.f32 %v1104, 0.0
      %v1109 = vmax.f32 %v1105, 0.0
      %v1110 = vmax.f32 %v1106, 0.0
      %v1111 = vmax.f32 %v1107, 0.0
      %v1112 = vpack.c.bf16 %v1108, %v1108
      %v1113 = vpack.c.bf16 %v1109, %v1109
      %v1114 = vpack.c.bf16 %v1110, %v1110
      %v1115 = vpack.c.bf16 %v1111, %v1111
      %s1116 = scalar_lea.vmem %s300, 80
      %1117 = vst.msk [vmem:[%s1116] sm:$0xf] %vm502, %v1112
      %1118 = vst.msk [vmem:[%s1116 + $0x4] sm:$0xf] %vm502, %v1113
      %1119 = vst.msk [vmem:[%s1116 + $0x8] sm:$0xf] %vm502, %v1114
      %1120 = vst.msk [vmem:[%s1116 + $0xc] sm:$0xf] %vm502, %v1115
      %v1121 = vld [vmem:[%s279] sm:$0x8]
      %v1122 = vld [vmem:[%s279 + $0xc] sm:$0x8]
      %v1123 = vld [vmem:[%s279 + $0x18] sm:$0x8]
      %v1124 = vld [vmem:[%s279 + $0x24] sm:$0x8]
      %v1125 = vld [vmem:[%s289] sm:$0x8]
      %v1126 = vld [vmem:[%s289 + $0xc] sm:$0x8]
      %v1127 = vld [vmem:[%s289 + $0x18] sm:$0x8]
      %v1128 = vld [vmem:[%s289 + $0x24] sm:$0x8]
      %v1133 = vunpack.c.l.b16 %v1121
      %v1134 = vunpack.c.l.b16 %v1122
      %v1135 = vunpack.c.l.b16 %v1123
      %v1136 = vunpack.c.l.b16 %v1124
      %v1137 = vpack.c.b16 %v1133, %v1133
      %v1138 = vpack.c.b16 %v1134, %v1134
      %v1139 = vpack.c.b16 %v1135, %v1135
      %v1140 = vpack.c.b16 %v1136, %v1136
      %v1141 = vunpack.c.l.b16 %v1137
      %v1142 = vunpack.c.l.b16 %v1138
      %v1143 = vunpack.c.l.b16 %v1139
      %v1144 = vunpack.c.l.b16 %v1140
      %v1145 = vrot.slane %v1141, 6
      %v1146 = vrot.slane %v1142, 5
      %v1147 = vsel %vm340, %v1146, %v1145
      %v1148 = vrot.slane %v1143, 4
      %v1149 = vsel %vm343, %v1148, %v1147
      %v1150 = vrot.slane %v1144, 3
      %v1151 = vsel %vm346, %v1150, %v1149
      %v1152 = vpack.c.b16 %v1151, %v1151
      %v1153 = vrot.slane %v1141, 2
      %v1154 = vrot.slane %v1142, 1
      %v1155 = vsel %vm351, %v1154, %v1153
      %v1156 = vsel %vm354, %v1143, %v1155
      %v1157 = vrot.slane %v1144, 7
      %v1158 = vsel %vm357, %v1157, %v1156
      %v1159 = vpack.c.b16 %v1158, %v1158
      %1160 = vrot.lane.b32.xlu0 %v1159, 127
      %v1161 = vpop.permute.xlu0 %1160
      %v1166 = vunpack.c.l.b16 %v1125
      %v1167 = vunpack.c.l.b16 %v1126
      %v1168 = vunpack.c.l.b16 %v1127
      %v1169 = vunpack.c.l.b16 %v1128
      %v1170 = vpack.c.b16 %v1166, %v1166
      %v1171 = vpack.c.b16 %v1167, %v1167
      %v1172 = vpack.c.b16 %v1168, %v1168
      %v1173 = vpack.c.b16 %v1169, %v1169
      %v1174 = vunpack.c.l.b16 %v1170
      %v1175 = vunpack.c.l.b16 %v1171
      %v1176 = vunpack.c.l.b16 %v1172
      %v1177 = vunpack.c.l.b16 %v1173
      %v1178 = vrot.slane %v1174, 6
      %v1179 = vrot.slane %v1175, 5
      %v1180 = vsel %vm340, %v1179, %v1178
      %v1181 = vrot.slane %v1176, 4
      %v1182 = vsel %vm343, %v1181, %v1180
      %v1183 = vrot.slane %v1177, 3
      %v1184 = vsel %vm346, %v1183, %v1182
      %v1185 = vpack.c.b16 %v1184, %v1184
      %v1186 = vrot.slane %v1174, 2
      %v1187 = vrot.slane %v1175, 1
      %v1188 = vsel %vm351, %v1187, %v1186
      %v1189 = vsel %vm354, %v1176, %v1188
      %v1190 = vrot.slane %v1177, 7
      %v1191 = vsel %vm357, %v1190, %v1189
      %v1192 = vpack.c.b16 %v1191, %v1191
      %1193 = vrot.lane.b32.xlu0 %v1192, 127
      %v1194 = vpop.permute.xlu0 %1193
      %v1197 = vsel %vm399, %v1152, %v1161
      %v1199 = vsel %vm403, %v1197, %v1185
      %v1201 = vsel %vm406, %v1199, %v1194
      %1203 = vmatpush.bf16.msra.mxu0 0
      %1204 = vmatpush.bf16.msra.mxu0 0
      %1205 = vmatpush.bf16.msra.mxu0 0
      %1206 = vmatpush.bf16.msra.mxu0 0
      %1207 = vmatpush.bf16.msra.mxu0 0
      %1208 = vmatpush.bf16.msra.mxu0 0
      %1209 = vmatpush.bf16.msra.mxu0 0
      %1210 = vmatpush.bf16.msra.mxu0 %v1201
      %1211 = vmatmul.bf16.gmra.mxu0 %v422
      %v1212 = vpop.f32.mrf.mxu0
      %v1213 = vadd.f32 0.0, %v1212
      %v1214 = vpop.f32.mrf.mxu0
      %v1215 = vadd.f32 0.0, %v1214
      %1216 = vmatmul.bf16.gmra.mxu0 %v425
      %v1217 = vpop.f32.mrf.mxu0
      %v1218 = vadd.f32 0.0, %v1217
      %v1219 = vpop.f32.mrf.mxu0
      %v1220 = vadd.f32 0.0, %v1219
      %1221 = vdwg.mxu0
      %v1222 = vmul.f32 %v1213, %v449
      %v1223 = vmul.f32 %v1215, %v454
      %v1224 = vmul.f32 %v1218, %v459
      %v1225 = vmul.f32 %v1220, %v464
      %v1226 = vadd.f32 %v1222, %v473
      %v1227 = vadd.f32 %v1223, %v478
      %v1228 = vadd.f32 %v1224, %v483
      %v1229 = vadd.f32 %v1225, %v488
      %v1230 = vmax.f32 %v1226, 0.0
      %v1231 = vmax.f32 %v1227, 0.0
      %v1232 = vmax.f32 %v1228, 0.0
      %v1233 = vmax.f32 %v1229, 0.0
      %v1234 = vpack.c.bf16 %v1230, %v1230
      %v1235 = vpack.c.bf16 %v1231, %v1231
      %v1236 = vpack.c.bf16 %v1232, %v1232
      %v1237 = vpack.c.bf16 %v1233, %v1233
      %s1238 = scalar_lea.vmem %s300, 96
      %1239 = vst.msk [vmem:[%s1238] sm:$0xf] %vm502, %v1234
      %1240 = vst.msk [vmem:[%s1238 + $0x4] sm:$0xf] %vm502, %v1235
      %1241 = vst.msk [vmem:[%s1238 + $0x8] sm:$0xf] %vm502, %v1236
      %1242 = vst.msk [vmem:[%s1238 + $0xc] sm:$0xf] %vm502, %v1237
      %v1243 = vld [vmem:[%s279] sm:$0x8]
      %v1244 = vld [vmem:[%s279 + $0xc] sm:$0x8]
      %v1245 = vld [vmem:[%s279 + $0x18] sm:$0x8]
      %v1246 = vld [vmem:[%s279 + $0x24] sm:$0x8]
      %v1247 = vld [vmem:[%s289] sm:$0x8]
      %v1248 = vld [vmem:[%s289 + $0xc] sm:$0x8]
      %v1249 = vld [vmem:[%s289 + $0x18] sm:$0x8]
      %v1250 = vld [vmem:[%s289 + $0x24] sm:$0x8]
      %v1255 = vunpack.c.l.b16 %v1243
      %v1256 = vunpack.c.l.b16 %v1244
      %v1257 = vunpack.c.l.b16 %v1245
      %v1258 = vunpack.c.l.b16 %v1246
      %v1259 = vpack.c.b16 %v1255, %v1255
      %v1260 = vpack.c.b16 %v1256, %v1256
      %v1261 = vpack.c.b16 %v1257, %v1257
      %v1262 = vpack.c.b16 %v1258, %v1258
      %v1263 = vunpack.c.l.b16 %v1259
      %v1264 = vunpack.c.l.b16 %v1260
      %v1265 = vunpack.c.l.b16 %v1261
      %v1266 = vunpack.c.l.b16 %v1262
      %v1267 = vrot.slane %v1263, 7
      %v1268 = vrot.slane %v1264, 6
      %v1269 = vsel %vm340, %v1268, %v1267
      %v1270 = vrot.slane %v1265, 5
      %v1271 = vsel %vm343, %v1270, %v1269
      %v1272 = vrot.slane %v1266, 4
      %v1273 = vsel %vm346, %v1272, %v1271
      %v1274 = vpack.c.b16 %v1273, %v1273
      %v1275 = vrot.slane %v1263, 3
      %v1276 = vrot.slane %v1264, 2
      %v1277 = vsel %vm351, %v1276, %v1275
      %v1278 = vrot.slane %v1265, 1
      %v1279 = vsel %vm354, %v1278, %v1277
      %v1280 = vsel %vm357, %v1266, %v1279
      %v1281 = vpack.c.b16 %v1280, %v1280
      %1282 = vrot.lane.b32.xlu0 %v1281, 127
      %v1283 = vpop.permute.xlu0 %1282
      %v1288 = vunpack.c.l.b16 %v1247
      %v1289 = vunpack.c.l.b16 %v1248
      %v1290 = vunpack.c.l.b16 %v1249
      %v1291 = vunpack.c.l.b16 %v1250
      %v1292 = vpack.c.b16 %v1288, %v1288
      %v1293 = vpack.c.b16 %v1289, %v1289
      %v1294 = vpack.c.b16 %v1290, %v1290
      %v1295 = vpack.c.b16 %v1291, %v1291
      %v1296 = vunpack.c.l.b16 %v1292
      %v1297 = vunpack.c.l.b16 %v1293
      %v1298 = vunpack.c.l.b16 %v1294
      %v1299 = vunpack.c.l.b16 %v1295
      %v1300 = vrot.slane %v1296, 7
      %v1301 = vrot.slane %v1297, 6
      %v1302 = vsel %vm340, %v1301, %v1300
      %v1303 = vrot.slane %v1298, 5
      %v1304 = vsel %vm343, %v1303, %v1302
      %v1305 = vrot.slane %v1299, 4
      %v1306 = vsel %vm346, %v1305, %v1304
      %v1307 = vpack.c.b16 %v1306, %v1306
      %v1308 = vrot.slane %v1296, 3
      %v1309 = vrot.slane %v1297, 2
      %v1310 = vsel %vm351, %v1309, %v1308
      %v1311 = vrot.slane %v1298, 1
      %v1312 = vsel %vm354, %v1311, %v1310
      %v1313 = vsel %vm357, %v1299, %v1312
      %v1314 = vpack.c.b16 %v1313, %v1313
      %1315 = vrot.lane.b32.xlu0 %v1314, 127
      %v1316 = vpop.permute.xlu0 %1315
      %v1319 = vsel %vm399, %v1274, %v1283
      %v1321 = vsel %vm403, %v1319, %v1307
      %v1323 = vsel %vm406, %v1321, %v1316
      %1325 = vmatpush.bf16.msra.mxu0 0
      %1326 = vmatpush.bf16.msra.mxu0 0
      %1327 = vmatpush.bf16.msra.mxu0 0
      %1328 = vmatpush.bf16.msra.mxu0 0
      %1329 = vmatpush.bf16.msra.mxu0 0
      %1330 = vmatpush.bf16.msra.mxu0 0
      %1331 = vmatpush.bf16.msra.mxu0 0
      %1332 = vmatpush.bf16.msra.mxu0 %v1323
      %1333 = vmatmul.bf16.gmra.mxu0 %v422
      %v1334 = vpop.f32.mrf.mxu0
      %v1335 = vadd.f32 0.0, %v1334
      %v1336 = vpop.f32.mrf.mxu0
      %v1337 = vadd.f32 0.0, %v1336
      %1338 = vmatmul.bf16.gmra.mxu0 %v425
      %v1339 = vpop.f32.mrf.mxu0
      %v1340 = vadd.f32 0.0, %v1339
      %v1341 = vpop.f32.mrf.mxu0
      %v1342 = vadd.f32 0.0, %v1341
      %1343 = vdwg.mxu0
      %v1344 = vmul.f32 %v1335, %v449
      %v1345 = vmul.f32 %v1337, %v454
      %v1346 = vmul.f32 %v1340, %v459
      %v1347 = vmul.f32 %v1342, %v464
      %v1348 = vadd.f32 %v1344, %v473
      %v1349 = vadd.f32 %v1345, %v478
      %v1350 = vadd.f32 %v1346, %v483
      %v1351 = vadd.f32 %v1347, %v488
      %v1352 = vmax.f32 %v1348, 0.0
      %v1353 = vmax.f32 %v1349, 0.0
      %v1354 = vmax.f32 %v1350, 0.0
      %v1355 = vmax.f32 %v1351, 0.0
      %v1356 = vpack.c.bf16 %v1352, %v1352
      %v1357 = vpack.c.bf16 %v1353, %v1353
      %v1358 = vpack.c.bf16 %v1354, %v1354
      %v1359 = vpack.c.bf16 %v1355, %v1355
      %s1360 = scalar_lea.vmem %s300, 112
      %1361 = vst.msk [vmem:[%s1360] sm:$0xf] %vm502, %v1356
      %1362 = vst.msk [vmem:[%s1360 + $0x4] sm:$0xf] %vm502, %v1357
      %1363 = vst.msk [vmem:[%s1360 + $0x8] sm:$0xf] %vm502, %v1358
      %1364 = vst.msk [vmem:[%s1360 + $0xc] sm:$0xf] %vm502, %v1359
      %v1365 = vld [vmem:[%s279 + $0x4] sm:$0x1]
      %v1366 = vld [vmem:[%s279 + $0x10] sm:$0x1]
      %v1367 = vld [vmem:[%s279 + $0x1c] sm:$0x1]
      %v1368 = vld [vmem:[%s279 + $0x28] sm:$0x1]
      %v1369 = vld [vmem:[%s289 + $0x4] sm:$0x1]
      %v1370 = vld [vmem:[%s289 + $0x10] sm:$0x1]
      %v1371 = vld [vmem:[%s289 + $0x1c] sm:$0x1]
      %v1372 = vld [vmem:[%s289 + $0x28] sm:$0x1]
      %v1377 = vunpack.c.l.b16 %v1365
      %v1378 = vunpack.c.l.b16 %v1366
      %v1379 = vunpack.c.l.b16 %v1367
      %v1380 = vunpack.c.l.b16 %v1368
      %v1381 = vpack.c.b16 %v1377, %v1377
      %v1382 = vpack.c.b16 %v1378, %v1378
      %v1383 = vpack.c.b16 %v1379, %v1379
      %v1384 = vpack.c.b16 %v1380, %v1380
      %v1385 = vunpack.c.l.b16 %v1381
      %v1386 = vunpack.c.l.b16 %v1382
      %v1387 = vunpack.c.l.b16 %v1383
      %v1388 = vunpack.c.l.b16 %v1384
      %v1389 = vrot.slane %v1386, 7
      %v1390 = vsel %vm340, %v1389, %v1385
      %v1391 = vrot.slane %v1387, 6
      %v1392 = vsel %vm343, %v1391, %v1390
      %v1393 = vrot.slane %v1388, 5
      %v1394 = vsel %vm346, %v1393, %v1392
      %v1395 = vpack.c.b16 %v1394, %v1394
      %v1396 = vrot.slane %v1385, 4
      %v1397 = vrot.slane %v1386, 3
      %v1398 = vsel %vm351, %v1397, %v1396
      %v1399 = vrot.slane %v1387, 2
      %v1400 = vsel %vm354, %v1399, %v1398
      %v1401 = vrot.slane %v1388, 1
      %v1402 = vsel %vm357, %v1401, %v1400
      %v1403 = vpack.c.b16 %v1402, %v1402
      %1404 = vrot.lane.b32.xlu0 %v1403, 127
      %v1405 = vpop.permute.xlu0 %1404
      %v1410 = vunpack.c.l.b16 %v1369
      %v1411 = vunpack.c.l.b16 %v1370
      %v1412 = vunpack.c.l.b16 %v1371
      %v1413 = vunpack.c.l.b16 %v1372
      %v1414 = vpack.c.b16 %v1410, %v1410
      %v1415 = vpack.c.b16 %v1411, %v1411
      %v1416 = vpack.c.b16 %v1412, %v1412
      %v1417 = vpack.c.b16 %v1413, %v1413
      %v1418 = vunpack.c.h.b16 %v1414
      %v1419 = vunpack.c.h.b16 %v1415
      %v1420 = vunpack.c.h.b16 %v1416
      %v1421 = vunpack.c.h.b16 %v1417
      %v1422 = vrot.slane %v1419, 7
      %v1423 = vsel %vm340, %v1422, %v1418
      %v1424 = vrot.slane %v1420, 6
      %v1425 = vsel %vm343, %v1424, %v1423
      %v1426 = vrot.slane %v1421, 5
      %v1427 = vsel %vm346, %v1426, %v1425
      %v1428 = vpack.c.b16 %v1427, %v1427
      %v1429 = vunpack.c.l.b16 %v1414
      %v1430 = vunpack.c.l.b16 %v1415
      %v1431 = vunpack.c.l.b16 %v1416
      %v1432 = vunpack.c.l.b16 %v1417
      %v1433 = vrot.slane %v1429, 4
      %v1434 = vrot.slane %v1430, 3
      %v1435 = vsel %vm351, %v1434, %v1433
      %v1436 = vrot.slane %v1431, 2
      %v1437 = vsel %vm354, %v1436, %v1435
      %v1438 = vrot.slane %v1432, 1
      %v1439 = vsel %vm357, %v1438, %v1437
      %v1440 = vpack.c.b16 %v1439, %v1439
      %1441 = vrot.lane.b32.xlu0 %v1440, 127
      %v1442 = vpop.permute.xlu0 %1441
      %v1445 = vsel %vm399, %v1395, %v1405
      %v1447 = vsel %vm403, %v1445, %v1428
      %v1449 = vsel %vm406, %v1447, %v1442
      %1451 = vmatpush.bf16.msra.mxu0 0
      %1452 = vmatpush.bf16.msra.mxu0 0
      %1453 = vmatpush.bf16.msra.mxu0 0
      %1454 = vmatpush.bf16.msra.mxu0 0
      %1455 = vmatpush.bf16.msra.mxu0 0
      %1456 = vmatpush.bf16.msra.mxu0 0
      %1457 = vmatpush.bf16.msra.mxu0 0
      %1458 = vmatpush.bf16.msra.mxu0 %v1449
      %1459 = vmatmul.bf16.gmra.mxu0 %v422
      %v1460 = vpop.f32.mrf.mxu0
      %v1461 = vadd.f32 0.0, %v1460
      %v1462 = vpop.f32.mrf.mxu0
      %v1463 = vadd.f32 0.0, %v1462
      %1464 = vmatmul.bf16.gmra.mxu0 %v425
      %v1465 = vpop.f32.mrf.mxu0
      %v1466 = vadd.f32 0.0, %v1465
      %v1467 = vpop.f32.mrf.mxu0
      %v1468 = vadd.f32 0.0, %v1467
      %1469 = vdwg.mxu0
      %v1470 = vmul.f32 %v1461, %v449
      %v1471 = vmul.f32 %v1463, %v454
      %v1472 = vmul.f32 %v1466, %v459
      %v1473 = vmul.f32 %v1468, %v464
      %v1474 = vadd.f32 %v1470, %v473
      %v1475 = vadd.f32 %v1471, %v478
      %v1476 = vadd.f32 %v1472, %v483
      %v1477 = vadd.f32 %v1473, %v488
      %v1478 = vmax.f32 %v1474, 0.0
      %v1479 = vmax.f32 %v1475, 0.0
      %v1480 = vmax.f32 %v1476, 0.0
      %v1481 = vmax.f32 %v1477, 0.0
      %v1482 = vpack.c.bf16 %v1478, %v1478
      %v1483 = vpack.c.bf16 %v1479, %v1479
      %v1484 = vpack.c.bf16 %v1480, %v1480
      %v1485 = vpack.c.bf16 %v1481, %v1481
      %s1486 = scalar_lea.vmem %s300, 128
      %1487 = vst.msk [vmem:[%s1486] sm:$0xf] %vm502, %v1482
      %1488 = vst.msk [vmem:[%s1486 + $0x4] sm:$0xf] %vm502, %v1483
      %1489 = vst.msk [vmem:[%s1486 + $0x8] sm:$0xf] %vm502, %v1484
      %1490 = vst.msk [vmem:[%s1486 + $0xc] sm:$0xf] %vm502, %v1485
      %v1491 = vld [vmem:[%s279 + $0x4] sm:$0x1]
      %v1492 = vld [vmem:[%s279 + $0x10] sm:$0x1]
      %v1493 = vld [vmem:[%s279 + $0x1c] sm:$0x1]
      %v1494 = vld [vmem:[%s279 + $0x28] sm:$0x1]
      %v1495 = vld [vmem:[%s289 + $0x4] sm:$0x1]
      %v1496 = vld [vmem:[%s289 + $0x10] sm:$0x1]
      %v1497 = vld [vmem:[%s289 + $0x1c] sm:$0x1]
      %v1498 = vld [vmem:[%s289 + $0x28] sm:$0x1]
      %v1503 = vunpack.c.l.b16 %v1491
      %v1504 = vunpack.c.l.b16 %v1492
      %v1505 = vunpack.c.l.b16 %v1493
      %v1506 = vunpack.c.l.b16 %v1494
      %v1507 = vpack.c.b16 %v1503, %v1503
      %v1508 = vpack.c.b16 %v1504, %v1504
      %v1509 = vpack.c.b16 %v1505, %v1505
      %v1510 = vpack.c.b16 %v1506, %v1506
      %v1511 = vunpack.c.l.b16 %v1507
      %v1512 = vunpack.c.l.b16 %v1508
      %v1513 = vunpack.c.l.b16 %v1509
      %v1514 = vunpack.c.l.b16 %v1510
      %v1515 = vrot.slane %v1511, 1
      %v1516 = vsel %vm340, %v1512, %v1515
      %v1517 = vrot.slane %v1513, 7
      %v1518 = vsel %vm343, %v1517, %v1516
      %v1519 = vrot.slane %v1514, 6
      %v1520 = vsel %vm346, %v1519, %v1518
      %v1521 = vpack.c.b16 %v1520, %v1520
      %v1522 = vrot.slane %v1511, 5
      %v1523 = vrot.slane %v1512, 4
      %v1524 = vsel %vm351, %v1523, %v1522
      %v1525 = vrot.slane %v1513, 3
      %v1526 = vsel %vm354, %v1525, %v1524
      %v1527 = vrot.slane %v1514, 2
      %v1528 = vsel %vm357, %v1527, %v1526
      %v1529 = vpack.c.b16 %v1528, %v1528
      %1530 = vrot.lane.b32.xlu0 %v1529, 127
      %v1531 = vpop.permute.xlu0 %1530
      %v1536 = vunpack.c.l.b16 %v1495
      %v1537 = vunpack.c.l.b16 %v1496
      %v1538 = vunpack.c.l.b16 %v1497
      %v1539 = vunpack.c.l.b16 %v1498
      %v1540 = vpack.c.b16 %v1536, %v1536
      %v1541 = vpack.c.b16 %v1537, %v1537
      %v1542 = vpack.c.b16 %v1538, %v1538
      %v1543 = vpack.c.b16 %v1539, %v1539
      %v1544 = vunpack.c.l.b16 %v1540
      %v1545 = vunpack.c.l.b16 %v1541
      %v1546 = vunpack.c.l.b16 %v1542
      %v1547 = vunpack.c.l.b16 %v1543
      %v1548 = vrot.slane %v1544, 1
      %v1549 = vsel %vm340, %v1545, %v1548
      %v1550 = vrot.slane %v1546, 7
      %v1551 = vsel %vm343, %v1550, %v1549
      %v1552 = vrot.slane %v1547, 6
      %v1553 = vsel %vm346, %v1552, %v1551
      %v1554 = vpack.c.b16 %v1553, %v1553
      %v1555 = vrot.slane %v1544, 5
      %v1556 = vrot.slane %v1545, 4
      %v1557 = vsel %vm351, %v1556, %v1555
      %v1558 = vrot.slane %v1546, 3
      %v1559 = vsel %vm354, %v1558, %v1557
      %v1560 = vrot.slane %v1547, 2
      %v1561 = vsel %vm357, %v1560, %v1559
      %v1562 = vpack.c.b16 %v1561, %v1561
      %1563 = vrot.lane.b32.xlu0 %v1562, 127
      %v1564 = vpop.permute.xlu0 %1563
      %v1567 = vsel %vm399, %v1521, %v1531
      %v1569 = vsel %vm403, %v1567, %v1554
      %v1571 = vsel %vm406, %v1569, %v1564
      %1573 = vmatpush.bf16.msra.mxu0 0
      %1574 = vmatpush.bf16.msra.mxu0 0
      %1575 = vmatpush.bf16.msra.mxu0 0
      %1576 = vmatpush.bf16.msra.mxu0 0
      %1577 = vmatpush.bf16.msra.mxu0 0
      %1578 = vmatpush.bf16.msra.mxu0 0
      %1579 = vmatpush.bf16.msra.mxu0 0
      %1580 = vmatpush.bf16.msra.mxu0 %v1571
      %1581 = vmatmul.bf16.gmra.mxu0 %v422
      %v1582 = vpop.f32.mrf.mxu0
      %v1583 = vadd.f32 0.0, %v1582
      %v1584 = vpop.f32.mrf.mxu0
      %v1585 = vadd.f32 0.0, %v1584
      %1586 = vmatmul.bf16.gmra.mxu0 %v425
      %v1587 = vpop.f32.mrf.mxu0
      %v1588 = vadd.f32 0.0, %v1587
      %v1589 = vpop.f32.mrf.mxu0
      %v1590 = vadd.f32 0.0, %v1589
      %1591 = vdwg.mxu0
      %v1592 = vmul.f32 %v1583, %v449
      %v1593 = vmul.f32 %v1585, %v454
      %v1594 = vmul.f32 %v1588, %v459
      %v1595 = vmul.f32 %v1590, %v464
      %v1596 = vadd.f32 %v1592, %v473
      %v1597 = vadd.f32 %v1593, %v478
      %v1598 = vadd.f32 %v1594, %v483
      %v1599 = vadd.f32 %v1595, %v488
      %v1600 = vmax.f32 %v1596, 0.0
      %v1601 = vmax.f32 %v1597, 0.0
      %v1602 = vmax.f32 %v1598, 0.0
      %v1603 = vmax.f32 %v1599, 0.0
      %v1604 = vpack.c.bf16 %v1600, %v1600
      %v1605 = vpack.c.bf16 %v1601, %v1601
      %v1606 = vpack.c.bf16 %v1602, %v1602
      %v1607 = vpack.c.bf16 %v1603, %v1603
      %s1608 = scalar_lea.vmem %s300, 144
      %1609 = vst.msk [vmem:[%s1608] sm:$0xf] %vm502, %v1604
      %1610 = vst.msk [vmem:[%s1608 + $0x4] sm:$0xf] %vm502, %v1605
      %1611 = vst.msk [vmem:[%s1608 + $0x8] sm:$0xf] %vm502, %v1606
      %1612 = vst.msk [vmem:[%s1608 + $0xc] sm:$0xf] %vm502, %v1607
      %v1613 = vld [vmem:[%s279 + $0x4] sm:$0x2]
      %v1614 = vld [vmem:[%s279 + $0x10] sm:$0x2]
      %v1615 = vld [vmem:[%s279 + $0x1c] sm:$0x2]
      %v1616 = vld [vmem:[%s279 + $0x28] sm:$0x2]
      %v1617 = vld [vmem:[%s289 + $0x4] sm:$0x2]
      %v1618 = vld [vmem:[%s289 + $0x10] sm:$0x2]
      %v1619 = vld [vmem:[%s289 + $0x1c] sm:$0x2]
      %v1620 = vld [vmem:[%s289 + $0x28] sm:$0x2]
      %v1625 = vunpack.c.l.b16 %v1613
      %v1626 = vunpack.c.l.b16 %v1614
      %v1627 = vunpack.c.l.b16 %v1615
      %v1628 = vunpack.c.l.b16 %v1616
      %v1629 = vpack.c.b16 %v1625, %v1625
      %v1630 = vpack.c.b16 %v1626, %v1626
      %v1631 = vpack.c.b16 %v1627, %v1627
      %v1632 = vpack.c.b16 %v1628, %v1628
      %v1633 = vunpack.c.l.b16 %v1629
      %v1634 = vunpack.c.l.b16 %v1630
      %v1635 = vunpack.c.l.b16 %v1631
      %v1636 = vunpack.c.l.b16 %v1632
      %v1637 = vrot.slane %v1633, 2
      %v1638 = vrot.slane %v1634, 1
      %v1639 = vsel %vm340, %v1638, %v1637
      %v1640 = vsel %vm343, %v1635, %v1639
      %v1641 = vrot.slane %v1636, 7
      %v1642 = vsel %vm346, %v1641, %v1640
      %v1643 = vpack.c.b16 %v1642, %v1642
      %v1644 = vrot.slane %v1633, 6
      %v1645 = vrot.slane %v1634, 5
      %v1646 = vsel %vm351, %v1645, %v1644
      %v1647 = vrot.slane %v1635, 4
      %v1648 = vsel %vm354, %v1647, %v1646
      %v1649 = vrot.slane %v1636, 3
      %v1650 = vsel %vm357, %v1649, %v1648
      %v1651 = vpack.c.b16 %v1650, %v1650
      %1652 = vrot.lane.b32.xlu0 %v1651, 127
      %v1653 = vpop.permute.xlu0 %1652
      %v1658 = vunpack.c.l.b16 %v1617
      %v1659 = vunpack.c.l.b16 %v1618
      %v1660 = vunpack.c.l.b16 %v1619
      %v1661 = vunpack.c.l.b16 %v1620
      %v1662 = vpack.c.b16 %v1658, %v1658
      %v1663 = vpack.c.b16 %v1659, %v1659
      %v1664 = vpack.c.b16 %v1660, %v1660
      %v1665 = vpack.c.b16 %v1661, %v1661
      %v1666 = vunpack.c.l.b16 %v1662
      %v1667 = vunpack.c.l.b16 %v1663
      %v1668 = vunpack.c.l.b16 %v1664
      %v1669 = vunpack.c.l.b16 %v1665
      %v1670 = vrot.slane %v1666, 2
      %v1671 = vrot.slane %v1667, 1
      %v1672 = vsel %vm340, %v1671, %v1670
      %v1673 = vsel %vm343, %v1668, %v1672
      %v1674 = vrot.slane %v1669, 7
      %v1675 = vsel %vm346, %v1674, %v1673
      %v1676 = vpack.c.b16 %v1675, %v1675
      %v1677 = vrot.slane %v1666, 6
      %v1678 = vrot.slane %v1667, 5
      %v1679 = vsel %vm351, %v1678, %v1677
      %v1680 = vrot.slane %v1668, 4
      %v1681 = vsel %vm354, %v1680, %v1679
      %v1682 = vrot.slane %v1669, 3
      %v1683 = vsel %vm357, %v1682, %v1681
      %v1684 = vpack.c.b16 %v1683, %v1683
      %1685 = vrot.lane.b32.xlu0 %v1684, 127
      %v1686 = vpop.permute.xlu0 %1685
      %v1689 = vsel %vm399, %v1643, %v1653
      %v1691 = vsel %vm403, %v1689, %v1676
      %v1693 = vsel %vm406, %v1691, %v1686
      %1695 = vmatpush.bf16.msra.mxu0 0
      %1696 = vmatpush.bf16.msra.mxu0 0
      %1697 = vmatpush.bf16.msra.mxu0 0
      %1698 = vmatpush.bf16.msra.mxu0 0
      %1699 = vmatpush.bf16.msra.mxu0 0
      %1700 = vmatpush.bf16.msra.mxu0 0
      %1701 = vmatpush.bf16.msra.mxu0 0
      %1702 = vmatpush.bf16.msra.mxu0 %v1693
      %1703 = vmatmul.bf16.gmra.mxu0 %v422
      %v1704 = vpop.f32.mrf.mxu0
      %v1705 = vadd.f32 0.0, %v1704
      %v1706 = vpop.f32.mrf.mxu0
      %v1707 = vadd.f32 0.0, %v1706
      %1708 = vmatmul.bf16.gmra.mxu0 %v425
      %v1709 = vpop.f32.mrf.mxu0
      %v1710 = vadd.f32 0.0, %v1709
      %v1711 = vpop.f32.mrf.mxu0
      %v1712 = vadd.f32 0.0, %v1711
      %1713 = vdwg.mxu0
      %v1714 = vmul.f32 %v1705, %v449
      %v1715 = vmul.f32 %v1707, %v454
      %v1716 = vmul.f32 %v1710, %v459
      %v1717 = vmul.f32 %v1712, %v464
      %v1718 = vadd.f32 %v1714, %v473
      %v1719 = vadd.f32 %v1715, %v478
      %v1720 = vadd.f32 %v1716, %v483
      %v1721 = vadd.f32 %v1717, %v488
      %v1722 = vmax.f32 %v1718, 0.0
      %v1723 = vmax.f32 %v1719, 0.0
      %v1724 = vmax.f32 %v1720, 0.0
      %v1725 = vmax.f32 %v1721, 0.0
      %v1726 = vpack.c.bf16 %v1722, %v1722
      %v1727 = vpack.c.bf16 %v1723, %v1723
      %v1728 = vpack.c.bf16 %v1724, %v1724
      %v1729 = vpack.c.bf16 %v1725, %v1725
      %s1730 = scalar_lea.vmem %s300, 160
      %1731 = vst.msk [vmem:[%s1730] sm:$0xf] %vm502, %v1726
      %1732 = vst.msk [vmem:[%s1730 + $0x4] sm:$0xf] %vm502, %v1727
      %1733 = vst.msk [vmem:[%s1730 + $0x8] sm:$0xf] %vm502, %v1728
      %1734 = vst.msk [vmem:[%s1730 + $0xc] sm:$0xf] %vm502, %v1729
      %v1735 = vld [vmem:[%s279 + $0x4] sm:$0x2]
      %v1736 = vld [vmem:[%s279 + $0x10] sm:$0x2]
      %v1737 = vld [vmem:[%s279 + $0x1c] sm:$0x2]
      %v1738 = vld [vmem:[%s279 + $0x28] sm:$0x2]
      %v1739 = vld [vmem:[%s289 + $0x4] sm:$0x2]
      %v1740 = vld [vmem:[%s289 + $0x10] sm:$0x2]
      %v1741 = vld [vmem:[%s289 + $0x1c] sm:$0x2]
      %v1742 = vld [vmem:[%s289 + $0x28] sm:$0x2]
      %v1747 = vunpack.c.l.b16 %v1735
      %v1748 = vunpack.c.l.b16 %v1736
      %v1749 = vunpack.c.l.b16 %v1737
      %v1750 = vunpack.c.l.b16 %v1738
      %v1751 = vpack.c.b16 %v1747, %v1747
      %v1752 = vpack.c.b16 %v1748, %v1748
      %v1753 = vpack.c.b16 %v1749, %v1749
      %v1754 = vpack.c.b16 %v1750, %v1750
      %v1755 = vunpack.c.l.b16 %v1751
      %v1756 = vunpack.c.l.b16 %v1752
      %v1757 = vunpack.c.l.b16 %v1753
      %v1758 = vunpack.c.l.b16 %v1754
      %v1759 = vrot.slane %v1755, 3
      %v1760 = vrot.slane %v1756, 2
      %v1761 = vsel %vm340, %v1760, %v1759
      %v1762 = vrot.slane %v1757, 1
      %v1763 = vsel %vm343, %v1762, %v1761
      %v1764 = vsel %vm346, %v1758, %v1763
      %v1765 = vpack.c.b16 %v1764, %v1764
      %v1766 = vrot.slane %v1755, 7
      %v1767 = vrot.slane %v1756, 6
      %v1768 = vsel %vm351, %v1767, %v1766
      %v1769 = vrot.slane %v1757, 5
      %v1770 = vsel %vm354, %v1769, %v1768
      %v1771 = vrot.slane %v1758, 4
      %v1772 = vsel %vm357, %v1771, %v1770
      %v1773 = vpack.c.b16 %v1772, %v1772
      %1774 = vrot.lane.b32.xlu0 %v1773, 127
      %v1775 = vpop.permute.xlu0 %1774
      %v1780 = vunpack.c.l.b16 %v1739
      %v1781 = vunpack.c.l.b16 %v1740
      %v1782 = vunpack.c.l.b16 %v1741
      %v1783 = vunpack.c.l.b16 %v1742
      %v1784 = vpack.c.b16 %v1780, %v1780
      %v1785 = vpack.c.b16 %v1781, %v1781
      %v1786 = vpack.c.b16 %v1782, %v1782
      %v1787 = vpack.c.b16 %v1783, %v1783
      %v1788 = vunpack.c.l.b16 %v1784
      %v1789 = vunpack.c.l.b16 %v1785
      %v1790 = vunpack.c.l.b16 %v1786
      %v1791 = vunpack.c.l.b16 %v1787
      %v1792 = vrot.slane %v1788, 3
      %v1793 = vrot.slane %v1789, 2
      %v1794 = vsel %vm340, %v1793, %v1792
      %v1795 = vrot.slane %v1790, 1
      %v1796 = vsel %vm343, %v1795, %v1794
      %v1797 = vsel %vm346, %v1791, %v1796
      %v1798 = vpack.c.b16 %v1797, %v1797
      %v1799 = vrot.slane %v1788, 7
      %v1800 = vrot.slane %v1789, 6
      %v1801 = vsel %vm351, %v1800, %v1799
      %v1802 = vrot.slane %v1790, 5
      %v1803 = vsel %vm354, %v1802, %v1801
      %v1804 = vrot.slane %v1791, 4
      %v1805 = vsel %vm357, %v1804, %v1803
      %v1806 = vpack.c.b16 %v1805, %v1805
      %1807 = vrot.lane.b32.xlu0 %v1806, 127
      %v1808 = vpop.permute.xlu0 %1807
      %v1811 = vsel %vm399, %v1765, %v1775
      %v1813 = vsel %vm403, %v1811, %v1798
      %v1815 = vsel %vm406, %v1813, %v1808
      %1817 = vmatpush.bf16.msra.mxu0 0
      %1818 = vmatpush.bf16.msra.mxu0 0
      %1819 = vmatpush.bf16.msra.mxu0 0
      %1820 = vmatpush.bf16.msra.mxu0 0
      %1821 = vmatpush.bf16.msra.mxu0 0
      %1822 = vmatpush.bf16.msra.mxu0 0
      %1823 = vmatpush.bf16.msra.mxu0 0
      %1824 = vmatpush.bf16.msra.mxu0 %v1815
      %1825 = vmatmul.bf16.gmra.mxu0 %v422
      %v1826 = vpop.f32.mrf.mxu0
      %v1827 = vadd.f32 0.0, %v1826
      %v1828 = vpop.f32.mrf.mxu0
      %v1829 = vadd.f32 0.0, %v1828
      %1830 = vmatmul.bf16.gmra.mxu0 %v425
      %v1831 = vpop.f32.mrf.mxu0
      %v1832 = vadd.f32 0.0, %v1831
      %v1833 = vpop.f32.mrf.mxu0
      %v1834 = vadd.f32 0.0, %v1833
      %1835 = vdwg.mxu0
      %v1836 = vmul.f32 %v1827, %v449
      %v1837 = vmul.f32 %v1829, %v454
      %v1838 = vmul.f32 %v1832, %v459
      %v1839 = vmul.f32 %v1834, %v464
      %v1840 = vadd.f32 %v1836, %v473
      %v1841 = vadd.f32 %v1837, %v478
      %v1842 = vadd.f32 %v1838, %v483
      %v1843 = vadd.f32 %v1839, %v488
      %v1844 = vmax.f32 %v1840, 0.0
      %v1845 = vmax.f32 %v1841, 0.0
      %v1846 = vmax.f32 %v1842, 0.0
      %v1847 = vmax.f32 %v1843, 0.0
      %v1848 = vpack.c.bf16 %v1844, %v1844
      %v1849 = vpack.c.bf16 %v1845, %v1845
      %v1850 = vpack.c.bf16 %v1846, %v1846
      %v1851 = vpack.c.bf16 %v1847, %v1847
      %s1852 = scalar_lea.vmem %s300, 176
      %1853 = vst.msk [vmem:[%s1852] sm:$0xf] %vm502, %v1848
      %1854 = vst.msk [vmem:[%s1852 + $0x4] sm:$0xf] %vm502, %v1849
      %1855 = vst.msk [vmem:[%s1852 + $0x8] sm:$0xf] %vm502, %v1850
      %1856 = vst.msk [vmem:[%s1852 + $0xc] sm:$0xf] %vm502, %v1851
      %v1857 = vld [vmem:[%s279 + $0x4] sm:$0x4]
      %v1858 = vld [vmem:[%s279 + $0x10] sm:$0x4]
      %v1859 = vld [vmem:[%s279 + $0x1c] sm:$0x4]
      %v1860 = vld [vmem:[%s279 + $0x28] sm:$0x4]
      %v1861 = vld [vmem:[%s289 + $0x4] sm:$0x4]
      %v1862 = vld [vmem:[%s289 + $0x10] sm:$0x4]
      %v1863 = vld [vmem:[%s289 + $0x1c] sm:$0x4]
      %v1864 = vld [vmem:[%s289 + $0x28] sm:$0x4]
      %v1869 = vunpack.c.l.b16 %v1857
      %v1870 = vunpack.c.l.b16 %v1858
      %v1871 = vunpack.c.l.b16 %v1859
      %v1872 = vunpack.c.l.b16 %v1860
      %v1873 = vpack.c.b16 %v1869, %v1869
      %v1874 = vpack.c.b16 %v1870, %v1870
      %v1875 = vpack.c.b16 %v1871, %v1871
      %v1876 = vpack.c.b16 %v1872, %v1872
      %v1877 = vunpack.c.l.b16 %v1873
      %v1878 = vunpack.c.l.b16 %v1874
      %v1879 = vunpack.c.l.b16 %v1875
      %v1880 = vunpack.c.l.b16 %v1876
      %v1881 = vrot.slane %v1877, 4
      %v1882 = vrot.slane %v1878, 3
      %v1883 = vsel %vm340, %v1882, %v1881
      %v1884 = vrot.slane %v1879, 2
      %v1885 = vsel %vm343, %v1884, %v1883
      %v1886 = vrot.slane %v1880, 1
      %v1887 = vsel %vm346, %v1886, %v1885
      %v1888 = vpack.c.b16 %v1887, %v1887
      %v1889 = vrot.slane %v1878, 7
      %v1890 = vsel %vm351, %v1889, %v1877
      %v1891 = vrot.slane %v1879, 6
      %v1892 = vsel %vm354, %v1891, %v1890
      %v1893 = vrot.slane %v1880, 5
      %v1894 = vsel %vm357, %v1893, %v1892
      %v1895 = vpack.c.b16 %v1894, %v1894
      %1896 = vrot.lane.b32.xlu0 %v1895, 127
      %v1897 = vpop.permute.xlu0 %1896
      %v1902 = vunpack.c.l.b16 %v1861
      %v1903 = vunpack.c.l.b16 %v1862
      %v1904 = vunpack.c.l.b16 %v1863
      %v1905 = vunpack.c.l.b16 %v1864
      %v1906 = vpack.c.b16 %v1902, %v1902
      %v1907 = vpack.c.b16 %v1903, %v1903
      %v1908 = vpack.c.b16 %v1904, %v1904
      %v1909 = vpack.c.b16 %v1905, %v1905
      %v1910 = vunpack.c.l.b16 %v1906
      %v1911 = vunpack.c.l.b16 %v1907
      %v1912 = vunpack.c.l.b16 %v1908
      %v1913 = vunpack.c.l.b16 %v1909
      %v1914 = vrot.slane %v1910, 4
      %v1915 = vrot.slane %v1911, 3
      %v1916 = vsel %vm340, %v1915, %v1914
      %v1917 = vrot.slane %v1912, 2
      %v1918 = vsel %vm343, %v1917, %v1916
      %v1919 = vrot.slane %v1913, 1
      %v1920 = vsel %vm346, %v1919, %v1918
      %v1921 = vpack.c.b16 %v1920, %v1920
      %v1922 = vunpack.c.h.b16 %v1906
      %v1923 = vunpack.c.h.b16 %v1907
      %v1924 = vunpack.c.h.b16 %v1908
      %v1925 = vunpack.c.h.b16 %v1909
      %v1926 = vrot.slane %v1923, 7
      %v1927 = vsel %vm351, %v1926, %v1922
      %v1928 = vrot.slane %v1924, 6
      %v1929 = vsel %vm354, %v1928, %v1927
      %v1930 = vrot.slane %v1925, 5
      %v1931 = vsel %vm357, %v1930, %v1929
      %v1932 = vpack.c.b16 %v1931, %v1931
      %1933 = vrot.lane.b32.xlu0 %v1932, 127
      %v1934 = vpop.permute.xlu0 %1933
      %v1937 = vsel %vm399, %v1888, %v1897
      %v1939 = vsel %vm403, %v1937, %v1921
      %v1941 = vsel %vm406, %v1939, %v1934
      %1943 = vmatpush.bf16.msra.mxu0 0
      %1944 = vmatpush.bf16.msra.mxu0 0
      %1945 = vmatpush.bf16.msra.mxu0 0
      %1946 = vmatpush.bf16.msra.mxu0 0
      %1947 = vmatpush.bf16.msra.mxu0 0
      %1948 = vmatpush.bf16.msra.mxu0 0
      %1949 = vmatpush.bf16.msra.mxu0 0
      %1950 = vmatpush.bf16.msra.mxu0 %v1941
      %1951 = vmatmul.bf16.gmra.mxu0 %v422
      %v1952 = vpop.f32.mrf.mxu0
      %v1953 = vadd.f32 0.0, %v1952
      %v1954 = vpop.f32.mrf.mxu0
      %v1955 = vadd.f32 0.0, %v1954
      %1956 = vmatmul.bf16.gmra.mxu0 %v425
      %v1957 = vpop.f32.mrf.mxu0
      %v1958 = vadd.f32 0.0, %v1957
      %v1959 = vpop.f32.mrf.mxu0
      %v1960 = vadd.f32 0.0, %v1959
      %1961 = vdwg.mxu0
      %v1962 = vmul.f32 %v1953, %v449
      %v1963 = vmul.f32 %v1955, %v454
      %v1964 = vmul.f32 %v1958, %v459
      %v1965 = vmul.f32 %v1960, %v464
      %v1966 = vadd.f32 %v1962, %v473
      %v1967 = vadd.f32 %v1963, %v478
      %v1968 = vadd.f32 %v1964, %v483
      %v1969 = vadd.f32 %v1965, %v488
      %v1970 = vmax.f32 %v1966, 0.0
      %v1971 = vmax.f32 %v1967, 0.0
      %v1972 = vmax.f32 %v1968, 0.0
      %v1973 = vmax.f32 %v1969, 0.0
      %v1974 = vpack.c.bf16 %v1970, %v1970
      %v1975 = vpack.c.bf16 %v1971, %v1971
      %v1976 = vpack.c.bf16 %v1972, %v1972
      %v1977 = vpack.c.bf16 %v1973, %v1973
      %s1978 = scalar_lea.vmem %s300, 192
      %1979 = vst.msk [vmem:[%s1978] sm:$0xf] %vm502, %v1974
      %1980 = vst.msk [vmem:[%s1978 + $0x4] sm:$0xf] %vm502, %v1975
      %1981 = vst.msk [vmem:[%s1978 + $0x8] sm:$0xf] %vm502, %v1976
      %1982 = vst.msk [vmem:[%s1978 + $0xc] sm:$0xf] %vm502, %v1977
      %v1983 = vld [vmem:[%s279 + $0x4] sm:$0x4]
      %v1984 = vld [vmem:[%s279 + $0x10] sm:$0x4]
      %v1985 = vld [vmem:[%s279 + $0x1c] sm:$0x4]
      %v1986 = vld [vmem:[%s279 + $0x28] sm:$0x4]
      %v1987 = vld [vmem:[%s289 + $0x4] sm:$0x4]
      %v1988 = vld [vmem:[%s289 + $0x10] sm:$0x4]
      %v1989 = vld [vmem:[%s289 + $0x1c] sm:$0x4]
      %v1990 = vld [vmem:[%s289 + $0x28] sm:$0x4]
      %v1995 = vunpack.c.l.b16 %v1983
      %v1996 = vunpack.c.l.b16 %v1984
      %v1997 = vunpack.c.l.b16 %v1985
      %v1998 = vunpack.c.l.b16 %v1986
      %v1999 = vpack.c.b16 %v1995, %v1995
      %v2000 = vpack.c.b16 %v1996, %v1996
      %v2001 = vpack.c.b16 %v1997, %v1997
      %v2002 = vpack.c.b16 %v1998, %v1998
      %v2003 = vunpack.c.l.b16 %v1999
      %v2004 = vunpack.c.l.b16 %v2000
      %v2005 = vunpack.c.l.b16 %v2001
      %v2006 = vunpack.c.l.b16 %v2002
      %v2007 = vrot.slane %v2003, 5
      %v2008 = vrot.slane %v2004, 4
      %v2009 = vsel %vm340, %v2008, %v2007
      %v2010 = vrot.slane %v2005, 3
      %v2011 = vsel %vm343, %v2010, %v2009
      %v2012 = vrot.slane %v2006, 2
      %v2013 = vsel %vm346, %v2012, %v2011
      %v2014 = vpack.c.b16 %v2013, %v2013
      %v2015 = vrot.slane %v2003, 1
      %v2016 = vsel %vm351, %v2004, %v2015
      %v2017 = vrot.slane %v2005, 7
      %v2018 = vsel %vm354, %v2017, %v2016
      %v2019 = vrot.slane %v2006, 6
      %v2020 = vsel %vm357, %v2019, %v2018
      %v2021 = vpack.c.b16 %v2020, %v2020
      %2022 = vrot.lane.b32.xlu0 %v2021, 127
      %v2023 = vpop.permute.xlu0 %2022
      %v2028 = vunpack.c.l.b16 %v1987
      %v2029 = vunpack.c.l.b16 %v1988
      %v2030 = vunpack.c.l.b16 %v1989
      %v2031 = vunpack.c.l.b16 %v1990
      %v2032 = vpack.c.b16 %v2028, %v2028
      %v2033 = vpack.c.b16 %v2029, %v2029
      %v2034 = vpack.c.b16 %v2030, %v2030
      %v2035 = vpack.c.b16 %v2031, %v2031
      %v2036 = vunpack.c.l.b16 %v2032
      %v2037 = vunpack.c.l.b16 %v2033
      %v2038 = vunpack.c.l.b16 %v2034
      %v2039 = vunpack.c.l.b16 %v2035
      %v2040 = vrot.slane %v2036, 5
      %v2041 = vrot.slane %v2037, 4
      %v2042 = vsel %vm340, %v2041, %v2040
      %v2043 = vrot.slane %v2038, 3
      %v2044 = vsel %vm343, %v2043, %v2042
      %v2045 = vrot.slane %v2039, 2
      %v2046 = vsel %vm346, %v2045, %v2044
      %v2047 = vpack.c.b16 %v2046, %v2046
      %v2048 = vrot.slane %v2036, 1
      %v2049 = vsel %vm351, %v2037, %v2048
      %v2050 = vrot.slane %v2038, 7
      %v2051 = vsel %vm354, %v2050, %v2049
      %v2052 = vrot.slane %v2039, 6
      %v2053 = vsel %vm357, %v2052, %v2051
      %v2054 = vpack.c.b16 %v2053, %v2053
      %2055 = vrot.lane.b32.xlu0 %v2054, 127
      %v2056 = vpop.permute.xlu0 %2055
      %v2059 = vsel %vm399, %v2014, %v2023
      %v2061 = vsel %vm403, %v2059, %v2047
      %v2063 = vsel %vm406, %v2061, %v2056
      %2065 = vmatpush.bf16.msra.mxu0 0
      %2066 = vmatpush.bf16.msra.mxu0 0
      %2067 = vmatpush.bf16.msra.mxu0 0
      %2068 = vmatpush.bf16.msra.mxu0 0
      %2069 = vmatpush.bf16.msra.mxu0 0
      %2070 = vmatpush.bf16.msra.mxu0 0
      %2071 = vmatpush.bf16.msra.mxu0 0
      %2072 = vmatpush.bf16.msra.mxu0 %v2063
      %2073 = vmatmul.bf16.gmra.mxu0 %v422
      %v2074 = vpop.f32.mrf.mxu0
      %v2075 = vadd.f32 0.0, %v2074
      %v2076 = vpop.f32.mrf.mxu0
      %v2077 = vadd.f32 0.0, %v2076
      %2078 = vmatmul.bf16.gmra.mxu0 %v425
      %v2079 = vpop.f32.mrf.mxu0
      %v2080 = vadd.f32 0.0, %v2079
      %v2081 = vpop.f32.mrf.mxu0
      %v2082 = vadd.f32 0.0, %v2081
      %2083 = vdwg.mxu0
      %v2084 = vmul.f32 %v2075, %v449
      %v2085 = vmul.f32 %v2077, %v454
      %v2086 = vmul.f32 %v2080, %v459
      %v2087 = vmul.f32 %v2082, %v464
      %v2088 = vadd.f32 %v2084, %v473
      %v2089 = vadd.f32 %v2085, %v478
      %v2090 = vadd.f32 %v2086, %v483
      %v2091 = vadd.f32 %v2087, %v488
      %v2092 = vmax.f32 %v2088, 0.0
      %v2093 = vmax.f32 %v2089, 0.0
      %v2094 = vmax.f32 %v2090, 0.0
      %v2095 = vmax.f32 %v2091, 0.0
      %v2096 = vpack.c.bf16 %v2092, %v2092
      %v2097 = vpack.c.bf16 %v2093, %v2093
      %v2098 = vpack.c.bf16 %v2094, %v2094
      %v2099 = vpack.c.bf16 %v2095, %v2095
      %s2100 = scalar_lea.vmem %s300, 208
      %2101 = vst.msk [vmem:[%s2100] sm:$0xf] %vm502, %v2096
      %2102 = vst.msk [vmem:[%s2100 + $0x4] sm:$0xf] %vm502, %v2097
      %2103 = vst.msk [vmem:[%s2100 + $0x8] sm:$0xf] %vm502, %v2098
      %2104 = vst.msk [vmem:[%s2100 + $0xc] sm:$0xf] %vm502, %v2099
      %v2105 = vld [vmem:[%s279 + $0x4] sm:$0x8]
      %v2106 = vld [vmem:[%s279 + $0x10] sm:$0x8]
      %v2107 = vld [vmem:[%s279 + $0x1c] sm:$0x8]
      %v2108 = vld [vmem:[%s279 + $0x28] sm:$0x8]
      %v2109 = vld [vmem:[%s289 + $0x4] sm:$0x8]
      %v2110 = vld [vmem:[%s289 + $0x10] sm:$0x8]
      %v2111 = vld [vmem:[%s289 + $0x1c] sm:$0x8]
      %v2112 = vld [vmem:[%s289 + $0x28] sm:$0x8]
      %v2117 = vunpack.c.l.b16 %v2105
      %v2118 = vunpack.c.l.b16 %v2106
      %v2119 = vunpack.c.l.b16 %v2107
      %v2120 = vunpack.c.l.b16 %v2108
      %v2121 = vpack.c.b16 %v2117, %v2117
      %v2122 = vpack.c.b16 %v2118, %v2118
      %v2123 = vpack.c.b16 %v2119, %v2119
      %v2124 = vpack.c.b16 %v2120, %v2120
      %v2125 = vunpack.c.l.b16 %v2121
      %v2126 = vunpack.c.l.b16 %v2122
      %v2127 = vunpack.c.l.b16 %v2123
      %v2128 = vunpack.c.l.b16 %v2124
      %v2129 = vrot.slane %v2125, 6
      %v2130 = vrot.slane %v2126, 5
      %v2131 = vsel %vm340, %v2130, %v2129
      %v2132 = vrot.slane %v2127, 4
      %v2133 = vsel %vm343, %v2132, %v2131
      %v2134 = vrot.slane %v2128, 3
      %v2135 = vsel %vm346, %v2134, %v2133
      %v2136 = vpack.c.b16 %v2135, %v2135
      %v2137 = vrot.slane %v2125, 2
      %v2138 = vrot.slane %v2126, 1
      %v2139 = vsel %vm351, %v2138, %v2137
      %v2140 = vsel %vm354, %v2127, %v2139
      %v2141 = vrot.slane %v2128, 7
      %v2142 = vsel %vm357, %v2141, %v2140
      %v2143 = vpack.c.b16 %v2142, %v2142
      %2144 = vrot.lane.b32.xlu0 %v2143, 127
      %v2145 = vpop.permute.xlu0 %2144
      %v2150 = vunpack.c.l.b16 %v2109
      %v2151 = vunpack.c.l.b16 %v2110
      %v2152 = vunpack.c.l.b16 %v2111
      %v2153 = vunpack.c.l.b16 %v2112
      %v2154 = vpack.c.b16 %v2150, %v2150
      %v2155 = vpack.c.b16 %v2151, %v2151
      %v2156 = vpack.c.b16 %v2152, %v2152
      %v2157 = vpack.c.b16 %v2153, %v2153
      %v2158 = vunpack.c.l.b16 %v2154
      %v2159 = vunpack.c.l.b16 %v2155
      %v2160 = vunpack.c.l.b16 %v2156
      %v2161 = vunpack.c.l.b16 %v2157
      %v2162 = vrot.slane %v2158, 6
      %v2163 = vrot.slane %v2159, 5
      %v2164 = vsel %vm340, %v2163, %v2162
      %v2165 = vrot.slane %v2160, 4
      %v2166 = vsel %vm343, %v2165, %v2164
      %v2167 = vrot.slane %v2161, 3
      %v2168 = vsel %vm346, %v2167, %v2166
      %v2169 = vpack.c.b16 %v2168, %v2168
      %v2170 = vrot.slane %v2158, 2
      %v2171 = vrot.slane %v2159, 1
      %v2172 = vsel %vm351, %v2171, %v2170
      %v2173 = vsel %vm354, %v2160, %v2172
      %v2174 = vrot.slane %v2161, 7
      %v2175 = vsel %vm357, %v2174, %v2173
      %v2176 = vpack.c.b16 %v2175, %v2175
      %2177 = vrot.lane.b32.xlu0 %v2176, 127
      %v2178 = vpop.permute.xlu0 %2177
      %v2181 = vsel %vm399, %v2136, %v2145
      %v2183 = vsel %vm403, %v2181, %v2169
      %v2185 = vsel %vm406, %v2183, %v2178
      %2187 = vmatpush.bf16.msra.mxu0 0
      %2188 = vmatpush.bf16.msra.mxu0 0
      %2189 = vmatpush.bf16.msra.mxu0 0
      %2190 = vmatpush.bf16.msra.mxu0 0
      %2191 = vmatpush.bf16.msra.mxu0 0
      %2192 = vmatpush.bf16.msra.mxu0 0
      %2193 = vmatpush.bf16.msra.mxu0 0
      %2194 = vmatpush.bf16.msra.mxu0 %v2185
      %2195 = vmatmul.bf16.gmra.mxu0 %v422
      %v2196 = vpop.f32.mrf.mxu0
      %v2197 = vadd.f32 0.0, %v2196
      %v2198 = vpop.f32.mrf.mxu0
      %v2199 = vadd.f32 0.0, %v2198
      %2200 = vmatmul.bf16.gmra.mxu0 %v425
      %v2201 = vpop.f32.mrf.mxu0
      %v2202 = vadd.f32 0.0, %v2201
      %v2203 = vpop.f32.mrf.mxu0
      %v2204 = vadd.f32 0.0, %v2203
      %2205 = vdwg.mxu0
      %v2206 = vmul.f32 %v2197, %v449
      %v2207 = vmul.f32 %v2199, %v454
      %v2208 = vmul.f32 %v2202, %v459
      %v2209 = vmul.f32 %v2204, %v464
      %v2210 = vadd.f32 %v2206, %v473
      %v2211 = vadd.f32 %v2207, %v478
      %v2212 = vadd.f32 %v2208, %v483
      %v2213 = vadd.f32 %v2209, %v488
      %v2214 = vmax.f32 %v2210, 0.0
      %v2215 = vmax.f32 %v2211, 0.0
      %v2216 = vmax.f32 %v2212, 0.0
      %v2217 = vmax.f32 %v2213, 0.0
      %v2218 = vpack.c.bf16 %v2214, %v2214
      %v2219 = vpack.c.bf16 %v2215, %v2215
      %v2220 = vpack.c.bf16 %v2216, %v2216
      %v2221 = vpack.c.bf16 %v2217, %v2217
      %s2222 = scalar_lea.vmem %s300, 224
      %2223 = vst.msk [vmem:[%s2222] sm:$0xf] %vm502, %v2218
      %2224 = vst.msk [vmem:[%s2222 + $0x4] sm:$0xf] %vm502, %v2219
      %2225 = vst.msk [vmem:[%s2222 + $0x8] sm:$0xf] %vm502, %v2220
      %2226 = vst.msk [vmem:[%s2222 + $0xc] sm:$0xf] %vm502, %v2221
      %v2227 = vld [vmem:[%s279 + $0x4] sm:$0x8]
      %v2228 = vld [vmem:[%s279 + $0x10] sm:$0x8]
      %v2229 = vld [vmem:[%s279 + $0x1c] sm:$0x8]
      %v2230 = vld [vmem:[%s279 + $0x28] sm:$0x8]
      %v2231 = vld [vmem:[%s289 + $0x4] sm:$0x8]
      %v2232 = vld [vmem:[%s289 + $0x10] sm:$0x8]
      %v2233 = vld [vmem:[%s289 + $0x1c] sm:$0x8]
      %v2234 = vld [vmem:[%s289 + $0x28] sm:$0x8]
      %v2239 = vunpack.c.l.b16 %v2227
      %v2240 = vunpack.c.l.b16 %v2228
      %v2241 = vunpack.c.l.b16 %v2229
      %v2242 = vunpack.c.l.b16 %v2230
      %v2243 = vpack.c.b16 %v2239, %v2239
      %v2244 = vpack.c.b16 %v2240, %v2240
      %v2245 = vpack.c.b16 %v2241, %v2241
      %v2246 = vpack.c.b16 %v2242, %v2242
      %v2247 = vunpack.c.l.b16 %v2243
      %v2248 = vunpack.c.l.b16 %v2244
      %v2249 = vunpack.c.l.b16 %v2245
      %v2250 = vunpack.c.l.b16 %v2246
      %v2251 = vrot.slane %v2247, 7
      %v2252 = vrot.slane %v2248, 6
      %v2253 = vsel %vm340, %v2252, %v2251
      %v2254 = vrot.slane %v2249, 5
      %v2255 = vsel %vm343, %v2254, %v2253
      %v2256 = vrot.slane %v2250, 4
      %v2257 = vsel %vm346, %v2256, %v2255
      %v2258 = vpack.c.b16 %v2257, %v2257
      %v2259 = vrot.slane %v2247, 3
      %v2260 = vrot.slane %v2248, 2
      %v2261 = vsel %vm351, %v2260, %v2259
      %v2262 = vrot.slane %v2249, 1
      %v2263 = vsel %vm354, %v2262, %v2261
      %v2264 = vsel %vm357, %v2250, %v2263
      %v2265 = vpack.c.b16 %v2264, %v2264
      %2266 = vrot.lane.b32.xlu0 %v2265, 127
      %v2267 = vpop.permute.xlu0 %2266
      %v2272 = vunpack.c.l.b16 %v2231
      %v2273 = vunpack.c.l.b16 %v2232
      %v2274 = vunpack.c.l.b16 %v2233
      %v2275 = vunpack.c.l.b16 %v2234
      %v2276 = vpack.c.b16 %v2272, %v2272
      %v2277 = vpack.c.b16 %v2273, %v2273
      %v2278 = vpack.c.b16 %v2274, %v2274
      %v2279 = vpack.c.b16 %v2275, %v2275
      %v2280 = vunpack.c.l.b16 %v2276
      %v2281 = vunpack.c.l.b16 %v2277
      %v2282 = vunpack.c.l.b16 %v2278
      %v2283 = vunpack.c.l.b16 %v2279
      %v2284 = vrot.slane %v2280, 7
      %v2285 = vrot.slane %v2281, 6
      %v2286 = vsel %vm340, %v2285, %v2284
      %v2287 = vrot.slane %v2282, 5
      %v2288 = vsel %vm343, %v2287, %v2286
      %v2289 = vrot.slane %v2283, 4
      %v2290 = vsel %vm346, %v2289, %v2288
      %v2291 = vpack.c.b16 %v2290, %v2290
      %v2292 = vrot.slane %v2280, 3
      %v2293 = vrot.slane %v2281, 2
      %v2294 = vsel %vm351, %v2293, %v2292
      %v2295 = vrot.slane %v2282, 1
      %v2296 = vsel %vm354, %v2295, %v2294
      %v2297 = vsel %vm357, %v2283, %v2296
      %v2298 = vpack.c.b16 %v2297, %v2297
      %2299 = vrot.lane.b32.xlu0 %v2298, 127
      %v2300 = vpop.permute.xlu0 %2299
      %v2303 = vsel %vm399, %v2258, %v2267
      %v2305 = vsel %vm403, %v2303, %v2291
      %v2307 = vsel %vm406, %v2305, %v2300
      %2309 = vmatpush.bf16.msra.mxu0 0
      %2310 = vmatpush.bf16.msra.mxu0 0
      %2311 = vmatpush.bf16.msra.mxu0 0
      %2312 = vmatpush.bf16.msra.mxu0 0
      %2313 = vmatpush.bf16.msra.mxu0 0
      %2314 = vmatpush.bf16.msra.mxu0 0
      %2315 = vmatpush.bf16.msra.mxu0 0
      %2316 = vmatpush.bf16.msra.mxu0 %v2307
      %2317 = vmatmul.bf16.gmra.mxu0 %v422
      %v2318 = vpop.f32.mrf.mxu0
      %v2319 = vadd.f32 0.0, %v2318
      %v2320 = vpop.f32.mrf.mxu0
      %v2321 = vadd.f32 0.0, %v2320
      %2322 = vmatmul.bf16.gmra.mxu0 %v425
      %v2323 = vpop.f32.mrf.mxu0
      %v2324 = vadd.f32 0.0, %v2323
      %v2325 = vpop.f32.mrf.mxu0
      %v2326 = vadd.f32 0.0, %v2325
      %2327 = vdwg.mxu0
      %v2328 = vmul.f32 %v2319, %v449
      %v2329 = vmul.f32 %v2321, %v454
      %v2330 = vmul.f32 %v2324, %v459
      %v2331 = vmul.f32 %v2326, %v464
      %v2332 = vadd.f32 %v2328, %v473
      %v2333 = vadd.f32 %v2329, %v478
      %v2334 = vadd.f32 %v2330, %v483
      %v2335 = vadd.f32 %v2331, %v488
      %v2336 = vmax.f32 %v2332, 0.0
      %v2337 = vmax.f32 %v2333, 0.0
      %v2338 = vmax.f32 %v2334, 0.0
      %v2339 = vmax.f32 %v2335, 0.0
      %v2340 = vpack.c.bf16 %v2336, %v2336
      %v2341 = vpack.c.bf16 %v2337, %v2337
      %v2342 = vpack.c.bf16 %v2338, %v2338
      %v2343 = vpack.c.bf16 %v2339, %v2339
      %s2344 = scalar_lea.vmem %s300, 240
      %2345 = vst.msk [vmem:[%s2344] sm:$0xf] %vm502, %v2340
      %2346 = vst.msk [vmem:[%s2344 + $0x4] sm:$0xf] %vm502, %v2341
      %2347 = vst.msk [vmem:[%s2344 + $0x8] sm:$0xf] %vm502, %v2342
      %2348 = vst.msk [vmem:[%s2344 + $0xc] sm:$0xf] %vm502, %v2343
      %v2349 = vld [vmem:[%s279 + $0x8] sm:$0x1]
      %v2350 = vld [vmem:[%s279 + $0x14] sm:$0x1]
      %v2351 = vld [vmem:[%s279 + $0x20] sm:$0x1]
      %v2352 = vld [vmem:[%s279 + $0x2c] sm:$0x1]
      %v2353 = vld [vmem:[%s289 + $0x8] sm:$0x1]
      %v2354 = vld [vmem:[%s289 + $0x14] sm:$0x1]
      %v2355 = vld [vmem:[%s289 + $0x20] sm:$0x1]
      %v2356 = vld [vmem:[%s289 + $0x2c] sm:$0x1]
      %v2361 = vunpack.c.l.b16 %v2349
      %v2362 = vunpack.c.l.b16 %v2350
      %v2363 = vunpack.c.l.b16 %v2351
      %v2364 = vunpack.c.l.b16 %v2352
      %v2365 = vpack.c.b16 %v2361, %v2361
      %v2366 = vpack.c.b16 %v2362, %v2362
      %v2367 = vpack.c.b16 %v2363, %v2363
      %v2368 = vpack.c.b16 %v2364, %v2364
      %v2369 = vunpack.c.l.b16 %v2365
      %v2370 = vunpack.c.l.b16 %v2366
      %v2371 = vunpack.c.l.b16 %v2367
      %v2372 = vunpack.c.l.b16 %v2368
      %v2373 = vrot.slane %v2370, 7
      %v2374 = vsel %vm340, %v2373, %v2369
      %v2375 = vrot.slane %v2371, 6
      %v2376 = vsel %vm343, %v2375, %v2374
      %v2377 = vrot.slane %v2372, 5
      %v2378 = vsel %vm346, %v2377, %v2376
      %v2379 = vpack.c.b16 %v2378, %v2378
      %v2380 = vrot.slane %v2369, 4
      %v2381 = vrot.slane %v2370, 3
      %v2382 = vsel %vm351, %v2381, %v2380
      %v2383 = vrot.slane %v2371, 2
      %v2384 = vsel %vm354, %v2383, %v2382
      %v2385 = vrot.slane %v2372, 1
      %v2386 = vsel %vm357, %v2385, %v2384
      %v2387 = vpack.c.b16 %v2386, %v2386
      %2388 = vrot.lane.b32.xlu0 %v2387, 127
      %v2389 = vpop.permute.xlu0 %2388
      %v2394 = vunpack.c.l.b16 %v2353
      %v2395 = vunpack.c.l.b16 %v2354
      %v2396 = vunpack.c.l.b16 %v2355
      %v2397 = vunpack.c.l.b16 %v2356
      %v2398 = vpack.c.b16 %v2394, %v2394
      %v2399 = vpack.c.b16 %v2395, %v2395
      %v2400 = vpack.c.b16 %v2396, %v2396
      %v2401 = vpack.c.b16 %v2397, %v2397
      %v2402 = vunpack.c.h.b16 %v2398
      %v2403 = vunpack.c.h.b16 %v2399
      %v2404 = vunpack.c.h.b16 %v2400
      %v2405 = vunpack.c.h.b16 %v2401
      %v2406 = vrot.slane %v2403, 7
      %v2407 = vsel %vm340, %v2406, %v2402
      %v2408 = vrot.slane %v2404, 6
      %v2409 = vsel %vm343, %v2408, %v2407
      %v2410 = vrot.slane %v2405, 5
      %v2411 = vsel %vm346, %v2410, %v2409
      %v2412 = vpack.c.b16 %v2411, %v2411
      %v2413 = vunpack.c.l.b16 %v2398
      %v2414 = vunpack.c.l.b16 %v2399
      %v2415 = vunpack.c.l.b16 %v2400
      %v2416 = vunpack.c.l.b16 %v2401
      %v2417 = vrot.slane %v2413, 4
      %v2418 = vrot.slane %v2414, 3
      %v2419 = vsel %vm351, %v2418, %v2417
      %v2420 = vrot.slane %v2415, 2
      %v2421 = vsel %vm354, %v2420, %v2419
      %v2422 = vrot.slane %v2416, 1
      %v2423 = vsel %vm357, %v2422, %v2421
      %v2424 = vpack.c.b16 %v2423, %v2423
      %2425 = vrot.lane.b32.xlu0 %v2424, 127
      %v2426 = vpop.permute.xlu0 %2425
      %v2429 = vsel %vm399, %v2379, %v2389
      %v2431 = vsel %vm403, %v2429, %v2412
      %v2433 = vsel %vm406, %v2431, %v2426
      %2435 = vmatpush.bf16.msra.mxu0 0
      %2436 = vmatpush.bf16.msra.mxu0 0
      %2437 = vmatpush.bf16.msra.mxu0 0
      %2438 = vmatpush.bf16.msra.mxu0 0
      %2439 = vmatpush.bf16.msra.mxu0 0
      %2440 = vmatpush.bf16.msra.mxu0 0
      %2441 = vmatpush.bf16.msra.mxu0 0
      %2442 = vmatpush.bf16.msra.mxu0 %v2433
      %2443 = vmatmul.bf16.gmra.mxu0 %v422
      %v2444 = vpop.f32.mrf.mxu0
      %v2445 = vadd.f32 0.0, %v2444
      %v2446 = vpop.f32.mrf.mxu0
      %v2447 = vadd.f32 0.0, %v2446
      %2448 = vmatmul.bf16.gmra.mxu0 %v425
      %v2449 = vpop.f32.mrf.mxu0
      %v2450 = vadd.f32 0.0, %v2449
      %v2451 = vpop.f32.mrf.mxu0
      %v2452 = vadd.f32 0.0, %v2451
      %2453 = vdwg.mxu0
      %v2454 = vmul.f32 %v2445, %v449
      %v2455 = vmul.f32 %v2447, %v454
      %v2456 = vmul.f32 %v2450, %v459
      %v2457 = vmul.f32 %v2452, %v464
      %v2458 = vadd.f32 %v2454, %v473
      %v2459 = vadd.f32 %v2455, %v478
      %v2460 = vadd.f32 %v2456, %v483
      %v2461 = vadd.f32 %v2457, %v488
      %v2462 = vmax.f32 %v2458, 0.0
      %v2463 = vmax.f32 %v2459, 0.0
      %v2464 = vmax.f32 %v2460, 0.0
      %v2465 = vmax.f32 %v2461, 0.0
      %v2466 = vpack.c.bf16 %v2462, %v2462
      %v2467 = vpack.c.bf16 %v2463, %v2463
      %v2468 = vpack.c.bf16 %v2464, %v2464
      %v2469 = vpack.c.bf16 %v2465, %v2465
      %s2470 = scalar_lea.vmem %s300, 256
      %2471 = vst.msk [vmem:[%s2470] sm:$0xf] %vm502, %v2466
      %2472 = vst.msk [vmem:[%s2470 + $0x4] sm:$0xf] %vm502, %v2467
      %2473 = vst.msk [vmem:[%s2470 + $0x8] sm:$0xf] %vm502, %v2468
      %2474 = vst.msk [vmem:[%s2470 + $0xc] sm:$0xf] %vm502, %v2469
      %v2475 = vld [vmem:[%s279 + $0x8] sm:$0x1]
      %v2476 = vld [vmem:[%s279 + $0x14] sm:$0x1]
      %v2477 = vld [vmem:[%s279 + $0x20] sm:$0x1]
      %v2478 = vld [vmem:[%s279 + $0x2c] sm:$0x1]
      %v2479 = vld [vmem:[%s289 + $0x8] sm:$0x1]
      %v2480 = vld [vmem:[%s289 + $0x14] sm:$0x1]
      %v2481 = vld [vmem:[%s289 + $0x20] sm:$0x1]
      %v2482 = vld [vmem:[%s289 + $0x2c] sm:$0x1]
      %v2487 = vunpack.c.l.b16 %v2475
      %v2488 = vunpack.c.l.b16 %v2476
      %v2489 = vunpack.c.l.b16 %v2477
      %v2490 = vunpack.c.l.b16 %v2478
      %v2491 = vpack.c.b16 %v2487, %v2487
      %v2492 = vpack.c.b16 %v2488, %v2488
      %v2493 = vpack.c.b16 %v2489, %v2489
      %v2494 = vpack.c.b16 %v2490, %v2490
      %v2495 = vunpack.c.l.b16 %v2491
      %v2496 = vunpack.c.l.b16 %v2492
      %v2497 = vunpack.c.l.b16 %v2493
      %v2498 = vunpack.c.l.b16 %v2494
      %v2499 = vrot.slane %v2495, 1
      %v2500 = vsel %vm340, %v2496, %v2499
      %v2501 = vrot.slane %v2497, 7
      %v2502 = vsel %vm343, %v2501, %v2500
      %v2503 = vrot.slane %v2498, 6
      %v2504 = vsel %vm346, %v2503, %v2502
      %v2505 = vpack.c.b16 %v2504, %v2504
      %v2506 = vrot.slane %v2495, 5
      %v2507 = vrot.slane %v2496, 4
      %v2508 = vsel %vm351, %v2507, %v2506
      %v2509 = vrot.slane %v2497, 3
      %v2510 = vsel %vm354, %v2509, %v2508
      %v2511 = vrot.slane %v2498, 2
      %v2512 = vsel %vm357, %v2511, %v2510
      %v2513 = vpack.c.b16 %v2512, %v2512
      %2514 = vrot.lane.b32.xlu0 %v2513, 127
      %v2515 = vpop.permute.xlu0 %2514
      %v2520 = vunpack.c.l.b16 %v2479
      %v2521 = vunpack.c.l.b16 %v2480
      %v2522 = vunpack.c.l.b16 %v2481
      %v2523 = vunpack.c.l.b16 %v2482
      %v2524 = vpack.c.b16 %v2520, %v2520
      %v2525 = vpack.c.b16 %v2521, %v2521
      %v2526 = vpack.c.b16 %v2522, %v2522
      %v2527 = vpack.c.b16 %v2523, %v2523
      %v2528 = vunpack.c.l.b16 %v2524
      %v2529 = vunpack.c.l.b16 %v2525
      %v2530 = vunpack.c.l.b16 %v2526
      %v2531 = vunpack.c.l.b16 %v2527
      %v2532 = vrot.slane %v2528, 1
      %v2533 = vsel %vm340, %v2529, %v2532
      %v2534 = vrot.slane %v2530, 7
      %v2535 = vsel %vm343, %v2534, %v2533
      %v2536 = vrot.slane %v2531, 6
      %v2537 = vsel %vm346, %v2536, %v2535
      %v2538 = vpack.c.b16 %v2537, %v2537
      %v2539 = vrot.slane %v2528, 5
      %v2540 = vrot.slane %v2529, 4
      %v2541 = vsel %vm351, %v2540, %v2539
      %v2542 = vrot.slane %v2530, 3
      %v2543 = vsel %vm354, %v2542, %v2541
      %v2544 = vrot.slane %v2531, 2
      %v2545 = vsel %vm357, %v2544, %v2543
      %v2546 = vpack.c.b16 %v2545, %v2545
      %2547 = vrot.lane.b32.xlu0 %v2546, 127
      %v2548 = vpop.permute.xlu0 %2547
      %v2551 = vsel %vm399, %v2505, %v2515
      %v2553 = vsel %vm403, %v2551, %v2538
      %v2555 = vsel %vm406, %v2553, %v2548
      %2557 = vmatpush.bf16.msra.mxu0 0
      %2558 = vmatpush.bf16.msra.mxu0 0
      %2559 = vmatpush.bf16.msra.mxu0 0
      %2560 = vmatpush.bf16.msra.mxu0 0
      %2561 = vmatpush.bf16.msra.mxu0 0
      %2562 = vmatpush.bf16.msra.mxu0 0
      %2563 = vmatpush.bf16.msra.mxu0 0
      %2564 = vmatpush.bf16.msra.mxu0 %v2555
      %2565 = vmatmul.bf16.gmra.mxu0 %v422
      %v2566 = vpop.f32.mrf.mxu0
      %v2567 = vadd.f32 0.0, %v2566
      %v2568 = vpop.f32.mrf.mxu0
      %v2569 = vadd.f32 0.0, %v2568
      %2570 = vmatmul.bf16.gmra.mxu0 %v425
      %v2571 = vpop.f32.mrf.mxu0
      %v2572 = vadd.f32 0.0, %v2571
      %v2573 = vpop.f32.mrf.mxu0
      %v2574 = vadd.f32 0.0, %v2573
      %2575 = vdwg.mxu0
      %v2576 = vmul.f32 %v2567, %v449
      %v2577 = vmul.f32 %v2569, %v454
      %v2578 = vmul.f32 %v2572, %v459
      %v2579 = vmul.f32 %v2574, %v464
      %v2580 = vadd.f32 %v2576, %v473
      %v2581 = vadd.f32 %v2577, %v478
      %v2582 = vadd.f32 %v2578, %v483
      %v2583 = vadd.f32 %v2579, %v488
      %v2584 = vmax.f32 %v2580, 0.0
      %v2585 = vmax.f32 %v2581, 0.0
      %v2586 = vmax.f32 %v2582, 0.0
      %v2587 = vmax.f32 %v2583, 0.0
      %v2588 = vpack.c.bf16 %v2584, %v2584
      %v2589 = vpack.c.bf16 %v2585, %v2585
      %v2590 = vpack.c.bf16 %v2586, %v2586
      %v2591 = vpack.c.bf16 %v2587, %v2587
      %s2592 = scalar_lea.vmem %s300, 272
      %2593 = vst.msk [vmem:[%s2592] sm:$0xf] %vm502, %v2588
      %2594 = vst.msk [vmem:[%s2592 + $0x4] sm:$0xf] %vm502, %v2589
      %2595 = vst.msk [vmem:[%s2592 + $0x8] sm:$0xf] %vm502, %v2590
      %2596 = vst.msk [vmem:[%s2592 + $0xc] sm:$0xf] %vm502, %v2591
      %v2597 = vld [vmem:[%s279 + $0x8] sm:$0x2]
      %v2598 = vld [vmem:[%s279 + $0x14] sm:$0x2]
      %v2599 = vld [vmem:[%s279 + $0x20] sm:$0x2]
      %v2600 = vld [vmem:[%s279 + $0x2c] sm:$0x2]
      %v2601 = vld [vmem:[%s289 + $0x8] sm:$0x2]
      %v2602 = vld [vmem:[%s289 + $0x14] sm:$0x2]
      %v2603 = vld [vmem:[%s289 + $0x20] sm:$0x2]
      %v2604 = vld [vmem:[%s289 + $0x2c] sm:$0x2]
      %v2609 = vunpack.c.l.b16 %v2597
      %v2610 = vunpack.c.l.b16 %v2598
      %v2611 = vunpack.c.l.b16 %v2599
      %v2612 = vunpack.c.l.b16 %v2600
      %v2613 = vpack.c.b16 %v2609, %v2609
      %v2614 = vpack.c.b16 %v2610, %v2610
      %v2615 = vpack.c.b16 %v2611, %v2611
      %v2616 = vpack.c.b16 %v2612, %v2612
      %v2617 = vunpack.c.l.b16 %v2613
      %v2618 = vunpack.c.l.b16 %v2614
      %v2619 = vunpack.c.l.b16 %v2615
      %v2620 = vunpack.c.l.b16 %v2616
      %v2621 = vrot.slane %v2617, 2
      %v2622 = vrot.slane %v2618, 1
      %v2623 = vsel %vm340, %v2622, %v2621
      %v2624 = vsel %vm343, %v2619, %v2623
      %v2625 = vrot.slane %v2620, 7
      %v2626 = vsel %vm346, %v2625, %v2624
      %v2627 = vpack.c.b16 %v2626, %v2626
      %v2628 = vrot.slane %v2617, 6
      %v2629 = vrot.slane %v2618, 5
      %v2630 = vsel %vm351, %v2629, %v2628
      %v2631 = vrot.slane %v2619, 4
      %v2632 = vsel %vm354, %v2631, %v2630
      %v2633 = vrot.slane %v2620, 3
      %v2634 = vsel %vm357, %v2633, %v2632
      %v2635 = vpack.c.b16 %v2634, %v2634
      %2636 = vrot.lane.b32.xlu0 %v2635, 127
      %v2637 = vpop.permute.xlu0 %2636
      %v2642 = vunpack.c.l.b16 %v2601
      %v2643 = vunpack.c.l.b16 %v2602
      %v2644 = vunpack.c.l.b16 %v2603
      %v2645 = vunpack.c.l.b16 %v2604
      %v2646 = vpack.c.b16 %v2642, %v2642
      %v2647 = vpack.c.b16 %v2643, %v2643
      %v2648 = vpack.c.b16 %v2644, %v2644
      %v2649 = vpack.c.b16 %v2645, %v2645
      %v2650 = vunpack.c.l.b16 %v2646
      %v2651 = vunpack.c.l.b16 %v2647
      %v2652 = vunpack.c.l.b16 %v2648
      %v2653 = vunpack.c.l.b16 %v2649
      %v2654 = vrot.slane %v2650, 2
      %v2655 = vrot.slane %v2651, 1
      %v2656 = vsel %vm340, %v2655, %v2654
      %v2657 = vsel %vm343, %v2652, %v2656
      %v2658 = vrot.slane %v2653, 7
      %v2659 = vsel %vm346, %v2658, %v2657
      %v2660 = vpack.c.b16 %v2659, %v2659
      %v2661 = vrot.slane %v2650, 6
      %v2662 = vrot.slane %v2651, 5
      %v2663 = vsel %vm351, %v2662, %v2661
      %v2664 = vrot.slane %v2652, 4
      %v2665 = vsel %vm354, %v2664, %v2663
      %v2666 = vrot.slane %v2653, 3
      %v2667 = vsel %vm357, %v2666, %v2665
      %v2668 = vpack.c.b16 %v2667, %v2667
      %2669 = vrot.lane.b32.xlu0 %v2668, 127
      %v2670 = vpop.permute.xlu0 %2669
      %v2673 = vsel %vm399, %v2627, %v2637
      %v2675 = vsel %vm403, %v2673, %v2660
      %v2677 = vsel %vm406, %v2675, %v2670
      %2679 = vmatpush.bf16.msra.mxu0 0
      %2680 = vmatpush.bf16.msra.mxu0 0
      %2681 = vmatpush.bf16.msra.mxu0 0
      %2682 = vmatpush.bf16.msra.mxu0 0
      %2683 = vmatpush.bf16.msra.mxu0 0
      %2684 = vmatpush.bf16.msra.mxu0 0
      %2685 = vmatpush.bf16.msra.mxu0 0
      %2686 = vmatpush.bf16.msra.mxu0 %v2677
      %2687 = vmatmul.bf16.gmra.mxu0 %v422
      %v2688 = vpop.f32.mrf.mxu0
      %v2689 = vadd.f32 0.0, %v2688
      %v2690 = vpop.f32.mrf.mxu0
      %v2691 = vadd.f32 0.0, %v2690
      %2692 = vmatmul.bf16.gmra.mxu0 %v425
      %v2693 = vpop.f32.mrf.mxu0
      %v2694 = vadd.f32 0.0, %v2693
      %v2695 = vpop.f32.mrf.mxu0
      %v2696 = vadd.f32 0.0, %v2695
      %2697 = vdwg.mxu0
      %v2698 = vmul.f32 %v2689, %v449
      %v2699 = vmul.f32 %v2691, %v454
      %v2700 = vmul.f32 %v2694, %v459
      %v2701 = vmul.f32 %v2696, %v464
      %v2702 = vadd.f32 %v2698, %v473
      %v2703 = vadd.f32 %v2699, %v478
      %v2704 = vadd.f32 %v2700, %v483
      %v2705 = vadd.f32 %v2701, %v488
      %v2706 = vmax.f32 %v2702, 0.0
      %v2707 = vmax.f32 %v2703, 0.0
      %v2708 = vmax.f32 %v2704, 0.0
      %v2709 = vmax.f32 %v2705, 0.0
      %v2710 = vpack.c.bf16 %v2706, %v2706
      %v2711 = vpack.c.bf16 %v2707, %v2707
      %v2712 = vpack.c.bf16 %v2708, %v2708
      %v2713 = vpack.c.bf16 %v2709, %v2709
      %s2714 = scalar_lea.vmem %s300, 288
      %2715 = vst.msk [vmem:[%s2714] sm:$0xf] %vm502, %v2710
      %2716 = vst.msk [vmem:[%s2714 + $0x4] sm:$0xf] %vm502, %v2711
      %2717 = vst.msk [vmem:[%s2714 + $0x8] sm:$0xf] %vm502, %v2712
      %2718 = vst.msk [vmem:[%s2714 + $0xc] sm:$0xf] %vm502, %v2713
      %v2719 = vld [vmem:[%s279 + $0x8] sm:$0x2]
      %v2720 = vld [vmem:[%s279 + $0x14] sm:$0x2]
      %v2721 = vld [vmem:[%s279 + $0x20] sm:$0x2]
      %v2722 = vld [vmem:[%s279 + $0x2c] sm:$0x2]
      %v2723 = vld [vmem:[%s289 + $0x8] sm:$0x2]
      %v2724 = vld [vmem:[%s289 + $0x14] sm:$0x2]
      %v2725 = vld [vmem:[%s289 + $0x20] sm:$0x2]
      %v2726 = vld [vmem:[%s289 + $0x2c] sm:$0x2]
      %v2731 = vunpack.c.l.b16 %v2719
      %v2732 = vunpack.c.l.b16 %v2720
      %v2733 = vunpack.c.l.b16 %v2721
      %v2734 = vunpack.c.l.b16 %v2722
      %v2735 = vpack.c.b16 %v2731, %v2731
      %v2736 = vpack.c.b16 %v2732, %v2732
      %v2737 = vpack.c.b16 %v2733, %v2733
      %v2738 = vpack.c.b16 %v2734, %v2734
      %v2739 = vunpack.c.l.b16 %v2735
      %v2740 = vunpack.c.l.b16 %v2736
      %v2741 = vunpack.c.l.b16 %v2737
      %v2742 = vunpack.c.l.b16 %v2738
      %v2743 = vrot.slane %v2739, 3
      %v2744 = vrot.slane %v2740, 2
      %v2745 = vsel %vm340, %v2744, %v2743
      %v2746 = vrot.slane %v2741, 1
      %v2747 = vsel %vm343, %v2746, %v2745
      %v2748 = vsel %vm346, %v2742, %v2747
      %v2749 = vpack.c.b16 %v2748, %v2748
      %v2750 = vrot.slane %v2739, 7
      %v2751 = vrot.slane %v2740, 6
      %v2752 = vsel %vm351, %v2751, %v2750
      %v2753 = vrot.slane %v2741, 5
      %v2754 = vsel %vm354, %v2753, %v2752
      %v2755 = vrot.slane %v2742, 4
      %v2756 = vsel %vm357, %v2755, %v2754
      %v2757 = vpack.c.b16 %v2756, %v2756
      %2758 = vrot.lane.b32.xlu0 %v2757, 127
      %v2759 = vpop.permute.xlu0 %2758
      %v2764 = vunpack.c.l.b16 %v2723
      %v2765 = vunpack.c.l.b16 %v2724
      %v2766 = vunpack.c.l.b16 %v2725
      %v2767 = vunpack.c.l.b16 %v2726
      %v2768 = vpack.c.b16 %v2764, %v2764
      %v2769 = vpack.c.b16 %v2765, %v2765
      %v2770 = vpack.c.b16 %v2766, %v2766
      %v2771 = vpack.c.b16 %v2767, %v2767
      %v2772 = vunpack.c.l.b16 %v2768
      %v2773 = vunpack.c.l.b16 %v2769
      %v2774 = vunpack.c.l.b16 %v2770
      %v2775 = vunpack.c.l.b16 %v2771
      %v2776 = vrot.slane %v2772, 3
      %v2777 = vrot.slane %v2773, 2
      %v2778 = vsel %vm340, %v2777, %v2776
      %v2779 = vrot.slane %v2774, 1
      %v2780 = vsel %vm343, %v2779, %v2778
      %v2781 = vsel %vm346, %v2775, %v2780
      %v2782 = vpack.c.b16 %v2781, %v2781
      %v2783 = vrot.slane %v2772, 7
      %v2784 = vrot.slane %v2773, 6
      %v2785 = vsel %vm351, %v2784, %v2783
      %v2786 = vrot.slane %v2774, 5
      %v2787 = vsel %vm354, %v2786, %v2785
      %v2788 = vrot.slane %v2775, 4
      %v2789 = vsel %vm357, %v2788, %v2787
      %v2790 = vpack.c.b16 %v2789, %v2789
      %2791 = vrot.lane.b32.xlu0 %v2790, 127
      %v2792 = vpop.permute.xlu0 %2791
      %v2795 = vsel %vm399, %v2749, %v2759
      %v2797 = vsel %vm403, %v2795, %v2782
      %v2799 = vsel %vm406, %v2797, %v2792
      %2801 = vmatpush.bf16.msra.mxu0 0
      %2802 = vmatpush.bf16.msra.mxu0 0
      %2803 = vmatpush.bf16.msra.mxu0 0
      %2804 = vmatpush.bf16.msra.mxu0 0
      %2805 = vmatpush.bf16.msra.mxu0 0
      %2806 = vmatpush.bf16.msra.mxu0 0
      %2807 = vmatpush.bf16.msra.mxu0 0
      %2808 = vmatpush.bf16.msra.mxu0 %v2799
      %2809 = vmatmul.bf16.gmra.mxu0 %v422
      %v2810 = vpop.f32.mrf.mxu0
      %v2811 = vadd.f32 0.0, %v2810
      %v2812 = vpop.f32.mrf.mxu0
      %v2813 = vadd.f32 0.0, %v2812
      %2814 = vmatmul.bf16.gmra.mxu0 %v425
      %v2815 = vpop.f32.mrf.mxu0
      %v2816 = vadd.f32 0.0, %v2815
      %v2817 = vpop.f32.mrf.mxu0
      %v2818 = vadd.f32 0.0, %v2817
      %2819 = vdwg.mxu0
      %v2820 = vmul.f32 %v2811, %v449
      %v2821 = vmul.f32 %v2813, %v454
      %v2822 = vmul.f32 %v2816, %v459
      %v2823 = vmul.f32 %v2818, %v464
      %v2824 = vadd.f32 %v2820, %v473
      %v2825 = vadd.f32 %v2821, %v478
      %v2826 = vadd.f32 %v2822, %v483
      %v2827 = vadd.f32 %v2823, %v488
      %v2828 = vmax.f32 %v2824, 0.0
      %v2829 = vmax.f32 %v2825, 0.0
      %v2830 = vmax.f32 %v2826, 0.0
      %v2831 = vmax.f32 %v2827, 0.0
      %v2832 = vpack.c.bf16 %v2828, %v2828
      %v2833 = vpack.c.bf16 %v2829, %v2829
      %v2834 = vpack.c.bf16 %v2830, %v2830
      %v2835 = vpack.c.bf16 %v2831, %v2831
      %s2836 = scalar_lea.vmem %s300, 304
      %2837 = vst.msk [vmem:[%s2836] sm:$0xf] %vm502, %v2832
      %2838 = vst.msk [vmem:[%s2836 + $0x4] sm:$0xf] %vm502, %v2833
      %2839 = vst.msk [vmem:[%s2836 + $0x8] sm:$0xf] %vm502, %v2834
      %2840 = vst.msk [vmem:[%s2836 + $0xc] sm:$0xf] %vm502, %v2835
      %v2841 = vld [vmem:[%s279 + $0x8] sm:$0x4]
      %v2842 = vld [vmem:[%s279 + $0x14] sm:$0x4]
      %v2843 = vld [vmem:[%s279 + $0x20] sm:$0x4]
      %v2844 = vld [vmem:[%s279 + $0x2c] sm:$0x4]
      %v2845 = vld [vmem:[%s289 + $0x8] sm:$0x4]
      %v2846 = vld [vmem:[%s289 + $0x14] sm:$0x4]
      %v2847 = vld [vmem:[%s289 + $0x20] sm:$0x4]
      %v2848 = vld [vmem:[%s289 + $0x2c] sm:$0x4]
      %v2853 = vunpack.c.l.b16 %v2841
      %v2854 = vunpack.c.l.b16 %v2842
      %v2855 = vunpack.c.l.b16 %v2843
      %v2856 = vunpack.c.l.b16 %v2844
      %v2857 = vpack.c.b16 %v2853, %v2853
      %v2858 = vpack.c.b16 %v2854, %v2854
      %v2859 = vpack.c.b16 %v2855, %v2855
      %v2860 = vpack.c.b16 %v2856, %v2856
      %v2861 = vunpack.c.l.b16 %v2857
      %v2862 = vunpack.c.l.b16 %v2858
      %v2863 = vunpack.c.l.b16 %v2859
      %v2864 = vunpack.c.l.b16 %v2860
      %v2865 = vrot.slane %v2861, 4
      %v2866 = vrot.slane %v2862, 3
      %v2867 = vsel %vm340, %v2866, %v2865
      %v2868 = vrot.slane %v2863, 2
      %v2869 = vsel %vm343, %v2868, %v2867
      %v2870 = vrot.slane %v2864, 1
      %v2871 = vsel %vm346, %v2870, %v2869
      %v2872 = vpack.c.b16 %v2871, %v2871
      %v2873 = vrot.slane %v2862, 7
      %v2874 = vsel %vm351, %v2873, %v2861
      %v2875 = vrot.slane %v2863, 6
      %v2876 = vsel %vm354, %v2875, %v2874
      %v2877 = vrot.slane %v2864, 5
      %v2878 = vsel %vm357, %v2877, %v2876
      %v2879 = vpack.c.b16 %v2878, %v2878
      %2880 = vrot.lane.b32.xlu0 %v2879, 127
      %v2881 = vpop.permute.xlu0 %2880
      %v2886 = vunpack.c.l.b16 %v2845
      %v2887 = vunpack.c.l.b16 %v2846
      %v2888 = vunpack.c.l.b16 %v2847
      %v2889 = vunpack.c.l.b16 %v2848
      %v2890 = vpack.c.b16 %v2886, %v2886
      %v2891 = vpack.c.b16 %v2887, %v2887
      %v2892 = vpack.c.b16 %v2888, %v2888
      %v2893 = vpack.c.b16 %v2889, %v2889
      %v2894 = vunpack.c.l.b16 %v2890
      %v2895 = vunpack.c.l.b16 %v2891
      %v2896 = vunpack.c.l.b16 %v2892
      %v2897 = vunpack.c.l.b16 %v2893
      %v2898 = vrot.slane %v2894, 4
      %v2899 = vrot.slane %v2895, 3
      %v2900 = vsel %vm340, %v2899, %v2898
      %v2901 = vrot.slane %v2896, 2
      %v2902 = vsel %vm343, %v2901, %v2900
      %v2903 = vrot.slane %v2897, 1
      %v2904 = vsel %vm346, %v2903, %v2902
      %v2905 = vpack.c.b16 %v2904, %v2904
      %v2906 = vunpack.c.h.b16 %v2890
      %v2907 = vunpack.c.h.b16 %v2891
      %v2908 = vunpack.c.h.b16 %v2892
      %v2909 = vunpack.c.h.b16 %v2893
      %v2910 = vrot.slane %v2907, 7
      %v2911 = vsel %vm351, %v2910, %v2906
      %v2912 = vrot.slane %v2908, 6
      %v2913 = vsel %vm354, %v2912, %v2911
      %v2914 = vrot.slane %v2909, 5
      %v2915 = vsel %vm357, %v2914, %v2913
      %v2916 = vpack.c.b16 %v2915, %v2915
      %2917 = vrot.lane.b32.xlu0 %v2916, 127
      %v2918 = vpop.permute.xlu0 %2917
      %v2921 = vsel %vm399, %v2872, %v2881
      %v2923 = vsel %vm403, %v2921, %v2905
      %v2925 = vsel %vm406, %v2923, %v2918
      %2927 = vmatpush.bf16.msra.mxu0 0
      %2928 = vmatpush.bf16.msra.mxu0 0
      %2929 = vmatpush.bf16.msra.mxu0 0
      %2930 = vmatpush.bf16.msra.mxu0 0
      %2931 = vmatpush.bf16.msra.mxu0 0
      %2932 = vmatpush.bf16.msra.mxu0 0
      %2933 = vmatpush.bf16.msra.mxu0 0
      %2934 = vmatpush.bf16.msra.mxu0 %v2925
      %2935 = vmatmul.bf16.gmra.mxu0 %v422
      %v2936 = vpop.f32.mrf.mxu0
      %v2937 = vadd.f32 0.0, %v2936
      %v2938 = vpop.f32.mrf.mxu0
      %v2939 = vadd.f32 0.0, %v2938
      %2940 = vmatmul.bf16.gmra.mxu0 %v425
      %v2941 = vpop.f32.mrf.mxu0
      %v2942 = vadd.f32 0.0, %v2941
      %v2943 = vpop.f32.mrf.mxu0
      %v2944 = vadd.f32 0.0, %v2943
      %2945 = vdwg.mxu0
      %v2946 = vmul.f32 %v2937, %v449
      %v2947 = vmul.f32 %v2939, %v454
      %v2948 = vmul.f32 %v2942, %v459
      %v2949 = vmul.f32 %v2944, %v464
      %v2950 = vadd.f32 %v2946, %v473
      %v2951 = vadd.f32 %v2947, %v478
      %v2952 = vadd.f32 %v2948, %v483
      %v2953 = vadd.f32 %v2949, %v488
      %v2954 = vmax.f32 %v2950, 0.0
      %v2955 = vmax.f32 %v2951, 0.0
      %v2956 = vmax.f32 %v2952, 0.0
      %v2957 = vmax.f32 %v2953, 0.0
      %v2958 = vpack.c.bf16 %v2954, %v2954
      %v2959 = vpack.c.bf16 %v2955, %v2955
      %v2960 = vpack.c.bf16 %v2956, %v2956
      %v2961 = vpack.c.bf16 %v2957, %v2957
      %s2962 = scalar_lea.vmem %s300, 320
      %2963 = vst.msk [vmem:[%s2962] sm:$0xf] %vm502, %v2958
      %2964 = vst.msk [vmem:[%s2962 + $0x4] sm:$0xf] %vm502, %v2959
      %2965 = vst.msk [vmem:[%s2962 + $0x8] sm:$0xf] %vm502, %v2960
      %2966 = vst.msk [vmem:[%s2962 + $0xc] sm:$0xf] %vm502, %v2961
      %v2967 = vld [vmem:[%s279 + $0x8] sm:$0x4]
      %v2968 = vld [vmem:[%s279 + $0x14] sm:$0x4]
      %v2969 = vld [vmem:[%s279 + $0x20] sm:$0x4]
      %v2970 = vld [vmem:[%s279 + $0x2c] sm:$0x4]
      %v2971 = vld [vmem:[%s289 + $0x8] sm:$0x4]
      %v2972 = vld [vmem:[%s289 + $0x14] sm:$0x4]
      %v2973 = vld [vmem:[%s289 + $0x20] sm:$0x4]
      %v2974 = vld [vmem:[%s289 + $0x2c] sm:$0x4]
      %v2979 = vunpack.c.l.b16 %v2967
      %v2980 = vunpack.c.l.b16 %v2968
      %v2981 = vunpack.c.l.b16 %v2969
      %v2982 = vunpack.c.l.b16 %v2970
      %v2983 = vpack.c.b16 %v2979, %v2979
      %v2984 = vpack.c.b16 %v2980, %v2980
      %v2985 = vpack.c.b16 %v2981, %v2981
      %v2986 = vpack.c.b16 %v2982, %v2982
      %v2987 = vunpack.c.l.b16 %v2983
      %v2988 = vunpack.c.l.b16 %v2984
      %v2989 = vunpack.c.l.b16 %v2985
      %v2990 = vunpack.c.l.b16 %v2986
      %v2991 = vrot.slane %v2987, 5
      %v2992 = vrot.slane %v2988, 4
      %v2993 = vsel %vm340, %v2992, %v2991
      %v2994 = vrot.slane %v2989, 3
      %v2995 = vsel %vm343, %v2994, %v2993
      %v2996 = vrot.slane %v2990, 2
      %v2997 = vsel %vm346, %v2996, %v2995
      %v2998 = vpack.c.b16 %v2997, %v2997
      %v2999 = vrot.slane %v2987, 1
      %v3000 = vsel %vm351, %v2988, %v2999
      %v3001 = vrot.slane %v2989, 7
      %v3002 = vsel %vm354, %v3001, %v3000
      %v3003 = vrot.slane %v2990, 6
      %v3004 = vsel %vm357, %v3003, %v3002
      %v3005 = vpack.c.b16 %v3004, %v3004
      %3006 = vrot.lane.b32.xlu0 %v3005, 127
      %v3007 = vpop.permute.xlu0 %3006
      %v3012 = vunpack.c.l.b16 %v2971
      %v3013 = vunpack.c.l.b16 %v2972
      %v3014 = vunpack.c.l.b16 %v2973
      %v3015 = vunpack.c.l.b16 %v2974
      %v3016 = vpack.c.b16 %v3012, %v3012
      %v3017 = vpack.c.b16 %v3013, %v3013
      %v3018 = vpack.c.b16 %v3014, %v3014
      %v3019 = vpack.c.b16 %v3015, %v3015
      %v3020 = vunpack.c.l.b16 %v3016
      %v3021 = vunpack.c.l.b16 %v3017
      %v3022 = vunpack.c.l.b16 %v3018
      %v3023 = vunpack.c.l.b16 %v3019
      %v3024 = vrot.slane %v3020, 5
      %v3025 = vrot.slane %v3021, 4
      %v3026 = vsel %vm340, %v3025, %v3024
      %v3027 = vrot.slane %v3022, 3
      %v3028 = vsel %vm343, %v3027, %v3026
      %v3029 = vrot.slane %v3023, 2
      %v3030 = vsel %vm346, %v3029, %v3028
      %v3031 = vpack.c.b16 %v3030, %v3030
      %v3032 = vrot.slane %v3020, 1
      %v3033 = vsel %vm351, %v3021, %v3032
      %v3034 = vrot.slane %v3022, 7
      %v3035 = vsel %vm354, %v3034, %v3033
      %v3036 = vrot.slane %v3023, 6
      %v3037 = vsel %vm357, %v3036, %v3035
      %v3038 = vpack.c.b16 %v3037, %v3037
      %3039 = vrot.lane.b32.xlu0 %v3038, 127
      %v3040 = vpop.permute.xlu0 %3039
      %v3043 = vsel %vm399, %v2998, %v3007
      %v3045 = vsel %vm403, %v3043, %v3031
      %v3047 = vsel %vm406, %v3045, %v3040
      %3049 = vmatpush.bf16.msra.mxu0 0
      %3050 = vmatpush.bf16.msra.mxu0 0
      %3051 = vmatpush.bf16.msra.mxu0 0
      %3052 = vmatpush.bf16.msra.mxu0 0
      %3053 = vmatpush.bf16.msra.mxu0 0
      %3054 = vmatpush.bf16.msra.mxu0 0
      %3055 = vmatpush.bf16.msra.mxu0 0
      %3056 = vmatpush.bf16.msra.mxu0 %v3047
      %3057 = vmatmul.bf16.gmra.mxu0 %v422
      %v3058 = vpop.f32.mrf.mxu0
      %v3059 = vadd.f32 0.0, %v3058
      %v3060 = vpop.f32.mrf.mxu0
      %v3061 = vadd.f32 0.0, %v3060
      %3062 = vmatmul.bf16.gmra.mxu0 %v425
      %v3063 = vpop.f32.mrf.mxu0
      %v3064 = vadd.f32 0.0, %v3063
      %v3065 = vpop.f32.mrf.mxu0
      %v3066 = vadd.f32 0.0, %v3065
      %3067 = vdwg.mxu0
      %v3068 = vmul.f32 %v3059, %v449
      %v3069 = vmul.f32 %v3061, %v454
      %v3070 = vmul.f32 %v3064, %v459
      %v3071 = vmul.f32 %v3066, %v464
      %v3072 = vadd.f32 %v3068, %v473
      %v3073 = vadd.f32 %v3069, %v478
      %v3074 = vadd.f32 %v3070, %v483
      %v3075 = vadd.f32 %v3071, %v488
      %v3076 = vmax.f32 %v3072, 0.0
      %v3077 = vmax.f32 %v3073, 0.0
      %v3078 = vmax.f32 %v3074, 0.0
      %v3079 = vmax.f32 %v3075, 0.0
      %v3080 = vpack.c.bf16 %v3076, %v3076
      %v3081 = vpack.c.bf16 %v3077, %v3077
      %v3082 = vpack.c.bf16 %v3078, %v3078
      %v3083 = vpack.c.bf16 %v3079, %v3079
      %s3084 = scalar_lea.vmem %s300, 336
      %3085 = vst.msk [vmem:[%s3084] sm:$0xf] %vm502, %v3080
      %3086 = vst.msk [vmem:[%s3084 + $0x4] sm:$0xf] %vm502, %v3081
      %3087 = vst.msk [vmem:[%s3084 + $0x8] sm:$0xf] %vm502, %v3082
      %3088 = vst.msk [vmem:[%s3084 + $0xc] sm:$0xf] %vm502, %v3083
      %v3089 = vld [vmem:[%s279 + $0x8] sm:$0x8]
      %v3090 = vld [vmem:[%s279 + $0x14] sm:$0x8]
      %v3091 = vld [vmem:[%s279 + $0x20] sm:$0x8]
      %v3092 = vld [vmem:[%s279 + $0x2c] sm:$0x8]
      %v3093 = vld [vmem:[%s289 + $0x8] sm:$0x8]
      %v3094 = vld [vmem:[%s289 + $0x14] sm:$0x8]
      %v3095 = vld [vmem:[%s289 + $0x20] sm:$0x8]
      %v3096 = vld [vmem:[%s289 + $0x2c] sm:$0x8]
      %v3101 = vunpack.c.l.b16 %v3089
      %v3102 = vunpack.c.l.b16 %v3090
      %v3103 = vunpack.c.l.b16 %v3091
      %v3104 = vunpack.c.l.b16 %v3092
      %v3105 = vpack.c.b16 %v3101, %v3101
      %v3106 = vpack.c.b16 %v3102, %v3102
      %v3107 = vpack.c.b16 %v3103, %v3103
      %v3108 = vpack.c.b16 %v3104, %v3104
      %v3109 = vunpack.c.l.b16 %v3105
      %v3110 = vunpack.c.l.b16 %v3106
      %v3111 = vunpack.c.l.b16 %v3107
      %v3112 = vunpack.c.l.b16 %v3108
      %v3113 = vrot.slane %v3109, 6
      %v3114 = vrot.slane %v3110, 5
      %v3115 = vsel %vm340, %v3114, %v3113
      %v3116 = vrot.slane %v3111, 4
      %v3117 = vsel %vm343, %v3116, %v3115
      %v3118 = vrot.slane %v3112, 3
      %v3119 = vsel %vm346, %v3118, %v3117
      %v3120 = vpack.c.b16 %v3119, %v3119
      %v3121 = vrot.slane %v3109, 2
      %v3122 = vrot.slane %v3110, 1
      %v3123 = vsel %vm351, %v3122, %v3121
      %v3124 = vsel %vm354, %v3111, %v3123
      %v3125 = vrot.slane %v3112, 7
      %v3126 = vsel %vm357, %v3125, %v3124
      %v3127 = vpack.c.b16 %v3126, %v3126
      %3128 = vrot.lane.b32.xlu0 %v3127, 127
      %v3129 = vpop.permute.xlu0 %3128
      %v3134 = vunpack.c.l.b16 %v3093
      %v3135 = vunpack.c.l.b16 %v3094
      %v3136 = vunpack.c.l.b16 %v3095
      %v3137 = vunpack.c.l.b16 %v3096
      %v3138 = vpack.c.b16 %v3134, %v3134
      %v3139 = vpack.c.b16 %v3135, %v3135
      %v3140 = vpack.c.b16 %v3136, %v3136
      %v3141 = vpack.c.b16 %v3137, %v3137
      %v3142 = vunpack.c.l.b16 %v3138
      %v3143 = vunpack.c.l.b16 %v3139
      %v3144 = vunpack.c.l.b16 %v3140
      %v3145 = vunpack.c.l.b16 %v3141
      %v3146 = vrot.slane %v3142, 6
      %v3147 = vrot.slane %v3143, 5
      %v3148 = vsel %vm340, %v3147, %v3146
      %v3149 = vrot.slane %v3144, 4
      %v3150 = vsel %vm343, %v3149, %v3148
      %v3151 = vrot.slane %v3145, 3
      %v3152 = vsel %vm346, %v3151, %v3150
      %v3153 = vpack.c.b16 %v3152, %v3152
      %v3154 = vrot.slane %v3142, 2
      %v3155 = vrot.slane %v3143, 1
      %v3156 = vsel %vm351, %v3155, %v3154
      %v3157 = vsel %vm354, %v3144, %v3156
      %v3158 = vrot.slane %v3145, 7
      %v3159 = vsel %vm357, %v3158, %v3157
      %v3160 = vpack.c.b16 %v3159, %v3159
      %3161 = vrot.lane.b32.xlu0 %v3160, 127
      %v3162 = vpop.permute.xlu0 %3161
      %v3165 = vsel %vm399, %v3120, %v3129
      %v3167 = vsel %vm403, %v3165, %v3153
      %v3169 = vsel %vm406, %v3167, %v3162
      %3171 = vmatpush.bf16.msra.mxu0 0
      %3172 = vmatpush.bf16.msra.mxu0 0
      %3173 = vmatpush.bf16.msra.mxu0 0
      %3174 = vmatpush.bf16.msra.mxu0 0
      %3175 = vmatpush.bf16.msra.mxu0 0
      %3176 = vmatpush.bf16.msra.mxu0 0
      %3177 = vmatpush.bf16.msra.mxu0 0
      %3178 = vmatpush.bf16.msra.mxu0 %v3169
      %3179 = vmatmul.bf16.gmra.mxu0 %v422
      %v3180 = vpop.f32.mrf.mxu0
      %v3181 = vadd.f32 0.0, %v3180
      %v3182 = vpop.f32.mrf.mxu0
      %v3183 = vadd.f32 0.0, %v3182
      %3184 = vmatmul.bf16.gmra.mxu0 %v425
      %v3185 = vpop.f32.mrf.mxu0
      %v3186 = vadd.f32 0.0, %v3185
      %v3187 = vpop.f32.mrf.mxu0
      %v3188 = vadd.f32 0.0, %v3187
      %3189 = vdwg.mxu0
      %v3190 = vmul.f32 %v3181, %v449
      %v3191 = vmul.f32 %v3183, %v454
      %v3192 = vmul.f32 %v3186, %v459
      %v3193 = vmul.f32 %v3188, %v464
      %v3194 = vadd.f32 %v3190, %v473
      %v3195 = vadd.f32 %v3191, %v478
      %v3196 = vadd.f32 %v3192, %v483
      %v3197 = vadd.f32 %v3193, %v488
      %v3198 = vmax.f32 %v3194, 0.0
      %v3199 = vmax.f32 %v3195, 0.0
      %v3200 = vmax.f32 %v3196, 0.0
      %v3201 = vmax.f32 %v3197, 0.0
      %v3202 = vpack.c.bf16 %v3198, %v3198
      %v3203 = vpack.c.bf16 %v3199, %v3199
      %v3204 = vpack.c.bf16 %v3200, %v3200
      %v3205 = vpack.c.bf16 %v3201, %v3201
      %s3206 = scalar_lea.vmem %s300, 352
      %3207 = vst.msk [vmem:[%s3206] sm:$0xf] %vm502, %v3202
      %3208 = vst.msk [vmem:[%s3206 + $0x4] sm:$0xf] %vm502, %v3203
      %3209 = vst.msk [vmem:[%s3206 + $0x8] sm:$0xf] %vm502, %v3204
      %3210 = vst.msk [vmem:[%s3206 + $0xc] sm:$0xf] %vm502, %v3205
      %v3211 = vld [vmem:[%s279 + $0x8] sm:$0x8]
      %v3212 = vld [vmem:[%s279 + $0x14] sm:$0x8]
      %v3213 = vld [vmem:[%s279 + $0x20] sm:$0x8]
      %v3214 = vld [vmem:[%s279 + $0x2c] sm:$0x8]
      %v3215 = vld [vmem:[%s289 + $0x8] sm:$0x8]
      %v3216 = vld [vmem:[%s289 + $0x14] sm:$0x8]
      %v3217 = vld [vmem:[%s289 + $0x20] sm:$0x8]
      %v3218 = vld [vmem:[%s289 + $0x2c] sm:$0x8]
      %v3223 = vunpack.c.l.b16 %v3211
      %v3224 = vunpack.c.l.b16 %v3212
      %v3225 = vunpack.c.l.b16 %v3213
      %v3226 = vunpack.c.l.b16 %v3214
      %v3227 = vpack.c.b16 %v3223, %v3223
      %v3228 = vpack.c.b16 %v3224, %v3224
      %v3229 = vpack.c.b16 %v3225, %v3225
      %v3230 = vpack.c.b16 %v3226, %v3226
      %v3231 = vunpack.c.l.b16 %v3227
      %v3232 = vunpack.c.l.b16 %v3228
      %v3233 = vunpack.c.l.b16 %v3229
      %v3234 = vunpack.c.l.b16 %v3230
      %v3235 = vrot.slane %v3231, 7
      %v3236 = vrot.slane %v3232, 6
      %v3237 = vsel %vm340, %v3236, %v3235
      %v3238 = vrot.slane %v3233, 5
      %v3239 = vsel %vm343, %v3238, %v3237
      %v3240 = vrot.slane %v3234, 4
      %v3241 = vsel %vm346, %v3240, %v3239
      %v3242 = vpack.c.b16 %v3241, %v3241
      %v3243 = vrot.slane %v3231, 3
      %v3244 = vrot.slane %v3232, 2
      %v3245 = vsel %vm351, %v3244, %v3243
      %v3246 = vrot.slane %v3233, 1
      %v3247 = vsel %vm354, %v3246, %v3245
      %v3248 = vsel %vm357, %v3234, %v3247
      %v3249 = vpack.c.b16 %v3248, %v3248
      %3250 = vrot.lane.b32.xlu0 %v3249, 127
      %v3251 = vpop.permute.xlu0 %3250
      %v3256 = vunpack.c.l.b16 %v3215
      %v3257 = vunpack.c.l.b16 %v3216
      %v3258 = vunpack.c.l.b16 %v3217
      %v3259 = vunpack.c.l.b16 %v3218
      %v3260 = vpack.c.b16 %v3256, %v3256
      %v3261 = vpack.c.b16 %v3257, %v3257
      %v3262 = vpack.c.b16 %v3258, %v3258
      %v3263 = vpack.c.b16 %v3259, %v3259
      %v3264 = vunpack.c.l.b16 %v3260
      %v3265 = vunpack.c.l.b16 %v3261
      %v3266 = vunpack.c.l.b16 %v3262
      %v3267 = vunpack.c.l.b16 %v3263
      %v3268 = vrot.slane %v3264, 7
      %v3269 = vrot.slane %v3265, 6
      %v3270 = vsel %vm340, %v3269, %v3268
      %v3271 = vrot.slane %v3266, 5
      %v3272 = vsel %vm343, %v3271, %v3270
      %v3273 = vrot.slane %v3267, 4
      %v3274 = vsel %vm346, %v3273, %v3272
      %v3275 = vpack.c.b16 %v3274, %v3274
      %v3276 = vrot.slane %v3264, 3
      %v3277 = vrot.slane %v3265, 2
      %v3278 = vsel %vm351, %v3277, %v3276
      %v3279 = vrot.slane %v3266, 1
      %v3280 = vsel %vm354, %v3279, %v3278
      %v3281 = vsel %vm357, %v3267, %v3280
      %v3282 = vpack.c.b16 %v3281, %v3281
      %3283 = vrot.lane.b32.xlu0 %v3282, 127
      %v3284 = vpop.permute.xlu0 %3283
      %v3287 = vsel %vm399, %v3242, %v3251
      %v3289 = vsel %vm403, %v3287, %v3275
      %v3291 = vsel %vm406, %v3289, %v3284
      %3293 = vmatpush.bf16.msra.mxu0 0
      %3294 = vmatpush.bf16.msra.mxu0 0
      %3295 = vmatpush.bf16.msra.mxu0 0
      %3296 = vmatpush.bf16.msra.mxu0 0
      %3297 = vmatpush.bf16.msra.mxu0 0
      %3298 = vmatpush.bf16.msra.mxu0 0
      %3299 = vmatpush.bf16.msra.mxu0 0
      %3300 = vmatpush.bf16.msra.mxu0 %v3291
      %3301 = vmatmul.bf16.gmra.mxu0 %v422
      %v3302 = vpop.f32.mrf.mxu0
      %v3303 = vadd.f32 0.0, %v3302
      %v3304 = vpop.f32.mrf.mxu0
      %v3305 = vadd.f32 0.0, %v3304
      %3306 = vmatmul.bf16.gmra.mxu0 %v425
      %v3307 = vpop.f32.mrf.mxu0
      %v3308 = vadd.f32 0.0, %v3307
      %v3309 = vpop.f32.mrf.mxu0
      %v3310 = vadd.f32 0.0, %v3309
      %3311 = vdwg.mxu0
      %v3312 = vmul.f32 %v3303, %v449
      %v3313 = vmul.f32 %v3305, %v454
      %v3314 = vmul.f32 %v3308, %v459
      %v3315 = vmul.f32 %v3310, %v464
      %v3316 = vadd.f32 %v3312, %v473
      %v3317 = vadd.f32 %v3313, %v478
      %v3318 = vadd.f32 %v3314, %v483
      %v3319 = vadd.f32 %v3315, %v488
      %v3320 = vmax.f32 %v3316, 0.0
      %v3321 = vmax.f32 %v3317, 0.0
      %v3322 = vmax.f32 %v3318, 0.0
      %v3323 = vmax.f32 %v3319, 0.0
      %v3324 = vpack.c.bf16 %v3320, %v3320
      %v3325 = vpack.c.bf16 %v3321, %v3321
      %v3326 = vpack.c.bf16 %v3322, %v3322
      %v3327 = vpack.c.bf16 %v3323, %v3323
      %s3328 = scalar_lea.vmem %s300, 368
      %3329 = vst.msk [vmem:[%s3328] sm:$0xf] %vm502, %v3324
      %3330 = vst.msk [vmem:[%s3328 + $0x4] sm:$0xf] %vm502, %v3325
      %3331 = vst.msk [vmem:[%s3328 + $0x8] sm:$0xf] %vm502, %v3326
      %3332 = vst.msk [vmem:[%s3328 + $0xc] sm:$0xf] %vm502, %v3327
      %s3333 = smul.u32 24, %s21
      %p3334 = scmp.lt.s32.totalorder %s20, 1
      %s3335 = scalar_select %p3334, %s20, 1
      %p3336 = scmp.lt.s32.totalorder %s3333, 23
      %s3337 = scalar_select %p3336, %s3333, 23
      %s3338 = smul.addr %s3337, 4
      %s3339 = smul.addr %s3335, 96
      %s3340 = sadd.s32 %s3338, %s3339
      %s3341 = smul.addr %s3340, 4
      %s3342 = scalar_lea.vmem %s5, %s3341
      // Predicated region
      $region41: #{upconv_block_forward.3} parent=39 // pred_check
        %p3343 = pneg %p167
      $region42: #{upconv_block_forward.3} parent=39 // pred_check_branch
        %3345 = sbr.rel (%p3343) target = $region44
      $region43: #{upconv_block_forward.3} parent=39 // pred_region
        %s3346 = smul.u32 24, %s21
      $region44: #{upconv_block_forward.3} parent=39 // pred_fallthru
        _
    $region40: #{upconv_block_forward.3} parent=5 // pred_fallthru
      _
    %p3347 = scmp.le.s32.totalorder 2, %s11
    // Predicated region
    $region45: #{upconv_block_forward.3} parent=5 // pred_check
      %p3348 = pneg %p3347
    $region46: #{upconv_block_forward.3} parent=5 // pred_check_branch
      %3350 = sbr.rel (%p3348) target = $region48
    $region47: #{upconv_block_forward.3} parent=5 // pred_region
      %s3351 = ssub.s32 %s11, 2
      // Predicated region
      $region49: #{upconv_block_forward.3} parent=47 // pred_check
        %p3352 = pneg %p173
      $region50: #{upconv_block_forward.3} parent=47 // pred_check_branch
        %3354 = sbr.rel (%p3352) target = $region52
      $region51: #{upconv_block_forward.3} parent=47 // pred_region
        %s3355 = smul.u32 24, %s23
        %p3356 = scmp.lt.s32.totalorder %s22, 1
        %s3357 = scalar_select %p3356, %s22, 1
        %p3358 = scmp.lt.s32.totalorder %s3355, 23
        %s3359 = scalar_select %p3358, %s3355, 23
        %s3360 = smul.addr %s3359, 4
        %s3361 = smul.addr %s3357, 96
        %s3362 = sadd.s32 %s3360, %s3361
        %s3363 = smul.addr %s3362, 4
        %s3364 = scalar_lea.vmem %s5, %s3363
      $region52: #{upconv_block_forward.3} parent=47 // pred_fallthru
        _
    $region48: #{upconv_block_forward.3} parent=5 // pred_fallthru
      _
  $region6: #{upconv_block_forward.3} parent=0 // loop_footer
    %s15 = sadd.s32 1, %s11
  $region7: #{upconv_block_forward.3} parent=0 // loop_footer_branch
    %10 = sbr.rel target = $region3
  $region8: #{upconv_block_forward.3} parent=0 // loop_exit
    _

</llo_original>
